<compile_context>
chip_gen: v6e
topology: v6e:2x2x1
jax: 0.10.0
libtpu: 0.0.40
codegen_flags: <defaults>
</compile_context>

<pallas_src>
import functools
import math

import jax
import jax.numpy as jnp
from jax.experimental import pallas as pl
from jax.experimental.pallas import tpu as pltpu

_LN_EPS = 1e-6
_MASK_NEG = -1e9


# ---------------------------------------------------------------------------
# In-kernel building blocks (all operate on the packed (S/G, G*H) activation)
# ---------------------------------------------------------------------------

def _ln(z, gam, bet, pmean, pvar, eps):
    """Per-original-row LayerNorm on the packed activation.

    pmean / pvar are block-diagonal (G*H, G*H) constants that broadcast the
    per-H-segment mean / unbiased variance to every lane of its segment, so the
    cross-lane reductions run on the MXU and the op stays 128-lane dense.
    """
    mu = jnp.dot(z, pmean, preferred_element_type=jnp.float32)
    d = z - mu
    var = jnp.dot(d * d, pvar, preferred_element_type=jnp.float32)
    return gam * (d / (jnp.sqrt(var) + eps)) + bet


def _attn_ln(x, kv, neg, wq, bq, wk, bk, wv, bv, wm, bm, gam, bet,
             tq, mq, mv, rmat, pmean, pvar, eps):
    """LayerNorm(x + GMHAtt(v=kv, k=kv, q=x, mask)) on packed activations.

    x  : (Sq, P)  packed queries (also the residual), P = G*H.
    kv : (Sk, P)  packed keys/values (== x for self-attention).
    neg: (1, Sk)  additive mask bias (0 or -1e9), broadcast over all heads.
    wq/wk/wv/wm are block-diagonal (built at prep time) so each projection /
    the merge is ONE full-lane MXU matmul.  All NH = G*G*(dm/dh) heads share a
    single scores matmul / softmax / att@V matmul through the constant
    replicate (tq), head-select (mq, mv) and fold-back (rmat) matrices.
    1/sqrt(dk) is already folded into wq/bq.
    """
    qp = jnp.dot(x, wq, preferred_element_type=jnp.float32) + bq        # (Sq, Pq)
    kp = jnp.dot(kv, wk, preferred_element_type=jnp.float32) + bk       # (Sk, Pq)
    vp = jnp.dot(kv, wv, preferred_element_type=jnp.float32) + bv       # (Sk, P)

    # Row block i of qbig holds head i's dk query lanes (all other lanes 0).
    qbig = jnp.dot(tq, qp, preferred_element_type=jnp.float32) * mq     # (NH*Sq, Pq)
    sc = jax.lax.dot_general(qbig, kp, (((1,), (1,)), ((), ())),
                             preferred_element_type=jnp.float32)        # (NH*Sq, Sk)
    sc = sc + neg
    sc = sc - jnp.max(sc, axis=-1, keepdims=True)
    e = jnp.exp(sc)
    att = e / jnp.sum(e, axis=-1, keepdims=True)   # attn-map dropout: identity (eval)

    obig = jnp.dot(att, vp, preferred_element_type=jnp.float32)         # (NH*Sq, P)
    atted = jnp.dot(rmat, obig * mv, preferred_element_type=jnp.float32)  # (Sq, P)

    z = jnp.dot(atted, wm, preferred_element_type=jnp.float32) + bm + x
    return _ln(z, gam, bet, pmean, pvar, eps)


def _ffn_ln(x, w1, b1, w2, b2, gam, bet, pmean, pvar, eps):
    """LayerNorm(x + GFFN(x)); grouped linear2 is a block-diagonal matmul."""
    h1 = jnp.maximum(jnp.dot(x, w1, preferred_element_type=jnp.float32) + b1, 0.0)
    z = jnp.dot(h1, w2, preferred_element_type=jnp.float32) + b2 + x
    return _ln(z, gam, bet, pmean, pvar, eps)


# ---------------------------------------------------------------------------
# Fused encoder-stack kernel (all SA layers, one batch element per grid step)
# ---------------------------------------------------------------------------

def _enc_stack_kernel(y_ref, neg_ref, tq_ref, mq_ref, mv_ref, r_ref, pm_ref, pv_ref,
                      wq_ref, bq_ref, wk_ref, bk_ref, wv_ref, bv_ref, wm_ref, bm_ref,
                      g1_ref, be1_ref,
                      w1_ref, b1_ref, w2_ref, b2_ref,
                      g2_ref, be2_ref,
                      o_ref, act_ref, *, eps):
    layer = pl.program_id(1)

    @pl.when(layer == 0)
    def _():
        act_ref[...] = y_ref[0]

    x = act_ref[...]
    pm = pm_ref[...]
    pv = pv_ref[...]

    x = _attn_ln(x, x, neg_ref[0],
                 wq_ref[0], bq_ref[0], wk_ref[0], bk_ref[0],
                 wv_ref[0], bv_ref[0], wm_ref[0], bm_ref[0],
                 g1_ref[0], be1_ref[0],
                 tq_ref[...], mq_ref[...], mv_ref[...], r_ref[...], pm, pv, eps)
    x = _ffn_ln(x, w1_ref[0], b1_ref[0], w2_ref[0], b2_ref[0],
                g2_ref[0], be2_ref[0], pm, pv, eps)

    act_ref[...] = x

    @pl.when(layer == pl.num_programs(1) - 1)
    def _():
        o_ref[0] = x


# ---------------------------------------------------------------------------
# Fused decoder-stack kernel (all SGA layers, one batch element per grid step)
# ---------------------------------------------------------------------------

def _dec_stack_kernel(x_ref, y_ref, ngx_ref, ngy_ref, tq_ref, mq_ref, mv_ref, r_ref,
                      pm_ref, pv_ref,
                      wq1_ref, bq1_ref, wk1_ref, bk1_ref, wv1_ref, bv1_ref,
                      wm1_ref, bm1_ref, g1_ref, be1_ref,
                      wq2_ref, bq2_ref, wk2_ref, bk2_ref, wv2_ref, bv2_ref,
                      wm2_ref, bm2_ref, g2_ref, be2_ref,
                      w1_ref, b1_ref, w2_ref, b2_ref, g3_ref, be3_ref,
                      o_ref, act_ref, *, eps):
    layer = pl.program_id(1)

    @pl.when(layer == 0)
    def _():
        act_ref[...] = x_ref[0]

    x = act_ref[...]
    pm = pm_ref[...]
    pv = pv_ref[...]
    tq = tq_ref[...]
    mq = mq_ref[...]
    mv = mv_ref[...]
    rm = r_ref[...]

    # Self-attention on x (q = k = v).
    x = _attn_ln(x, x, ngx_ref[0],
                 wq1_ref[0], bq1_ref[0], wk1_ref[0], bk1_ref[0],
                 wv1_ref[0], bv1_ref[0], wm1_ref[0], bm1_ref[0],
                 g1_ref[0], be1_ref[0], tq, mq, mv, rm, pm, pv, eps)
    # Cross-attention (k = v = encoder output y, q = x).
    x = _attn_ln(x, y_ref[0], ngy_ref[0],
                 wq2_ref[0], bq2_ref[0], wk2_ref[0], bk2_ref[0],
                 wv2_ref[0], bv2_ref[0], wm2_ref[0], bm2_ref[0],
                 g2_ref[0], be2_ref[0], tq, mq, mv, rm, pm, pv, eps)
    x = _ffn_ln(x, w1_ref[0], b1_ref[0], w2_ref[0], b2_ref[0],
                g3_ref[0], be3_ref[0], pm, pv, eps)

    act_ref[...] = x

    @pl.when(layer == pl.num_programs(1) - 1)
    def _():
        o_ref[0] = x


# ---------------------------------------------------------------------------
# Host-side constants / parameter preparation (hoisted out of the forward)
# ---------------------------------------------------------------------------

def _block_diag(w, times):
    r, c = w.shape
    out = jnp.zeros((times * r, times * c), w.dtype)
    for t in range(times):
        out = out.at[t * r:(t + 1) * r, t * c:(t + 1) * c].set(w)
    return out


def _attn_consts(sq, cfg):
    """Constant head-packing matrices for an attention with Sq_eff = sq."""
    H, G = cfg["HIDDEN_SIZE"], cfg["GROUP"]
    n, dh = cfg["EXPAND"], cfg["MULTI_HEAD"]
    dm = H // G
    dk = dh * n
    hpp = dm // dh
    nh = G * G * hpp                       # total heads across all G*G combos
    P = G * H
    Pq = G * G * dm * n
    rows = jnp.arange(nh * sq)
    tq = (rows[:, None] % sq == jnp.arange(sq)[None, :]).astype(jnp.float32)
    mq = (rows[:, None] // sq == jnp.arange(Pq)[None, :] // dk).astype(jnp.float32)
    mv = (rows[:, None] // sq == jnp.arange(P)[None, :] // dh).astype(jnp.float32)
    rmat = (jnp.arange(sq)[:, None] == rows[None, :] % sq).astype(jnp.float32)
    return tq, mq, mv, rmat


def _ln_consts(cfg):
    H, G = cfg["HIDDEN_SIZE"], cfg["GROUP"]
    P = G * H
    blk = ((jnp.arange(P)[:, None] // H) == (jnp.arange(P)[None, :] // H))
    blk = blk.astype(jnp.float32)
    return blk / H, blk / (H - 1)


def prepare_params(params, cfg):
    """One-time weight prep: block-diagonal weights for the packed layout,
    tiled biases / LN affines, 1/sqrt(dk) folded into Wq, per-layer stacking."""
    G = cfg["GROUP"]
    n, dh = cfg["EXPAND"], cfg["MULTI_HEAD"]
    scale = 1.0 / math.sqrt(dh * n)

    def prep_attn(p):
        return {
            "wq": _block_diag(p["Wq"], G * G) * scale,
            "bq": jnp.tile(p["bq"], (1, G * G)) * scale,
            "wk": _block_diag(p["Wk"], G * G),
            "bk": jnp.tile(p["bk"], (1, G * G)),
            "wv": _block_diag(p["Wv"], G * G),
            "bv": jnp.tile(p["bv"], (1, G * G)),
            "wm": _block_diag(p["Wm"], G),
            "bm": jnp.tile(p["bm"], (1, G)),
        }

    def prep_ln(p):
        return {"g": jnp.tile(p["g"], (1, G)), "b": jnp.tile(p["b"], (1, G))}

    def prep_ffn(p):
        return {
            "w1": _block_diag(p["W1"], G),
            "b1": jnp.tile(p["b1"], (1, G)),
            "w2": _block_diag(p["W2"], G * G),
            "b2": jnp.tile(p["b2"], (1, G * G)),
        }

    def stack(ds):
        return {k: jnp.stack([d[k] for d in ds]) for k in ds[0]}

    enc = {
        "attn": stack([prep_attn(p["mhatt"]) for p in params["enc"]]),
        "ln1": stack([prep_ln(p["ln1"]) for p in params["enc"]]),
        "ffn": stack([prep_ffn(p["ffn"]) for p in params["enc"]]),
        "ln2": stack([prep_ln(p["ln2"]) for p in params["enc"]]),
    }
    dec = {
        "attn1": stack([prep_attn(p["mhatt1"]) for p in params["dec"]]),
        "ln1": stack([prep_ln(p["ln1"]) for p in params["dec"]]),
        "attn2": stack([prep_attn(p["mhatt2"]) for p in params["dec"]]),
        "ln2": stack([prep_ln(p["ln2"]) for p in params["dec"]]),
        "ffn": stack([prep_ffn(p["ffn"]) for p in params["dec"]]),
        "ln3": stack([prep_ln(p["ln3"]) for p in params["dec"]]),
    }
    return {"enc": enc, "dec": dec}


# ---------------------------------------------------------------------------
# pallas_call wrappers
# ---------------------------------------------------------------------------

def encoder_stack(y, y_mask_f, enc_p, cfg):
    B, Sy, H = y.shape
    G, FF = cfg["GROUP"], cfg["FF_SIZE"]
    assert Sy % G == 0 and H % G == 0
    Se = Sy // G
    P = G * H
    a, f = enc_p["attn"], enc_p["ffn"]
    l1, l2 = enc_p["ln1"], enc_p["ln2"]
    L = a["wq"].shape[0]
    Pq = a["wq"].shape[2]

    tq, mq, mv, rmat = _attn_consts(Se, cfg)
    pmean, pvar = _ln_consts(cfg)
    NHS = tq.shape[0]

    y_pk = y.reshape(B, Se, P)                              # free reshape
    neg = y_mask_f.reshape(B, 1, Se) * _MASK_NEG

    def batch_spec(sh):
        return pl.BlockSpec((1,) + sh, lambda b, l: (b, 0, 0))

    def const_spec(sh):
        return pl.BlockSpec(sh, lambda b, l: (0,) * len(sh))

    def layer_spec(sh):
        return pl.BlockSpec((1,) + sh, lambda b, l: (l, 0, 0))

    kernel = functools.partial(_enc_stack_kernel, eps=_LN_EPS)
    out = pl.pallas_call(
        kernel,
        out_shape=jax.ShapeDtypeStruct((B, Se, P), jnp.float32),
        grid=(B, L),
        in_specs=[
            batch_spec((Se, P)),                                   # y
            batch_spec((1, Se)),                                   # mask bias
            const_spec((NHS, Se)),                                 # tq
            const_spec((NHS, Pq)),                                 # mq
            const_spec((NHS, P)),                                  # mv
            const_spec((Se, NHS)),                                 # rmat
            const_spec((P, P)), const_spec((P, P)),                # pmean, pvar
            layer_spec((P, Pq)), layer_spec((1, Pq)),              # wq, bq
            layer_spec((P, Pq)), layer_spec((1, Pq)),              # wk, bk
            layer_spec((P, P)), layer_spec((1, P)),                # wv, bv
            layer_spec((P, P)), layer_spec((1, P)),                # wm, bm
            layer_spec((1, P)), layer_spec((1, P)),                # ln1 g, b
            layer_spec((P, G * FF)), layer_spec((1, G * FF)),      # w1, b1
            layer_spec((G * FF, P)), layer_spec((1, P)),           # w2, b2
            layer_spec((1, P)), layer_spec((1, P)),                # ln2 g, b
        ],
        out_specs=pl.BlockSpec((1, Se, P), lambda b, l: (b, 0, 0)),
        scratch_shapes=[pltpu.VMEM((Se, P), jnp.float32)],
        compiler_params=pltpu.CompilerParams(
            dimension_semantics=("parallel", "arbitrary")),
    )(y_pk, neg, tq, mq, mv, rmat, pmean, pvar,
      a["wq"], a["bq"], a["wk"], a["bk"], a["wv"], a["bv"], a["wm"], a["bm"],
      l1["g"], l1["b"],
      f["w1"], f["b1"], f["w2"], f["b2"],
      l2["g"], l2["b"])
    return out.reshape(B, Sy, H)


def decoder_stack(x, y, x_mask_f, y_mask_f, dec_p, cfg):
    B, Sx, H = x.shape
    Sy = y.shape[1]
    G, FF = cfg["GROUP"], cfg["FF_SIZE"]
    assert Sx % G == 0 and Sy % G == 0
    Sxe, Sye = Sx // G, Sy // G
    P = G * H
    a1, a2, f = dec_p["attn1"], dec_p["attn2"], dec_p["ffn"]
    l1, l2, l3 = dec_p["ln1"], dec_p["ln2"], dec_p["ln3"]
    L = a1["wq"].shape[0]
    Pq = a1["wq"].shape[2]

    tq, mq, mv, rmat = _attn_consts(Sxe, cfg)
    pmean, pvar = _ln_consts(cfg)
    NHS = tq.shape[0]

    x_pk = x.reshape(B, Sxe, P)                             # free reshapes
    y_pk = y.reshape(B, Sye, P)
    negx = x_mask_f.reshape(B, 1, Sxe) * _MASK_NEG
    negy = y_mask_f.reshape(B, 1, Sye) * _MASK_NEG

    def batch_spec(sh):
        return pl.BlockSpec((1,) + sh, lambda b, l: (b, 0, 0))

    def const_spec(sh):
        return pl.BlockSpec(sh, lambda b, l: (0,) * len(sh))

    def layer_spec(sh):
        return pl.BlockSpec((1,) + sh, lambda b, l: (l, 0, 0))

    kernel = functools.partial(_dec_stack_kernel, eps=_LN_EPS)
    out = pl.pallas_call(
        kernel,
        out_shape=jax.ShapeDtypeStruct((B, Sxe, P), jnp.float32),
        grid=(B, L),
        in_specs=[
            batch_spec((Sxe, P)),                                  # x
            batch_spec((Sye, P)),                                  # y (enc out)
            batch_spec((1, Sxe)),                                  # mask bias x
            batch_spec((1, Sye)),                                  # mask bias y
            const_spec((NHS, Sxe)),                                # tq
            const_spec((NHS, Pq)),                                 # mq
            const_spec((NHS, P)),                                  # mv
            const_spec((Sxe, NHS)),                                # rmat
            const_spec((P, P)), const_spec((P, P)),                # pmean, pvar
            # self-attention (mhatt1) + ln1
            layer_spec((P, Pq)), layer_spec((1, Pq)),
            layer_spec((P, Pq)), layer_spec((1, Pq)),
            layer_spec((P, P)), layer_spec((1, P)),
            layer_spec((P, P)), layer_spec((1, P)),
            layer_spec((1, P)), layer_spec((1, P)),
            # cross-attention (mhatt2) + ln2
            layer_spec((P, Pq)), layer_spec((1, Pq)),
            layer_spec((P, Pq)), layer_spec((1, Pq)),
            layer_spec((P, P)), layer_spec((1, P)),
            layer_spec((P, P)), layer_spec((1, P)),
            layer_spec((1, P)), layer_spec((1, P)),
            # ffn + ln3
            layer_spec((P, G * FF)), layer_spec((1, G * FF)),
            layer_spec((G * FF, P)), layer_spec((1, P)),
            layer_spec((1, P)), layer_spec((1, P)),
        ],
        out_specs=pl.BlockSpec((1, Sxe, P), lambda b, l: (b, 0, 0)),
        scratch_shapes=[pltpu.VMEM((Sxe, P), jnp.float32)],
        compiler_params=pltpu.CompilerParams(
            dimension_semantics=("parallel", "arbitrary")),
    )(x_pk, y_pk, negx, negy, tq, mq, mv, rmat, pmean, pvar,
      a1["wq"], a1["bq"], a1["wk"], a1["bk"], a1["wv"], a1["bv"], a1["wm"], a1["bm"],
      l1["g"], l1["b"],
      a2["wq"], a2["bq"], a2["wk"], a2["bk"], a2["wv"], a2["bv"], a2["wm"], a2["bm"],
      l2["g"], l2["b"],
      f["w1"], f["b1"], f["w2"], f["b2"],
      l3["g"], l3["b"])
    return out.reshape(B, Sx, H)


def mca_ed_forward(prepared, y, x, y_mask_f, x_mask_f, cfg):
    y = encoder_stack(y, y_mask_f, prepared["enc"], cfg)
    x = decoder_stack(x, y, x_mask_f, y_mask_f, prepared["dec"], cfg)
    return y, x


# ---------------------------------------------------------------------------
# Pure-JAX reference (mirrors the PyTorch code; for correctness check only)
# ---------------------------------------------------------------------------

def ref_layer_norm(x, ln, eps=_LN_EPS):
    mu = jnp.mean(x, axis=-1, keepdims=True)
    var = jnp.sum((x - mu) ** 2, axis=-1, keepdims=True) / (x.shape[-1] - 1)
    return ln["g"] * (x - mu) / (jnp.sqrt(var) + eps) + ln["b"]


def ref_gmhatt(p, v, k, q, mask, cfg):
    G = cfg["GROUP"]
    H = q.shape[-1]
    dm = H // G
    n = cfg["EXPAND"]
    dh = cfg["MULTI_HEAD"]
    h = H // dh
    if G > 1:
        q = jnp.concatenate(jnp.split(q, G, axis=-1), axis=0)
        k = jnp.concatenate(jnp.split(k, G, axis=-1), axis=0)
        v = jnp.concatenate(jnp.split(v, G, axis=-1), axis=0)
        mask = jnp.tile(mask, (G, 1, 1, 1))
    BG = q.shape[0]
    vp = v @ p["Wv"] + p["bv"]
    kp = k @ p["Wk"] + p["bk"]
    qp = q @ p["Wq"] + p["bq"]
    vh = vp.reshape(BG, -1, h, dh).transpose(0, 2, 1, 3)
    kh = kp.reshape(BG, -1, h, dh * n).transpose(0, 2, 1, 3)
    qh = qp.reshape(BG, -1, h, dh * n).transpose(0, 2, 1, 3)
    dk = qh.shape[-1]
    scores = jnp.einsum("bhqd,bhkd->bhqk", qh, kh) / math.sqrt(dk)
    scores = jnp.where(mask, -1e9, scores)
    att = jax.nn.softmax(scores, axis=-1)
    out = jnp.einsum("bhqk,bhkd->bhqd", att, vh)
    atted = out.transpose(0, 2, 1, 3).reshape(BG, -1, dm)
    if G > 1:
        atted = jnp.concatenate(jnp.split(atted, G, axis=0), axis=-1)
    return atted @ p["Wm"] + p["bm"]


def ref_gffn(p, x, cfg):
    G = cfg["GROUP"]
    B, L, D = x.shape
    h1 = jnp.maximum(x @ p["W1"] + p["b1"], 0.0)
    z = h1.reshape(B, L, G, -1) @ p["W2"] + p["b2"]
    return z.reshape(B, L, D)


def ref_sa(p, y, y_mask, cfg):
    y = ref_layer_norm(y + ref_gmhatt(p["mhatt"], y, y, y, y_mask, cfg), p["ln1"])
    y = ref_layer_norm(y + ref_gffn(p["ffn"], y, cfg), p["ln2"])
    return y


def ref_sga(p, x, y, x_mask, y_mask, cfg):
    x = ref_layer_norm(x + ref_gmhatt(p["mhatt1"], x, x, x, x_mask, cfg), p["ln1"])
    x = ref_layer_norm(x + ref_gmhatt(p["mhatt2"], y, y, x, y_mask, cfg), p["ln2"])
    x = ref_layer_norm(x + ref_gffn(p["ffn"], x, cfg), p["ln3"])
    return x


def ref_mca_ed(params, y, x, y_mask, x_mask, cfg):
    for p in params["enc"]:
        y = ref_sa(p, y, y_mask, cfg)
    for p in params["dec"]:
        x = ref_sga(p, x, y, x_mask, y_mask, cfg)
    return y, x


# ---------------------------------------------------------------------------
# Parameter initialisation
# ---------------------------------------------------------------------------

def init_attn_params(key, H, G, n):
    dm = H // G
    ks = jax.random.split(key, 8)
    sc = 0.08
    return {
        "Wq": sc * jax.random.normal(ks[0], (dm, dm * n), jnp.float32),
        "bq": sc * jax.random.normal(ks[1], (1, dm * n), jnp.float32),
        "Wk": sc * jax.random.normal(ks[2], (dm, dm * n), jnp.float32),
        "bk": sc * jax.random.normal(ks[3], (1, dm * n), jnp.float32),
        "Wv": sc * jax.random.normal(ks[4], (dm, dm), jnp.float32),
        "bv": sc * jax.random.normal(ks[5], (1, dm), jnp.float32),
        "Wm": sc * jax.random.normal(ks[6], (H, H), jnp.float32),
        "bm": sc * jax.random.normal(ks[7], (1, H), jnp.float32),
    }


def init_ln_params(key, H):
    k1, k2 = jax.random.split(key)
    return {"g": 1.0 + 0.05 * jax.random.normal(k1, (1, H), jnp.float32),
            "b": 0.05 * jax.random.normal(k2, (1, H), jnp.float32)}


def init_ffn_params(key, H, FF, G):
    ks = jax.random.split(key, 4)
    sc = 0.08
    return {
        "W1": sc * jax.random.normal(ks[0], (H, FF), jnp.float32),
        "b1": sc * jax.random.normal(ks[1], (1, FF), jnp.float32),
        "W2": sc * jax.random.normal(ks[2], (FF // G, H // G), jnp.float32),
        "b2": sc * jax.random.normal(ks[3], (1, H // G), jnp.float32),
    }


def init_mca_ed_params(key, cfg):
    H, FF, G, n = cfg["HIDDEN_SIZE"], cfg["FF_SIZE"], cfg["GROUP"], cfg["EXPAND"]
    L = cfg["LAYER"]
    keys = jax.random.split(key, 2 * L)
    enc = []
    for i in range(L):
        ks = jax.random.split(keys[i], 4)
        enc.append({
            "mhatt": init_attn_params(ks[0], H, G, n),
            "ln1": init_ln_params(ks[1], H),
            "ffn": init_ffn_params(ks[2], H, FF, G),
            "ln2": init_ln_params(ks[3], H),
        })
    dec = []
    for i in range(L):
        ks = jax.random.split(keys[L + i], 6)
        dec.append({
            "mhatt1": init_attn_params(ks[0], H, G, n),
            "ln1": init_ln_params(ks[1], H),
            "mhatt2": init_attn_params(ks[2], H, G, n),
            "ln2": init_ln_params(ks[3], H),
            "ffn": init_ffn_params(ks[4], H, FF, G),
            "ln3": init_ln_params(ks[5], H),
        })
    return {"enc": enc, "dec": dec}


# ---------------------------------------------------------------------------

if __name__ == "__main__":
    cfg = dict(HIDDEN_SIZE=64, FF_SIZE=256, GROUP=2, MULTI_HEAD=8, EXPAND=1,
               DROPOUT_R=0.1, LAYER=2)
    B = 2
    S_y = 16          # encoder ("y") sequence length
    S_x = 12          # decoder ("x") sequence length
    H, G = cfg["HIDDEN_SIZE"], cfg["GROUP"]

    key = jax.random.PRNGKey(0)
    k_param, k_y, k_x = jax.random.split(key, 3)

    params = init_mca_ed_params(k_param, cfg)
    prepared = prepare_params(params, cfg)      # hoisted one-time weight prep

    y_in = jax.random.normal(k_y, (B, S_y, H), jnp.float32)
    x_in = jax.random.normal(k_x, (B, S_x, H), jnp.float32)

    # Padding masks at the grouped ("effective") key length S // GROUP.
    # True / 1.0 == masked-out key position (as in torch masked_fill).
    Sy_e, Sx_e = S_y // G, S_x // G
    y_len = jnp.array([Sy_e, Sy_e - 2])
    x_len = jnp.array([Sx_e, Sx_e - 1])
    y_mask_b = (jnp.arange(Sy_e)[None, :] >= y_len[:, None]).reshape(B, 1, 1, Sy_e)
    x_mask_b = (jnp.arange(Sx_e)[None, :] >= x_len[:, None]).reshape(B, 1, 1, Sx_e)
    y_mask_f = y_mask_b.astype(jnp.float32)
    x_mask_f = x_mask_b.astype(jnp.float32)

    fwd = jax.jit(functools.partial(mca_ed_forward, cfg=cfg))
    y_out, x_out = fwd(prepared, y_in, x_in, y_mask_f, x_mask_f)
    y_out = jax.block_until_ready(y_out)
    x_out = jax.block_until_ready(x_out)

    y_ref, x_ref = ref_mca_ed(params, y_in, x_in, y_mask_b, x_mask_b, cfg)

    assert y_out.shape == (B, S_y, H), y_out.shape
    assert x_out.shape == (B, S_x, H), x_out.shape
    err_y = float(jnp.max(jnp.abs(y_out - y_ref)))
    err_x = float(jnp.max(jnp.abs(x_out - x_ref)))
    assert err_y < 2e-3 and err_x < 2e-3, (err_y, err_x)

    print("KERNEL_OK")
</pallas_src>

<mosaic_0001>
module attributes {stable_mosaic.version = 11 : i64} {
  func.func @_enc_stack_kernel(%arg0: i32, %arg1: i32, %arg2: memref<1x8x128xf32, #tpu.memory_space<vmem>>, %arg3: memref<1x1x8xf32, #tpu.memory_space<vmem>>, %arg4: memref<128x8xf32, #tpu.memory_space<vmem>>, %arg5: memref<128x128xf32, #tpu.memory_space<vmem>>, %arg6: memref<128x128xf32, #tpu.memory_space<vmem>>, %arg7: memref<8x128xf32, #tpu.memory_space<vmem>>, %arg8: memref<128x128xf32, #tpu.memory_space<vmem>>, %arg9: memref<128x128xf32, #tpu.memory_space<vmem>>, %arg10: memref<1x128x128xf32, #tpu.memory_space<vmem>>, %arg11: memref<1x1x128xf32, #tpu.memory_space<vmem>>, %arg12: memref<1x128x128xf32, #tpu.memory_space<vmem>>, %arg13: memref<1x1x128xf32, #tpu.memory_space<vmem>>, %arg14: memref<1x128x128xf32, #tpu.memory_space<vmem>>, %arg15: memref<1x1x128xf32, #tpu.memory_space<vmem>>, %arg16: memref<1x128x128xf32, #tpu.memory_space<vmem>>, %arg17: memref<1x1x128xf32, #tpu.memory_space<vmem>>, %arg18: memref<1x1x128xf32, #tpu.memory_space<vmem>>, %arg19: memref<1x1x128xf32, #tpu.memory_space<vmem>>, %arg20: memref<1x128x512xf32, #tpu.memory_space<vmem>>, %arg21: memref<1x1x512xf32, #tpu.memory_space<vmem>>, %arg22: memref<1x512x128xf32, #tpu.memory_space<vmem>>, %arg23: memref<1x1x128xf32, #tpu.memory_space<vmem>>, %arg24: memref<1x1x128xf32, #tpu.memory_space<vmem>>, %arg25: memref<1x1x128xf32, #tpu.memory_space<vmem>>, %arg26: memref<1x8x128xf32, #tpu.memory_space<vmem>>, %arg27: memref<8x128xf32, #tpu.memory_space<vmem>>) attributes {dimension_semantics = [#tpu.dimension_semantics<parallel>, #tpu.dimension_semantics<arbitrary>], iteration_bounds = array<i64: 2, 2>, scalar_prefetch = 0 : i64, scratch_operands = 1 : i64, tpu.core_type = #tpu.core_type<tc>, window_params = [{transform_indices = @transform_0, window_bounds = array<i64: 1, 8, 128>}, {transform_indices = @transform_1, window_bounds = array<i64: 1, 1, 8>}, {pipeline_mode = #tpu.pipeline_mode<synchronous>, transform_indices = @transform_2, window_bounds = array<i64: 128, 8>}, {pipeline_mode = #tpu.pipeline_mode<synchronous>, transform_indices = @transform_3, window_bounds = array<i64: 128, 128>}, {pipeline_mode = #tpu.pipeline_mode<synchronous>, transform_indices = @transform_4, window_bounds = array<i64: 128, 128>}, {pipeline_mode = #tpu.pipeline_mode<synchronous>, transform_indices = @transform_5, window_bounds = array<i64: 8, 128>}, {pipeline_mode = #tpu.pipeline_mode<synchronous>, transform_indices = @transform_6, window_bounds = array<i64: 128, 128>}, {pipeline_mode = #tpu.pipeline_mode<synchronous>, transform_indices = @transform_7, window_bounds = array<i64: 128, 128>}, {transform_indices = @transform_8, window_bounds = array<i64: 1, 128, 128>}, {transform_indices = @transform_9, window_bounds = array<i64: 1, 1, 128>}, {transform_indices = @transform_10, window_bounds = array<i64: 1, 128, 128>}, {transform_indices = @transform_11, window_bounds = array<i64: 1, 1, 128>}, {transform_indices = @transform_12, window_bounds = array<i64: 1, 128, 128>}, {transform_indices = @transform_13, window_bounds = array<i64: 1, 1, 128>}, {transform_indices = @transform_14, window_bounds = array<i64: 1, 128, 128>}, {transform_indices = @transform_15, window_bounds = array<i64: 1, 1, 128>}, {transform_indices = @transform_16, window_bounds = array<i64: 1, 1, 128>}, {transform_indices = @transform_17, window_bounds = array<i64: 1, 1, 128>}, {transform_indices = @transform_18, window_bounds = array<i64: 1, 128, 512>}, {transform_indices = @transform_19, window_bounds = array<i64: 1, 1, 512>}, {transform_indices = @transform_20, window_bounds = array<i64: 1, 512, 128>}, {transform_indices = @transform_21, window_bounds = array<i64: 1, 1, 128>}, {transform_indices = @transform_22, window_bounds = array<i64: 1, 1, 128>}, {transform_indices = @transform_23, window_bounds = array<i64: 1, 1, 128>}, {transform_indices = @transform_24, window_bounds = array<i64: 1, 8, 128>}]} {
    %c0_i32 = arith.constant 0 : i32
    %0 = arith.cmpi eq, %arg1, %c0_i32 : i32
    %1 = arith.extui %0 : i1 to i32
    %c0_i32_0 = arith.constant 0 : i32
    %2 = arith.cmpi ne, %1, %c0_i32_0 : i32
    scf.if %2 {
      %c0_86 = arith.constant 0 : index
      %c0_87 = arith.constant 0 : index
      %c0_88 = arith.constant 0 : index
      %111 = vector.load %arg2[%c0_86, %c0_87, %c0_88] : memref<1x8x128xf32, #tpu.memory_space<vmem>>, vector<1x8x128xf32>
      %112 = vector.shape_cast %111 : vector<1x8x128xf32> to vector<8x128xf32>
      %c0_89 = arith.constant 0 : index
      %c0_90 = arith.constant 0 : index
      %113 = vector.load %arg27[%c0_89, %c0_90] : memref<8x128xf32, #tpu.memory_space<vmem>>, vector<8x128xf32>
      tpu.vector_store %arg27[%c0_89, %c0_90], %112 {strides = array<i32>} : memref<8x128xf32, #tpu.memory_space<vmem>>, vector<8x128xf32>,
    } else {
    }
    %c0 = arith.constant 0 : index
    %c0_1 = arith.constant 0 : index
    %3 = vector.load %arg27[%c0, %c0_1] : memref<8x128xf32, #tpu.memory_space<vmem>>, vector<8x128xf32>
    %c0_2 = arith.constant 0 : index
    %c0_3 = arith.constant 0 : index
    %4 = vector.load %arg8[%c0_2, %c0_3] : memref<128x128xf32, #tpu.memory_space<vmem>>, vector<128x128xf32>
    %c0_4 = arith.constant 0 : index
    %c0_5 = arith.constant 0 : index
    %5 = vector.load %arg9[%c0_4, %c0_5] : memref<128x128xf32, #tpu.memory_space<vmem>>, vector<128x128xf32>
    %c0_6 = arith.constant 0 : index
    %c0_7 = arith.constant 0 : index
    %c0_8 = arith.constant 0 : index
    %6 = vector.load %arg3[%c0_6, %c0_7, %c0_8] : memref<1x1x8xf32, #tpu.memory_space<vmem>>, vector<1x1x8xf32>
    %7 = vector.shape_cast %6 : vector<1x1x8xf32> to vector<1x8xf32>
    %c0_9 = arith.constant 0 : index
    %c0_10 = arith.constant 0 : index
    %c0_11 = arith.constant 0 : index
    %8 = vector.load %arg10[%c0_9, %c0_10, %c0_11] : memref<1x128x128xf32, #tpu.memory_space<vmem>>, vector<1x128x128xf32>
    %9 = vector.shape_cast %8 : vector<1x128x128xf32> to vector<128x128xf32>
    %c0_12 = arith.constant 0 : index
    %c0_13 = arith.constant 0 : index
    %c0_14 = arith.constant 0 : index
    %10 = vector.load %arg11[%c0_12, %c0_13, %c0_14] : memref<1x1x128xf32, #tpu.memory_space<vmem>>, vector<1x1x128xf32>
    %11 = vector.shape_cast %10 : vector<1x1x128xf32> to vector<1x128xf32>
    %c0_15 = arith.constant 0 : index
    %c0_16 = arith.constant 0 : index
    %c0_17 = arith.constant 0 : index
    %12 = vector.load %arg12[%c0_15, %c0_16, %c0_17] : memref<1x128x128xf32, #tpu.memory_space<vmem>>, vector<1x128x128xf32>
    %13 = vector.shape_cast %12 : vector<1x128x128xf32> to vector<128x128xf32>
    %c0_18 = arith.constant 0 : index
    %c0_19 = arith.constant 0 : index
    %c0_20 = arith.constant 0 : index
    %14 = vector.load %arg13[%c0_18, %c0_19, %c0_20] : memref<1x1x128xf32, #tpu.memory_space<vmem>>, vector<1x1x128xf32>
    %15 = vector.shape_cast %14 : vector<1x1x128xf32> to vector<1x128xf32>
    %c0_21 = arith.constant 0 : index
    %c0_22 = arith.constant 0 : index
    %c0_23 = arith.constant 0 : index
    %16 = vector.load %arg14[%c0_21, %c0_22, %c0_23] : memref<1x128x128xf32, #tpu.memory_space<vmem>>, vector<1x128x128xf32>
    %17 = vector.shape_cast %16 : vector<1x128x128xf32> to vector<128x128xf32>
    %c0_24 = arith.constant 0 : index
    %c0_25 = arith.constant 0 : index
    %c0_26 = arith.constant 0 : index
    %18 = vector.load %arg15[%c0_24, %c0_25, %c0_26] : memref<1x1x128xf32, #tpu.memory_space<vmem>>, vector<1x1x128xf32>
    %19 = vector.shape_cast %18 : vector<1x1x128xf32> to vector<1x128xf32>
    %c0_27 = arith.constant 0 : index
    %c0_28 = arith.constant 0 : index
    %c0_29 = arith.constant 0 : index
    %20 = vector.load %arg16[%c0_27, %c0_28, %c0_29] : memref<1x128x128xf32, #tpu.memory_space<vmem>>, vector<1x128x128xf32>
    %21 = vector.shape_cast %20 : vector<1x128x128xf32> to vector<128x128xf32>
    %c0_30 = arith.constant 0 : index
    %c0_31 = arith.constant 0 : index
    %c0_32 = arith.constant 0 : index
    %22 = vector.load %arg17[%c0_30, %c0_31, %c0_32] : memref<1x1x128xf32, #tpu.memory_space<vmem>>, vector<1x1x128xf32>
    %23 = vector.shape_cast %22 : vector<1x1x128xf32> to vector<1x128xf32>
    %c0_33 = arith.constant 0 : index
    %c0_34 = arith.constant 0 : index
    %c0_35 = arith.constant 0 : index
    %24 = vector.load %arg18[%c0_33, %c0_34, %c0_35] : memref<1x1x128xf32, #tpu.memory_space<vmem>>, vector<1x1x128xf32>
    %25 = vector.shape_cast %24 : vector<1x1x128xf32> to vector<1x128xf32>
    %c0_36 = arith.constant 0 : index
    %c0_37 = arith.constant 0 : index
    %c0_38 = arith.constant 0 : index
    %26 = vector.load %arg19[%c0_36, %c0_37, %c0_38] : memref<1x1x128xf32, #tpu.memory_space<vmem>>, vector<1x1x128xf32>
    %27 = vector.shape_cast %26 : vector<1x1x128xf32> to vector<1x128xf32>
    %c0_39 = arith.constant 0 : index
    %c0_40 = arith.constant 0 : index
    %28 = vector.load %arg4[%c0_39, %c0_40] : memref<128x8xf32, #tpu.memory_space<vmem>>, vector<128x8xf32>
    %c0_41 = arith.constant 0 : index
    %c0_42 = arith.constant 0 : index
    %29 = vector.load %arg5[%c0_41, %c0_42] : memref<128x128xf32, #tpu.memory_space<vmem>>, vector<128x128xf32>
    %c0_43 = arith.constant 0 : index
    %c0_44 = arith.constant 0 : index
    %30 = vector.load %arg6[%c0_43, %c0_44] : memref<128x128xf32, #tpu.memory_space<vmem>>, vector<128x128xf32>
    %c0_45 = arith.constant 0 : index
    %c0_46 = arith.constant 0 : index
    %31 = vector.load %arg7[%c0_45, %c0_46] : memref<8x128xf32, #tpu.memory_space<vmem>>, vector<8x128xf32>
    %cst = arith.constant dense<0.000000e+00> : vector<8x128xf32>
    %32 = tpu.matmul %3, %9, %cst {dimension_numbers = #tpu.dot_dimension_numbers<[1], [0], [0], [1], [0, 0, 1, 1], [], []>} : vector<8x128xf32>, vector<128x128xf32>, vector<8x128xf32> -> vector<8x128xf32>
    %33 = vector.broadcast %11 : vector<1x128xf32> to vector<8x128xf32>
    %34 = arith.addf %32, %33 : vector<8x128xf32>
    %cst_47 = arith.constant dense<0.000000e+00> : vector<8x128xf32>
    %35 = tpu.matmul %3, %13, %cst_47 {dimension_numbers = #tpu.dot_dimension_numbers<[1], [0], [0], [1], [0, 0, 1, 1], [], []>} : vector<8x128xf32>, vector<128x128xf32>, vector<8x128xf32> -> vector<8x128xf32>
    %36 = vector.broadcast %15 : vector<1x128xf32> to vector<8x128xf32>
    %37 = arith.addf %35, %36 : vector<8x128xf32>
    %cst_48 = arith.constant dense<0.000000e+00> : vector<8x128xf32>
    %38 = tpu.matmul %3, %17, %cst_48 {dimension_numbers = #tpu.dot_dimension_numbers<[1], [0], [0], [1], [0, 0, 1, 1], [], []>} : vector<8x128xf32>, vector<128x128xf32>, vector<8x128xf32> -> vector<8x128xf32>
    %39 = vector.broadcast %19 : vector<1x128xf32> to vector<8x128xf32>
    %40 = arith.addf %38, %39 : vector<8x128xf32>
    %cst_49 = arith.constant dense<0.000000e+00> : vector<128x128xf32>
    %41 = tpu.matmul %28, %34, %cst_49 {dimension_numbers = #tpu.dot_dimension_numbers<[1], [0], [0], [1], [0, 0, 1, 1], [], []>} : vector<128x8xf32>, vector<8x128xf32>, vector<128x128xf32> -> vector<128x128xf32>
    %42 = arith.mulf %41, %29 : vector<128x128xf32>
    %cst_50 = arith.constant dense<0.000000e+00> : vector<128x8xf32>
    %43 = tpu.matmul %42, %37, %cst_50 {dimension_numbers = #tpu.dot_dimension_numbers<[1], [1], [0], [0], [0, 0, 1, 0], [], []>} : vector<128x128xf32>, vector<8x128xf32>, vector<128x8xf32> -> vector<128x8xf32>
    %44 = vector.broadcast %7 : vector<1x8xf32> to vector<128x8xf32>
    %45 = arith.addf %43, %44 : vector<128x8xf32>
    %cst_51 = arith.constant dense<0xFF800000> : vector<128xf32>
    %46 = vector.multi_reduction <maximumf>, %45, %cst_51 [1] : vector<128x8xf32> to vector<128xf32>
    %47 = vector.shape_cast %46 : vector<128xf32> to vector<128x1xf32>
    %48 = vector.broadcast %47 : vector<128x1xf32> to vector<128x8xf32>
    %49 = arith.subf %45, %48 : vector<128x8xf32>
    %50 = math.exp %49 : vector<128x8xf32>
    %cst_52 = arith.constant dense<0.000000e+00> : vector<128xf32>
    %51 = vector.multi_reduction <add>, %50, %cst_52 [1] : vector<128x8xf32> to vector<128xf32>
    %52 = vector.shape_cast %51 : vector<128xf32> to vector<128x1xf32>
    %53 = vector.broadcast %52 : vector<128x1xf32> to vector<128x8xf32>
    %54 = arith.divf %50, %53 : vector<128x8xf32>
    %cst_53 = arith.constant dense<0.000000e+00> : vector<128x128xf32>
    %55 = tpu.matmul %54, %40, %cst_53 {dimension_numbers = #tpu.dot_dimension_numbers<[1], [0], [0], [1], [0, 0, 1, 1], [], []>} : vector<128x8xf32>, vector<8x128xf32>, vector<128x128xf32> -> vector<128x128xf32>
    %56 = arith.mulf %55, %30 : vector<128x128xf32>
    %cst_54 = arith.constant dense<0.000000e+00> : vector<8x128xf32>
    %57 = tpu.matmul %31, %56, %cst_54 {dimension_numbers = #tpu.dot_dimension_numbers<[1], [0], [0], [1], [0, 0, 1, 1], [], []>} : vector<8x128xf32>, vector<128x128xf32>, vector<8x128xf32> -> vector<8x128xf32>
    %cst_55 = arith.constant dense<0.000000e+00> : vector<8x128xf32>
    %58 = tpu.matmul %57, %21, %cst_55 {dimension_numbers = #tpu.dot_dimension_numbers<[1], [0], [0], [1], [0, 0, 1, 1], [], []>} : vector<8x128xf32>, vector<128x128xf32>, vector<8x128xf32> -> vector<8x128xf32>
    %59 = vector.broadcast %23 : vector<1x128xf32> to vector<8x128xf32>
    %60 = arith.addf %58, %59 : vector<8x128xf32>
    %61 = arith.addf %60, %3 : vector<8x128xf32>
    %cst_56 = arith.constant dense<0.000000e+00> : vector<8x128xf32>
    %62 = tpu.matmul %61, %4, %cst_56 {dimension_numbers = #tpu.dot_dimension_numbers<[1], [0], [0], [1], [0, 0, 1, 1], [], []>} : vector<8x128xf32>, vector<128x128xf32>, vector<8x128xf32> -> vector<8x128xf32>
    %63 = arith.subf %61, %62 : vector<8x128xf32>
    %64 = arith.mulf %63, %63 : vector<8x128xf32>
    %cst_57 = arith.constant dense<0.000000e+00> : vector<8x128xf32>
    %65 = tpu.matmul %64, %5, %cst_57 {dimension_numbers = #tpu.dot_dimension_numbers<[1], [0], [0], [1], [0, 0, 1, 1], [], []>} : vector<8x128xf32>, vector<128x128xf32>, vector<8x128xf32> -> vector<8x128xf32>
    %66 = math.sqrt %65 : vector<8x128xf32>
    %cst_58 = arith.constant 9.99999997E-7 : f32
    %67 = vector.broadcast %cst_58 : f32 to vector<8x128xf32>
    %68 = arith.addf %66, %67 : vector<8x128xf32>
    %69 = arith.divf %63, %68 : vector<8x128xf32>
    %70 = vector.broadcast %25 : vector<1x128xf32> to vector<8x128xf32>
    %71 = arith.mulf %70, %69 : vector<8x128xf32>
    %72 = vector.broadcast %27 : vector<1x128xf32> to vector<8x128xf32>
    %73 = arith.addf %71, %72 : vector<8x128xf32>
    %c0_59 = arith.constant 0 : index
    %c0_60 = arith.constant 0 : index
    %c0_61 = arith.constant 0 : index
    %74 = vector.load %arg20[%c0_59, %c0_60, %c0_61] : memref<1x128x512xf32, #tpu.memory_space<vmem>>, vector<1x128x512xf32>
    %75 = vector.shape_cast %74 : vector<1x128x512xf32> to vector<128x512xf32>
    %c0_62 = arith.constant 0 : index
    %c0_63 = arith.constant 0 : index
    %c0_64 = arith.constant 0 : index
    %76 = vector.load %arg21[%c0_62, %c0_63, %c0_64] : memref<1x1x512xf32, #tpu.memory_space<vmem>>, vector<1x1x512xf32>
    %77 = vector.shape_cast %76 : vector<1x1x512xf32> to vector<1x512xf32>
    %c0_65 = arith.constant 0 : index
    %c0_66 = arith.constant 0 : index
    %c0_67 = arith.constant 0 : index
    %78 = vector.load %arg22[%c0_65, %c0_66, %c0_67] : memref<1x512x128xf32, #tpu.memory_space<vmem>>, vector<1x512x128xf32>
    %79 = vector.shape_cast %78 : vector<1x512x128xf32> to vector<512x128xf32>
    %c0_68 = arith.constant 0 : index
    %c0_69 = arith.constant 0 : index
    %c0_70 = arith.constant 0 : index
    %80 = vector.load %arg23[%c0_68, %c0_69, %c0_70] : memref<1x1x128xf32, #tpu.memory_space<vmem>>, vector<1x1x128xf32>
    %81 = vector.shape_cast %80 : vector<1x1x128xf32> to vector<1x128xf32>
    %c0_71 = arith.constant 0 : index
    %c0_72 = arith.constant 0 : index
    %c0_73 = arith.constant 0 : index
    %82 = vector.load %arg24[%c0_71, %c0_72, %c0_73] : memref<1x1x128xf32, #tpu.memory_space<vmem>>, vector<1x1x128xf32>
    %83 = vector.shape_cast %82 : vector<1x1x128xf32> to vector<1x128xf32>
    %c0_74 = arith.constant 0 : index
    %c0_75 = arith.constant 0 : index
    %c0_76 = arith.constant 0 : index
    %84 = vector.load %arg25[%c0_74, %c0_75, %c0_76] : memref<1x1x128xf32, #tpu.memory_space<vmem>>, vector<1x1x128xf32>
    %85 = vector.shape_cast %84 : vector<1x1x128xf32> to vector<1x128xf32>
    %cst_77 = arith.constant dense<0.000000e+00> : vector<8x512xf32>
    %86 = tpu.matmul %73, %75, %cst_77 {dimension_numbers = #tpu.dot_dimension_numbers<[1], [0], [0], [1], [0, 0, 1, 1], [], []>} : vector<8x128xf32>, vector<128x512xf32>, vector<8x512xf32> -> vector<8x512xf32>
    %87 = vector.broadcast %77 : vector<1x512xf32> to vector<8x512xf32>
    %88 = arith.addf %86, %87 : vector<8x512xf32>
    %cst_78 = arith.constant 0.000000e+00 : f32
    %89 = vector.broadcast %cst_78 : f32 to vector<8x512xf32>
    %90 = arith.maximumf %88, %89 : vector<8x512xf32>
    %cst_79 = arith.constant dense<0.000000e+00> : vector<8x128xf32>
    %91 = tpu.matmul %90, %79, %cst_79 {dimension_numbers = #tpu.dot_dimension_numbers<[1], [0], [0], [1], [0, 0, 1, 1], [], []>} : vector<8x512xf32>, vector<512x128xf32>, vector<8x128xf32> -> vector<8x128xf32>
    %92 = vector.broadcast %81 : vector<1x128xf32> to vector<8x128xf32>
    %93 = arith.addf %91, %92 : vector<8x128xf32>
    %94 = arith.addf %93, %73 : vector<8x128xf32>
    %cst_80 = arith.constant dense<0.000000e+00> : vector<8x128xf32>
    %95 = tpu.matmul %94, %4, %cst_80 {dimension_numbers = #tpu.dot_dimension_numbers<[1], [0], [0], [1], [0, 0, 1, 1], [], []>} : vector<8x128xf32>, vector<128x128xf32>, vector<8x128xf32> -> vector<8x128xf32>
    %96 = arith.subf %94, %95 : vector<8x128xf32>
    %97 = arith.mulf %96, %96 : vector<8x128xf32>
    %cst_81 = arith.constant dense<0.000000e+00> : vector<8x128xf32>
    %98 = tpu.matmul %97, %5, %cst_81 {dimension_numbers = #tpu.dot_dimension_numbers<[1], [0], [0], [1], [0, 0, 1, 1], [], []>} : vector<8x128xf32>, vector<128x128xf32>, vector<8x128xf32> -> vector<8x128xf32>
    %99 = math.sqrt %98 : vector<8x128xf32>
    %cst_82 = arith.constant 9.99999997E-7 : f32
    %100 = vector.broadcast %cst_82 : f32 to vector<8x128xf32>
    %101 = arith.addf %99, %100 : vector<8x128xf32>
    %102 = arith.divf %96, %101 : vector<8x128xf32>
    %103 = vector.broadcast %83 : vector<1x128xf32> to vector<8x128xf32>
    %104 = arith.mulf %103, %102 : vector<8x128xf32>
    %105 = vector.broadcast %85 : vector<1x128xf32> to vector<8x128xf32>
    %106 = arith.addf %104, %105 : vector<8x128xf32>
    %c0_83 = arith.constant 0 : index
    %c0_84 = arith.constant 0 : index
    %107 = vector.load %arg27[%c0_83, %c0_84] : memref<8x128xf32, #tpu.memory_space<vmem>>, vector<8x128xf32>
    tpu.vector_store %arg27[%c0_83, %c0_84], %106 {strides = array<i32>} : memref<8x128xf32, #tpu.memory_space<vmem>>, vector<8x128xf32>,
    %c1_i32 = arith.constant 1 : i32
    %108 = arith.cmpi eq, %arg1, %c1_i32 : i32
    %109 = arith.extui %108 : i1 to i32
    %c0_i32_85 = arith.constant 0 : i32
    %110 = arith.cmpi ne, %109, %c0_i32_85 : i32
    scf.if %110 {
      %c0_86 = arith.constant 0 : index
      %c0_87 = arith.constant 0 : index
      %c0_88 = arith.constant 0 : index
      %111 = vector.load %arg26[%c0_86, %c0_87, %c0_88] : memref<1x8x128xf32, #tpu.memory_space<vmem>>, vector<1x8x128xf32>
      %112 = vector.shape_cast %111 : vector<1x8x128xf32> to vector<8x128xf32>
      %113 = vector.shape_cast %106 : vector<8x128xf32> to vector<1x8x128xf32>
      tpu.vector_store %arg26[%c0_86, %c0_87, %c0_88], %113 {strides = array<i32>} : memref<1x8x128xf32, #tpu.memory_space<vmem>>, vector<1x8x128xf32>,
    } else {
    }
    return
  }
  func.func @transform_0(%arg0: i32, %arg1: i32) -> (i32, i32, i32) {
    %c0_i32 = arith.constant 0 : i32
    %c0_i32_0 = arith.constant 0 : i32
    %c0_i32_1 = arith.constant 0 : i32
    return %arg0, %c0_i32, %c0_i32_0 : i32, i32, i32
  }
  func.func @transform_1(%arg0: i32, %arg1: i32) -> (i32, i32, i32) {
    %c0_i32 = arith.constant 0 : i32
    %c0_i32_0 = arith.constant 0 : i32
    %c0_i32_1 = arith.constant 0 : i32
    return %arg0, %c0_i32, %c0_i32_0 : i32, i32, i32
  }
  func.func @transform_2(%arg0: i32, %arg1: i32) -> (i32, i32) {
    %c0_i32 = arith.constant 0 : i32
    %c0_i32_0 = arith.constant 0 : i32
    %c0_i32_1 = arith.constant 0 : i32
    return %c0_i32, %c0_i32_0 : i32, i32
  }
  func.func @transform_3(%arg0: i32, %arg1: i32) -> (i32, i32) {
    %c0_i32 = arith.constant 0 : i32
    %c0_i32_0 = arith.constant 0 : i32
    %c0_i32_1 = arith.constant 0 : i32
    return %c0_i32, %c0_i32_0 : i32, i32
  }
  func.func @transform_4(%arg0: i32, %arg1: i32) -> (i32, i32) {
    %c0_i32 = arith.constant 0 : i32
    %c0_i32_0 = arith.constant 0 : i32
    %c0_i32_1 = arith.constant 0 : i32
    return %c0_i32, %c0_i32_0 : i32, i32
  }
  func.func @transform_5(%arg0: i32, %arg1: i32) -> (i32, i32) {
    %c0_i32 = arith.constant 0 : i32
    %c0_i32_0 = arith.constant 0 : i32
    %c0_i32_1 = arith.constant 0 : i32
    return %c0_i32, %c0_i32_0 : i32, i32
  }
  func.func @transform_6(%arg0: i32, %arg1: i32) -> (i32, i32) {
    %c0_i32 = arith.constant 0 : i32
    %c0_i32_0 = arith.constant 0 : i32
    %c0_i32_1 = arith.constant 0 : i32
    return %c0_i32, %c0_i32_0 : i32, i32
  }
  func.func @transform_7(%arg0: i32, %arg1: i32) -> (i32, i32) {
    %c0_i32 = arith.constant 0 : i32
    %c0_i32_0 = arith.constant 0 : i32
    %c0_i32_1 = arith.constant 0 : i32
    return %c0_i32, %c0_i32_0 : i32, i32
  }
  func.func @transform_8(%arg0: i32, %arg1: i32) -> (i32, i32, i32) {
    %c0_i32 = arith.constant 0 : i32
    %c0_i32_0 = arith.constant 0 : i32
    %c0_i32_1 = arith.constant 0 : i32
    return %arg1, %c0_i32, %c0_i32_0 : i32, i32, i32
  }
  func.func @transform_9(%arg0: i32, %arg1: i32) -> (i32, i32, i32) {
    %c0_i32 = arith.constant 0 : i32
    %c0_i32_0 = arith.constant 0 : i32
    %c0_i32_1 = arith.constant 0 : i32
    return %arg1, %c0_i32, %c0_i32_0 : i32, i32, i32
  }
  func.func @transform_10(%arg0: i32, %arg1: i32) -> (i32, i32, i32) {
    %c0_i32 = arith.constant 0 : i32
    %c0_i32_0 = arith.constant 0 : i32
    %c0_i32_1 = arith.constant 0 : i32
    return %arg1, %c0_i32, %c0_i32_0 : i32, i32, i32
  }
  func.func @transform_11(%arg0: i32, %arg1: i32) -> (i32, i32, i32) {
    %c0_i32 = arith.constant 0 : i32
    %c0_i32_0 = arith.constant 0 : i32
    %c0_i32_1 = arith.constant 0 : i32
    return %arg1, %c0_i32, %c0_i32_0 : i32, i32, i32
  }
  func.func @transform_12(%arg0: i32, %arg1: i32) -> (i32, i32, i32) {
    %c0_i32 = arith.constant 0 : i32
    %c0_i32_0 = arith.constant 0 : i32
    %c0_i32_1 = arith.constant 0 : i32
    return %arg1, %c0_i32, %c0_i32_0 : i32, i32, i32
  }
  func.func @transform_13(%arg0: i32, %arg1: i32) -> (i32, i32, i32) {
    %c0_i32 = arith.constant 0 : i32
    %c0_i32_0 = arith.constant 0 : i32
    %c0_i32_1 = arith.constant 0 : i32
    return %arg1, %c0_i32, %c0_i32_0 : i32, i32, i32
  }
  func.func @transform_14(%arg0: i32, %arg1: i32) -> (i32, i32, i32) {
    %c0_i32 = arith.constant 0 : i32
    %c0_i32_0 = arith.constant 0 : i32
    %c0_i32_1 = arith.constant 0 : i32
    return %arg1, %c0_i32, %c0_i32_0 : i32, i32, i32
  }
  func.func @transform_15(%arg0: i32, %arg1: i32) -> (i32, i32, i32) {
    %c0_i32 = arith.constant 0 : i32
    %c0_i32_0 = arith.constant 0 : i32
    %c0_i32_1 = arith.constant 0 : i32
    return %arg1, %c0_i32, %c0_i32_0 : i32, i32, i32
  }
  func.func @transform_16(%arg0: i32, %arg1: i32) -> (i32, i32, i32) {
    %c0_i32 = arith.constant 0 : i32
    %c0_i32_0 = arith.constant 0 : i32
    %c0_i32_1 = arith.constant 0 : i32
    return %arg1, %c0_i32, %c0_i32_0 : i32, i32, i32
  }
  func.func @transform_17(%arg0: i32, %arg1: i32) -> (i32, i32, i32) {
    %c0_i32 = arith.constant 0 : i32
    %c0_i32_0 = arith.constant 0 : i32
    %c0_i32_1 = arith.constant 0 : i32
    return %arg1, %c0_i32, %c0_i32_0 : i32, i32, i32
  }
  func.func @transform_18(%arg0: i32, %arg1: i32) -> (i32, i32, i32) {
    %c0_i32 = arith.constant 0 : i32
    %c0_i32_0 = arith.constant 0 : i32
    %c0_i32_1 = arith.constant 0 : i32
    return %arg1, %c0_i32, %c0_i32_0 : i32, i32, i32
  }
  func.func @transform_19(%arg0: i32, %arg1: i32) -> (i32, i32, i32) {
    %c0_i32 = arith.constant 0 : i32
    %c0_i32_0 = arith.constant 0 : i32
    %c0_i32_1 = arith.constant 0 : i32
    return %arg1, %c0_i32, %c0_i32_0 : i32, i32, i32
  }
  func.func @transform_20(%arg0: i32, %arg1: i32) -> (i32, i32, i32) {
    %c0_i32 = arith.constant 0 : i32
    %c0_i32_0 = arith.constant 0 : i32
    %c0_i32_1 = arith.constant 0 : i32
    return %arg1, %c0_i32, %c0_i32_0 : i32, i32, i32
  }
  func.func @transform_21(%arg0: i32, %arg1: i32) -> (i32, i32, i32) {
    %c0_i32 = arith.constant 0 : i32
    %c0_i32_0 = arith.constant 0 : i32
    %c0_i32_1 = arith.constant 0 : i32
    return %arg1, %c0_i32, %c0_i32_0 : i32, i32, i32
  }
  func.func @transform_22(%arg0: i32, %arg1: i32) -> (i32, i32, i32) {
    %c0_i32 = arith.constant 0 : i32
    %c0_i32_0 = arith.constant 0 : i32
    %c0_i32_1 = arith.constant 0 : i32
    return %arg1, %c0_i32, %c0_i32_0 : i32, i32, i32
  }
  func.func @transform_23(%arg0: i32, %arg1: i32) -> (i32, i32, i32) {
    %c0_i32 = arith.constant 0 : i32
    %c0_i32_0 = arith.constant 0 : i32
    %c0_i32_1 = arith.constant 0 : i32
    return %arg1, %c0_i32, %c0_i32_0 : i32, i32, i32
  }
  func.func @transform_24(%arg0: i32, %arg1: i32) -> (i32, i32, i32) {
    %c0_i32 = arith.constant 0 : i32
    %c0_i32_0 = arith.constant 0 : i32
    %c0_i32_1 = arith.constant 0 : i32
    return %arg0, %c0_i32, %c0_i32_0 : i32, i32, i32
  }
}

module attributes {stable_mosaic.version = 11 : i64} {
  func.func @_dec_stack_kernel(%arg0: i32, %arg1: i32, %arg2: memref<1x6x128xf32, #tpu.memory_space<vmem>>, %arg3: memref<1x8x128xf32, #tpu.memory_space<vmem>>, %arg4: memref<1x1x6xf32, #tpu.memory_space<vmem>>, %arg5: memref<1x1x8xf32, #tpu.memory_space<vmem>>, %arg6: memref<96x6xf32, #tpu.memory_space<vmem>>, %arg7: memref<96x128xf32, #tpu.memory_space<vmem>>, %arg8: memref<96x128xf32, #tpu.memory_space<vmem>>, %arg9: memref<6x96xf32, #tpu.memory_space<vmem>>, %arg10: memref<128x128xf32, #tpu.memory_space<vmem>>, %arg11: memref<128x128xf32, #tpu.memory_space<vmem>>, %arg12: memref<1x128x128xf32, #tpu.memory_space<vmem>>, %arg13: memref<1x1x128xf32, #tpu.memory_space<vmem>>, %arg14: memref<1x128x128xf32, #tpu.memory_space<vmem>>, %arg15: memref<1x1x128xf32, #tpu.memory_space<vmem>>, %arg16: memref<1x128x128xf32, #tpu.memory_space<vmem>>, %arg17: memref<1x1x128xf32, #tpu.memory_space<vmem>>, %arg18: memref<1x128x128xf32, #tpu.memory_space<vmem>>, %arg19: memref<1x1x128xf32, #tpu.memory_space<vmem>>, %arg20: memref<1x1x128xf32, #tpu.memory_space<vmem>>, %arg21: memref<1x1x128xf32, #tpu.memory_space<vmem>>, %arg22: memref<1x128x128xf32, #tpu.memory_space<vmem>>, %arg23: memref<1x1x128xf32, #tpu.memory_space<vmem>>, %arg24: memref<1x128x128xf32, #tpu.memory_space<vmem>>, %arg25: memref<1x1x128xf32, #tpu.memory_space<vmem>>, %arg26: memref<1x128x128xf32, #tpu.memory_space<vmem>>, %arg27: memref<1x1x128xf32, #tpu.memory_space<vmem>>, %arg28: memref<1x128x128xf32, #tpu.memory_space<vmem>>, %arg29: memref<1x1x128xf32, #tpu.memory_space<vmem>>, %arg30: memref<1x1x128xf32, #tpu.memory_space<vmem>>, %arg31: memref<1x1x128xf32, #tpu.memory_space<vmem>>, %arg32: memref<1x128x512xf32, #tpu.memory_space<vmem>>, %arg33: memref<1x1x512xf32, #tpu.memory_space<vmem>>, %arg34: memref<1x512x128xf32, #tpu.memory_space<vmem>>, %arg35: memref<1x1x128xf32, #tpu.memory_space<vmem>>, %arg36: memref<1x1x128xf32, #tpu.memory_space<vmem>>, %arg37: memref<1x1x128xf32, #tpu.memory_space<vmem>>, %arg38: memref<1x6x128xf32, #tpu.memory_space<vmem>>, %arg39: memref<6x128xf32, #tpu.memory_space<vmem>>) attributes {dimension_semantics = [#tpu.dimension_semantics<parallel>, #tpu.dimension_semantics<arbitrary>], iteration_bounds = array<i64: 2, 2>, scalar_prefetch = 0 : i64, scratch_operands = 1 : i64, tpu.core_type = #tpu.core_type<tc>, window_params = [{transform_indices = @transform_0, window_bounds = array<i64: 1, 6, 128>}, {transform_indices = @transform_1, window_bounds = array<i64: 1, 8, 128>}, {transform_indices = @transform_2, window_bounds = array<i64: 1, 1, 6>}, {transform_indices = @transform_3, window_bounds = array<i64: 1, 1, 8>}, {pipeline_mode = #tpu.pipeline_mode<synchronous>, transform_indices = @transform_4, window_bounds = array<i64: 96, 6>}, {pipeline_mode = #tpu.pipeline_mode<synchronous>, transform_indices = @transform_5, window_bounds = array<i64: 96, 128>}, {pipeline_mode = #tpu.pipeline_mode<synchronous>, transform_indices = @transform_6, window_bounds = array<i64: 96, 128>}, {pipeline_mode = #tpu.pipeline_mode<synchronous>, transform_indices = @transform_7, window_bounds = array<i64: 6, 96>}, {pipeline_mode = #tpu.pipeline_mode<synchronous>, transform_indices = @transform_8, window_bounds = array<i64: 128, 128>}, {pipeline_mode = #tpu.pipeline_mode<synchronous>, transform_indices = @transform_9, window_bounds = array<i64: 128, 128>}, {transform_indices = @transform_10, window_bounds = array<i64: 1, 128, 128>}, {transform_indices = @transform_11, window_bounds = array<i64: 1, 1, 128>}, {transform_indices = @transform_12, window_bounds = array<i64: 1, 128, 128>}, {transform_indices = @transform_13, window_bounds = array<i64: 1, 1, 128>}, {transform_indices = @transform_14, window_bounds = array<i64: 1, 128, 128>}, {transform_indices = @transform_15, window_bounds = array<i64: 1, 1, 128>}, {transform_indices = @transform_16, window_bounds = array<i64: 1, 128, 128>}, {transform_indices = @transform_17, window_bounds = array<i64: 1, 1, 128>}, {transform_indices = @transform_18, window_bounds = array<i64: 1, 1, 128>}, {transform_indices = @transform_19, window_bounds = array<i64: 1, 1, 128>}, {transform_indices = @transform_20, window_bounds = array<i64: 1, 128, 128>}, {transform_indices = @transform_21, window_bounds = array<i64: 1, 1, 128>}, {transform_indices = @transform_22, window_bounds = array<i64: 1, 128, 128>}, {transform_indices = @transform_23, window_bounds = array<i64: 1, 1, 128>}, {transform_indices = @transform_24, window_bounds = array<i64: 1, 128, 128>}, {transform_indices = @transform_25, window_bounds = array<i64: 1, 1, 128>}, {transform_indices = @transform_26, window_bounds = array<i64: 1, 128, 128>}, {transform_indices = @transform_27, window_bounds = array<i64: 1, 1, 128>}, {transform_indices = @transform_28, window_bounds = array<i64: 1, 1, 128>}, {transform_indices = @transform_29, window_bounds = array<i64: 1, 1, 128>}, {transform_indices = @transform_30, window_bounds = array<i64: 1, 128, 512>}, {transform_indices = @transform_31, window_bounds = array<i64: 1, 1, 512>}, {transform_indices = @transform_32, window_bounds = array<i64: 1, 512, 128>}, {transform_indices = @transform_33, window_bounds = array<i64: 1, 1, 128>}, {transform_indices = @transform_34, window_bounds = array<i64: 1, 1, 128>}, {transform_indices = @transform_35, window_bounds = array<i64: 1, 1, 128>}, {transform_indices = @transform_36, window_bounds = array<i64: 1, 6, 128>}]} {
    %c0_i32 = arith.constant 0 : i32
    %0 = arith.cmpi eq, %arg1, %c0_i32 : i32
    %1 = arith.extui %0 : i1 to i32
    %c0_i32_0 = arith.constant 0 : i32
    %2 = arith.cmpi ne, %1, %c0_i32_0 : i32
    scf.if %2 {
      %c0_135 = arith.constant 0 : index
      %c0_136 = arith.constant 0 : index
      %c0_137 = arith.constant 0 : index
      %177 = vector.load %arg2[%c0_135, %c0_136, %c0_137] : memref<1x6x128xf32, #tpu.memory_space<vmem>>, vector<1x6x128xf32>
      %178 = vector.shape_cast %177 : vector<1x6x128xf32> to vector<6x128xf32>
      %c0_138 = arith.constant 0 : index
      %c0_139 = arith.constant 0 : index
      %179 = vector.load %arg39[%c0_138, %c0_139] : memref<6x128xf32, #tpu.memory_space<vmem>>, vector<6x128xf32>
      tpu.vector_store %arg39[%c0_138, %c0_139], %178 {strides = array<i32>} : memref<6x128xf32, #tpu.memory_space<vmem>>, vector<6x128xf32>,
    } else {
    }
    %c0 = arith.constant 0 : index
    %c0_1 = arith.constant 0 : index
    %3 = vector.load %arg39[%c0, %c0_1] : memref<6x128xf32, #tpu.memory_space<vmem>>, vector<6x128xf32>
    %c0_2 = arith.constant 0 : index
    %c0_3 = arith.constant 0 : index
    %4 = vector.load %arg10[%c0_2, %c0_3] : memref<128x128xf32, #tpu.memory_space<vmem>>, vector<128x128xf32>
    %c0_4 = arith.constant 0 : index
    %c0_5 = arith.constant 0 : index
    %5 = vector.load %arg11[%c0_4, %c0_5] : memref<128x128xf32, #tpu.memory_space<vmem>>, vector<128x128xf32>
    %c0_6 = arith.constant 0 : index
    %c0_7 = arith.constant 0 : index
    %6 = vector.load %arg6[%c0_6, %c0_7] : memref<96x6xf32, #tpu.memory_space<vmem>>, vector<96x6xf32>
    %c0_8 = arith.constant 0 : index
    %c0_9 = arith.constant 0 : index
    %7 = vector.load %arg7[%c0_8, %c0_9] : memref<96x128xf32, #tpu.memory_space<vmem>>, vector<96x128xf32>
    %c0_10 = arith.constant 0 : index
    %c0_11 = arith.constant 0 : index
    %8 = vector.load %arg8[%c0_10, %c0_11] : memref<96x128xf32, #tpu.memory_space<vmem>>, vector<96x128xf32>
    %c0_12 = arith.constant 0 : index
    %c0_13 = arith.constant 0 : index
    %9 = vector.load %arg9[%c0_12, %c0_13] : memref<6x96xf32, #tpu.memory_space<vmem>>, vector<6x96xf32>
    %c0_14 = arith.constant 0 : index
    %c0_15 = arith.constant 0 : index
    %c0_16 = arith.constant 0 : index
    %10 = vector.load %arg4[%c0_14, %c0_15, %c0_16] : memref<1x1x6xf32, #tpu.memory_space<vmem>>, vector<1x1x6xf32>
    %11 = vector.shape_cast %10 : vector<1x1x6xf32> to vector<1x6xf32>
    %c0_17 = arith.constant 0 : index
    %c0_18 = arith.constant 0 : index
    %c0_19 = arith.constant 0 : index
    %12 = vector.load %arg12[%c0_17, %c0_18, %c0_19] : memref<1x128x128xf32, #tpu.memory_space<vmem>>, vector<1x128x128xf32>
    %13 = vector.shape_cast %12 : vector<1x128x128xf32> to vector<128x128xf32>
    %c0_20 = arith.constant 0 : index
    %c0_21 = arith.constant 0 : index
    %c0_22 = arith.constant 0 : index
    %14 = vector.load %arg13[%c0_20, %c0_21, %c0_22] : memref<1x1x128xf32, #tpu.memory_space<vmem>>, vector<1x1x128xf32>
    %15 = vector.shape_cast %14 : vector<1x1x128xf32> to vector<1x128xf32>
    %c0_23 = arith.constant 0 : index
    %c0_24 = arith.constant 0 : index
    %c0_25 = arith.constant 0 : index
    %16 = vector.load %arg14[%c0_23, %c0_24, %c0_25] : memref<1x128x128xf32, #tpu.memory_space<vmem>>, vector<1x128x128xf32>
    %17 = vector.shape_cast %16 : vector<1x128x128xf32> to vector<128x128xf32>
    %c0_26 = arith.constant 0 : index
    %c0_27 = arith.constant 0 : index
    %c0_28 = arith.constant 0 : index
    %18 = vector.load %arg15[%c0_26, %c0_27, %c0_28] : memref<1x1x128xf32, #tpu.memory_space<vmem>>, vector<1x1x128xf32>
    %19 = vector.shape_cast %18 : vector<1x1x128xf32> to vector<1x128xf32>
    %c0_29 = arith.constant 0 : index
    %c0_30 = arith.constant 0 : index
    %c0_31 = arith.constant 0 : index
    %20 = vector.load %arg16[%c0_29, %c0_30, %c0_31] : memref<1x128x128xf32, #tpu.memory_space<vmem>>, vector<1x128x128xf32>
    %21 = vector.shape_cast %20 : vector<1x128x128xf32> to vector<128x128xf32>
    %c0_32 = arith.constant 0 : index
    %c0_33 = arith.constant 0 : index
    %c0_34 = arith.constant 0 : index
    %22 = vector.load %arg17[%c0_32, %c0_33, %c0_34] : memref<1x1x128xf32, #tpu.memory_space<vmem>>, vector<1x1x128xf32>
    %23 = vector.shape_cast %22 : vector<1x1x128xf32> to vector<1x128xf32>
    %c0_35 = arith.constant 0 : index
    %c0_36 = arith.constant 0 : index
    %c0_37 = arith.constant 0 : index
    %24 = vector.load %arg18[%c0_35, %c0_36, %c0_37] : memref<1x128x128xf32, #tpu.memory_space<vmem>>, vector<1x128x128xf32>
    %25 = vector.shape_cast %24 : vector<1x128x128xf32> to vector<128x128xf32>
    %c0_38 = arith.constant 0 : index
    %c0_39 = arith.constant 0 : index
    %c0_40 = arith.constant 0 : index
    %26 = vector.load %arg19[%c0_38, %c0_39, %c0_40] : memref<1x1x128xf32, #tpu.memory_space<vmem>>, vector<1x1x128xf32>
    %27 = vector.shape_cast %26 : vector<1x1x128xf32> to vector<1x128xf32>
    %c0_41 = arith.constant 0 : index
    %c0_42 = arith.constant 0 : index
    %c0_43 = arith.constant 0 : index
    %28 = vector.load %arg20[%c0_41, %c0_42, %c0_43] : memref<1x1x128xf32, #tpu.memory_space<vmem>>, vector<1x1x128xf32>
    %29 = vector.shape_cast %28 : vector<1x1x128xf32> to vector<1x128xf32>
    %c0_44 = arith.constant 0 : index
    %c0_45 = arith.constant 0 : index
    %c0_46 = arith.constant 0 : index
    %30 = vector.load %arg21[%c0_44, %c0_45, %c0_46] : memref<1x1x128xf32, #tpu.memory_space<vmem>>, vector<1x1x128xf32>
    %31 = vector.shape_cast %30 : vector<1x1x128xf32> to vector<1x128xf32>
    %cst = arith.constant dense<0.000000e+00> : vector<6x128xf32>
    %32 = tpu.matmul %3, %13, %cst {dimension_numbers = #tpu.dot_dimension_numbers<[1], [0], [0], [1], [0, 0, 1, 1], [], []>} : vector<6x128xf32>, vector<128x128xf32>, vector<6x128xf32> -> vector<6x128xf32>
    %33 = vector.broadcast %15 : vector<1x128xf32> to vector<6x128xf32>
    %34 = arith.addf %32, %33 : vector<6x128xf32>
    %cst_47 = arith.constant dense<0.000000e+00> : vector<6x128xf32>
    %35 = tpu.matmul %3, %17, %cst_47 {dimension_numbers = #tpu.dot_dimension_numbers<[1], [0], [0], [1], [0, 0, 1, 1], [], []>} : vector<6x128xf32>, vector<128x128xf32>, vector<6x128xf32> -> vector<6x128xf32>
    %36 = vector.broadcast %19 : vector<1x128xf32> to vector<6x128xf32>
    %37 = arith.addf %35, %36 : vector<6x128xf32>
    %cst_48 = arith.constant dense<0.000000e+00> : vector<6x128xf32>
    %38 = tpu.matmul %3, %21, %cst_48 {dimension_numbers = #tpu.dot_dimension_numbers<[1], [0], [0], [1], [0, 0, 1, 1], [], []>} : vector<6x128xf32>, vector<128x128xf32>, vector<6x128xf32> -> vector<6x128xf32>
    %39 = vector.broadcast %23 : vector<1x128xf32> to vector<6x128xf32>
    %40 = arith.addf %38, %39 : vector<6x128xf32>
    %cst_49 = arith.constant dense<0.000000e+00> : vector<96x128xf32>
    %41 = tpu.matmul %6, %34, %cst_49 {dimension_numbers = #tpu.dot_dimension_numbers<[1], [0], [0], [1], [0, 0, 1, 1], [], []>} : vector<96x6xf32>, vector<6x128xf32>, vector<96x128xf32> -> vector<96x128xf32>
    %42 = arith.mulf %41, %7 : vector<96x128xf32>
    %cst_50 = arith.constant dense<0.000000e+00> : vector<96x6xf32>
    %43 = tpu.matmul %42, %37, %cst_50 {dimension_numbers = #tpu.dot_dimension_numbers<[1], [1], [0], [0], [0, 0, 1, 0], [], []>} : vector<96x128xf32>, vector<6x128xf32>, vector<96x6xf32> -> vector<96x6xf32>
    %44 = vector.broadcast %11 : vector<1x6xf32> to vector<96x6xf32>
    %45 = arith.addf %43, %44 : vector<96x6xf32>
    %cst_51 = arith.constant dense<0xFF800000> : vector<96xf32>
    %46 = vector.multi_reduction <maximumf>, %45, %cst_51 [1] : vector<96x6xf32> to vector<96xf32>
    %47 = vector.shape_cast %46 : vector<96xf32> to vector<96x1xf32>
    %48 = vector.broadcast %47 : vector<96x1xf32> to vector<96x6xf32>
    %49 = arith.subf %45, %48 : vector<96x6xf32>
    %50 = math.exp %49 : vector<96x6xf32>
    %cst_52 = arith.constant dense<0.000000e+00> : vector<96xf32>
    %51 = vector.multi_reduction <add>, %50, %cst_52 [1] : vector<96x6xf32> to vector<96xf32>
    %52 = vector.shape_cast %51 : vector<96xf32> to vector<96x1xf32>
    %53 = vector.broadcast %52 : vector<96x1xf32> to vector<96x6xf32>
    %54 = arith.divf %50, %53 : vector<96x6xf32>
    %cst_53 = arith.constant dense<0.000000e+00> : vector<96x128xf32>
    %55 = tpu.matmul %54, %40, %cst_53 {dimension_numbers = #tpu.dot_dimension_numbers<[1], [0], [0], [1], [0, 0, 1, 1], [], []>} : vector<96x6xf32>, vector<6x128xf32>, vector<96x128xf32> -> vector<96x128xf32>
    %56 = arith.mulf %55, %8 : vector<96x128xf32>
    %cst_54 = arith.constant dense<0.000000e+00> : vector<6x128xf32>
    %57 = tpu.matmul %9, %56, %cst_54 {dimension_numbers = #tpu.dot_dimension_numbers<[1], [0], [0], [1], [0, 0, 1, 1], [], []>} : vector<6x96xf32>, vector<96x128xf32>, vector<6x128xf32> -> vector<6x128xf32>
    %cst_55 = arith.constant dense<0.000000e+00> : vector<6x128xf32>
    %58 = tpu.matmul %57, %25, %cst_55 {dimension_numbers = #tpu.dot_dimension_numbers<[1], [0], [0], [1], [0, 0, 1, 1], [], []>} : vector<6x128xf32>, vector<128x128xf32>, vector<6x128xf32> -> vector<6x128xf32>
    %59 = vector.broadcast %27 : vector<1x128xf32> to vector<6x128xf32>
    %60 = arith.addf %58, %59 : vector<6x128xf32>
    %61 = arith.addf %60, %3 : vector<6x128xf32>
    %cst_56 = arith.constant dense<0.000000e+00> : vector<6x128xf32>
    %62 = tpu.matmul %61, %4, %cst_56 {dimension_numbers = #tpu.dot_dimension_numbers<[1], [0], [0], [1], [0, 0, 1, 1], [], []>} : vector<6x128xf32>, vector<128x128xf32>, vector<6x128xf32> -> vector<6x128xf32>
    %63 = arith.subf %61, %62 : vector<6x128xf32>
    %64 = arith.mulf %63, %63 : vector<6x128xf32>
    %cst_57 = arith.constant dense<0.000000e+00> : vector<6x128xf32>
    %65 = tpu.matmul %64, %5, %cst_57 {dimension_numbers = #tpu.dot_dimension_numbers<[1], [0], [0], [1], [0, 0, 1, 1], [], []>} : vector<6x128xf32>, vector<128x128xf32>, vector<6x128xf32> -> vector<6x128xf32>
    %66 = math.sqrt %65 : vector<6x128xf32>
    %cst_58 = arith.constant 9.99999997E-7 : f32
    %67 = vector.broadcast %cst_58 : f32 to vector<6x128xf32>
    %68 = arith.addf %66, %67 : vector<6x128xf32>
    %69 = arith.divf %63, %68 : vector<6x128xf32>
    %70 = vector.broadcast %29 : vector<1x128xf32> to vector<6x128xf32>
    %71 = arith.mulf %70, %69 : vector<6x128xf32>
    %72 = vector.broadcast %31 : vector<1x128xf32> to vector<6x128xf32>
    %73 = arith.addf %71, %72 : vector<6x128xf32>
    %c0_59 = arith.constant 0 : index
    %c0_60 = arith.constant 0 : index
    %c0_61 = arith.constant 0 : index
    %74 = vector.load %arg3[%c0_59, %c0_60, %c0_61] : memref<1x8x128xf32, #tpu.memory_space<vmem>>, vector<1x8x128xf32>
    %75 = vector.shape_cast %74 : vector<1x8x128xf32> to vector<8x128xf32>
    %c0_62 = arith.constant 0 : index
    %c0_63 = arith.constant 0 : index
    %c0_64 = arith.constant 0 : index
    %76 = vector.load %arg5[%c0_62, %c0_63, %c0_64] : memref<1x1x8xf32, #tpu.memory_space<vmem>>, vector<1x1x8xf32>
    %77 = vector.shape_cast %76 : vector<1x1x8xf32> to vector<1x8xf32>
    %c0_65 = arith.constant 0 : index
    %c0_66 = arith.constant 0 : index
    %c0_67 = arith.constant 0 : index
    %78 = vector.load %arg22[%c0_65, %c0_66, %c0_67] : memref<1x128x128xf32, #tpu.memory_space<vmem>>, vector<1x128x128xf32>
    %79 = vector.shape_cast %78 : vector<1x128x128xf32> to vector<128x128xf32>
    %c0_68 = arith.constant 0 : index
    %c0_69 = arith.constant 0 : index
    %c0_70 = arith.constant 0 : index
    %80 = vector.load %arg23[%c0_68, %c0_69, %c0_70] : memref<1x1x128xf32, #tpu.memory_space<vmem>>, vector<1x1x128xf32>
    %81 = vector.shape_cast %80 : vector<1x1x128xf32> to vector<1x128xf32>
    %c0_71 = arith.constant 0 : index
    %c0_72 = arith.constant 0 : index
    %c0_73 = arith.constant 0 : index
    %82 = vector.load %arg24[%c0_71, %c0_72, %c0_73] : memref<1x128x128xf32, #tpu.memory_space<vmem>>, vector<1x128x128xf32>
    %83 = vector.shape_cast %82 : vector<1x128x128xf32> to vector<128x128xf32>
    %c0_74 = arith.constant 0 : index
    %c0_75 = arith.constant 0 : index
    %c0_76 = arith.constant 0 : index
    %84 = vector.load %arg25[%c0_74, %c0_75, %c0_76] : memref<1x1x128xf32, #tpu.memory_space<vmem>>, vector<1x1x128xf32>
    %85 = vector.shape_cast %84 : vector<1x1x128xf32> to vector<1x128xf32>
    %c0_77 = arith.constant 0 : index
    %c0_78 = arith.constant 0 : index
    %c0_79 = arith.constant 0 : index
    %86 = vector.load %arg26[%c0_77, %c0_78, %c0_79] : memref<1x128x128xf32, #tpu.memory_space<vmem>>, vector<1x128x128xf32>
    %87 = vector.shape_cast %86 : vector<1x128x128xf32> to vector<128x128xf32>
    %c0_80 = arith.constant 0 : index
    %c0_81 = arith.constant 0 : index
    %c0_82 = arith.constant 0 : index
    %88 = vector.load %arg27[%c0_80, %c0_81, %c0_82] : memref<1x1x128xf32, #tpu.memory_space<vmem>>, vector<1x1x128xf32>
    %89 = vector.shape_cast %88 : vector<1x1x128xf32> to vector<1x128xf32>
    %c0_83 = arith.constant 0 : index
    %c0_84 = arith.constant 0 : index
    %c0_85 = arith.constant 0 : index
    %90 = vector.load %arg28[%c0_83, %c0_84, %c0_85] : memref<1x128x128xf32, #tpu.memory_space<vmem>>, vector<1x128x128xf32>
    %91 = vector.shape_cast %90 : vector<1x128x128xf32> to vector<128x128xf32>
    %c0_86 = arith.constant 0 : index
    %c0_87 = arith.constant 0 : index
    %c0_88 = arith.constant 0 : index
    %92 = vector.load %arg29[%c0_86, %c0_87, %c0_88] : memref<1x1x128xf32, #tpu.memory_space<vmem>>, vector<1x1x128xf32>
    %93 = vector.shape_cast %92 : vector<1x1x128xf32> to vector<1x128xf32>
    %c0_89 = arith.constant 0 : index
    %c0_90 = arith.constant 0 : index
    %c0_91 = arith.constant 0 : index
    %94 = vector.load %arg30[%c0_89, %c0_90, %c0_91] : memref<1x1x128xf32, #tpu.memory_space<vmem>>, vector<1x1x128xf32>
    %95 = vector.shape_cast %94 : vector<1x1x128xf32> to vector<1x128xf32>
    %c0_92 = arith.constant 0 : index
    %c0_93 = arith.constant 0 : index
    %c0_94 = arith.constant 0 : index
    %96 = vector.load %arg31[%c0_92, %c0_93, %c0_94] : memref<1x1x128xf32, #tpu.memory_space<vmem>>, vector<1x1x128xf32>
    %97 = vector.shape_cast %96 : vector<1x1x128xf32> to vector<1x128xf32>
    %cst_95 = arith.constant dense<0.000000e+00> : vector<6x128xf32>
    %98 = tpu.matmul %73, %79, %cst_95 {dimension_numbers = #tpu.dot_dimension_numbers<[1], [0], [0], [1], [0, 0, 1, 1], [], []>} : vector<6x128xf32>, vector<128x128xf32>, vector<6x128xf32> -> vector<6x128xf32>
    %99 = vector.broadcast %81 : vector<1x128xf32> to vector<6x128xf32>
    %100 = arith.addf %98, %99 : vector<6x128xf32>
    %cst_96 = arith.constant dense<0.000000e+00> : vector<8x128xf32>
    %101 = tpu.matmul %75, %83, %cst_96 {dimension_numbers = #tpu.dot_dimension_numbers<[1], [0], [0], [1], [0, 0, 1, 1], [], []>} : vector<8x128xf32>, vector<128x128xf32>, vector<8x128xf32> -> vector<8x128xf32>
    %102 = vector.broadcast %85 : vector<1x128xf32> to vector<8x128xf32>
    %103 = arith.addf %101, %102 : vector<8x128xf32>
    %cst_97 = arith.constant dense<0.000000e+00> : vector<8x128xf32>
    %104 = tpu.matmul %75, %87, %cst_97 {dimension_numbers = #tpu.dot_dimension_numbers<[1], [0], [0], [1], [0, 0, 1, 1], [], []>} : vector<8x128xf32>, vector<128x128xf32>, vector<8x128xf32> -> vector<8x128xf32>
    %105 = vector.broadcast %89 : vector<1x128xf32> to vector<8x128xf32>
    %106 = arith.addf %104, %105 : vector<8x128xf32>
    %cst_98 = arith.constant dense<0.000000e+00> : vector<96x128xf32>
    %107 = tpu.matmul %6, %100, %cst_98 {dimension_numbers = #tpu.dot_dimension_numbers<[1], [0], [0], [1], [0, 0, 1, 1], [], []>} : vector<96x6xf32>, vector<6x128xf32>, vector<96x128xf32> -> vector<96x128xf32>
    %108 = arith.mulf %107, %7 : vector<96x128xf32>
    %cst_99 = arith.constant dense<0.000000e+00> : vector<96x8xf32>
    %109 = tpu.matmul %108, %103, %cst_99 {dimension_numbers = #tpu.dot_dimension_numbers<[1], [1], [0], [0], [0, 0, 1, 0], [], []>} : vector<96x128xf32>, vector<8x128xf32>, vector<96x8xf32> -> vector<96x8xf32>
    %110 = vector.broadcast %77 : vector<1x8xf32> to vector<96x8xf32>
    %111 = arith.addf %109, %110 : vector<96x8xf32>
    %cst_100 = arith.constant dense<0xFF800000> : vector<96xf32>
    %112 = vector.multi_reduction <maximumf>, %111, %cst_100 [1] : vector<96x8xf32> to vector<96xf32>
    %113 = vector.shape_cast %112 : vector<96xf32> to vector<96x1xf32>
    %114 = vector.broadcast %113 : vector<96x1xf32> to vector<96x8xf32>
    %115 = arith.subf %111, %114 : vector<96x8xf32>
    %116 = math.exp %115 : vector<96x8xf32>
    %cst_101 = arith.constant dense<0.000000e+00> : vector<96xf32>
    %117 = vector.multi_reduction <add>, %116, %cst_101 [1] : vector<96x8xf32> to vector<96xf32>
    %118 = vector.shape_cast %117 : vector<96xf32> to vector<96x1xf32>
    %119 = vector.broadcast %118 : vector<96x1xf32> to vector<96x8xf32>
    %120 = arith.divf %116, %119 : vector<96x8xf32>
    %cst_102 = arith.constant dense<0.000000e+00> : vector<96x128xf32>
    %121 = tpu.matmul %120, %106, %cst_102 {dimension_numbers = #tpu.dot_dimension_numbers<[1], [0], [0], [1], [0, 0, 1, 1], [], []>} : vector<96x8xf32>, vector<8x128xf32>, vector<96x128xf32> -> vector<96x128xf32>
    %122 = arith.mulf %121, %8 : vector<96x128xf32>
    %cst_103 = arith.constant dense<0.000000e+00> : vector<6x128xf32>
    %123 = tpu.matmul %9, %122, %cst_103 {dimension_numbers = #tpu.dot_dimension_numbers<[1], [0], [0], [1], [0, 0, 1, 1], [], []>} : vector<6x96xf32>, vector<96x128xf32>, vector<6x128xf32> -> vector<6x128xf32>
    %cst_104 = arith.constant dense<0.000000e+00> : vector<6x128xf32>
    %124 = tpu.matmul %123, %91, %cst_104 {dimension_numbers = #tpu.dot_dimension_numbers<[1], [0], [0], [1], [0, 0, 1, 1], [], []>} : vector<6x128xf32>, vector<128x128xf32>, vector<6x128xf32> -> vector<6x128xf32>
    %125 = vector.broadcast %93 : vector<1x128xf32> to vector<6x128xf32>
    %126 = arith.addf %124, %125 : vector<6x128xf32>
    %127 = arith.addf %126, %73 : vector<6x128xf32>
    %cst_105 = arith.constant dense<0.000000e+00> : vector<6x128xf32>
    %128 = tpu.matmul %127, %4, %cst_105 {dimension_numbers = #tpu.dot_dimension_numbers<[1], [0], [0], [1], [0, 0, 1, 1], [], []>} : vector<6x128xf32>, vector<128x128xf32>, vector<6x128xf32> -> vector<6x128xf32>
    %129 = arith.subf %127, %128 : vector<6x128xf32>
    %130 = arith.mulf %129, %129 : vector<6x128xf32>
    %cst_106 = arith.constant dense<0.000000e+00> : vector<6x128xf32>
    %131 = tpu.matmul %130, %5, %cst_106 {dimension_numbers = #tpu.dot_dimension_numbers<[1], [0], [0], [1], [0, 0, 1, 1], [], []>} : vector<6x128xf32>, vector<128x128xf32>, vector<6x128xf32> -> vector<6x128xf32>
    %132 = math.sqrt %131 : vector<6x128xf32>
    %cst_107 = arith.constant 9.99999997E-7 : f32
    %133 = vector.broadcast %cst_107 : f32 to vector<6x128xf32>
    %134 = arith.addf %132, %133 : vector<6x128xf32>
    %135 = arith.divf %129, %134 : vector<6x128xf32>
    %136 = vector.broadcast %95 : vector<1x128xf32> to vector<6x128xf32>
    %137 = arith.mulf %136, %135 : vector<6x128xf32>
    %138 = vector.broadcast %97 : vector<1x128xf32> to vector<6x128xf32>
    %139 = arith.addf %137, %138 : vector<6x128xf32>
    %c0_108 = arith.constant 0 : index
    %c0_109 = arith.constant 0 : index
    %c0_110 = arith.constant 0 : index
    %140 = vector.load %arg32[%c0_108, %c0_109, %c0_110] : memref<1x128x512xf32, #tpu.memory_space<vmem>>, vector<1x128x512xf32>
    %141 = vector.shape_cast %140 : vector<1x128x512xf32> to vector<128x512xf32>
    %c0_111 = arith.constant 0 : index
    %c0_112 = arith.constant 0 : index
    %c0_113 = arith.constant 0 : index
    %142 = vector.load %arg33[%c0_111, %c0_112, %c0_113] : memref<1x1x512xf32, #tpu.memory_space<vmem>>, vector<1x1x512xf32>
    %143 = vector.shape_cast %142 : vector<1x1x512xf32> to vector<1x512xf32>
    %c0_114 = arith.constant 0 : index
    %c0_115 = arith.constant 0 : index
    %c0_116 = arith.constant 0 : index
    %144 = vector.load %arg34[%c0_114, %c0_115, %c0_116] : memref<1x512x128xf32, #tpu.memory_space<vmem>>, vector<1x512x128xf32>
    %145 = vector.shape_cast %144 : vector<1x512x128xf32> to vector<512x128xf32>
    %c0_117 = arith.constant 0 : index
    %c0_118 = arith.constant 0 : index
    %c0_119 = arith.constant 0 : index
    %146 = vector.load %arg35[%c0_117, %c0_118, %c0_119] : memref<1x1x128xf32, #tpu.memory_space<vmem>>, vector<1x1x128xf32>
    %147 = vector.shape_cast %146 : vector<1x1x128xf32> to vector<1x128xf32>
    %c0_120 = arith.constant 0 : index
    %c0_121 = arith.constant 0 : index
    %c0_122 = arith.constant 0 : index
    %148 = vector.load %arg36[%c0_120, %c0_121, %c0_122] : memref<1x1x128xf32, #tpu.memory_space<vmem>>, vector<1x1x128xf32>
    %149 = vector.shape_cast %148 : vector<1x1x128xf32> to vector<1x128xf32>
    %c0_123 = arith.constant 0 : index
    %c0_124 = arith.constant 0 : index
    %c0_125 = arith.constant 0 : index
    %150 = vector.load %arg37[%c0_123, %c0_124, %c0_125] : memref<1x1x128xf32, #tpu.memory_space<vmem>>, vector<1x1x128xf32>
    %151 = vector.shape_cast %150 : vector<1x1x128xf32> to vector<1x128xf32>
    %cst_126 = arith.constant dense<0.000000e+00> : vector<6x512xf32>
    %152 = tpu.matmul %139, %141, %cst_126 {dimension_numbers = #tpu.dot_dimension_numbers<[1], [0], [0], [1], [0, 0, 1, 1], [], []>} : vector<6x128xf32>, vector<128x512xf32>, vector<6x512xf32> -> vector<6x512xf32>
    %153 = vector.broadcast %143 : vector<1x512xf32> to vector<6x512xf32>
    %154 = arith.addf %152, %153 : vector<6x512xf32>
    %cst_127 = arith.constant 0.000000e+00 : f32
    %155 = vector.broadcast %cst_127 : f32 to vector<6x512xf32>
    %156 = arith.maximumf %154, %155 : vector<6x512xf32>
    %cst_128 = arith.constant dense<0.000000e+00> : vector<6x128xf32>
    %157 = tpu.matmul %156, %145, %cst_128 {dimension_numbers = #tpu.dot_dimension_numbers<[1], [0], [0], [1], [0, 0, 1, 1], [], []>} : vector<6x512xf32>, vector<512x128xf32>, vector<6x128xf32> -> vector<6x128xf32>
    %158 = vector.broadcast %147 : vector<1x128xf32> to vector<6x128xf32>
    %159 = arith.addf %157, %158 : vector<6x128xf32>
    %160 = arith.addf %159, %139 : vector<6x128xf32>
    %cst_129 = arith.constant dense<0.000000e+00> : vector<6x128xf32>
    %161 = tpu.matmul %160, %4, %cst_129 {dimension_numbers = #tpu.dot_dimension_numbers<[1], [0], [0], [1], [0, 0, 1, 1], [], []>} : vector<6x128xf32>, vector<128x128xf32>, vector<6x128xf32> -> vector<6x128xf32>
    %162 = arith.subf %160, %161 : vector<6x128xf32>
    %163 = arith.mulf %162, %162 : vector<6x128xf32>
    %cst_130 = arith.constant dense<0.000000e+00> : vector<6x128xf32>
    %164 = tpu.matmul %163, %5, %cst_130 {dimension_numbers = #tpu.dot_dimension_numbers<[1], [0], [0], [1], [0, 0, 1, 1], [], []>} : vector<6x128xf32>, vector<128x128xf32>, vector<6x128xf32> -> vector<6x128xf32>
    %165 = math.sqrt %164 : vector<6x128xf32>
    %cst_131 = arith.constant 9.99999997E-7 : f32
    %166 = vector.broadcast %cst_131 : f32 to vector<6x128xf32>
    %167 = arith.addf %165, %166 : vector<6x128xf32>
    %168 = arith.divf %162, %167 : vector<6x128xf32>
    %169 = vector.broadcast %149 : vector<1x128xf32> to vector<6x128xf32>
    %170 = arith.mulf %169, %168 : vector<6x128xf32>
    %171 = vector.broadcast %151 : vector<1x128xf32> to vector<6x128xf32>
    %172 = arith.addf %170, %171 : vector<6x128xf32>
    %c0_132 = arith.constant 0 : index
    %c0_133 = arith.constant 0 : index
    %173 = vector.load %arg39[%c0_132, %c0_133] : memref<6x128xf32, #tpu.memory_space<vmem>>, vector<6x128xf32>
    tpu.vector_store %arg39[%c0_132, %c0_133], %172 {strides = array<i32>} : memref<6x128xf32, #tpu.memory_space<vmem>>, vector<6x128xf32>,
    %c1_i32 = arith.constant 1 : i32
    %174 = arith.cmpi eq, %arg1, %c1_i32 : i32
    %175 = arith.extui %174 : i1 to i32
    %c0_i32_134 = arith.constant 0 : i32
    %176 = arith.cmpi ne, %175, %c0_i32_134 : i32
    scf.if %176 {
      %c0_135 = arith.constant 0 : index
      %c0_136 = arith.constant 0 : index
      %c0_137 = arith.constant 0 : index
      %177 = vector.load %arg38[%c0_135, %c0_136, %c0_137] : memref<1x6x128xf32, #tpu.memory_space<vmem>>, vector<1x6x128xf32>
      %178 = vector.shape_cast %177 : vector<1x6x128xf32> to vector<6x128xf32>
      %179 = vector.shape_cast %172 : vector<6x128xf32> to vector<1x6x128xf32>
      tpu.vector_store %arg38[%c0_135, %c0_136, %c0_137], %179 {strides = array<i32>} : memref<1x6x128xf32, #tpu.memory_space<vmem>>, vector<1x6x128xf32>,
    } else {
    }
    return
  }
  func.func @transform_0(%arg0: i32, %arg1: i32) -> (i32, i32, i32) {
    %c0_i32 = arith.constant 0 : i32
    %c0_i32_0 = arith.constant 0 : i32
    %c0_i32_1 = arith.constant 0 : i32
    return %arg0, %c0_i32, %c0_i32_0 : i32, i32, i32
  }
  func.func @transform_1(%arg0: i32, %arg1: i32) -> (i32, i32, i32) {
    %c0_i32 = arith.constant 0 : i32
    %c0_i32_0 = arith.constant 0 : i32
    %c0_i32_1 = arith.constant 0 : i32
    return %arg0, %c0_i32, %c0_i32_0 : i32, i32, i32
  }
  func.func @transform_2(%arg0: i32, %arg1: i32) -> (i32, i32, i32) {
    %c0_i32 = arith.constant 0 : i32
    %c0_i32_0 = arith.constant 0 : i32
    %c0_i32_1 = arith.constant 0 : i32
    return %arg0, %c0_i32, %c0_i32_0 : i32, i32, i32
  }
  func.func @transform_3(%arg0: i32, %arg1: i32) -> (i32, i32, i32) {
    %c0_i32 = arith.constant 0 : i32
    %c0_i32_0 = arith.constant 0 : i32
    %c0_i32_1 = arith.constant 0 : i32
    return %arg0, %c0_i32, %c0_i32_0 : i32, i32, i32
  }
  func.func @transform_4(%arg0: i32, %arg1: i32) -> (i32, i32) {
    %c0_i32 = arith.constant 0 : i32
    %c0_i32_0 = arith.constant 0 : i32
    %c0_i32_1 = arith.constant 0 : i32
    return %c0_i32, %c0_i32_0 : i32, i32
  }
  func.func @transform_5(%arg0: i32, %arg1: i32) -> (i32, i32) {
    %c0_i32 = arith.constant 0 : i32
    %c0_i32_0 = arith.constant 0 : i32
    %c0_i32_1 = arith.constant 0 : i32
    return %c0_i32, %c0_i32_0 : i32, i32
  }
  func.func @transform_6(%arg0: i32, %arg1: i32) -> (i32, i32) {
    %c0_i32 = arith.constant 0 : i32
    %c0_i32_0 = arith.constant 0 : i32
    %c0_i32_1 = arith.constant 0 : i32
    return %c0_i32, %c0_i32_0 : i32, i32
  }
  func.func @transform_7(%arg0: i32, %arg1: i32) -> (i32, i32) {
    %c0_i32 = arith.constant 0 : i32
    %c0_i32_0 = arith.constant 0 : i32
    %c0_i32_1 = arith.constant 0 : i32
    return %c0_i32, %c0_i32_0 : i32, i32
  }
  func.func @transform_8(%arg0: i32, %arg1: i32) -> (i32, i32) {
    %c0_i32 = arith.constant 0 : i32
    %c0_i32_0 = arith.constant 0 : i32
    %c0_i32_1 = arith.constant 0 : i32
    return %c0_i32, %c0_i32_0 : i32, i32
  }
  func.func @transform_9(%arg0: i32, %arg1: i32) -> (i32, i32) {
    %c0_i32 = arith.constant 0 : i32
    %c0_i32_0 = arith.constant 0 : i32
    %c0_i32_1 = arith.constant 0 : i32
    return %c0_i32, %c0_i32_0 : i32, i32
  }
  func.func @transform_10(%arg0: i32, %arg1: i32) -> (i32, i32, i32) {
    %c0_i32 = arith.constant 0 : i32
    %c0_i32_0 = arith.constant 0 : i32
    %c0_i32_1 = arith.constant 0 : i32
    return %arg1, %c0_i32, %c0_i32_0 : i32, i32, i32
  }
  func.func @transform_11(%arg0: i32, %arg1: i32) -> (i32, i32, i32) {
    %c0_i32 = arith.constant 0 : i32
    %c0_i32_0 = arith.constant 0 : i32
    %c0_i32_1 = arith.constant 0 : i32
    return %arg1, %c0_i32, %c0_i32_0 : i32, i32, i32
  }
  func.func @transform_12(%arg0: i32, %arg1: i32) -> (i32, i32, i32) {
    %c0_i32 = arith.constant 0 : i32
    %c0_i32_0 = arith.constant 0 : i32
    %c0_i32_1 = arith.constant 0 : i32
    return %arg1, %c0_i32, %c0_i32_0 : i32, i32, i32
  }
  func.func @transform_13(%arg0: i32, %arg1: i32) -> (i32, i32, i32) {
    %c0_i32 = arith.constant 0 : i32
    %c0_i32_0 = arith.constant 0 : i32
    %c0_i32_1 = arith.constant 0 : i32
    return %arg1, %c0_i32, %c0_i32_0 : i32, i32, i32
  }
  func.func @transform_14(%arg0: i32, %arg1: i32) -> (i32, i32, i32) {
    %c0_i32 = arith.constant 0 : i32
    %c0_i32_0 = arith.constant 0 : i32
    %c0_i32_1 = arith.constant 0 : i32
    return %arg1, %c0_i32, %c0_i32_0 : i32, i32, i32
  }
  func.func @transform_15(%arg0: i32, %arg1: i32) -> (i32, i32, i32) {
    %c0_i32 = arith.constant 0 : i32
    %c0_i32_0 = arith.constant 0 : i32
    %c0_i32_1 = arith.constant 0 : i32
    return %arg1, %c0_i32, %c0_i32_0 : i32, i32, i32
  }
  func.func @transform_16(%arg0: i32, %arg1: i32) -> (i32, i32, i32) {
    %c0_i32 = arith.constant 0 : i32
    %c0_i32_0 = arith.constant 0 : i32
    %c0_i32_1 = arith.constant 0 : i32
    return %arg1, %c0_i32, %c0_i32_0 : i32, i32, i32
  }
  func.func @transform_17(%arg0: i32, %arg1: i32) -> (i32, i32, i32) {
    %c0_i32 = arith.constant 0 : i32
    %c0_i32_0 = arith.constant 0 : i32
    %c0_i32_1 = arith.constant 0 : i32
    return %arg1, %c0_i32, %c0_i32_0 : i32, i32, i32
  }
  func.func @transform_18(%arg0: i32, %arg1: i32) -> (i32, i32, i32) {
    %c0_i32 = arith.constant 0 : i32
    %c0_i32_0 = arith.constant 0 : i32
    %c0_i32_1 = arith.constant 0 : i32
    return %arg1, %c0_i32, %c0_i32_0 : i32, i32, i32
  }
  func.func @transform_19(%arg0: i32, %arg1: i32) -> (i32, i32, i32) {
    %c0_i32 = arith.constant 0 : i32
    %c0_i32_0 = arith.constant 0 : i32
    %c0_i32_1 = arith.constant 0 : i32
    return %arg1, %c0_i32, %c0_i32_0 : i32, i32, i32
  }
  func.func @transform_20(%arg0: i32, %arg1: i32) -> (i32, i32, i32) {
    %c0_i32 = arith.constant 0 : i32
    %c0_i32_0 = arith.constant 0 : i32
    %c0_i32_1 = arith.constant 0 : i32
    return %arg1, %c0_i32, %c0_i32_0 : i32, i32, i32
  }
  func.func @transform_21(%arg0: i32, %arg1: i32) -> (i32, i32, i32) {
    %c0_i32 = arith.constant 0 : i32
    %c0_i32_0 = arith.constant 0 : i32
    %c0_i32_1 = arith.constant 0 : i32
    return %arg1, %c0_i32, %c0_i32_0 : i32, i32, i32
  }
  func.func @transform_22(%arg0: i32, %arg1: i32) -> (i32, i32, i32) {
    %c0_i32 = arith.constant 0 : i32
    %c0_i32_0 = arith.constant 0 : i32
    %c0_i32_1 = arith.constant 0 : i32
    return %arg1, %c0_i32, %c0_i32_0 : i32, i32, i32
  }
  func.func @transform_23(%arg0: i32, %arg1: i32) -> (i32, i32, i32) {
    %c0_i32 = arith.constant 0 : i32
    %c0_i32_0 = arith.constant 0 : i32
    %c0_i32_1 = arith.constant 0 : i32
    return %arg1, %c0_i32, %c0_i32_0 : i32, i32, i32
  }
  func.func @transform_24(%arg0: i32, %arg1: i32) -> (i32, i32, i32) {
    %c0_i32 = arith.constant 0 : i32
    %c0_i32_0 = arith.constant 0 : i32
    %c0_i32_1 = arith.constant 0 : i32
    return %arg1, %c0_i32, %c0_i32_0 : i32, i32, i32
  }
  func.func @transform_25(%arg0: i32, %arg1: i32) -> (i32, i32, i32) {
    %c0_i32 = arith.constant 0 : i32
    %c0_i32_0 = arith.constant 0 : i32
    %c0_i32_1 = arith.constant 0 : i32
    return %arg1, %c0_i32, %c0_i32_0 : i32, i32, i32
  }
  func.func @transform_26(%arg0: i32, %arg1: i32) -> (i32, i32, i32) {
    %c0_i32 = arith.constant 0 : i32
    %c0_i32_0 = arith.constant 0 : i32
    %c0_i32_1 = arith.constant 0 : i32
    return %arg1, %c0_i32, %c0_i32_0 : i32, i32, i32
  }
  func.func @transform_27(%arg0: i32, %arg1: i32) -> (i32, i32, i32) {
    %c0_i32 = arith.constant 0 : i32
    %c0_i32_0 = arith.constant 0 : i32
    %c0_i32_1 = arith.constant 0 : i32
    return %arg1, %c0_i32, %c0_i32_0 : i32, i32, i32
  }
  func.func @transform_28(%arg0: i32, %arg1: i32) -> (i32, i32, i32) {
    %c0_i32 = arith.constant 0 : i32
    %c0_i32_0 = arith.constant 0 : i32
    %c0_i32_1 = arith.constant 0 : i32
    return %arg1, %c0_i32, %c0_i32_0 : i32, i32, i32
  }
  func.func @transform_29(%arg0: i32, %arg1: i32) -> (i32, i32, i32) {
    %c0_i32 = arith.constant 0 : i32
    %c0_i32_0 = arith.constant 0 : i32
    %c0_i32_1 = arith.constant 0 : i32
    return %arg1, %c0_i32, %c0_i32_0 : i32, i32, i32
  }
  func.func @transform_30(%arg0: i32, %arg1: i32) -> (i32, i32, i32) {
    %c0_i32 = arith.constant 0 : i32
    %c0_i32_0 = arith.constant 0 : i32
    %c0_i32_1 = arith.constant 0 : i32
    return %arg1, %c0_i32, %c0_i32_0 : i32, i32, i32
  }
  func.func @transform_31(%arg0: i32, %arg1: i32) -> (i32, i32, i32) {
    %c0_i32 = arith.constant 0 : i32
    %c0_i32_0 = arith.constant 0 : i32
    %c0_i32_1 = arith.constant 0 : i32
    return %arg1, %c0_i32, %c0_i32_0 : i32, i32, i32
  }
  func.func @transform_32(%arg0: i32, %arg1: i32) -> (i32, i32, i32) {
    %c0_i32 = arith.constant 0 : i32
    %c0_i32_0 = arith.constant 0 : i32
    %c0_i32_1 = arith.constant 0 : i32
    return %arg1, %c0_i32, %c0_i32_0 : i32, i32, i32
  }
  func.func @transform_33(%arg0: i32, %arg1: i32) -> (i32, i32, i32) {
    %c0_i32 = arith.constant 0 : i32
    %c0_i32_0 = arith.constant 0 : i32
    %c0_i32_1 = arith.constant 0 : i32
    return %arg1, %c0_i32, %c0_i32_0 : i32, i32, i32
  }
  func.func @transform_34(%arg0: i32, %arg1: i32) -> (i32, i32, i32) {
    %c0_i32 = arith.constant 0 : i32
    %c0_i32_0 = arith.constant 0 : i32
    %c0_i32_1 = arith.constant 0 : i32
    return %arg1, %c0_i32, %c0_i32_0 : i32, i32, i32
  }
  func.func @transform_35(%arg0: i32, %arg1: i32) -> (i32, i32, i32) {
    %c0_i32 = arith.constant 0 : i32
    %c0_i32_0 = arith.constant 0 : i32
    %c0_i32_1 = arith.constant 0 : i32
    return %arg1, %c0_i32, %c0_i32_0 : i32, i32, i32
  }
  func.func @transform_36(%arg0: i32, %arg1: i32) -> (i32, i32, i32) {
    %c0_i32 = arith.constant 0 : i32
    %c0_i32_0 = arith.constant 0 : i32
    %c0_i32_1 = arith.constant 0 : i32
    return %arg0, %c0_i32, %c0_i32_0 : i32, i32, i32
  }
}

</mosaic_0001>

<llo_original>
// kernel: mca_ed_forward.2
$region0: #{mca_ed_forward.2}
  #allocation0 [shape = 'u32[]', space=smem, size = 0x4, offset = 0x4, fixed_abs, tag = 'smem constant byte address 0x4 - core index']
  #allocation1 [shape = 'u32[144,128]{1,0:T(1,128)}', space=vmem, size = 0x12000, scoped, tag = 'internal scratch']
  #allocation2 [shape = 'f32[8,128]{1,0:T(8,128)}', space=vmem, size = 0x1000, scoped, tag = 'scratch operand']
  %s0 = inlined_call_operand.vmem [shape: f32[2,8,128], index: 0, kind: input, shape index: {}]
  %s1 = inlined_call_operand.vmem [shape: f32[2,1,8], index: 1, kind: input, shape index: {}]
  %s2 = inlined_call_operand.vmem [shape: f32[128,8], index: 2, kind: input, shape index: {}]
  %s3 = inlined_call_operand.vmem [shape: f32[128,128], index: 3, kind: input, shape index: {}, may-alias: {3,4}]
  %s4 = inlined_call_operand.vmem [shape: f32[128,128], index: 4, kind: input, shape index: {}, may-alias: {3,4}]
  %s5 = inlined_call_operand.vmem [shape: f32[8,128], index: 5, kind: input, shape index: {}]
  %s6 = inlined_call_operand.vmem [shape: f32[128,128], index: 6, kind: input, shape index: {}]
  %s7 = inlined_call_operand.vmem [shape: f32[128,128], index: 7, kind: input, shape index: {}]
  %s8 = inlined_call_operand.vmem [shape: f32[2,128,128], index: 8, kind: input, shape index: {}]
  %s9 = inlined_call_operand.vmem [shape: f32[2,1,128], index: 9, kind: input, shape index: {}]
  %s10 = inlined_call_operand.vmem [shape: f32[2,128,128], index: 10, kind: input, shape index: {}]
  %s11 = inlined_call_operand.vmem [shape: f32[2,1,128], index: 11, kind: input, shape index: {}]
  %s12 = inlined_call_operand.hbm [shape: f32[2,128,128], index: 12, kind: input, shape index: {}]
  %s13 = inlined_call_operand.vmem [shape: f32[2,1,128], index: 13, kind: input, shape index: {}]
  %s14 = inlined_call_operand.hbm [shape: f32[2,128,128], index: 14, kind: input, shape index: {}]
  %s15 = inlined_call_operand.vmem [shape: f32[2,1,128], index: 15, kind: input, shape index: {}]
  %s16 = inlined_call_operand.vmem [shape: f32[2,1,128], index: 16, kind: input, shape index: {}]
  %s17 = inlined_call_operand.vmem [shape: f32[2,1,128], index: 17, kind: input, shape index: {}]
  %s18 = inlined_call_operand.hbm [shape: f32[2,128,512], index: 18, kind: input, shape index: {}]
  %s19 = inlined_call_operand.vmem [shape: f32[2,1,512], index: 19, kind: input, shape index: {}]
  %s20 = inlined_call_operand.hbm [shape: f32[2,512,128], index: 20, kind: input, shape index: {}]
  %s21 = inlined_call_operand.vmem [shape: f32[2,1,128], index: 21, kind: input, shape index: {}]
  %s22 = inlined_call_operand.vmem [shape: f32[2,1,128], index: 22, kind: input, shape index: {}]
  %s23 = inlined_call_operand.vmem [shape: f32[2,1,128], index: 23, kind: input, shape index: {}]
  %s24 = inlined_call_operand.vmem [shape: f32[2,8,128], index: 24, kind: output, shape index: {}]
  %s25 = sld [smem:[#allocation0]]
  $region153: #{mca_ed_forward.2} parent=0
    _
  %s27 = ssub.s32 1, %s25
  %s28 = scalar_select 0, %s27, %s25
  $region1: #{mca_ed_forward.2} parent=0
    #allocation3 [shape = 'u8[131072]{0}', space=vmem, size = 0x20000, scoped, tag = 'input window, operand 12']
    #allocation4 [shape = 's32[2]{0}', space=sflag, size = 0x8, scoped, tag = 'scoped memory for mca_ed_forward.2']
    #allocation5 [shape = 'u8[131072]{0}', space=vmem, size = 0x20000, scoped, tag = 'input window, operand 14']
    #allocation6 [shape = 's32[2]{0}', space=sflag, size = 0x8, scoped, tag = 'scoped memory for mca_ed_forward.2']
    #allocation7 [shape = 'u8[524288]{0}', space=vmem, size = 0x80000, scoped, tag = 'input window, operand 18']
    #allocation8 [shape = 'u8[524288]{0}', space=vmem, size = 0x80000, scoped, tag = 'input window, operand 20']
    #allocation9 [shape = 's32[2]{0}', space=sflag, size = 0x8, scoped, tag = 'scoped memory for mca_ed_forward.2']
    %29 = vsyncpa [#allocation4], 0
    %s30 = scalar_lea.sflag [#allocation4], 1
    %31 = vsyncpa %s30, 0
    %32 = vsyncpa [#allocation6], 0
    %s33 = scalar_lea.sflag [#allocation6], 1
    %34 = vsyncpa %s33, 0
    %35 = vsyncpa [#allocation9], 0
    %s36 = scalar_lea.sflag [#allocation9], 1
    %37 = vsyncpa %s36, 0
    loop: start=0, step=1, limit=6
    $region2: #{mca_ed_forward.2} parent=1 // loop_pre_header
      _
    $region3: #{mca_ed_forward.2} parent=1 // loop_header
      %s39 = sphi 0, %s43
      %p40 = scmp.ge.s32.totalorder %s39, 6
      %s46 = sphi 0, %s58
      %s47 = sphi 0, %s54
      %s48 = sphi 0, %s46
      %s49 = sphi 0, %s47
      %s50 = sphi 0, %s48
      %s51 = sphi 0, %s49
      %s61 = sphi 0, %s63
      %s64 = sphi 0, %s61
      %s65 = sphi 0, %s64
      %s81 = sphi 0, %s65
      %s87 = sphi 0, %s89
      %s90 = sphi 0, %s87
      %s91 = sphi 0, %s90
      %s107 = sphi 0, %s91
      %s111 = sphi 0, %s111
      %s113 = sphi 0, %s111
      %s114 = sphi 0, %s113
      %s128 = sphi 0, %s114
      %s132 = sphi 0, %s132
      %s134 = sphi 0, %s132
      %s135 = sphi 0, %s134
      %s149 = sphi 0, %s135
      %s153 = sphi 0, %s153
      %s155 = sphi 0, %s153
      %s156 = sphi 0, %s155
      %s170 = sphi 0, %s156
      %s174 = sphi 0, %s174
      %s176 = sphi 0, %s174
      %s177 = sphi 0, %s176
      %s191 = sphi 0, %s177
      %s195 = sphi 0, %s195
      %s197 = sphi 0, %s195
      %s198 = sphi 0, %s197
      %s212 = sphi 0, %s198
      %s216 = sphi 0, %s216
      %s218 = sphi 0, %s216
      %s219 = sphi 0, %s218
      %s233 = sphi 0, %s219
      %s239 = sphi 0, %s241
      %s242 = sphi 0, %s239
      %s243 = sphi 0, %s242
      %s259 = sphi 0, %s243
      %s265 = sphi 0, %s267
      %s268 = sphi 0, %s265
      %s269 = sphi 0, %s268
      %s285 = sphi 0, %s269
      %s291 = sphi 0, %s293
      %s294 = sphi 0, %s291
      %s295 = sphi 0, %s294
      %s311 = sphi 0, %s295
      %s317 = sphi 0, %s319
      %s320 = sphi 0, %s317
      %s321 = sphi 0, %s320
      %s337 = sphi 0, %s321
      %s343 = sphi 0, %s345
      %s346 = sphi 0, %s343
      %s347 = sphi 0, %s346
      %s363 = sphi 0, %s347
      %s369 = sphi 0, %s371
      %s372 = sphi 0, %s369
      %s373 = sphi 0, %s372
      %s389 = sphi 0, %s373
      %s395 = sphi 0, %s397
      %s398 = sphi 0, %s395
      %s399 = sphi 0, %s398
      %s415 = sphi 0, %s399
      %s421 = sphi 0, %s423
      %s424 = sphi 0, %s421
      %s425 = sphi 0, %s424
      %s441 = sphi 0, %s425
      %s447 = sphi 0, %s449
      %s450 = sphi 0, %s447
      %s451 = sphi 0, %s450
      %s467 = sphi 0, %s451
      %s473 = sphi 0, %s475
      %s476 = sphi 0, %s473
      %s477 = sphi 0, %s476
      %s493 = sphi 0, %s477
      %s499 = sphi 0, %s501
      %s502 = sphi 0, %s499
      %s503 = sphi 0, %s502
      %s519 = sphi 0, %s503
      %s525 = sphi 0, %s527
      %s528 = sphi 0, %s525
      %s529 = sphi 0, %s528
      %s545 = sphi 0, %s529
      %s551 = sphi 0, %s553
      %s554 = sphi 0, %s551
      %s555 = sphi 0, %s554
      %s571 = sphi 0, %s555
      %s577 = sphi 0, %s579
      %s580 = sphi 0, %s577
      %s581 = sphi 0, %s580
      %s597 = sphi 0, %s581
      %s603 = sphi 0, %s605
      %s606 = sphi 0, %s603
      %s607 = sphi 0, %s606
      %s623 = sphi 0, %s607
      %s629 = sphi 0, %s631
      %s632 = sphi 0, %s629
      %s633 = sphi 0, %s632
      %s649 = sphi 0, %s633
      %s655 = sphi 0, %s657
      %s658 = sphi 0, %s655
      %s659 = sphi 0, %s658
      %s675 = sphi 0, %s659
    $region4: #{mca_ed_forward.2} parent=1 // loop_header_branch
      %42 = sbr.rel (%p40) target = $region8
    $region5: #{mca_ed_forward.2} parent=1 // loop_body
      %s44 = ssub.s32 %s39, 1
      %s45 = ssub.s32 %s39, 2
      %s52 = sadd.s32 1, %s47
      %p53 = scmp.ge.s32.totalorder %s52, 2
      %s54 = scalar_select %p53, 0, %s52
      %s55 = sadd.s32 1, %s46
      %s56 = scalar_select %p53, %s55, %s46
      %p57 = scmp.ge.s32.totalorder %s56, 2
      %s58 = scalar_select %p57, 0, %s56
      %s59 = ssub.s32 %s46, %s58
      %p60 = scmp.eq.s32.totalorder %s59, 0
      %s62 = sadd.s32 %s61, 1
      %s63 = scalar_select %p60, %s61, %s62
      %p66 = pneg %p60
      %p67 = scmp.eq.s32.totalorder %s39, 3
      %p68 = por %p66, %p67
      %p69 = scmp.ne.s32.totalorder %s61, %s64
      %p70 = scmp.eq.s32.totalorder %s39, 0
      %p71 = por %p69, %p70
      %p72 = scmp.ne.s32.totalorder %s61, %s64
      %p73 = scmp.eq.s32.totalorder %s44, 3
      %p74 = por %p72, %p73
      %p75 = scmp.ne.s32.totalorder %s64, %s65
      %p76 = scmp.eq.s32.totalorder %s44, 0
      %p77 = por %p75, %p76
      %p78 = scmp.ne.s32.totalorder %s64, %s65
      %p79 = scmp.eq.s32.totalorder %s45, 3
      %p80 = por %p78, %p79
      %p82 = scmp.ne.s32.totalorder %s65, %s81
      %p83 = scmp.eq.s32.totalorder %s45, 0
      %p84 = por %p82, %p83
      %s85 = ssub.s32 %s46, %s58
      %p86 = scmp.eq.s32.totalorder %s85, 0
      %s88 = sadd.s32 %s87, 1
      %s89 = scalar_select %p86, %s87, %s88
      %p92 = pneg %p86
      %p93 = scmp.eq.s32.totalorder %s39, 3
      %p94 = por %p92, %p93
      %p95 = scmp.ne.s32.totalorder %s87, %s90
      %p96 = scmp.eq.s32.totalorder %s39, 0
      %p97 = por %p95, %p96
      %p98 = scmp.ne.s32.totalorder %s87, %s90
      %p99 = scmp.eq.s32.totalorder %s44, 3
      %p100 = por %p98, %p99
      %p101 = scmp.ne.s32.totalorder %s90, %s91
      %p102 = scmp.eq.s32.totalorder %s44, 0
      %p103 = por %p101, %p102
      %p104 = scmp.ne.s32.totalorder %s90, %s91
      %p105 = scmp.eq.s32.totalorder %s45, 3
      %p106 = por %p104, %p105
      %p108 = scmp.ne.s32.totalorder %s91, %s107
      %p109 = scmp.eq.s32.totalorder %s45, 0
      %p110 = por %p108, %p109
      %s112 = sadd.s32 %s111, 1
      %p115 = scmp.eq.s32.totalorder %s39, 3
      %p116 = scmp.ne.s32.totalorder %s111, %s113
      %p117 = scmp.eq.s32.totalorder %s39, 0
      %p118 = por %p116, %p117
      %p119 = scmp.ne.s32.totalorder %s111, %s113
      %p120 = scmp.eq.s32.totalorder %s44, 3
      %p121 = por %p119, %p120
      %p122 = scmp.ne.s32.totalorder %s113, %s114
      %p123 = scmp.eq.s32.totalorder %s44, 0
      %p124 = por %p122, %p123
      %p125 = scmp.ne.s32.totalorder %s113, %s114
      %p126 = scmp.eq.s32.totalorder %s45, 3
      %p127 = por %p125, %p126
      %p129 = scmp.ne.s32.totalorder %s114, %s128
      %p130 = scmp.eq.s32.totalorder %s45, 0
      %p131 = por %p129, %p130
      %s133 = sadd.s32 %s132, 1
      %p136 = scmp.eq.s32.totalorder %s39, 3
      %p137 = scmp.ne.s32.totalorder %s132, %s134
      %p138 = scmp.eq.s32.totalorder %s39, 0
      %p139 = por %p137, %p138
      %p140 = scmp.ne.s32.totalorder %s132, %s134
      %p141 = scmp.eq.s32.totalorder %s44, 3
      %p142 = por %p140, %p141
      %p143 = scmp.ne.s32.totalorder %s134, %s135
      %p144 = scmp.eq.s32.totalorder %s44, 0
      %p145 = por %p143, %p144
      %p146 = scmp.ne.s32.totalorder %s134, %s135
      %p147 = scmp.eq.s32.totalorder %s45, 3
      %p148 = por %p146, %p147
      %p150 = scmp.ne.s32.totalorder %s135, %s149
      %p151 = scmp.eq.s32.totalorder %s45, 0
      %p152 = por %p150, %p151
      %s154 = sadd.s32 %s153, 1
      %p157 = scmp.eq.s32.totalorder %s39, 3
      %p158 = scmp.ne.s32.totalorder %s153, %s155
      %p159 = scmp.eq.s32.totalorder %s39, 0
      %p160 = por %p158, %p159
      %p161 = scmp.ne.s32.totalorder %s153, %s155
      %p162 = scmp.eq.s32.totalorder %s44, 3
      %p163 = por %p161, %p162
      %p164 = scmp.ne.s32.totalorder %s155, %s156
      %p165 = scmp.eq.s32.totalorder %s44, 0
      %p166 = por %p164, %p165
      %p167 = scmp.ne.s32.totalorder %s155, %s156
      %p168 = scmp.eq.s32.totalorder %s45, 3
      %p169 = por %p167, %p168
      %p171 = scmp.ne.s32.totalorder %s156, %s170
      %p172 = scmp.eq.s32.totalorder %s45, 0
      %p173 = por %p171, %p172
      %s175 = sadd.s32 %s174, 1
      %p178 = scmp.eq.s32.totalorder %s39, 3
      %p179 = scmp.ne.s32.totalorder %s174, %s176
      %p180 = scmp.eq.s32.totalorder %s39, 0
      %p181 = por %p179, %p180
      %p182 = scmp.ne.s32.totalorder %s174, %s176
      %p183 = scmp.eq.s32.totalorder %s44, 3
      %p184 = por %p182, %p183
      %p185 = scmp.ne.s32.totalorder %s176, %s177
      %p186 = scmp.eq.s32.totalorder %s44, 0
      %p187 = por %p185, %p186
      %p188 = scmp.ne.s32.totalorder %s176, %s177
      %p189 = scmp.eq.s32.totalorder %s45, 3
      %p190 = por %p188, %p189
      %p192 = scmp.ne.s32.totalorder %s177, %s191
      %p193 = scmp.eq.s32.totalorder %s45, 0
      %p194 = por %p192, %p193
      %s196 = sadd.s32 %s195, 1
      %p199 = scmp.eq.s32.totalorder %s39, 3
      %p200 = scmp.ne.s32.totalorder %s195, %s197
      %p201 = scmp.eq.s32.totalorder %s39, 0
      %p202 = por %p200, %p201
      %p203 = scmp.ne.s32.totalorder %s195, %s197
      %p204 = scmp.eq.s32.totalorder %s44, 3
      %p205 = por %p203, %p204
      %p206 = scmp.ne.s32.totalorder %s197, %s198
      %p207 = scmp.eq.s32.totalorder %s44, 0
      %p208 = por %p206, %p207
      %p209 = scmp.ne.s32.totalorder %s197, %s198
      %p210 = scmp.eq.s32.totalorder %s45, 3
      %p211 = por %p209, %p210
      %p213 = scmp.ne.s32.totalorder %s198, %s212
      %p214 = scmp.eq.s32.totalorder %s45, 0
      %p215 = por %p213, %p214
      %s217 = sadd.s32 %s216, 1
      %p220 = scmp.eq.s32.totalorder %s39, 3
      %p221 = scmp.ne.s32.totalorder %s216, %s218
      %p222 = scmp.eq.s32.totalorder %s39, 0
      %p223 = por %p221, %p222
      %p224 = scmp.ne.s32.totalorder %s216, %s218
      %p225 = scmp.eq.s32.totalorder %s44, 3
      %p226 = por %p224, %p225
      %p227 = scmp.ne.s32.totalorder %s218, %s219
      %p228 = scmp.eq.s32.totalorder %s44, 0
      %p229 = por %p227, %p228
      %p230 = scmp.ne.s32.totalorder %s218, %s219
      %p231 = scmp.eq.s32.totalorder %s45, 3
      %p232 = por %p230, %p231
      %p234 = scmp.ne.s32.totalorder %s219, %s233
      %p235 = scmp.eq.s32.totalorder %s45, 0
      %p236 = por %p234, %p235
      %s237 = ssub.s32 %s47, %s54
      %p238 = scmp.eq.s32.totalorder %s237, 0
      %s240 = sadd.s32 %s239, 1
      %s241 = scalar_select %p238, %s239, %s240
      %p244 = pneg %p238
      %p245 = scmp.eq.s32.totalorder %s39, 3
      %p246 = por %p244, %p245
      %p247 = scmp.ne.s32.totalorder %s239, %s242
      %p248 = scmp.eq.s32.totalorder %s39, 0
      %p249 = por %p247, %p248
      %p250 = scmp.ne.s32.totalorder %s239, %s242
      %p251 = scmp.eq.s32.totalorder %s44, 3
      %p252 = por %p250, %p251
      %p253 = scmp.ne.s32.totalorder %s242, %s243
      %p254 = scmp.eq.s32.totalorder %s44, 0
      %p255 = por %p253, %p254
      %p256 = scmp.ne.s32.totalorder %s242, %s243
      %p257 = scmp.eq.s32.totalorder %s45, 3
      %p258 = por %p256, %p257
      %p260 = scmp.ne.s32.totalorder %s243, %s259
      %p261 = scmp.eq.s32.totalorder %s45, 0
      %p262 = por %p260, %p261
      %s263 = ssub.s32 %s47, %s54
      %p264 = scmp.eq.s32.totalorder %s263, 0
      %s266 = sadd.s32 %s265, 1
      %s267 = scalar_select %p264, %s265, %s266
      %p270 = pneg %p264
      %p271 = scmp.eq.s32.totalorder %s39, 3
      %p272 = por %p270, %p271
      %p273 = scmp.ne.s32.totalorder %s265, %s268
      %p274 = scmp.eq.s32.totalorder %s39, 0
      %p275 = por %p273, %p274
      %p276 = scmp.ne.s32.totalorder %s265, %s268
      %p277 = scmp.eq.s32.totalorder %s44, 3
      %p278 = por %p276, %p277
      %p279 = scmp.ne.s32.totalorder %s268, %s269
      %p280 = scmp.eq.s32.totalorder %s44, 0
      %p281 = por %p279, %p280
      %p282 = scmp.ne.s32.totalorder %s268, %s269
      %p283 = scmp.eq.s32.totalorder %s45, 3
      %p284 = por %p282, %p283
      %p286 = scmp.ne.s32.totalorder %s269, %s285
      %p287 = scmp.eq.s32.totalorder %s45, 0
      %p288 = por %p286, %p287
      %s289 = ssub.s32 %s47, %s54
      %p290 = scmp.eq.s32.totalorder %s289, 0
      %s292 = sadd.s32 %s291, 1
      %s293 = scalar_select %p290, %s291, %s292
      %p296 = pneg %p290
      %p297 = scmp.eq.s32.totalorder %s39, 3
      %p298 = por %p296, %p297
      %p299 = scmp.ne.s32.totalorder %s291, %s294
      %p300 = scmp.eq.s32.totalorder %s39, 0
      %p301 = por %p299, %p300
      %p302 = scmp.ne.s32.totalorder %s291, %s294
      %p303 = scmp.eq.s32.totalorder %s44, 3
      %p304 = por %p302, %p303
      %p305 = scmp.ne.s32.totalorder %s294, %s295
      %p306 = scmp.eq.s32.totalorder %s44, 0
      %p307 = por %p305, %p306
      %p308 = scmp.ne.s32.totalorder %s294, %s295
      %p309 = scmp.eq.s32.totalorder %s45, 3
      %p310 = por %p308, %p309
      %p312 = scmp.ne.s32.totalorder %s295, %s311
      %p313 = scmp.eq.s32.totalorder %s45, 0
      %p314 = por %p312, %p313
      %s315 = ssub.s32 %s47, %s54
      %p316 = scmp.eq.s32.totalorder %s315, 0
      %s318 = sadd.s32 %s317, 1
      %s319 = scalar_select %p316, %s317, %s318
      %p322 = pneg %p316
      %p323 = scmp.eq.s32.totalorder %s39, 3
      %p324 = por %p322, %p323
      %p325 = scmp.ne.s32.totalorder %s317, %s320
      %p326 = scmp.eq.s32.totalorder %s39, 0
      %p327 = por %p325, %p326
      %p328 = scmp.ne.s32.totalorder %s317, %s320
      %p329 = scmp.eq.s32.totalorder %s44, 3
      %p330 = por %p328, %p329
      %p331 = scmp.ne.s32.totalorder %s320, %s321
      %p332 = scmp.eq.s32.totalorder %s44, 0
      %p333 = por %p331, %p332
      %p334 = scmp.ne.s32.totalorder %s320, %s321
      %p335 = scmp.eq.s32.totalorder %s45, 3
      %p336 = por %p334, %p335
      %p338 = scmp.ne.s32.totalorder %s321, %s337
      %p339 = scmp.eq.s32.totalorder %s45, 0
      %p340 = por %p338, %p339
      %s341 = ssub.s32 %s47, %s54
      %p342 = scmp.eq.s32.totalorder %s341, 0
      %s344 = sadd.s32 %s343, 1
      %s345 = scalar_select %p342, %s343, %s344
      %p348 = pneg %p342
      %p349 = scmp.eq.s32.totalorder %s39, 3
      %p350 = por %p348, %p349
      %p351 = scmp.ne.s32.totalorder %s343, %s346
      %p352 = scmp.eq.s32.totalorder %s39, 0
      %p353 = por %p351, %p352
      %p354 = scmp.ne.s32.totalorder %s343, %s346
      %p355 = scmp.eq.s32.totalorder %s44, 3
      %p356 = por %p354, %p355
      %p357 = scmp.ne.s32.totalorder %s346, %s347
      %p358 = scmp.eq.s32.totalorder %s44, 0
      %p359 = por %p357, %p358
      %p360 = scmp.ne.s32.totalorder %s346, %s347
      %p361 = scmp.eq.s32.totalorder %s45, 3
      %p362 = por %p360, %p361
      %p364 = scmp.ne.s32.totalorder %s347, %s363
      %p365 = scmp.eq.s32.totalorder %s45, 0
      %p366 = por %p364, %p365
      %s367 = ssub.s32 %s47, %s54
      %p368 = scmp.eq.s32.totalorder %s367, 0
      %s370 = sadd.s32 %s369, 1
      %s371 = scalar_select %p368, %s369, %s370
      %p374 = pneg %p368
      %p375 = scmp.eq.s32.totalorder %s39, 3
      %p376 = por %p374, %p375
      %p377 = scmp.ne.s32.totalorder %s369, %s372
      %p378 = scmp.eq.s32.totalorder %s39, 0
      %p379 = por %p377, %p378
      %p380 = scmp.ne.s32.totalorder %s369, %s372
      %p381 = scmp.eq.s32.totalorder %s44, 3
      %p382 = por %p380, %p381
      %p383 = scmp.ne.s32.totalorder %s372, %s373
      %p384 = scmp.eq.s32.totalorder %s44, 0
      %p385 = por %p383, %p384
      %p386 = scmp.ne.s32.totalorder %s372, %s373
      %p387 = scmp.eq.s32.totalorder %s45, 3
      %p388 = por %p386, %p387
      %p390 = scmp.ne.s32.totalorder %s373, %s389
      %p391 = scmp.eq.s32.totalorder %s45, 0
      %p392 = por %p390, %p391
      %s393 = ssub.s32 %s47, %s54
      %p394 = scmp.eq.s32.totalorder %s393, 0
      %s396 = sadd.s32 %s395, 1
      %s397 = scalar_select %p394, %s395, %s396
      %p400 = pneg %p394
      %p401 = scmp.eq.s32.totalorder %s39, 3
      %p402 = por %p400, %p401
      %p403 = scmp.ne.s32.totalorder %s395, %s398
      %p404 = scmp.eq.s32.totalorder %s39, 0
      %p405 = por %p403, %p404
      %p406 = scmp.ne.s32.totalorder %s395, %s398
      %p407 = scmp.eq.s32.totalorder %s44, 3
      %p408 = por %p406, %p407
      %p409 = scmp.ne.s32.totalorder %s398, %s399
      %p410 = scmp.eq.s32.totalorder %s44, 0
      %p411 = por %p409, %p410
      %p412 = scmp.ne.s32.totalorder %s398, %s399
      %p413 = scmp.eq.s32.totalorder %s45, 3
      %p414 = por %p412, %p413
      %p416 = scmp.ne.s32.totalorder %s399, %s415
      %p417 = scmp.eq.s32.totalorder %s45, 0
      %p418 = por %p416, %p417
      %s419 = ssub.s32 %s47, %s54
      %p420 = scmp.eq.s32.totalorder %s419, 0
      %s422 = sadd.s32 %s421, 1
      %s423 = scalar_select %p420, %s421, %s422
      %p426 = pneg %p420
      %p427 = scmp.eq.s32.totalorder %s39, 3
      %p428 = por %p426, %p427
      %p429 = scmp.ne.s32.totalorder %s421, %s424
      %p430 = scmp.eq.s32.totalorder %s39, 0
      %p431 = por %p429, %p430
      %p432 = scmp.ne.s32.totalorder %s421, %s424
      %p433 = scmp.eq.s32.totalorder %s44, 3
      %p434 = por %p432, %p433
      %p435 = scmp.ne.s32.totalorder %s424, %s425
      %p436 = scmp.eq.s32.totalorder %s44, 0
      %p437 = por %p435, %p436
      %p438 = scmp.ne.s32.totalorder %s424, %s425
      %p439 = scmp.eq.s32.totalorder %s45, 3
      %p440 = por %p438, %p439
      %p442 = scmp.ne.s32.totalorder %s425, %s441
      %p443 = scmp.eq.s32.totalorder %s45, 0
      %p444 = por %p442, %p443
      %s445 = ssub.s32 %s47, %s54
      %p446 = scmp.eq.s32.totalorder %s445, 0
      %s448 = sadd.s32 %s447, 1
      %s449 = scalar_select %p446, %s447, %s448
      %p452 = pneg %p446
      %p453 = scmp.eq.s32.totalorder %s39, 3
      %p454 = por %p452, %p453
      %p455 = scmp.ne.s32.totalorder %s447, %s450
      %p456 = scmp.eq.s32.totalorder %s39, 0
      %p457 = por %p455, %p456
      %p458 = scmp.ne.s32.totalorder %s447, %s450
      %p459 = scmp.eq.s32.totalorder %s44, 3
      %p460 = por %p458, %p459
      %p461 = scmp.ne.s32.totalorder %s450, %s451
      %p462 = scmp.eq.s32.totalorder %s44, 0
      %p463 = por %p461, %p462
      %p464 = scmp.ne.s32.totalorder %s450, %s451
      %p465 = scmp.eq.s32.totalorder %s45, 3
      %p466 = por %p464, %p465
      %p468 = scmp.ne.s32.totalorder %s451, %s467
      %p469 = scmp.eq.s32.totalorder %s45, 0
      %p470 = por %p468, %p469
      %s471 = ssub.s32 %s47, %s54
      %p472 = scmp.eq.s32.totalorder %s471, 0
      %s474 = sadd.s32 %s473, 1
      %s475 = scalar_select %p472, %s473, %s474
      %p478 = pneg %p472
      %p479 = scmp.eq.s32.totalorder %s39, 3
      %p480 = por %p478, %p479
      %p481 = scmp.ne.s32.totalorder %s473, %s476
      %p482 = scmp.eq.s32.totalorder %s39, 0
      %p483 = por %p481, %p482
      %p484 = scmp.ne.s32.totalorder %s473, %s476
      %p485 = scmp.eq.s32.totalorder %s44, 3
      %p486 = por %p484, %p485
      %p487 = scmp.ne.s32.totalorder %s476, %s477
      %p488 = scmp.eq.s32.totalorder %s44, 0
      %p489 = por %p487, %p488
      %p490 = scmp.ne.s32.totalorder %s476, %s477
      %p491 = scmp.eq.s32.totalorder %s45, 3
      %p492 = por %p490, %p491
      %p494 = scmp.ne.s32.totalorder %s477, %s493
      %p495 = scmp.eq.s32.totalorder %s45, 0
      %p496 = por %p494, %p495
      %s497 = ssub.s32 %s47, %s54
      %p498 = scmp.eq.s32.totalorder %s497, 0
      %s500 = sadd.s32 %s499, 1
      %s501 = scalar_select %p498, %s499, %s500
      %p504 = pneg %p498
      %p505 = scmp.eq.s32.totalorder %s39, 3
      %p506 = por %p504, %p505
      %p507 = scmp.ne.s32.totalorder %s499, %s502
      %p508 = scmp.eq.s32.totalorder %s39, 0
      %p509 = por %p507, %p508
      %p510 = scmp.ne.s32.totalorder %s499, %s502
      %p511 = scmp.eq.s32.totalorder %s44, 3
      %p512 = por %p510, %p511
      %p513 = scmp.ne.s32.totalorder %s502, %s503
      %p514 = scmp.eq.s32.totalorder %s44, 0
      %p515 = por %p513, %p514
      %p516 = scmp.ne.s32.totalorder %s502, %s503
      %p517 = scmp.eq.s32.totalorder %s45, 3
      %p518 = por %p516, %p517
      %p520 = scmp.ne.s32.totalorder %s503, %s519
      %p521 = scmp.eq.s32.totalorder %s45, 0
      %p522 = por %p520, %p521
      %s523 = ssub.s32 %s47, %s54
      %p524 = scmp.eq.s32.totalorder %s523, 0
      %s526 = sadd.s32 %s525, 1
      %s527 = scalar_select %p524, %s525, %s526
      %p530 = pneg %p524
      %p531 = scmp.eq.s32.totalorder %s39, 3
      %p532 = por %p530, %p531
      %p533 = scmp.ne.s32.totalorder %s525, %s528
      %p534 = scmp.eq.s32.totalorder %s39, 0
      %p535 = por %p533, %p534
      %p536 = scmp.ne.s32.totalorder %s525, %s528
      %p537 = scmp.eq.s32.totalorder %s44, 3
      %p538 = por %p536, %p537
      %p539 = scmp.ne.s32.totalorder %s528, %s529
      %p540 = scmp.eq.s32.totalorder %s44, 0
      %p541 = por %p539, %p540
      %p542 = scmp.ne.s32.totalorder %s528, %s529
      %p543 = scmp.eq.s32.totalorder %s45, 3
      %p544 = por %p542, %p543
      %p546 = scmp.ne.s32.totalorder %s529, %s545
      %p547 = scmp.eq.s32.totalorder %s45, 0
      %p548 = por %p546, %p547
      %s549 = ssub.s32 %s47, %s54
      %p550 = scmp.eq.s32.totalorder %s549, 0
      %s552 = sadd.s32 %s551, 1
      %s553 = scalar_select %p550, %s551, %s552
      %p556 = pneg %p550
      %p557 = scmp.eq.s32.totalorder %s39, 3
      %p558 = por %p556, %p557
      %p559 = scmp.ne.s32.totalorder %s551, %s554
      %p560 = scmp.eq.s32.totalorder %s39, 0
      %p561 = por %p559, %p560
      %p562 = scmp.ne.s32.totalorder %s551, %s554
      %p563 = scmp.eq.s32.totalorder %s44, 3
      %p564 = por %p562, %p563
      %p565 = scmp.ne.s32.totalorder %s554, %s555
      %p566 = scmp.eq.s32.totalorder %s44, 0
      %p567 = por %p565, %p566
      %p568 = scmp.ne.s32.totalorder %s554, %s555
      %p569 = scmp.eq.s32.totalorder %s45, 3
      %p570 = por %p568, %p569
      %p572 = scmp.ne.s32.totalorder %s555, %s571
      %p573 = scmp.eq.s32.totalorder %s45, 0
      %p574 = por %p572, %p573
      %s575 = ssub.s32 %s47, %s54
      %p576 = scmp.eq.s32.totalorder %s575, 0
      %s578 = sadd.s32 %s577, 1
      %s579 = scalar_select %p576, %s577, %s578
      %p582 = pneg %p576
      %p583 = scmp.eq.s32.totalorder %s39, 3
      %p584 = por %p582, %p583
      %p585 = scmp.ne.s32.totalorder %s577, %s580
      %p586 = scmp.eq.s32.totalorder %s39, 0
      %p587 = por %p585, %p586
      %p588 = scmp.ne.s32.totalorder %s577, %s580
      %p589 = scmp.eq.s32.totalorder %s44, 3
      %p590 = por %p588, %p589
      %p591 = scmp.ne.s32.totalorder %s580, %s581
      %p592 = scmp.eq.s32.totalorder %s44, 0
      %p593 = por %p591, %p592
      %p594 = scmp.ne.s32.totalorder %s580, %s581
      %p595 = scmp.eq.s32.totalorder %s45, 3
      %p596 = por %p594, %p595
      %p598 = scmp.ne.s32.totalorder %s581, %s597
      %p599 = scmp.eq.s32.totalorder %s45, 0
      %p600 = por %p598, %p599
      %s601 = ssub.s32 %s47, %s54
      %p602 = scmp.eq.s32.totalorder %s601, 0
      %s604 = sadd.s32 %s603, 1
      %s605 = scalar_select %p602, %s603, %s604
      %p608 = pneg %p602
      %p609 = scmp.eq.s32.totalorder %s39, 3
      %p610 = por %p608, %p609
      %p611 = scmp.ne.s32.totalorder %s603, %s606
      %p612 = scmp.eq.s32.totalorder %s39, 0
      %p613 = por %p611, %p612
      %p614 = scmp.ne.s32.totalorder %s603, %s606
      %p615 = scmp.eq.s32.totalorder %s44, 3
      %p616 = por %p614, %p615
      %p617 = scmp.ne.s32.totalorder %s606, %s607
      %p618 = scmp.eq.s32.totalorder %s44, 0
      %p619 = por %p617, %p618
      %p620 = scmp.ne.s32.totalorder %s606, %s607
      %p621 = scmp.eq.s32.totalorder %s45, 3
      %p622 = por %p620, %p621
      %p624 = scmp.ne.s32.totalorder %s607, %s623
      %p625 = scmp.eq.s32.totalorder %s45, 0
      %p626 = por %p624, %p625
      %s627 = ssub.s32 %s47, %s54
      %p628 = scmp.eq.s32.totalorder %s627, 0
      %s630 = sadd.s32 %s629, 1
      %s631 = scalar_select %p628, %s629, %s630
      %p634 = pneg %p628
      %p635 = scmp.eq.s32.totalorder %s39, 3
      %p636 = por %p634, %p635
      %p637 = scmp.ne.s32.totalorder %s629, %s632
      %p638 = scmp.eq.s32.totalorder %s39, 0
      %p639 = por %p637, %p638
      %p640 = scmp.ne.s32.totalorder %s629, %s632
      %p641 = scmp.eq.s32.totalorder %s44, 3
      %p642 = por %p640, %p641
      %p643 = scmp.ne.s32.totalorder %s632, %s633
      %p644 = scmp.eq.s32.totalorder %s44, 0
      %p645 = por %p643, %p644
      %p646 = scmp.ne.s32.totalorder %s632, %s633
      %p647 = scmp.eq.s32.totalorder %s45, 3
      %p648 = por %p646, %p647
      %p650 = scmp.ne.s32.totalorder %s633, %s649
      %p651 = scmp.eq.s32.totalorder %s45, 0
      %p652 = por %p650, %p651
      %s653 = ssub.s32 %s46, %s58
      %p654 = scmp.eq.s32.totalorder %s653, 0
      %s656 = sadd.s32 %s655, 1
      %s657 = scalar_select %p654, %s655, %s656
      %p660 = pneg %p654
      %p661 = scmp.eq.s32.totalorder %s39, 3
      %p662 = por %p660, %p661
      %p663 = scmp.ne.s32.totalorder %s655, %s658
      %p664 = scmp.eq.s32.totalorder %s39, 0
      %p665 = por %p663, %p664
      %p666 = scmp.ne.s32.totalorder %s655, %s658
      %p667 = scmp.eq.s32.totalorder %s44, 3
      %p668 = por %p666, %p667
      %p669 = scmp.ne.s32.totalorder %s658, %s659
      %p670 = scmp.eq.s32.totalorder %s44, 0
      %p671 = por %p669, %p670
      %p672 = scmp.ne.s32.totalorder %s658, %s659
      %p673 = scmp.eq.s32.totalorder %s45, 3
      %p674 = por %p672, %p673
      %p676 = scmp.ne.s32.totalorder %s659, %s675
      %p677 = scmp.eq.s32.totalorder %s45, 0
      %p678 = por %p676, %p677
      %p679 = scmp.le.s32.totalorder 1, %s39
      %p680 = scmp.lt.s32.totalorder %s39, 5
      %p681 = pnand %p679, %p680
      %p682 = pneg %p681
      // Predicated region
      $region9: #{mca_ed_forward.2} parent=5 // pred_check
        _
      $region10: #{mca_ed_forward.2} parent=5 // pred_check_branch
        %684 = sbr.rel (%p681) target = $region12
      $region11: #{mca_ed_forward.2} parent=5 // pred_region
        %s685 = ssub.s32 %s39, 1
        // Predicated region
        $region13: #{mca_ed_forward.2} parent=11 // pred_check
          %p686 = pneg %p124
        $region14: #{mca_ed_forward.2} parent=11 // pred_check_branch
          %688 = sbr.rel (%p686) target = $region16
        $region15: #{mca_ed_forward.2} parent=11 // pred_region
          _
        $region16: #{mca_ed_forward.2} parent=11 // pred_fallthru
          _
        // Predicated region
        $region17: #{mca_ed_forward.2} parent=11 // pred_check
          %p689 = pneg %p145
        $region18: #{mca_ed_forward.2} parent=11 // pred_check_branch
          %691 = sbr.rel (%p689) target = $region20
        $region19: #{mca_ed_forward.2} parent=11 // pred_region
          _
        $region20: #{mca_ed_forward.2} parent=11 // pred_fallthru
          _
        // Predicated region
        $region21: #{mca_ed_forward.2} parent=11 // pred_check
          %p692 = pneg %p166
        $region22: #{mca_ed_forward.2} parent=11 // pred_check_branch
          %694 = sbr.rel (%p692) target = $region24
        $region23: #{mca_ed_forward.2} parent=11 // pred_region
          _
        $region24: #{mca_ed_forward.2} parent=11 // pred_fallthru
          _
        // Predicated region
        $region25: #{mca_ed_forward.2} parent=11 // pred_check
          %p695 = pneg %p187
        $region26: #{mca_ed_forward.2} parent=11 // pred_check_branch
          %697 = sbr.rel (%p695) target = $region28
        $region27: #{mca_ed_forward.2} parent=11 // pred_region
          _
        $region28: #{mca_ed_forward.2} parent=11 // pred_fallthru
          _
        // Predicated region
        $region29: #{mca_ed_forward.2} parent=11 // pred_check
          %p698 = pneg %p208
        $region30: #{mca_ed_forward.2} parent=11 // pred_check_branch
          %700 = sbr.rel (%p698) target = $region32
        $region31: #{mca_ed_forward.2} parent=11 // pred_region
          _
        $region32: #{mca_ed_forward.2} parent=11 // pred_fallthru
          _
        // Predicated region
        $region33: #{mca_ed_forward.2} parent=11 // pred_check
          %p701 = pneg %p229
        $region34: #{mca_ed_forward.2} parent=11 // pred_check_branch
          %703 = sbr.rel (%p701) target = $region36
        $region35: #{mca_ed_forward.2} parent=11 // pred_region
          _
        $region36: #{mca_ed_forward.2} parent=11 // pred_fallthru
          _
      $region12: #{mca_ed_forward.2} parent=5 // pred_fallthru
        _
      %p704 = scmp.lt.s32.totalorder %s39, 4
      // Predicated region
      $region37: #{mca_ed_forward.2} parent=5 // pred_check
        %p705 = pneg %p704
      $region38: #{mca_ed_forward.2} parent=5 // pred_check_branch
        %707 = sbr.rel (%p705) target = $region40
      $region39: #{mca_ed_forward.2} parent=5 // pred_region
        // Predicated region
        $region41: #{mca_ed_forward.2} parent=39 // pred_check
          %p708 = pneg %p71
        $region42: #{mca_ed_forward.2} parent=39 // pred_check_branch
          %710 = sbr.rel (%p708) target = $region44
        $region43: #{mca_ed_forward.2} parent=39 // pred_region
          %p711 = scmp.lt.s32.totalorder %s46, 1
          %s712 = scalar_select %p711, %s46, 1
          %s713 = smul.addr %s712, 8
          %s714 = scalar_lea.vmem %s0, %s713
        $region44: #{mca_ed_forward.2} parent=39 // pred_fallthru
          _
        // Predicated region
        $region45: #{mca_ed_forward.2} parent=39 // pred_check
          %p715 = pneg %p97
        $region46: #{mca_ed_forward.2} parent=39 // pred_check_branch
          %717 = sbr.rel (%p715) target = $region48
        $region47: #{mca_ed_forward.2} parent=39 // pred_region
          %p718 = scmp.lt.s32.totalorder %s46, 1
          %s719 = scalar_select %p718, %s46, 1
          %s720 = scalar_lea.vmem %s1, %s719
        $region48: #{mca_ed_forward.2} parent=39 // pred_fallthru
          _
        // Predicated region
        $region49: #{mca_ed_forward.2} parent=39 // pred_check
          %p721 = pneg %p249
        $region50: #{mca_ed_forward.2} parent=39 // pred_check_branch
          %723 = sbr.rel (%p721) target = $region52
        $region51: #{mca_ed_forward.2} parent=39 // pred_region
          %p724 = scmp.lt.s32.totalorder %s47, 1
          %s725 = scalar_select %p724, %s47, 1
          %s726 = smul.addr %s725, 16
          %s727 = smul.addr %s726, 8
          %s728 = scalar_lea.vmem %s8, %s727
        $region52: #{mca_ed_forward.2} parent=39 // pred_fallthru
          _
        // Predicated region
        $region53: #{mca_ed_forward.2} parent=39 // pred_check
          %p729 = pneg %p275
        $region54: #{mca_ed_forward.2} parent=39 // pred_check_branch
          %731 = sbr.rel (%p729) target = $region56
        $region55: #{mca_ed_forward.2} parent=39 // pred_region
          %p732 = scmp.lt.s32.totalorder %s47, 1
          %s733 = scalar_select %p732, %s47, 1
          %s734 = scalar_lea.vmem %s9, %s733
        $region56: #{mca_ed_forward.2} parent=39 // pred_fallthru
          _
        // Predicated region
        $region57: #{mca_ed_forward.2} parent=39 // pred_check
          %p735 = pneg %p301
        $region58: #{mca_ed_forward.2} parent=39 // pred_check_branch
          %737 = sbr.rel (%p735) target = $region60
        $region59: #{mca_ed_forward.2} parent=39 // pred_region
          %p738 = scmp.lt.s32.totalorder %s47, 1
          %s739 = scalar_select %p738, %s47, 1
          %s740 = smul.addr %s739, 16
          %s741 = smul.addr %s740, 8
          %s742 = scalar_lea.vmem %s10, %s741
        $region60: #{mca_ed_forward.2} parent=39 // pred_fallthru
          _
        // Predicated region
        $region61: #{mca_ed_forward.2} parent=39 // pred_check
          %p743 = pneg %p327
        $region62: #{mca_ed_forward.2} parent=39 // pred_check_branch
          %745 = sbr.rel (%p743) target = $region64
        $region63: #{mca_ed_forward.2} parent=39 // pred_region
          %p746 = scmp.lt.s32.totalorder %s47, 1
          %s747 = scalar_select %p746, %s47, 1
          %s748 = scalar_lea.vmem %s11, %s747
        $region64: #{mca_ed_forward.2} parent=39 // pred_fallthru
          _
        // Predicated region
        $region65: #{mca_ed_forward.2} parent=39 // pred_check
          %p749 = pneg %p353
        $region66: #{mca_ed_forward.2} parent=39 // pred_check_branch
          %751 = sbr.rel (%p749) target = $region68
        $region67: #{mca_ed_forward.2} parent=39 // pred_region
          %s752 = sand.u32 %s343, 1
          %s753 = scalar_lea.sflag [#allocation4], %s752
          %s754 = sand.u32 %s343, 1
          %s755 = smul.addr %s754, 128
          %s756 = scalar_lea.vmem [#allocation3], %s755
          %s758 = ssub.s32 2048, 2048
          %759 = vsyncadd %s753, %s758
          %s760 = smul.addr %s47, 16
          %s761 = smul.addr %s760, 128
          %s762 = scalar_lea.hbm %s12, %s761
          %s763 = sshll.u32 %s756, 4
          %s764 = int_to_ptr.vmem [resolvable:$true] %s763
          %769 = dma.hbm_to_vmem [thread:$0]  %s762, 2048, %s764, %s753, 128, 128, 8
        $region68: #{mca_ed_forward.2} parent=39 // pred_fallthru
          _
        // Predicated region
        $region69: #{mca_ed_forward.2} parent=39 // pred_check
          %p770 = pneg %p379
        $region70: #{mca_ed_forward.2} parent=39 // pred_check_branch
          %772 = sbr.rel (%p770) target = $region72
        $region71: #{mca_ed_forward.2} parent=39 // pred_region
          %p773 = scmp.lt.s32.totalorder %s47, 1
          %s774 = scalar_select %p773, %s47, 1
          %s775 = scalar_lea.vmem %s13, %s774
        $region72: #{mca_ed_forward.2} parent=39 // pred_fallthru
          _
        // Predicated region
        $region73: #{mca_ed_forward.2} parent=39 // pred_check
          %p776 = pneg %p405
        $region74: #{mca_ed_forward.2} parent=39 // pred_check_branch
          %778 = sbr.rel (%p776) target = $region76
        $region75: #{mca_ed_forward.2} parent=39 // pred_region
          %s779 = sand.u32 %s39, 1
          %s780 = scalar_lea.sflag [#allocation6], %s779
          %s781 = sand.u32 %s395, 1
          %s782 = smul.addr %s781, 128
          %s783 = scalar_lea.vmem [#allocation5], %s782
          %s785 = ssub.s32 2048, 2048
          %786 = vsyncadd %s780, %s785
          %s787 = smul.addr %s47, 16
          %s788 = smul.addr %s787, 128
          %s789 = scalar_lea.hbm %s14, %s788
          %s790 = sshll.u32 %s783, 4
          %s791 = int_to_ptr.vmem [resolvable:$true] %s790
          %796 = dma.hbm_to_vmem [thread:$0]  %s789, 2048, %s791, %s780, 128, 128, 8
        $region76: #{mca_ed_forward.2} parent=39 // pred_fallthru
          _
        // Predicated region
        $region77: #{mca_ed_forward.2} parent=39 // pred_check
          %p797 = pneg %p431
        $region78: #{mca_ed_forward.2} parent=39 // pred_check_branch
          %799 = sbr.rel (%p797) target = $region80
        $region79: #{mca_ed_forward.2} parent=39 // pred_region
          %p800 = scmp.lt.s32.totalorder %s47, 1
          %s801 = scalar_select %p800, %s47, 1
          %s802 = scalar_lea.vmem %s15, %s801
        $region80: #{mca_ed_forward.2} parent=39 // pred_fallthru
          _
        // Predicated region
        $region81: #{mca_ed_forward.2} parent=39 // pred_check
          %p803 = pneg %p457
        $region82: #{mca_ed_forward.2} parent=39 // pred_check_branch
          %805 = sbr.rel (%p803) target = $region84
        $region83: #{mca_ed_forward.2} parent=39 // pred_region
          %p806 = scmp.lt.s32.totalorder %s47, 1
          %s807 = scalar_select %p806, %s47, 1
          %s808 = scalar_lea.vmem %s16, %s807
        $region84: #{mca_ed_forward.2} parent=39 // pred_fallthru
          _
        // Predicated region
        $region85: #{mca_ed_forward.2} parent=39 // pred_check
          %p809 = pneg %p483
        $region86: #{mca_ed_forward.2} parent=39 // pred_check_branch
          %811 = sbr.rel (%p809) target = $region88
        $region87: #{mca_ed_forward.2} parent=39 // pred_region
          %p812 = scmp.lt.s32.totalorder %s47, 1
          %s813 = scalar_select %p812, %s47, 1
          %s814 = scalar_lea.vmem %s17, %s813
        $region88: #{mca_ed_forward.2} parent=39 // pred_fallthru
          _
        // Predicated region
        $region89: #{mca_ed_forward.2} parent=39 // pred_check
          %p815 = pneg %p509
        $region90: #{mca_ed_forward.2} parent=39 // pred_check_branch
          %817 = sbr.rel (%p815) target = $region92
        $region91: #{mca_ed_forward.2} parent=39 // pred_region
          %s818 = sand.u32 %s39, 1
          %s819 = scalar_lea.sflag [#allocation6], %s818
          %s820 = sand.u32 %s499, 1
          %s821 = smul.addr %s820, 512
          %s822 = scalar_lea.vmem [#allocation7], %s821
          %s824 = ssub.s32 8192, 8192
          %825 = vsyncadd %s819, %s824
          %s826 = smul.addr %s47, 64
          %s827 = smul.addr %s826, 128
          %s828 = scalar_lea.hbm %s18, %s827
          %s829 = sshll.u32 %s822, 4
          %s830 = int_to_ptr.vmem [resolvable:$true] %s829
          %835 = dma.hbm_to_vmem [thread:$0]  %s828, 8192, %s830, %s819, 512, 512, 32
        $region92: #{mca_ed_forward.2} parent=39 // pred_fallthru
          _
        // Predicated region
        $region93: #{mca_ed_forward.2} parent=39 // pred_check
          %p836 = pneg %p535
        $region94: #{mca_ed_forward.2} parent=39 // pred_check_branch
          %838 = sbr.rel (%p836) target = $region96
        $region95: #{mca_ed_forward.2} parent=39 // pred_region
          %p839 = scmp.lt.s32.totalorder %s47, 1
          %s840 = scalar_select %p839, %s47, 1
          %s841 = smul.addr %s840, 4
          %s842 = scalar_lea.vmem %s19, %s841
        $region96: #{mca_ed_forward.2} parent=39 // pred_fallthru
          _
        // Predicated region
        $region97: #{mca_ed_forward.2} parent=39 // pred_check
          %p843 = pneg %p561
        $region98: #{mca_ed_forward.2} parent=39 // pred_check_branch
          %845 = sbr.rel (%p843) target = $region100
        $region99: #{mca_ed_forward.2} parent=39 // pred_region
          %s846 = sand.u32 %s551, 1
          %s847 = scalar_lea.sflag [#allocation9], %s846
          %s848 = sand.u32 %s551, 1
          %s849 = smul.addr %s848, 512
          %s850 = scalar_lea.vmem [#allocation8], %s849
          %s852 = ssub.s32 8192, 8192
          %853 = vsyncadd %s847, %s852
          %s854 = smul.addr %s47, 64
          %s855 = smul.addr %s854, 128
          %s856 = scalar_lea.hbm %s20, %s855
          %s857 = sshll.u32 %s850, 4
          %s858 = int_to_ptr.vmem [resolvable:$true] %s857
          %863 = dma.hbm_to_vmem [thread:$0]  %s856, 8192, %s858, %s847, 128, 128, 8
        $region100: #{mca_ed_forward.2} parent=39 // pred_fallthru
          _
        // Predicated region
        $region101: #{mca_ed_forward.2} parent=39 // pred_check
          %p864 = pneg %p587
        $region102: #{mca_ed_forward.2} parent=39 // pred_check_branch
          %866 = sbr.rel (%p864) target = $region104
        $region103: #{mca_ed_forward.2} parent=39 // pred_region
          %p867 = scmp.lt.s32.totalorder %s47, 1
          %s868 = scalar_select %p867, %s47, 1
          %s869 = scalar_lea.vmem %s21, %s868
        $region104: #{mca_ed_forward.2} parent=39 // pred_fallthru
          _
        // Predicated region
        $region105: #{mca_ed_forward.2} parent=39 // pred_check
          %p870 = pneg %p613
        $region106: #{mca_ed_forward.2} parent=39 // pred_check_branch
          %872 = sbr.rel (%p870) target = $region108
        $region107: #{mca_ed_forward.2} parent=39 // pred_region
          %p873 = scmp.lt.s32.totalorder %s47, 1
          %s874 = scalar_select %p873, %s47, 1
          %s875 = scalar_lea.vmem %s22, %s874
        $region108: #{mca_ed_forward.2} parent=39 // pred_fallthru
          _
        // Predicated region
        $region109: #{mca_ed_forward.2} parent=39 // pred_check
          %p876 = pneg %p639
        $region110: #{mca_ed_forward.2} parent=39 // pred_check_branch
          %878 = sbr.rel (%p876) target = $region112
        $region111: #{mca_ed_forward.2} parent=39 // pred_region
          %p879 = scmp.lt.s32.totalorder %s47, 1
          %s880 = scalar_select %p879, %s47, 1
          %s881 = scalar_lea.vmem %s23, %s880
        $region112: #{mca_ed_forward.2} parent=39 // pred_fallthru
          _
      $region40: #{mca_ed_forward.2} parent=5 // pred_fallthru
        _
      %p882 = scmp.le.s32.totalorder 1, %s39
      %p883 = scmp.lt.s32.totalorder %s39, 5
      %p884 = pnand %p882, %p883
      %p885 = pneg %p884
      // Predicated region
      $region113: #{mca_ed_forward.2} parent=5 // pred_check
        _
      $region114: #{mca_ed_forward.2} parent=5 // pred_check_branch
        %887 = sbr.rel (%p884) target = $region116
      $region115: #{mca_ed_forward.2} parent=5 // pred_region
        %s888 = ssub.s32 %s39, 1
        %s889 = sand.u32 %s346, 1
        %s890 = scalar_lea.sflag [#allocation4], %s889
        %s891 = sand.u32 %s346, 1
        %s892 = smul.addr %s891, 128
        %s893 = scalar_lea.vmem [#allocation3], %s892
        // Predicated region
        $region117: #{mca_ed_forward.2} parent=115 // pred_check
          %p894 = pneg %p359
        $region118: #{mca_ed_forward.2} parent=115 // pred_check_branch
          %896 = sbr.rel (%p894) target = $region120
        $region119: #{mca_ed_forward.2} parent=115 // pred_region
          %897 = dma.done %s890, 2048
        $region120: #{mca_ed_forward.2} parent=115 // pred_fallthru
          _
        %s898 = sand.u32 %s44, 1
        %s899 = scalar_lea.sflag [#allocation6], %s898
        %s900 = sand.u32 %s398, 1
        %s901 = smul.addr %s900, 128
        %s902 = scalar_lea.vmem [#allocation5], %s901
        // Predicated region
        $region121: #{mca_ed_forward.2} parent=115 // pred_check
          %p903 = pneg %p411
        $region122: #{mca_ed_forward.2} parent=115 // pred_check_branch
          %905 = sbr.rel (%p903) target = $region124
        $region123: #{mca_ed_forward.2} parent=115 // pred_region
          %906 = dma.done %s899, 2048
        $region124: #{mca_ed_forward.2} parent=115 // pred_fallthru
          _
        %s907 = sand.u32 %s44, 1
        %s908 = scalar_lea.sflag [#allocation6], %s907
        %s909 = sand.u32 %s502, 1
        %s910 = smul.addr %s909, 512
        %s911 = scalar_lea.vmem [#allocation7], %s910
        // Predicated region
        $region125: #{mca_ed_forward.2} parent=115 // pred_check
          %p912 = pneg %p515
        $region126: #{mca_ed_forward.2} parent=115 // pred_check_branch
          %914 = sbr.rel (%p912) target = $region128
        $region127: #{mca_ed_forward.2} parent=115 // pred_region
          %915 = dma.done %s908, 8192
        $region128: #{mca_ed_forward.2} parent=115 // pred_fallthru
          _
        %s916 = sand.u32 %s554, 1
        %s917 = scalar_lea.sflag [#allocation9], %s916
        %s918 = sand.u32 %s554, 1
        %s919 = smul.addr %s918, 512
        %s920 = scalar_lea.vmem [#allocation8], %s919
        // Predicated region
        $region129: #{mca_ed_forward.2} parent=115 // pred_check
          %p921 = pneg %p567
        $region130: #{mca_ed_forward.2} parent=115 // pred_check_branch
          %923 = sbr.rel (%p921) target = $region132
        $region131: #{mca_ed_forward.2} parent=115 // pred_region
          %924 = dma.done %s917, 8192
        $region132: #{mca_ed_forward.2} parent=115 // pred_fallthru
          _
        %p925 = scmp.lt.s32.totalorder %s48, 1
        %s926 = scalar_select %p925, %s48, 1
        %s927 = smul.addr %s926, 8
        %s928 = scalar_lea.vmem %s0, %s927
        %p929 = pneg %p77
        %p930 = pneg %p74
        %p931 = scmp.lt.s32.totalorder %s48, 1
        %s932 = scalar_select %p931, %s48, 1
        %s933 = scalar_lea.vmem %s1, %s932
        %p934 = pneg %p103
        %p935 = pneg %p100
        %p936 = pneg %p124
        %p937 = pneg %p121
        %p938 = pneg %p145
        %p939 = pneg %p142
        %p940 = pneg %p166
        %p941 = pneg %p163
        %p942 = pneg %p187
        %p943 = pneg %p184
        %p944 = pneg %p208
        %p945 = pneg %p205
        %p946 = pneg %p229
        %p947 = pneg %p226
        %p948 = scmp.lt.s32.totalorder %s49, 1
        %s949 = scalar_select %p948, %s49, 1
        %s950 = smul.addr %s949, 16
        %s951 = smul.addr %s950, 8
        %s952 = scalar_lea.vmem %s8, %s951
        %p953 = pneg %p255
        %p954 = pneg %p252
        %p955 = scmp.lt.s32.totalorder %s49, 1
        %s956 = scalar_select %p955, %s49, 1
        %s957 = scalar_lea.vmem %s9, %s956
        %p958 = pneg %p281
        %p959 = pneg %p278
        %p960 = scmp.lt.s32.totalorder %s49, 1
        %s961 = scalar_select %p960, %s49, 1
        %s962 = smul.addr %s961, 16
        %s963 = smul.addr %s962, 8
        %s964 = scalar_lea.vmem %s10, %s963
        %p965 = pneg %p307
        %p966 = pneg %p304
        %p967 = scmp.lt.s32.totalorder %s49, 1
        %s968 = scalar_select %p967, %s49, 1
        %s969 = scalar_lea.vmem %s11, %s968
        %p970 = pneg %p333
        %p971 = pneg %p330
        %s972 = sand.u32 %s346, 1
        %s973 = scalar_lea.sflag [#allocation4], %s972
        %s974 = sand.u32 %s346, 1
        %s975 = smul.addr %s974, 128
        %s976 = scalar_lea.vmem [#allocation3], %s975
        %p977 = pneg %p359
        %p978 = pneg %p356
        %p979 = scmp.lt.s32.totalorder %s49, 1
        %s980 = scalar_select %p979, %s49, 1
        %s981 = scalar_lea.vmem %s13, %s980
        %p982 = pneg %p385
        %p983 = pneg %p382
        %s984 = sand.u32 %s44, 1
        %s985 = scalar_lea.sflag [#allocation6], %s984
        %s986 = sand.u32 %s398, 1
        %s987 = smul.addr %s986, 128
        %s988 = scalar_lea.vmem [#allocation5], %s987
        %p989 = pneg %p411
        %p990 = pneg %p408
        %p991 = scmp.lt.s32.totalorder %s49, 1
        %s992 = scalar_select %p991, %s49, 1
        %s993 = scalar_lea.vmem %s15, %s992
        %p994 = pneg %p437
        %p995 = pneg %p434
        %p996 = scmp.lt.s32.totalorder %s49, 1
        %s997 = scalar_select %p996, %s49, 1
        %s998 = scalar_lea.vmem %s16, %s997
        %p999 = pneg %p463
        %p1000 = pneg %p460
        %p1001 = scmp.lt.s32.totalorder %s49, 1
        %s1002 = scalar_select %p1001, %s49, 1
        %s1003 = scalar_lea.vmem %s17, %s1002
        %p1004 = pneg %p489
        %p1005 = pneg %p486
        %s1006 = sand.u32 %s44, 1
        %s1007 = scalar_lea.sflag [#allocation6], %s1006
        %s1008 = sand.u32 %s502, 1
        %s1009 = smul.addr %s1008, 512
        %s1010 = scalar_lea.vmem [#allocation7], %s1009
        %p1011 = pneg %p515
        %p1012 = pneg %p512
        %p1013 = scmp.lt.s32.totalorder %s49, 1
        %s1014 = scalar_select %p1013, %s49, 1
        %s1015 = smul.addr %s1014, 4
        %s1016 = scalar_lea.vmem %s19, %s1015
        %p1017 = pneg %p541
        %p1018 = pneg %p538
        %s1019 = sand.u32 %s554, 1
        %s1020 = scalar_lea.sflag [#allocation9], %s1019
        %s1021 = sand.u32 %s554, 1
        %s1022 = smul.addr %s1021, 512
        %s1023 = scalar_lea.vmem [#allocation8], %s1022
        %p1024 = pneg %p567
        %p1025 = pneg %p564
        %p1026 = scmp.lt.s32.totalorder %s49, 1
        %s1027 = scalar_select %p1026, %s49, 1
        %s1028 = scalar_lea.vmem %s21, %s1027
        %p1029 = pneg %p593
        %p1030 = pneg %p590
        %p1031 = scmp.lt.s32.totalorder %s49, 1
        %s1032 = scalar_select %p1031, %s49, 1
        %s1033 = scalar_lea.vmem %s22, %s1032
        %p1034 = pneg %p619
        %p1035 = pneg %p616
        %p1036 = scmp.lt.s32.totalorder %s49, 1
        %s1037 = scalar_select %p1036, %s49, 1
        %s1038 = scalar_lea.vmem %s23, %s1037
        %p1039 = pneg %p645
        %p1040 = pneg %p642
        %p1041 = pneg %p671
        %p1042 = pneg %p668
        %p1043 = scmp.lt.s32.totalorder %s48, 1
        %s1044 = scalar_select %p1043, %s48, 1
        %s1045 = smul.addr %s1044, 8
        %s1046 = scalar_lea.vmem %s24, %s1045
        %p1047 = scmp.lt.s32.totalorder %s48, 1
        %s1048 = scalar_select %p1047, %s48, 1
        %s1049 = smul.addr %s1048, 8
        %s1050 = scalar_lea.vmem %s0, %s1049
        %p1051 = scmp.lt.s32.totalorder %s48, 1
        %s1052 = scalar_select %p1051, %s48, 1
        %s1053 = scalar_lea.vmem %s1, %s1052
        %p1054 = scmp.lt.s32.totalorder %s49, 1
        %s1055 = scalar_select %p1054, %s49, 1
        %s1056 = smul.addr %s1055, 16
        %s1057 = smul.addr %s1056, 8
        %s1058 = scalar_lea.vmem %s8, %s1057
        %p1059 = scmp.lt.s32.totalorder %s49, 1
        %s1060 = scalar_select %p1059, %s49, 1
        %s1061 = scalar_lea.vmem %s9, %s1060
        %p1062 = scmp.lt.s32.totalorder %s49, 1
        %s1063 = scalar_select %p1062, %s49, 1
        %s1064 = smul.addr %s1063, 16
        %s1065 = smul.addr %s1064, 8
        %s1066 = scalar_lea.vmem %s10, %s1065
        %p1067 = scmp.lt.s32.totalorder %s49, 1
        %s1068 = scalar_select %p1067, %s49, 1
        %s1069 = scalar_lea.vmem %s11, %s1068
        %p1070 = scmp.lt.s32.totalorder %s49, 1
        %s1071 = scalar_select %p1070, %s49, 1
        %s1072 = scalar_lea.vmem %s13, %s1071
        %p1073 = scmp.lt.s32.totalorder %s49, 1
        %s1074 = scalar_select %p1073, %s49, 1
        %s1075 = scalar_lea.vmem %s15, %s1074
        %p1076 = scmp.lt.s32.totalorder %s49, 1
        %s1077 = scalar_select %p1076, %s49, 1
        %s1078 = scalar_lea.vmem %s16, %s1077
        %p1079 = scmp.lt.s32.totalorder %s49, 1
        %s1080 = scalar_select %p1079, %s49, 1
        %s1081 = scalar_lea.vmem %s17, %s1080
        %p1082 = scmp.lt.s32.totalorder %s49, 1
        %s1083 = scalar_select %p1082, %s49, 1
        %s1084 = smul.addr %s1083, 4
        %s1085 = scalar_lea.vmem %s19, %s1084
        %p1086 = scmp.lt.s32.totalorder %s49, 1
        %s1087 = scalar_select %p1086, %s49, 1
        %s1088 = scalar_lea.vmem %s21, %s1087
        %p1089 = scmp.lt.s32.totalorder %s49, 1
        %s1090 = scalar_select %p1089, %s49, 1
        %s1091 = scalar_lea.vmem %s22, %s1090
        %p1092 = scmp.lt.s32.totalorder %s49, 1
        %s1093 = scalar_select %p1092, %s49, 1
        %s1094 = scalar_lea.vmem %s23, %s1093
        %p1095 = scmp.lt.s32.totalorder %s48, 1
        %s1096 = scalar_select %p1095, %s48, 1
        %s1097 = smul.addr %s1096, 8
        %s1098 = scalar_lea.vmem %s24, %s1097
        %p1099 = scmp.eq.s32.totalorder %s49, 0
        // Predicated region
        $region133: #{mca_ed_forward.2} parent=115 // pred_check
          %p1100 = pneg %p1099
        $region134: #{mca_ed_forward.2} parent=115 // pred_check_branch
          %1102 = sbr.rel (%p1100) target = $region136
        $region135: #{mca_ed_forward.2} parent=115 // pred_region
          %v1103 = vld [vmem:[%s1050] sm:$0xff]
          %1104 = vst [vmem:[#allocation2] sm:$0xff] %v1103
        $region136: #{mca_ed_forward.2} parent=115 // pred_fallthru
          _
        %v1105 = vld [vmem:[#allocation2] sm:$0xff]
        %v1106 = vld [vmem:[%s6] sm:$0xff]
        %v1107 = vld [vmem:[%s6 + $0x8] sm:$0xff]
        %v1108 = vld [vmem:[%s6 + $0x10] sm:$0xff]
        %v1109 = vld [vmem:[%s6 + $0x18] sm:$0xff]
        %v1110 = vld [vmem:[%s6 + $0x20] sm:$0xff]
        %v1111 = vld [vmem:[%s6 + $0x28] sm:$0xff]
        %v1112 = vld [vmem:[%s6 + $0x30] sm:$0xff]
        %v1113 = vld [vmem:[%s6 + $0x38] sm:$0xff]
        %v1114 = vld [vmem:[%s6 + $0x40] sm:$0xff]
        %v1115 = vld [vmem:[%s6 + $0x48] sm:$0xff]
        %v1116 = vld [vmem:[%s6 + $0x50] sm:$0xff]
        %v1117 = vld [vmem:[%s6 + $0x58] sm:$0xff]
        %v1118 = vld [vmem:[%s6 + $0x60] sm:$0xff]
        %v1119 = vld [vmem:[%s6 + $0x68] sm:$0xff]
        %v1120 = vld [vmem:[%s6 + $0x70] sm:$0xff]
        %v1121 = vld [vmem:[%s6 + $0x78] sm:$0xff]
        %v1122 = vld [vmem:[%s7] sm:$0xff]
        %v1123 = vld [vmem:[%s7 + $0x8] sm:$0xff]
        %v1124 = vld [vmem:[%s7 + $0x10] sm:$0xff]
        %v1125 = vld [vmem:[%s7 + $0x18] sm:$0xff]
        %v1126 = vld [vmem:[%s7 + $0x20] sm:$0xff]
        %v1127 = vld [vmem:[%s7 + $0x28] sm:$0xff]
        %v1128 = vld [vmem:[%s7 + $0x30] sm:$0xff]
        %v1129 = vld [vmem:[%s7 + $0x38] sm:$0xff]
        %v1130 = vld [vmem:[%s7 + $0x40] sm:$0xff]
        %v1131 = vld [vmem:[%s7 + $0x48] sm:$0xff]
        %v1132 = vld [vmem:[%s7 + $0x50] sm:$0xff]
        %v1133 = vld [vmem:[%s7 + $0x58] sm:$0xff]
        %v1134 = vld [vmem:[%s7 + $0x60] sm:$0xff]
        %v1135 = vld [vmem:[%s7 + $0x68] sm:$0xff]
        %v1136 = vld [vmem:[%s7 + $0x70] sm:$0xff]
        %v1137 = vld [vmem:[%s7 + $0x78] sm:$0xff]
        %v1138 = vld [vmem:[%s1053] sm:$0x1]
        %v1139 = vld [vmem:[%s1058] sm:$0xff]
        %v1140 = vld [vmem:[%s1058 + $0x8] sm:$0xff]
        %v1141 = vld [vmem:[%s1058 + $0x10] sm:$0xff]
        %v1142 = vld [vmem:[%s1058 + $0x18] sm:$0xff]
        %v1143 = vld [vmem:[%s1058 + $0x20] sm:$0xff]
        %v1144 = vld [vmem:[%s1058 + $0x28] sm:$0xff]
        %v1145 = vld [vmem:[%s1058 + $0x30] sm:$0xff]
        %v1146 = vld [vmem:[%s1058 + $0x38] sm:$0xff]
        %v1147 = vld [vmem:[%s1058 + $0x40] sm:$0xff]
        %v1148 = vld [vmem:[%s1058 + $0x48] sm:$0xff]
        %v1149 = vld [vmem:[%s1058 + $0x50] sm:$0xff]
        %v1150 = vld [vmem:[%s1058 + $0x58] sm:$0xff]
        %v1151 = vld [vmem:[%s1058 + $0x60] sm:$0xff]
        %v1152 = vld [vmem:[%s1058 + $0x68] sm:$0xff]
        %v1153 = vld [vmem:[%s1058 + $0x70] sm:$0xff]
        %v1154 = vld [vmem:[%s1058 + $0x78] sm:$0xff]
        %v1155 = vld [vmem:[%s1061] sm:$0x1]
        %v1156 = vld [vmem:[%s1066] sm:$0xff]
        %v1157 = vld [vmem:[%s1066 + $0x8] sm:$0xff]
        %v1158 = vld [vmem:[%s1066 + $0x10] sm:$0xff]
        %v1159 = vld [vmem:[%s1066 + $0x18] sm:$0xff]
        %v1160 = vld [vmem:[%s1066 + $0x20] sm:$0xff]
        %v1161 = vld [vmem:[%s1066 + $0x28] sm:$0xff]
        %v1162 = vld [vmem:[%s1066 + $0x30] sm:$0xff]
        %v1163 = vld [vmem:[%s1066 + $0x38] sm:$0xff]
        %v1164 = vld [vmem:[%s1066 + $0x40] sm:$0xff]
        %v1165 = vld [vmem:[%s1066 + $0x48] sm:$0xff]
        %v1166 = vld [vmem:[%s1066 + $0x50] sm:$0xff]
        %v1167 = vld [vmem:[%s1066 + $0x58] sm:$0xff]
        %v1168 = vld [vmem:[%s1066 + $0x60] sm:$0xff]
        %v1169 = vld [vmem:[%s1066 + $0x68] sm:$0xff]
        %v1170 = vld [vmem:[%s1066 + $0x70] sm:$0xff]
        %v1171 = vld [vmem:[%s1066 + $0x78] sm:$0xff]
        %v1172 = vld [vmem:[%s1069] sm:$0x1]
        %v1173 = vld [vmem:[%s893] sm:$0xff]
        %v1174 = vld [vmem:[%s893 + $0x8] sm:$0xff]
        %v1175 = vld [vmem:[%s893 + $0x10] sm:$0xff]
        %v1176 = vld [vmem:[%s893 + $0x18] sm:$0xff]
        %v1177 = vld [vmem:[%s893 + $0x20] sm:$0xff]
        %v1178 = vld [vmem:[%s893 + $0x28] sm:$0xff]
        %v1179 = vld [vmem:[%s893 + $0x30] sm:$0xff]
        %v1180 = vld [vmem:[%s893 + $0x38] sm:$0xff]
        %v1181 = vld [vmem:[%s893 + $0x40] sm:$0xff]
        %v1182 = vld [vmem:[%s893 + $0x48] sm:$0xff]
        %v1183 = vld [vmem:[%s893 + $0x50] sm:$0xff]
        %v1184 = vld [vmem:[%s893 + $0x58] sm:$0xff]
        %v1185 = vld [vmem:[%s893 + $0x60] sm:$0xff]
        %v1186 = vld [vmem:[%s893 + $0x68] sm:$0xff]
        %v1187 = vld [vmem:[%s893 + $0x70] sm:$0xff]
        %v1188 = vld [vmem:[%s893 + $0x78] sm:$0xff]
        %v1189 = vld [vmem:[%s1072] sm:$0x1]
        %v1190 = vld [vmem:[%s902] sm:$0xff]
        %v1191 = vld [vmem:[%s902 + $0x8] sm:$0xff]
        %v1192 = vld [vmem:[%s902 + $0x10] sm:$0xff]
        %v1193 = vld [vmem:[%s902 + $0x18] sm:$0xff]
        %v1194 = vld [vmem:[%s902 + $0x20] sm:$0xff]
        %v1195 = vld [vmem:[%s902 + $0x28] sm:$0xff]
        %v1196 = vld [vmem:[%s902 + $0x30] sm:$0xff]
        %v1197 = vld [vmem:[%s902 + $0x38] sm:$0xff]
        %v1198 = vld [vmem:[%s902 + $0x40] sm:$0xff]
        %v1199 = vld [vmem:[%s902 + $0x48] sm:$0xff]
        %v1200 = vld [vmem:[%s902 + $0x50] sm:$0xff]
        %v1201 = vld [vmem:[%s902 + $0x58] sm:$0xff]
        %v1202 = vld [vmem:[%s902 + $0x60] sm:$0xff]
        %v1203 = vld [vmem:[%s902 + $0x68] sm:$0xff]
        %v1204 = vld [vmem:[%s902 + $0x70] sm:$0xff]
        %v1205 = vld [vmem:[%s902 + $0x78] sm:$0xff]
        %v1206 = vld [vmem:[%s1075] sm:$0x1]
        %v1207 = vld [vmem:[%s1078] sm:$0x1]
        %v1208 = vld [vmem:[%s1081] sm:$0x1]
        %v1209 = vld [vmem:[%s2] sm:$0xff]
        %v1210 = vld [vmem:[%s2 + $0x8] sm:$0xff]
        %v1211 = vld [vmem:[%s2 + $0x10] sm:$0xff]
        %v1212 = vld [vmem:[%s2 + $0x18] sm:$0xff]
        %v1213 = vld [vmem:[%s2 + $0x20] sm:$0xff]
        %v1214 = vld [vmem:[%s2 + $0x28] sm:$0xff]
        %v1215 = vld [vmem:[%s2 + $0x30] sm:$0xff]
        %v1216 = vld [vmem:[%s2 + $0x38] sm:$0xff]
        %v1217 = vld [vmem:[%s2 + $0x40] sm:$0xff]
        %v1218 = vld [vmem:[%s2 + $0x48] sm:$0xff]
        %v1219 = vld [vmem:[%s2 + $0x50] sm:$0xff]
        %v1220 = vld [vmem:[%s2 + $0x58] sm:$0xff]
        %v1221 = vld [vmem:[%s2 + $0x60] sm:$0xff]
        %v1222 = vld [vmem:[%s2 + $0x68] sm:$0xff]
        %v1223 = vld [vmem:[%s2 + $0x70] sm:$0xff]
        %v1224 = vld [vmem:[%s2 + $0x78] sm:$0xff]
        %v1225 = vld [vmem:[%s3] sm:$0xff]
        %v1226 = vld [vmem:[%s3 + $0x8] sm:$0xff]
        %v1227 = vld [vmem:[%s3 + $0x10] sm:$0xff]
        %v1228 = vld [vmem:[%s3 + $0x18] sm:$0xff]
        %v1229 = vld [vmem:[%s3 + $0x20] sm:$0xff]
        %v1230 = vld [vmem:[%s3 + $0x28] sm:$0xff]
        %v1231 = vld [vmem:[%s3 + $0x30] sm:$0xff]
        %v1232 = vld [vmem:[%s3 + $0x38] sm:$0xff]
        %v1233 = vld [vmem:[%s3 + $0x40] sm:$0xff]
        %v1234 = vld [vmem:[%s3 + $0x48] sm:$0xff]
        %v1235 = vld [vmem:[%s3 + $0x50] sm:$0xff]
        %v1236 = vld [vmem:[%s3 + $0x58] sm:$0xff]
        %v1237 = vld [vmem:[%s3 + $0x60] sm:$0xff]
        %v1238 = vld [vmem:[%s3 + $0x68] sm:$0xff]
        %v1239 = vld [vmem:[%s3 + $0x70] sm:$0xff]
        %v1240 = vld [vmem:[%s3 + $0x78] sm:$0xff]
        %v1241 = vld [vmem:[%s4] sm:$0xff]
        %v1242 = vld [vmem:[%s4 + $0x8] sm:$0xff]
        %v1243 = vld [vmem:[%s4 + $0x10] sm:$0xff]
        %v1244 = vld [vmem:[%s4 + $0x18] sm:$0xff]
        %v1245 = vld [vmem:[%s4 + $0x20] sm:$0xff]
        %v1246 = vld [vmem:[%s4 + $0x28] sm:$0xff]
        %v1247 = vld [vmem:[%s4 + $0x30] sm:$0xff]
        %v1248 = vld [vmem:[%s4 + $0x38] sm:$0xff]
        %v1249 = vld [vmem:[%s4 + $0x40] sm:$0xff]
        %v1250 = vld [vmem:[%s4 + $0x48] sm:$0xff]
        %v1251 = vld [vmem:[%s4 + $0x50] sm:$0xff]
        %v1252 = vld [vmem:[%s4 + $0x58] sm:$0xff]
        %v1253 = vld [vmem:[%s4 + $0x60] sm:$0xff]
        %v1254 = vld [vmem:[%s4 + $0x68] sm:$0xff]
        %v1255 = vld [vmem:[%s4 + $0x70] sm:$0xff]
        %v1256 = vld [vmem:[%s4 + $0x78] sm:$0xff]
        %v1257 = vld [vmem:[%s5] sm:$0xff]
        %v1259 = vlaneseq
        %v1260 = vshrl.u32 %v1259, 7
        %v1261 = vsub.s32 0, %v1260
        %v1262 = vrot.slane %v1155, %v1261
        %1264 = vmatprep.subr.mxu0 0.0
        %1265 = vmatpush1.msra.mxu0 %v1154
        %1266 = vmatprep.subr.mxu0 0.0
        %1267 = vmatpush1.msra.mxu0 %v1153
        %1268 = vmatprep.subr.mxu0 0.0
        %1269 = vmatpush1.msra.mxu0 %v1152
        %1270 = vmatprep.subr.mxu0 0.0
        %1271 = vmatpush1.msra.mxu0 %v1151
        %1272 = vmatprep.subr.mxu0 0.0
        %1273 = vmatpush1.msra.mxu0 %v1150
        %1274 = vmatprep.subr.mxu0 0.0
        %1275 = vmatpush1.msra.mxu0 %v1149
        %1276 = vmatprep.subr.mxu0 0.0
        %1277 = vmatpush1.msra.mxu0 %v1148
        %1278 = vmatprep.subr.mxu0 0.0
        %1279 = vmatpush1.msra.mxu0 %v1147
        %1280 = vmatprep.subr.mxu0 0.0
        %1281 = vmatpush1.msra.mxu0 %v1146
        %1282 = vmatprep.subr.mxu0 0.0
        %1283 = vmatpush1.msra.mxu0 %v1145
        %1284 = vmatprep.subr.mxu0 0.0
        %1285 = vmatpush1.msra.mxu0 %v1144
        %1286 = vmatprep.subr.mxu0 0.0
        %1287 = vmatpush1.msra.mxu0 %v1143
        %1288 = vmatprep.subr.mxu0 0.0
        %1289 = vmatpush1.msra.mxu0 %v1142
        %1290 = vmatprep.subr.mxu0 0.0
        %1291 = vmatpush1.msra.mxu0 %v1141
        %1292 = vmatprep.subr.mxu0 0.0
        %1293 = vmatpush1.msra.mxu0 %v1140
        %1294 = vmatprep.subr.mxu0 0.0
        %1295 = vmatpush1.msra.mxu0 %v1139
        %1296 = vmatprep.subr.mxu0 0.0
        %1297 = vmatpush2.msra.mxu0 0.0
        %1298 = vmatprep.subr.mxu0 0.0
        %1299 = vmatpush2.msra.mxu0 0.0
        %1300 = vmatprep.subr.mxu0 0.0
        %1301 = vmatpush2.msra.mxu0 0.0
        %1302 = vmatprep.subr.mxu0 0.0
        %1303 = vmatpush2.msra.mxu0 0.0
        %1304 = vmatprep.subr.mxu0 0.0
        %1305 = vmatpush2.msra.mxu0 0.0
        %1306 = vmatprep.subr.mxu0 0.0
        %1307 = vmatpush2.msra.mxu0 0.0
        %1308 = vmatprep.subr.mxu0 0.0
        %1309 = vmatpush2.msra.mxu0 0.0
        %1310 = vmatprep.subr.mxu0 0.0
        %1311 = vmatpush2.msra.mxu0 0.0
        %1312 = vmatprep.subr.mxu0 0.0
        %1313 = vmatpush2.msra.mxu0 0.0
        %1314 = vmatprep.subr.mxu0 0.0
        %1315 = vmatpush2.msra.mxu0 0.0
        %1316 = vmatprep.subr.mxu0 0.0
        %1317 = vmatpush2.msra.mxu0 0.0
        %1318 = vmatprep.subr.mxu0 0.0
        %1319 = vmatpush2.msra.mxu0 0.0
        %1320 = vmatprep.subr.mxu0 0.0
        %1321 = vmatpush2.msra.mxu0 0.0
        %1322 = vmatprep.subr.mxu0 0.0
        %1323 = vmatpush2.msra.mxu0 0.0
        %1324 = vmatprep.subr.mxu0 0.0
        %1325 = vmatpush2.msra.mxu0 0.0
        %1326 = vmatprep.subr.mxu0 0.0
        %1327 = vmatpush2.msra.mxu0 0.0
        %1328 = vmatprep.mubr.f32.mxu0 0.0
        %1329 = vmatmul.mubr.f32.gmra.mxu0 %v1105
        %v1330 = vpop.f32.mrf.mxu0
        %v1331 = vadd.f32 %v1262, %v1330
        %v1332 = vpop.f32.mrf.mxu0
        %1333 = vdwg.mxu0
        %v1335 = vlaneseq
        %v1336 = vshrl.u32 %v1335, 7
        %v1337 = vsub.s32 0, %v1336
        %v1338 = vrot.slane %v1172, %v1337
        %1340 = vmatprep.subr.mxu0 0.0
        %1341 = vmatpush1.msra.mxu0 %v1171
        %1342 = vmatprep.subr.mxu0 0.0
        %1343 = vmatpush1.msra.mxu0 %v1170
        %1344 = vmatprep.subr.mxu0 0.0
        %1345 = vmatpush1.msra.mxu0 %v1169
        %1346 = vmatprep.subr.mxu0 0.0
        %1347 = vmatpush1.msra.mxu0 %v1168
        %1348 = vmatprep.subr.mxu0 0.0
        %1349 = vmatpush1.msra.mxu0 %v1167
        %1350 = vmatprep.subr.mxu0 0.0
        %1351 = vmatpush1.msra.mxu0 %v1166
        %1352 = vmatprep.subr.mxu0 0.0
        %1353 = vmatpush1.msra.mxu0 %v1165
        %1354 = vmatprep.subr.mxu0 0.0
        %1355 = vmatpush1.msra.mxu0 %v1164
        %1356 = vmatprep.subr.mxu0 0.0
        %1357 = vmatpush1.msra.mxu0 %v1163
        %1358 = vmatprep.subr.mxu0 0.0
        %1359 = vmatpush1.msra.mxu0 %v1162
        %1360 = vmatprep.subr.mxu0 0.0
        %1361 = vmatpush1.msra.mxu0 %v1161
        %1362 = vmatprep.subr.mxu0 0.0
        %1363 = vmatpush1.msra.mxu0 %v1160
        %1364 = vmatprep.subr.mxu0 0.0
        %1365 = vmatpush1.msra.mxu0 %v1159
        %1366 = vmatprep.subr.mxu0 0.0
        %1367 = vmatpush1.msra.mxu0 %v1158
        %1368 = vmatprep.subr.mxu0 0.0
        %1369 = vmatpush1.msra.mxu0 %v1157
        %1370 = vmatprep.subr.mxu0 0.0
        %1371 = vmatpush1.msra.mxu0 %v1156
        %1372 = vmatprep.subr.mxu0 0.0
        %1373 = vmatpush2.msra.mxu0 0.0
        %1374 = vmatprep.subr.mxu0 0.0
        %1375 = vmatpush2.msra.mxu0 0.0
        %1376 = vmatprep.subr.mxu0 0.0
        %1377 = vmatpush2.msra.mxu0 0.0
        %1378 = vmatprep.subr.mxu0 0.0
        %1379 = vmatpush2.msra.mxu0 0.0
        %1380 = vmatprep.subr.mxu0 0.0
        %1381 = vmatpush2.msra.mxu0 0.0
        %1382 = vmatprep.subr.mxu0 0.0
        %1383 = vmatpush2.msra.mxu0 0.0
        %1384 = vmatprep.subr.mxu0 0.0
        %1385 = vmatpush2.msra.mxu0 0.0
        %1386 = vmatprep.subr.mxu0 0.0
        %1387 = vmatpush2.msra.mxu0 0.0
        %1388 = vmatprep.subr.mxu0 0.0
        %1389 = vmatpush2.msra.mxu0 0.0
        %1390 = vmatprep.subr.mxu0 0.0
        %1391 = vmatpush2.msra.mxu0 0.0
        %1392 = vmatprep.subr.mxu0 0.0
        %1393 = vmatpush2.msra.mxu0 0.0
        %1394 = vmatprep.subr.mxu0 0.0
        %1395 = vmatpush2.msra.mxu0 0.0
        %1396 = vmatprep.subr.mxu0 0.0
        %1397 = vmatpush2.msra.mxu0 0.0
        %1398 = vmatprep.subr.mxu0 0.0
        %1399 = vmatpush2.msra.mxu0 0.0
        %1400 = vmatprep.subr.mxu0 0.0
        %1401 = vmatpush2.msra.mxu0 0.0
        %1402 = vmatprep.subr.mxu0 0.0
        %1403 = vmatpush2.msra.mxu0 0.0
        %1404 = vmatprep.mubr.f32.mxu0 0.0
        %1405 = vmatmul.mubr.f32.gmra.mxu0 %v1105
        %v1406 = vpop.f32.mrf.mxu0
        %v1407 = vadd.f32 %v1338, %v1406
        %v1408 = vpop.f32.mrf.mxu0
        %1409 = vdwg.mxu0
        %v1411 = vlaneseq
        %v1412 = vshrl.u32 %v1411, 7
        %v1413 = vsub.s32 0, %v1412
        %v1414 = vrot.slane %v1189, %v1413
        %1416 = vmatprep.subr.mxu0 0.0
        %1417 = vmatpush1.msra.mxu0 %v1188
        %1418 = vmatprep.subr.mxu0 0.0
        %1419 = vmatpush1.msra.mxu0 %v1187
        %1420 = vmatprep.subr.mxu0 0.0
        %1421 = vmatpush1.msra.mxu0 %v1186
        %1422 = vmatprep.subr.mxu0 0.0
        %1423 = vmatpush1.msra.mxu0 %v1185
        %1424 = vmatprep.subr.mxu0 0.0
        %1425 = vmatpush1.msra.mxu0 %v1184
        %1426 = vmatprep.subr.mxu0 0.0
        %1427 = vmatpush1.msra.mxu0 %v1183
        %1428 = vmatprep.subr.mxu0 0.0
        %1429 = vmatpush1.msra.mxu0 %v1182
        %1430 = vmatprep.subr.mxu0 0.0
        %1431 = vmatpush1.msra.mxu0 %v1181
        %1432 = vmatprep.subr.mxu0 0.0
        %1433 = vmatpush1.msra.mxu0 %v1180
        %1434 = vmatprep.subr.mxu0 0.0
        %1435 = vmatpush1.msra.mxu0 %v1179
        %1436 = vmatprep.subr.mxu0 0.0
        %1437 = vmatpush1.msra.mxu0 %v1178
        %1438 = vmatprep.subr.mxu0 0.0
        %1439 = vmatpush1.msra.mxu0 %v1177
        %1440 = vmatprep.subr.mxu0 0.0
        %1441 = vmatpush1.msra.mxu0 %v1176
        %1442 = vmatprep.subr.mxu0 0.0
        %1443 = vmatpush1.msra.mxu0 %v1175
        %1444 = vmatprep.subr.mxu0 0.0
        %1445 = vmatpush1.msra.mxu0 %v1174
        %1446 = vmatprep.subr.mxu0 0.0
        %1447 = vmatpush1.msra.mxu0 %v1173
        %1448 = vmatprep.subr.mxu0 0.0
        %1449 = vmatpush2.msra.mxu0 0.0
        %1450 = vmatprep.subr.mxu0 0.0
        %1451 = vmatpush2.msra.mxu0 0.0
        %1452 = vmatprep.subr.mxu0 0.0
        %1453 = vmatpush2.msra.mxu0 0.0
        %1454 = vmatprep.subr.mxu0 0.0
        %1455 = vmatpush2.msra.mxu0 0.0
        %1456 = vmatprep.subr.mxu0 0.0
        %1457 = vmatpush2.msra.mxu0 0.0
        %1458 = vmatprep.subr.mxu0 0.0
        %1459 = vmatpush2.msra.mxu0 0.0
        %1460 = vmatprep.subr.mxu0 0.0
        %1461 = vmatpush2.msra.mxu0 0.0
        %1462 = vmatprep.subr.mxu0 0.0
        %1463 = vmatpush2.msra.mxu0 0.0
        %1464 = vmatprep.subr.mxu0 0.0
        %1465 = vmatpush2.msra.mxu0 0.0
        %1466 = vmatprep.subr.mxu0 0.0
        %1467 = vmatpush2.msra.mxu0 0.0
        %1468 = vmatprep.subr.mxu0 0.0
        %1469 = vmatpush2.msra.mxu0 0.0
        %1470 = vmatprep.subr.mxu0 0.0
        %1471 = vmatpush2.msra.mxu0 0.0
        %1472 = vmatprep.subr.mxu0 0.0
        %1473 = vmatpush2.msra.mxu0 0.0
        %1474 = vmatprep.subr.mxu0 0.0
        %1475 = vmatpush2.msra.mxu0 0.0
        %1476 = vmatprep.subr.mxu0 0.0
        %1477 = vmatpush2.msra.mxu0 0.0
        %1478 = vmatprep.subr.mxu0 0.0
        %1479 = vmatpush2.msra.mxu0 0.0
        %1480 = vmatprep.mubr.f32.mxu0 0.0
        %1481 = vmatmul.mubr.f32.gmra.mxu0 %v1105
        %v1482 = vpop.f32.mrf.mxu0
        %v1483 = vadd.f32 %v1414, %v1482
        %v1484 = vpop.f32.mrf.mxu0
        %1485 = vdwg.mxu0
        %vm1486 = vcmask 64512
        %v1488 = vsel %vm1486, %v1209, 0
        %v1491 = vsel %vm1486, %v1210, 0
        %v1494 = vsel %vm1486, %v1211, 0
        %v1497 = vsel %vm1486, %v1212, 0
        %v1500 = vsel %vm1486, %v1213, 0
        %v1503 = vsel %vm1486, %v1214, 0
        %v1506 = vsel %vm1486, %v1215, 0
        %v1509 = vsel %vm1486, %v1216, 0
        %v1512 = vsel %vm1486, %v1217, 0
        %v1515 = vsel %vm1486, %v1218, 0
        %v1518 = vsel %vm1486, %v1219, 0
        %v1521 = vsel %vm1486, %v1220, 0
        %v1524 = vsel %vm1486, %v1221, 0
        %v1527 = vsel %vm1486, %v1222, 0
        %v1530 = vsel %vm1486, %v1223, 0
        %v1533 = vsel %vm1486, %v1224, 0
        %1535 = vmatprep.subr.mxu0 0.0
        %1536 = vmatpush1.msra.mxu0 0.0
        %1537 = vmatprep.subr.mxu0 0.0
        %1538 = vmatpush1.msra.mxu0 0.0
        %1539 = vmatprep.subr.mxu0 0.0
        %1540 = vmatpush1.msra.mxu0 0.0
        %1541 = vmatprep.subr.mxu0 0.0
        %1542 = vmatpush1.msra.mxu0 0.0
        %1543 = vmatprep.subr.mxu0 0.0
        %1544 = vmatpush1.msra.mxu0 0.0
        %1545 = vmatprep.subr.mxu0 0.0
        %1546 = vmatpush1.msra.mxu0 0.0
        %1547 = vmatprep.subr.mxu0 0.0
        %1548 = vmatpush1.msra.mxu0 0.0
        %1549 = vmatprep.subr.mxu0 0.0
        %1550 = vmatpush1.msra.mxu0 0.0
        %1551 = vmatprep.subr.mxu0 0.0
        %1552 = vmatpush1.msra.mxu0 0.0
        %1553 = vmatprep.subr.mxu0 0.0
        %1554 = vmatpush1.msra.mxu0 0.0
        %1555 = vmatprep.subr.mxu0 0.0
        %1556 = vmatpush1.msra.mxu0 0.0
        %1557 = vmatprep.subr.mxu0 0.0
        %1558 = vmatpush1.msra.mxu0 0.0
        %1559 = vmatprep.subr.mxu0 0.0
        %1560 = vmatpush1.msra.mxu0 0.0
        %1561 = vmatprep.subr.mxu0 0.0
        %1562 = vmatpush1.msra.mxu0 0.0
        %1563 = vmatprep.subr.mxu0 0.0
        %1564 = vmatpush1.msra.mxu0 0.0
        %1565 = vmatprep.subr.mxu0 0.0
        %1566 = vmatpush1.msra.mxu0 %v1331
        %1567 = vmatprep.subr.mxu0 0.0
        %1568 = vmatpush2.msra.mxu0 0.0
        %1569 = vmatprep.subr.mxu0 0.0
        %1570 = vmatpush2.msra.mxu0 0.0
        %1571 = vmatprep.subr.mxu0 0.0
        %1572 = vmatpush2.msra.mxu0 0.0
        %1573 = vmatprep.subr.mxu0 0.0
        %1574 = vmatpush2.msra.mxu0 0.0
        %1575 = vmatprep.subr.mxu0 0.0
        %1576 = vmatpush2.msra.mxu0 0.0
        %1577 = vmatprep.subr.mxu0 0.0
        %1578 = vmatpush2.msra.mxu0 0.0
        %1579 = vmatprep.subr.mxu0 0.0
        %1580 = vmatpush2.msra.mxu0 0.0
        %1581 = vmatprep.subr.mxu0 0.0
        %1582 = vmatpush2.msra.mxu0 0.0
        %1583 = vmatprep.subr.mxu0 0.0
        %1584 = vmatpush2.msra.mxu0 0.0
        %1585 = vmatprep.subr.mxu0 0.0
        %1586 = vmatpush2.msra.mxu0 0.0
        %1587 = vmatprep.subr.mxu0 0.0
        %1588 = vmatpush2.msra.mxu0 0.0
        %1589 = vmatprep.subr.mxu0 0.0
        %1590 = vmatpush2.msra.mxu0 0.0
        %1591 = vmatprep.subr.mxu0 0.0
        %1592 = vmatpush2.msra.mxu0 0.0
        %1593 = vmatprep.subr.mxu0 0.0
        %1594 = vmatpush2.msra.mxu0 0.0
        %1595 = vmatprep.subr.mxu0 0.0
        %1596 = vmatpush2.msra.mxu0 0.0
        %1597 = vmatprep.subr.mxu0 0.0
        %1598 = vmatpush2.msra.mxu0 0.0
        %1599 = vmatprep.mubr.f32.mxu0 0.0
        %1600 = vmatmul.mubr.f32.gmra.mxu0 %v1488
        %v1601 = vpop.f32.mrf.mxu0
        %v1602 = vadd.f32 0.0, %v1601
        %v1603 = vpop.f32.mrf.mxu0
        %1604 = vmatprep.mubr.f32.mxu0 0.0
        %1605 = vmatmul.mubr.f32.gmra.mxu0 %v1491
        %v1606 = vpop.f32.mrf.mxu0
        %v1607 = vadd.f32 0.0, %v1606
        %v1608 = vpop.f32.mrf.mxu0
        %1609 = vmatprep.mubr.f32.mxu0 0.0
        %1610 = vmatmul.mubr.f32.gmra.mxu0 %v1494
        %v1611 = vpop.f32.mrf.mxu0
        %v1612 = vadd.f32 0.0, %v1611
        %v1613 = vpop.f32.mrf.mxu0
        %1614 = vmatprep.mubr.f32.mxu0 0.0
        %1615 = vmatmul.mubr.f32.gmra.mxu0 %v1497
        %v1616 = vpop.f32.mrf.mxu0
        %v1617 = vadd.f32 0.0, %v1616
        %v1618 = vpop.f32.mrf.mxu0
        %1619 = vmatprep.mubr.f32.mxu0 0.0
        %1620 = vmatmul.mubr.f32.gmra.mxu0 %v1500
        %v1621 = vpop.f32.mrf.mxu0
        %v1622 = vadd.f32 0.0, %v1621
        %v1623 = vpop.f32.mrf.mxu0
        %1624 = vmatprep.mubr.f32.mxu0 0.0
        %1625 = vmatmul.mubr.f32.gmra.mxu0 %v1503
        %v1626 = vpop.f32.mrf.mxu0
        %v1627 = vadd.f32 0.0, %v1626
        %v1628 = vpop.f32.mrf.mxu0
        %1629 = vmatprep.mubr.f32.mxu0 0.0
        %1630 = vmatmul.mubr.f32.gmra.mxu0 %v1506
        %v1631 = vpop.f32.mrf.mxu0
        %v1632 = vadd.f32 0.0, %v1631
        %v1633 = vpop.f32.mrf.mxu0
        %1634 = vmatprep.mubr.f32.mxu0 0.0
        %1635 = vmatmul.mubr.f32.gmra.mxu0 %v1509
        %v1636 = vpop.f32.mrf.mxu0
        %v1637 = vadd.f32 0.0, %v1636
        %v1638 = vpop.f32.mrf.mxu0
        %1639 = vmatprep.mubr.f32.mxu0 0.0
        %1640 = vmatmul.mubr.f32.gmra.mxu0 %v1512
        %v1641 = vpop.f32.mrf.mxu0
        %v1642 = vadd.f32 0.0, %v1641
        %v1643 = vpop.f32.mrf.mxu0
        %1644 = vmatprep.mubr.f32.mxu0 0.0
        %1645 = vmatmul.mubr.f32.gmra.mxu0 %v1515
        %v1646 = vpop.f32.mrf.mxu0
        %v1647 = vadd.f32 0.0, %v1646
        %v1648 = vpop.f32.mrf.mxu0
        %1649 = vmatprep.mubr.f32.mxu0 0.0
        %1650 = vmatmul.mubr.f32.gmra.mxu0 %v1518
        %v1651 = vpop.f32.mrf.mxu0
        %v1652 = vadd.f32 0.0, %v1651
        %v1653 = vpop.f32.mrf.mxu0
        %1654 = vmatprep.mubr.f32.mxu0 0.0
        %1655 = vmatmul.mubr.f32.gmra.mxu0 %v1521
        %v1656 = vpop.f32.mrf.mxu0
        %v1657 = vadd.f32 0.0, %v1656
        %v1658 = vpop.f32.mrf.mxu0
        %1659 = vmatprep.mubr.f32.mxu0 0.0
        %1660 = vmatmul.mubr.f32.gmra.mxu0 %v1524
        %v1661 = vpop.f32.mrf.mxu0
        %v1662 = vadd.f32 0.0, %v1661
        %v1663 = vpop.f32.mrf.mxu0
        %1664 = vmatprep.mubr.f32.mxu0 0.0
        %1665 = vmatmul.mubr.f32.gmra.mxu0 %v1527
        %v1666 = vpop.f32.mrf.mxu0
        %v1667 = vadd.f32 0.0, %v1666
        %v1668 = vpop.f32.mrf.mxu0
        %1669 = vmatprep.mubr.f32.mxu0 0.0
        %1670 = vmatmul.mubr.f32.gmra.mxu0 %v1530
        %v1671 = vpop.f32.mrf.mxu0
        %v1672 = vadd.f32 0.0, %v1671
        %v1673 = vpop.f32.mrf.mxu0
        %1674 = vmatprep.mubr.f32.mxu0 0.0
        %1675 = vmatmul.mubr.f32.gmra.mxu0 %v1533
        %v1676 = vpop.f32.mrf.mxu0
        %v1677 = vadd.f32 0.0, %v1676
        %v1678 = vpop.f32.mrf.mxu0
        %1679 = vdwg.mxu0
        %v1680 = vmul.f32 %v1602, %v1225
        %v1681 = vmul.f32 %v1607, %v1226
        %v1682 = vmul.f32 %v1612, %v1227
        %v1683 = vmul.f32 %v1617, %v1228
        %v1684 = vmul.f32 %v1622, %v1229
        %v1685 = vmul.f32 %v1627, %v1230
        %v1686 = vmul.f32 %v1632, %v1231
        %v1687 = vmul.f32 %v1637, %v1232
        %v1688 = vmul.f32 %v1642, %v1233
        %v1689 = vmul.f32 %v1647, %v1234
        %v1690 = vmul.f32 %v1652, %v1235
        %v1691 = vmul.f32 %v1657, %v1236
        %v1692 = vmul.f32 %v1662, %v1237
        %v1693 = vmul.f32 %v1667, %v1238
        %v1694 = vmul.f32 %v1672, %v1239
        %v1695 = vmul.f32 %v1677, %v1240
        %v1697 = vlaneseq
        %v1698 = vshrl.u32 %v1697, 7
        %v1699 = vsub.s32 0, %v1698
        %v1700 = vrot.slane %v1138, %v1699
        %1702 = vmatprep.subr.mxu0 0.0
        %1703 = vmatpush1.xpose.msra.mxu0 0.0
        %1704 = vmatprep.subr.mxu0 0.0
        %1705 = vmatpush1.xpose.msra.mxu0 0.0
        %1706 = vmatprep.subr.mxu0 0.0
        %1707 = vmatpush1.xpose.msra.mxu0 0.0
        %1708 = vmatprep.subr.mxu0 0.0
        %1709 = vmatpush1.xpose.msra.mxu0 0.0
        %1710 = vmatprep.subr.mxu0 0.0
        %1711 = vmatpush1.xpose.msra.mxu0 0.0
        %1712 = vmatprep.subr.mxu0 0.0
        %1713 = vmatpush1.xpose.msra.mxu0 0.0
        %1714 = vmatprep.subr.mxu0 0.0
        %1715 = vmatpush1.xpose.msra.mxu0 0.0
        %1716 = vmatprep.subr.mxu0 0.0
        %1717 = vmatpush1.xpose.msra.mxu0 0.0
        %1718 = vmatprep.subr.mxu0 0.0
        %1719 = vmatpush1.xpose.msra.mxu0 0.0
        %1720 = vmatprep.subr.mxu0 0.0
        %1721 = vmatpush1.xpose.msra.mxu0 0.0
        %1722 = vmatprep.subr.mxu0 0.0
        %1723 = vmatpush1.xpose.msra.mxu0 0.0
        %1724 = vmatprep.subr.mxu0 0.0
        %1725 = vmatpush1.xpose.msra.mxu0 0.0
        %1726 = vmatprep.subr.mxu0 0.0
        %1727 = vmatpush1.xpose.msra.mxu0 0.0
        %1728 = vmatprep.subr.mxu0 0.0
        %1729 = vmatpush1.xpose.msra.mxu0 0.0
        %1730 = vmatprep.subr.mxu0 0.0
        %1731 = vmatpush1.xpose.msra.mxu0 0.0
        %1732 = vmatprep.subr.mxu0 0.0
        %1733 = vmatpush1.xpose.msra.mxu0 %v1407
        %1734 = vmatprep.subr.mxu0 0.0
        %1735 = vmatpush2.xpose.msra.mxu0 0.0
        %1736 = vmatprep.subr.mxu0 0.0
        %1737 = vmatpush2.xpose.msra.mxu0 0.0
        %1738 = vmatprep.subr.mxu0 0.0
        %1739 = vmatpush2.xpose.msra.mxu0 0.0
        %1740 = vmatprep.subr.mxu0 0.0
        %1741 = vmatpush2.xpose.msra.mxu0 0.0
        %1742 = vmatprep.subr.mxu0 0.0
        %1743 = vmatpush2.xpose.msra.mxu0 0.0
        %1744 = vmatprep.subr.mxu0 0.0
        %1745 = vmatpush2.xpose.msra.mxu0 0.0
        %1746 = vmatprep.subr.mxu0 0.0
        %1747 = vmatpush2.xpose.msra.mxu0 0.0
        %1748 = vmatprep.subr.mxu0 0.0
        %1749 = vmatpush2.xpose.msra.mxu0 0.0
        %1750 = vmatprep.subr.mxu0 0.0
        %1751 = vmatpush2.xpose.msra.mxu0 0.0
        %1752 = vmatprep.subr.mxu0 0.0
        %1753 = vmatpush2.xpose.msra.mxu0 0.0
        %1754 = vmatprep.subr.mxu0 0.0
        %1755 = vmatpush2.xpose.msra.mxu0 0.0
        %1756 = vmatprep.subr.mxu0 0.0
        %1757 = vmatpush2.xpose.msra.mxu0 0.0
        %1758 = vmatprep.subr.mxu0 0.0
        %1759 = vmatpush2.xpose.msra.mxu0 0.0
        %1760 = vmatprep.subr.mxu0 0.0
        %1761 = vmatpush2.xpose.msra.mxu0 0.0
        %1762 = vmatprep.subr.mxu0 0.0
        %1763 = vmatpush2.xpose.msra.mxu0 0.0
        %1764 = vmatprep.subr.mxu0 0.0
        %1765 = vmatpush2.xpose.msra.mxu0 0.0
        %1766 = vmatprep.mubr.f32.mxu0 0.0
        %1767 = vmatmul.mubr.f32.gmra.mxu0 %v1680
        %v1768 = vpop.f32.mrf.mxu0
        %v1769 = vadd.f32 %v1700, %v1768
        %v1770 = vpop.f32.mrf.mxu0
        %1771 = vmatprep.mubr.f32.mxu0 0.0
        %1772 = vmatmul.mubr.f32.gmra.mxu0 %v1681
        %v1773 = vpop.f32.mrf.mxu0
        %v1774 = vadd.f32 %v1700, %v1773
        %v1775 = vpop.f32.mrf.mxu0
        %1776 = vmatprep.mubr.f32.mxu0 0.0
        %1777 = vmatmul.mubr.f32.gmra.mxu0 %v1682
        %v1778 = vpop.f32.mrf.mxu0
        %v1779 = vadd.f32 %v1700, %v1778
        %v1780 = vpop.f32.mrf.mxu0
        %1781 = vmatprep.mubr.f32.mxu0 0.0
        %1782 = vmatmul.mubr.f32.gmra.mxu0 %v1683
        %v1783 = vpop.f32.mrf.mxu0
        %v1784 = vadd.f32 %v1700, %v1783
        %v1785 = vpop.f32.mrf.mxu0
        %1786 = vmatprep.mubr.f32.mxu0 0.0
        %1787 = vmatmul.mubr.f32.gmra.mxu0 %v1684
        %v1788 = vpop.f32.mrf.mxu0
        %v1789 = vadd.f32 %v1700, %v1788
        %v1790 = vpop.f32.mrf.mxu0
        %1791 = vmatprep.mubr.f32.mxu0 0.0
        %1792 = vmatmul.mubr.f32.gmra.mxu0 %v1685
        %v1793 = vpop.f32.mrf.mxu0
        %v1794 = vadd.f32 %v1700, %v1793
        %v1795 = vpop.f32.mrf.mxu0
        %1796 = vmatprep.mubr.f32.mxu0 0.0
        %1797 = vmatmul.mubr.f32.gmra.mxu0 %v1686
        %v1798 = vpop.f32.mrf.mxu0
        %v1799 = vadd.f32 %v1700, %v1798
        %v1800 = vpop.f32.mrf.mxu0
        %1801 = vmatprep.mubr.f32.mxu0 0.0
        %1802 = vmatmul.mubr.f32.gmra.mxu0 %v1687
        %v1803 = vpop.f32.mrf.mxu0
        %v1804 = vadd.f32 %v1700, %v1803
        %v1805 = vpop.f32.mrf.mxu0
        %1806 = vmatprep.mubr.f32.mxu0 0.0
        %1807 = vmatmul.mubr.f32.gmra.mxu0 %v1688
        %v1808 = vpop.f32.mrf.mxu0
        %v1809 = vadd.f32 %v1700, %v1808
        %v1810 = vpop.f32.mrf.mxu0
        %1811 = vmatprep.mubr.f32.mxu0 0.0
        %1812 = vmatmul.mubr.f32.gmra.mxu0 %v1689
        %v1813 = vpop.f32.mrf.mxu0
        %v1814 = vadd.f32 %v1700, %v1813
        %v1815 = vpop.f32.mrf.mxu0
        %1816 = vmatprep.mubr.f32.mxu0 0.0
        %1817 = vmatmul.mubr.f32.gmra.mxu0 %v1690
        %v1818 = vpop.f32.mrf.mxu0
        %v1819 = vadd.f32 %v1700, %v1818
        %v1820 = vpop.f32.mrf.mxu0
        %1821 = vmatprep.mubr.f32.mxu0 0.0
        %1822 = vmatmul.mubr.f32.gmra.mxu0 %v1691
        %v1823 = vpop.f32.mrf.mxu0
        %v1824 = vadd.f32 %v1700, %v1823
        %v1825 = vpop.f32.mrf.mxu0
        %1826 = vmatprep.mubr.f32.mxu0 0.0
        %1827 = vmatmul.mubr.f32.gmra.mxu0 %v1692
        %v1828 = vpop.f32.mrf.mxu0
        %v1829 = vadd.f32 %v1700, %v1828
        %v1830 = vpop.f32.mrf.mxu0
        %1831 = vmatprep.mubr.f32.mxu0 0.0
        %1832 = vmatmul.mubr.f32.gmra.mxu0 %v1693
        %v1833 = vpop.f32.mrf.mxu0
        %v1834 = vadd.f32 %v1700, %v1833
        %v1835 = vpop.f32.mrf.mxu0
        %1836 = vmatprep.mubr.f32.mxu0 0.0
        %1837 = vmatmul.mubr.f32.gmra.mxu0 %v1694
        %v1838 = vpop.f32.mrf.mxu0
        %v1839 = vadd.f32 %v1700, %v1838
        %v1840 = vpop.f32.mrf.mxu0
        %1841 = vmatprep.mubr.f32.mxu0 0.0
        %1842 = vmatmul.mubr.f32.gmra.mxu0 %v1695
        %v1843 = vpop.f32.mrf.mxu0
        %v1844 = vadd.f32 %v1700, %v1843
        %v1845 = vpop.f32.mrf.mxu0
        %1846 = vdwg.mxu0
        %v1847 = vsel %vm1486, %v1769, -inf
        %1848 = vmax.xlane.f32.xlu0 %v1847
        %v1849 = vpop.xlane.xlu0 %1848
        %v1850 = vsel %vm1486, %v1774, -inf
        %1851 = vmax.xlane.f32.xlu0 %v1850
        %v1852 = vpop.xlane.xlu0 %1851
        %v1853 = vsel %vm1486, %v1779, -inf
        %1854 = vmax.xlane.f32.xlu0 %v1853
        %v1855 = vpop.xlane.xlu0 %1854
        %v1856 = vsel %vm1486, %v1784, -inf
        %1857 = vmax.xlane.f32.xlu0 %v1856
        %v1858 = vpop.xlane.xlu0 %1857
        %v1859 = vsel %vm1486, %v1789, -inf
        %1860 = vmax.xlane.f32.xlu0 %v1859
        %v1861 = vpop.xlane.xlu0 %1860
        %v1862 = vsel %vm1486, %v1794, -inf
        %1863 = vmax.xlane.f32.xlu0 %v1862
        %v1864 = vpop.xlane.xlu0 %1863
        %v1865 = vsel %vm1486, %v1799, -inf
        %1866 = vmax.xlane.f32.xlu0 %v1865
        %v1867 = vpop.xlane.xlu0 %1866
        %v1868 = vsel %vm1486, %v1804, -inf
        %1869 = vmax.xlane.f32.xlu0 %v1868
        %v1870 = vpop.xlane.xlu0 %1869
        %v1871 = vsel %vm1486, %v1809, -inf
        %1872 = vmax.xlane.f32.xlu0 %v1871
        %v1873 = vpop.xlane.xlu0 %1872
        %v1874 = vsel %vm1486, %v1814, -inf
        %1875 = vmax.xlane.f32.xlu0 %v1874
        %v1876 = vpop.xlane.xlu0 %1875
        %v1877 = vsel %vm1486, %v1819, -inf
        %1878 = vmax.xlane.f32.xlu0 %v1877
        %v1879 = vpop.xlane.xlu0 %1878
        %v1880 = vsel %vm1486, %v1824, -inf
        %1881 = vmax.xlane.f32.xlu0 %v1880
        %v1882 = vpop.xlane.xlu0 %1881
        %v1883 = vsel %vm1486, %v1829, -inf
        %1884 = vmax.xlane.f32.xlu0 %v1883
        %v1885 = vpop.xlane.xlu0 %1884
        %v1886 = vsel %vm1486, %v1834, -inf
        %1887 = vmax.xlane.f32.xlu0 %v1886
        %v1888 = vpop.xlane.xlu0 %1887
        %v1889 = vsel %vm1486, %v1839, -inf
        %1890 = vmax.xlane.f32.xlu0 %v1889
        %v1891 = vpop.xlane.xlu0 %1890
        %v1892 = vsel %vm1486, %v1844, -inf
        %1893 = vmax.xlane.f32.xlu0 %v1892
        %v1894 = vpop.xlane.xlu0 %1893
        %v1895 = vsub.f32 %v1769, %v1849
        %v1896 = vsub.f32 %v1774, %v1852
        %v1897 = vsub.f32 %v1779, %v1855
        %v1898 = vsub.f32 %v1784, %v1858
        %v1899 = vsub.f32 %v1789, %v1861
        %v1900 = vsub.f32 %v1794, %v1864
        %v1901 = vsub.f32 %v1799, %v1867
        %v1902 = vsub.f32 %v1804, %v1870
        %v1903 = vsub.f32 %v1809, %v1873
        %v1904 = vsub.f32 %v1814, %v1876
        %v1905 = vsub.f32 %v1819, %v1879
        %v1906 = vsub.f32 %v1824, %v1882
        %v1907 = vsub.f32 %v1829, %v1885
        %v1908 = vsub.f32 %v1834, %v1888
        %v1909 = vsub.f32 %v1839, %v1891
        %v1910 = vsub.f32 %v1844, %v1894
        %v1911 = vmul.f32 %v1895, 1.442695
        %v1912 = vpow.pop %v1911
        %v1913 = vmul.f32 %v1896, 1.442695
        %v1914 = vpow.pop %v1913
        %v1915 = vmul.f32 %v1897, 1.442695
        %v1916 = vpow.pop %v1915
        %v1917 = vmul.f32 %v1898, 1.442695
        %v1918 = vpow.pop %v1917
        %v1919 = vmul.f32 %v1899, 1.442695
        %v1920 = vpow.pop %v1919
        %v1921 = vmul.f32 %v1900, 1.442695
        %v1922 = vpow.pop %v1921
        %v1923 = vmul.f32 %v1901, 1.442695
        %v1924 = vpow.pop %v1923
        %v1925 = vmul.f32 %v1902, 1.442695
        %v1926 = vpow.pop %v1925
        %v1927 = vmul.f32 %v1903, 1.442695
        %v1928 = vpow.pop %v1927
        %v1929 = vmul.f32 %v1904, 1.442695
        %v1930 = vpow.pop %v1929
        %v1931 = vmul.f32 %v1905, 1.442695
        %v1932 = vpow.pop %v1931
        %v1933 = vmul.f32 %v1906, 1.442695
        %v1934 = vpow.pop %v1933
        %v1935 = vmul.f32 %v1907, 1.442695
        %v1936 = vpow.pop %v1935
        %v1937 = vmul.f32 %v1908, 1.442695
        %v1938 = vpow.pop %v1937
        %v1939 = vmul.f32 %v1909, 1.442695
        %v1940 = vpow.pop %v1939
        %v1941 = vmul.f32 %v1910, 1.442695
        %v1942 = vpow.pop %v1941
        %v1943 = vsel %vm1486, %v1912, 0.0
        %1944 = vadd.xlane.f32.xlu0 %v1943
        %v1945 = vpop.xlane.xlu0 %1944
        %v1946 = vsel %vm1486, %v1914, 0.0
        %1947 = vadd.xlane.f32.xlu0 %v1946
        %v1948 = vpop.xlane.xlu0 %1947
        %v1949 = vsel %vm1486, %v1916, 0.0
        %1950 = vadd.xlane.f32.xlu0 %v1949
        %v1951 = vpop.xlane.xlu0 %1950
        %v1952 = vsel %vm1486, %v1918, 0.0
        %1953 = vadd.xlane.f32.xlu0 %v1952
        %v1954 = vpop.xlane.xlu0 %1953
        %v1955 = vsel %vm1486, %v1920, 0.0
        %1956 = vadd.xlane.f32.xlu0 %v1955
        %v1957 = vpop.xlane.xlu0 %1956
        %v1958 = vsel %vm1486, %v1922, 0.0
        %1959 = vadd.xlane.f32.xlu0 %v1958
        %v1960 = vpop.xlane.xlu0 %1959
        %v1961 = vsel %vm1486, %v1924, 0.0
        %1962 = vadd.xlane.f32.xlu0 %v1961
        %v1963 = vpop.xlane.xlu0 %1962
        %v1964 = vsel %vm1486, %v1926, 0.0
        %1965 = vadd.xlane.f32.xlu0 %v1964
        %v1966 = vpop.xlane.xlu0 %1965
        %v1967 = vsel %vm1486, %v1928, 0.0
        %1968 = vadd.xlane.f32.xlu0 %v1967
        %v1969 = vpop.xlane.xlu0 %1968
        %v1970 = vsel %vm1486, %v1930, 0.0
        %1971 = vadd.xlane.f32.xlu0 %v1970
        %v1972 = vpop.xlane.xlu0 %1971
        %v1973 = vsel %vm1486, %v1932, 0.0
        %1974 = vadd.xlane.f32.xlu0 %v1973
        %v1975 = vpop.xlane.xlu0 %1974
        %v1976 = vsel %vm1486, %v1934, 0.0
        %1977 = vadd.xlane.f32.xlu0 %v1976
        %v1978 = vpop.xlane.xlu0 %1977
        %v1979 = vsel %vm1486, %v1936, 0.0
        %1980 = vadd.xlane.f32.xlu0 %v1979
        %v1981 = vpop.xlane.xlu0 %1980
        %v1982 = vsel %vm1486, %v1938, 0.0
        %1983 = vadd.xlane.f32.xlu0 %v1982
        %v1984 = vpop.xlane.xlu0 %1983
        %v1985 = vsel %vm1486, %v1940, 0.0
        %1986 = vadd.xlane.f32.xlu0 %v1985
        %v1987 = vpop.xlane.xlu0 %1986
        %v1988 = vsel %vm1486, %v1942, 0.0
        %1989 = vadd.xlane.f32.xlu0 %v1988
        %v1990 = vpop.xlane.xlu0 %1989
        %v1991 = vrcp.pop %v1945
        %v1992 = vmul.f32 %v1912, %v1991
        %v1993 = vrcp.pop %v1948
        %v1994 = vmul.f32 %v1914, %v1993
        %v1995 = vrcp.pop %v1951
        %v1996 = vmul.f32 %v1916, %v1995
        %v1997 = vrcp.pop %v1954
        %v1998 = vmul.f32 %v1918, %v1997
        %v1999 = vrcp.pop %v1957
        %v2000 = vmul.f32 %v1920, %v1999
        %v2001 = vrcp.pop %v1960
        %v2002 = vmul.f32 %v1922, %v2001
        %v2003 = vrcp.pop %v1963
        %v2004 = vmul.f32 %v1924, %v2003
        %v2005 = vrcp.pop %v1966
        %v2006 = vmul.f32 %v1926, %v2005
        %v2007 = vrcp.pop %v1969
        %v2008 = vmul.f32 %v1928, %v2007
        %v2009 = vrcp.pop %v1972
        %v2010 = vmul.f32 %v1930, %v2009
        %v2011 = vrcp.pop %v1975
        %v2012 = vmul.f32 %v1932, %v2011
        %v2013 = vrcp.pop %v1978
        %v2014 = vmul.f32 %v1934, %v2013
        %v2015 = vrcp.pop %v1981
        %v2016 = vmul.f32 %v1936, %v2015
        %v2017 = vrcp.pop %v1984
        %v2018 = vmul.f32 %v1938, %v2017
        %v2019 = vrcp.pop %v1987
        %v2020 = vmul.f32 %v1940, %v2019
        %v2021 = vrcp.pop %v1990
        %v2022 = vmul.f32 %v1942, %v2021
        %v2024 = vsel %vm1486, %v1992, 0
        %v2027 = vsel %vm1486, %v1994, 0
        %v2030 = vsel %vm1486, %v1996, 0
        %v2033 = vsel %vm1486, %v1998, 0
        %v2036 = vsel %vm1486, %v2000, 0
        %v2039 = vsel %vm1486, %v2002, 0
        %v2042 = vsel %vm1486, %v2004, 0
        %v2045 = vsel %vm1486, %v2006, 0
        %v2048 = vsel %vm1486, %v2008, 0
        %v2051 = vsel %vm1486, %v2010, 0
        %v2054 = vsel %vm1486, %v2012, 0
        %v2057 = vsel %vm1486, %v2014, 0
        %v2060 = vsel %vm1486, %v2016, 0
        %v2063 = vsel %vm1486, %v2018, 0
        %v2066 = vsel %vm1486, %v2020, 0
        %v2069 = vsel %vm1486, %v2022, 0
        %2071 = vmatprep.subr.mxu0 0.0
        %2072 = vmatpush1.msra.mxu0 0.0
        %2073 = vmatprep.subr.mxu0 0.0
        %2074 = vmatpush1.msra.mxu0 0.0
        %2075 = vmatprep.subr.mxu0 0.0
        %2076 = vmatpush1.msra.mxu0 0.0
        %2077 = vmatprep.subr.mxu0 0.0
        %2078 = vmatpush1.msra.mxu0 0.0
        %2079 = vmatprep.subr.mxu0 0.0
        %2080 = vmatpush1.msra.mxu0 0.0
        %2081 = vmatprep.subr.mxu0 0.0
        %2082 = vmatpush1.msra.mxu0 0.0
        %2083 = vmatprep.subr.mxu0 0.0
        %2084 = vmatpush1.msra.mxu0 0.0
        %2085 = vmatprep.subr.mxu0 0.0
        %2086 = vmatpush1.msra.mxu0 0.0
        %2087 = vmatprep.subr.mxu0 0.0
        %2088 = vmatpush1.msra.mxu0 0.0
        %2089 = vmatprep.subr.mxu0 0.0
        %2090 = vmatpush1.msra.mxu0 0.0
        %2091 = vmatprep.subr.mxu0 0.0
        %2092 = vmatpush1.msra.mxu0 0.0
        %2093 = vmatprep.subr.mxu0 0.0
        %2094 = vmatpush1.msra.mxu0 0.0
        %2095 = vmatprep.subr.mxu0 0.0
        %2096 = vmatpush1.msra.mxu0 0.0
        %2097 = vmatprep.subr.mxu0 0.0
        %2098 = vmatpush1.msra.mxu0 0.0
        %2099 = vmatprep.subr.mxu0 0.0
        %2100 = vmatpush1.msra.mxu0 0.0
        %2101 = vmatprep.subr.mxu0 0.0
        %2102 = vmatpush1.msra.mxu0 %v1483
        %2103 = vmatprep.subr.mxu0 0.0
        %2104 = vmatpush2.msra.mxu0 0.0
        %2105 = vmatprep.subr.mxu0 0.0
        %2106 = vmatpush2.msra.mxu0 0.0
        %2107 = vmatprep.subr.mxu0 0.0
        %2108 = vmatpush2.msra.mxu0 0.0
        %2109 = vmatprep.subr.mxu0 0.0
        %2110 = vmatpush2.msra.mxu0 0.0
        %2111 = vmatprep.subr.mxu0 0.0
        %2112 = vmatpush2.msra.mxu0 0.0
        %2113 = vmatprep.subr.mxu0 0.0
        %2114 = vmatpush2.msra.mxu0 0.0
        %2115 = vmatprep.subr.mxu0 0.0
        %2116 = vmatpush2.msra.mxu0 0.0
        %2117 = vmatprep.subr.mxu0 0.0
        %2118 = vmatpush2.msra.mxu0 0.0
        %2119 = vmatprep.subr.mxu0 0.0
        %2120 = vmatpush2.msra.mxu0 0.0
        %2121 = vmatprep.subr.mxu0 0.0
        %2122 = vmatpush2.msra.mxu0 0.0
        %2123 = vmatprep.subr.mxu0 0.0
        %2124 = vmatpush2.msra.mxu0 0.0
        %2125 = vmatprep.subr.mxu0 0.0
        %2126 = vmatpush2.msra.mxu0 0.0
        %2127 = vmatprep.subr.mxu0 0.0
        %2128 = vmatpush2.msra.mxu0 0.0
        %2129 = vmatprep.subr.mxu0 0.0
        %2130 = vmatpush2.msra.mxu0 0.0
        %2131 = vmatprep.subr.mxu0 0.0
        %2132 = vmatpush2.msra.mxu0 0.0
        %2133 = vmatprep.subr.mxu0 0.0
        %2134 = vmatpush2.msra.mxu0 0.0
        %2135 = vmatprep.mubr.f32.mxu0 0.0
        %2136 = vmatmul.mubr.f32.gmra.mxu0 %v2024
        %v2137 = vpop.f32.mrf.mxu0
        %v2138 = vadd.f32 0.0, %v2137
        %v2139 = vpop.f32.mrf.mxu0
        %2140 = vmatprep.mubr.f32.mxu0 0.0
        %2141 = vmatmul.mubr.f32.gmra.mxu0 %v2027
        %v2142 = vpop.f32.mrf.mxu0
        %v2143 = vadd.f32 0.0, %v2142
        %v2144 = vpop.f32.mrf.mxu0
        %2145 = vmatprep.mubr.f32.mxu0 0.0
        %2146 = vmatmul.mubr.f32.gmra.mxu0 %v2030
        %v2147 = vpop.f32.mrf.mxu0
        %v2148 = vadd.f32 0.0, %v2147
        %v2149 = vpop.f32.mrf.mxu0
        %2150 = vmatprep.mubr.f32.mxu0 0.0
        %2151 = vmatmul.mubr.f32.gmra.mxu0 %v2033
        %v2152 = vpop.f32.mrf.mxu0
        %v2153 = vadd.f32 0.0, %v2152
        %v2154 = vpop.f32.mrf.mxu0
        %2155 = vmatprep.mubr.f32.mxu0 0.0
        %2156 = vmatmul.mubr.f32.gmra.mxu0 %v2036
        %v2157 = vpop.f32.mrf.mxu0
        %v2158 = vadd.f32 0.0, %v2157
        %v2159 = vpop.f32.mrf.mxu0
        %2160 = vmatprep.mubr.f32.mxu0 0.0
        %2161 = vmatmul.mubr.f32.gmra.mxu0 %v2039
        %v2162 = vpop.f32.mrf.mxu0
        %v2163 = vadd.f32 0.0, %v2162
        %v2164 = vpop.f32.mrf.mxu0
        %2165 = vmatprep.mubr.f32.mxu0 0.0
        %2166 = vmatmul.mubr.f32.gmra.mxu0 %v2042
        %v2167 = vpop.f32.mrf.mxu0
        %v2168 = vadd.f32 0.0, %v2167
        %v2169 = vpop.f32.mrf.mxu0
        %2170 = vmatprep.mubr.f32.mxu0 0.0
        %2171 = vmatmul.mubr.f32.gmra.mxu0 %v2045
        %v2172 = vpop.f32.mrf.mxu0
        %v2173 = vadd.f32 0.0, %v2172
        %v2174 = vpop.f32.mrf.mxu0
        %2175 = vmatprep.mubr.f32.mxu0 0.0
        %2176 = vmatmul.mubr.f32.gmra.mxu0 %v2048
        %v2177 = vpop.f32.mrf.mxu0
        %v2178 = vadd.f32 0.0, %v2177
        %v2179 = vpop.f32.mrf.mxu0
        %2180 = vmatprep.mubr.f32.mxu0 0.0
        %2181 = vmatmul.mubr.f32.gmra.mxu0 %v2051
        %v2182 = vpop.f32.mrf.mxu0
        %v2183 = vadd.f32 0.0, %v2182
        %v2184 = vpop.f32.mrf.mxu0
        %2185 = vmatprep.mubr.f32.mxu0 0.0
        %2186 = vmatmul.mubr.f32.gmra.mxu0 %v2054
        %v2187 = vpop.f32.mrf.mxu0
        %v2188 = vadd.f32 0.0, %v2187
        %v2189 = vpop.f32.mrf.mxu0
        %2190 = vmatprep.mubr.f32.mxu0 0.0
        %2191 = vmatmul.mubr.f32.gmra.mxu0 %v2057
        %v2192 = vpop.f32.mrf.mxu0
        %v2193 = vadd.f32 0.0, %v2192
        %v2194 = vpop.f32.mrf.mxu0
        %2195 = vmatprep.mubr.f32.mxu0 0.0
        %2196 = vmatmul.mubr.f32.gmra.mxu0 %v2060
        %v2197 = vpop.f32.mrf.mxu0
        %v2198 = vadd.f32 0.0, %v2197
        %v2199 = vpop.f32.mrf.mxu0
        %2200 = vmatprep.mubr.f32.mxu0 0.0
        %2201 = vmatmul.mubr.f32.gmra.mxu0 %v2063
        %v2202 = vpop.f32.mrf.mxu0
        %v2203 = vadd.f32 0.0, %v2202
        %v2204 = vpop.f32.mrf.mxu0
        %2205 = vmatprep.mubr.f32.mxu0 0.0
        %2206 = vmatmul.mubr.f32.gmra.mxu0 %v2066
        %v2207 = vpop.f32.mrf.mxu0
        %v2208 = vadd.f32 0.0, %v2207
        %v2209 = vpop.f32.mrf.mxu0
        %2210 = vmatprep.mubr.f32.mxu0 0.0
        %2211 = vmatmul.mubr.f32.gmra.mxu0 %v2069
        %v2212 = vpop.f32.mrf.mxu0
        %v2213 = vadd.f32 0.0, %v2212
        %v2214 = vpop.f32.mrf.mxu0
        %2215 = vdwg.mxu0
        %v2216 = vmul.f32 %v2138, %v1241
        %v2217 = vmul.f32 %v2143, %v1242
        %v2218 = vmul.f32 %v2148, %v1243
        %v2219 = vmul.f32 %v2153, %v1244
        %v2220 = vmul.f32 %v2158, %v1245
        %v2221 = vmul.f32 %v2163, %v1246
        %v2222 = vmul.f32 %v2168, %v1247
        %v2223 = vmul.f32 %v2173, %v1248
        %v2224 = vmul.f32 %v2178, %v1249
        %v2225 = vmul.f32 %v2183, %v1250
        %v2226 = vmul.f32 %v2188, %v1251
        %v2227 = vmul.f32 %v2193, %v1252
        %v2228 = vmul.f32 %v2198, %v1253
        %v2229 = vmul.f32 %v2203, %v1254
        %v2230 = vmul.f32 %v2208, %v1255
        %v2231 = vmul.f32 %v2213, %v1256
        %2232 = vmatprep.subr.mxu0 0.0
        %2233 = vmatpush1.msra.mxu0 %v2231
        %2234 = vmatprep.subr.mxu0 0.0
        %2235 = vmatpush1.msra.mxu0 %v2230
        %2236 = vmatprep.subr.mxu0 0.0
        %2237 = vmatpush1.msra.mxu0 %v2229
        %2238 = vmatprep.subr.mxu0 0.0
        %2239 = vmatpush1.msra.mxu0 %v2228
        %2240 = vmatprep.subr.mxu0 0.0
        %2241 = vmatpush1.msra.mxu0 %v2227
        %2242 = vmatprep.subr.mxu0 0.0
        %2243 = vmatpush1.msra.mxu0 %v2226
        %2244 = vmatprep.subr.mxu0 0.0
        %2245 = vmatpush1.msra.mxu0 %v2225
        %2246 = vmatprep.subr.mxu0 0.0
        %2247 = vmatpush1.msra.mxu0 %v2224
        %2248 = vmatprep.subr.mxu0 0.0
        %2249 = vmatpush1.msra.mxu0 %v2223
        %2250 = vmatprep.subr.mxu0 0.0
        %2251 = vmatpush1.msra.mxu0 %v2222
        %2252 = vmatprep.subr.mxu0 0.0
        %2253 = vmatpush1.msra.mxu0 %v2221
        %2254 = vmatprep.subr.mxu0 0.0
        %2255 = vmatpush1.msra.mxu0 %v2220
        %2256 = vmatprep.subr.mxu0 0.0
        %2257 = vmatpush1.msra.mxu0 %v2219
        %2258 = vmatprep.subr.mxu0 0.0
        %2259 = vmatpush1.msra.mxu0 %v2218
        %2260 = vmatprep.subr.mxu0 0.0
        %2261 = vmatpush1.msra.mxu0 %v2217
        %2262 = vmatprep.subr.mxu0 0.0
        %2263 = vmatpush1.msra.mxu0 %v2216
        %2264 = vmatprep.subr.mxu0 0.0
        %2265 = vmatpush2.msra.mxu0 0.0
        %2266 = vmatprep.subr.mxu0 0.0
        %2267 = vmatpush2.msra.mxu0 0.0
        %2268 = vmatprep.subr.mxu0 0.0
        %2269 = vmatpush2.msra.mxu0 0.0
        %2270 = vmatprep.subr.mxu0 0.0
        %2271 = vmatpush2.msra.mxu0 0.0
        %2272 = vmatprep.subr.mxu0 0.0
        %2273 = vmatpush2.msra.mxu0 0.0
        %2274 = vmatprep.subr.mxu0 0.0
        %2275 = vmatpush2.msra.mxu0 0.0
        %2276 = vmatprep.subr.mxu0 0.0
        %2277 = vmatpush2.msra.mxu0 0.0
        %2278 = vmatprep.subr.mxu0 0.0
        %2279 = vmatpush2.msra.mxu0 0.0
        %2280 = vmatprep.subr.mxu0 0.0
        %2281 = vmatpush2.msra.mxu0 0.0
        %2282 = vmatprep.subr.mxu0 0.0
        %2283 = vmatpush2.msra.mxu0 0.0
        %2284 = vmatprep.subr.mxu0 0.0
        %2285 = vmatpush2.msra.mxu0 0.0
        %2286 = vmatprep.subr.mxu0 0.0
        %2287 = vmatpush2.msra.mxu0 0.0
        %2288 = vmatprep.subr.mxu0 0.0
        %2289 = vmatpush2.msra.mxu0 0.0
        %2290 = vmatprep.subr.mxu0 0.0
        %2291 = vmatpush2.msra.mxu0 0.0
        %2292 = vmatprep.subr.mxu0 0.0
        %2293 = vmatpush2.msra.mxu0 0.0
        %2294 = vmatprep.subr.mxu0 0.0
        %2295 = vmatpush2.msra.mxu0 0.0
        %2296 = vmatprep.mubr.f32.mxu0 0.0
        %2297 = vmatmul.mubr.f32.gmra.mxu0 %v1257
        %v2298 = vpop.f32.mrf.mxu0
        %v2299 = vadd.f32 0.0, %v2298
        %v2300 = vpop.f32.mrf.mxu0
        %2301 = vdwg.mxu0
        %v2303 = vlaneseq
        %v2304 = vshrl.u32 %v2303, 7
        %v2305 = vsub.s32 0, %v2304
        %v2306 = vrot.slane %v1206, %v2305
        %2308 = vmatprep.subr.mxu0 0.0
        %2309 = vmatpush1.msra.mxu0 %v1205
        %2310 = vmatprep.subr.mxu0 0.0
        %2311 = vmatpush1.msra.mxu0 %v1204
        %2312 = vmatprep.subr.mxu0 0.0
        %2313 = vmatpush1.msra.mxu0 %v1203
        %2314 = vmatprep.subr.mxu0 0.0
        %2315 = vmatpush1.msra.mxu0 %v1202
        %2316 = vmatprep.subr.mxu0 0.0
        %2317 = vmatpush1.msra.mxu0 %v1201
        %2318 = vmatprep.subr.mxu0 0.0
        %2319 = vmatpush1.msra.mxu0 %v1200
        %2320 = vmatprep.subr.mxu0 0.0
        %2321 = vmatpush1.msra.mxu0 %v1199
        %2322 = vmatprep.subr.mxu0 0.0
        %2323 = vmatpush1.msra.mxu0 %v1198
        %2324 = vmatprep.subr.mxu0 0.0
        %2325 = vmatpush1.msra.mxu0 %v1197
        %2326 = vmatprep.subr.mxu0 0.0
        %2327 = vmatpush1.msra.mxu0 %v1196
        %2328 = vmatprep.subr.mxu0 0.0
        %2329 = vmatpush1.msra.mxu0 %v1195
        %2330 = vmatprep.subr.mxu0 0.0
        %2331 = vmatpush1.msra.mxu0 %v1194
        %2332 = vmatprep.subr.mxu0 0.0
        %2333 = vmatpush1.msra.mxu0 %v1193
        %2334 = vmatprep.subr.mxu0 0.0
        %2335 = vmatpush1.msra.mxu0 %v1192
        %2336 = vmatprep.subr.mxu0 0.0
        %2337 = vmatpush1.msra.mxu0 %v1191
        %2338 = vmatprep.subr.mxu0 0.0
        %2339 = vmatpush1.msra.mxu0 %v1190
        %2340 = vmatprep.subr.mxu0 0.0
        %2341 = vmatpush2.msra.mxu0 0.0
        %2342 = vmatprep.subr.mxu0 0.0
        %2343 = vmatpush2.msra.mxu0 0.0
        %2344 = vmatprep.subr.mxu0 0.0
        %2345 = vmatpush2.msra.mxu0 0.0
        %2346 = vmatprep.subr.mxu0 0.0
        %2347 = vmatpush2.msra.mxu0 0.0
        %2348 = vmatprep.subr.mxu0 0.0
        %2349 = vmatpush2.msra.mxu0 0.0
        %2350 = vmatprep.subr.mxu0 0.0
        %2351 = vmatpush2.msra.mxu0 0.0
        %2352 = vmatprep.subr.mxu0 0.0
        %2353 = vmatpush2.msra.mxu0 0.0
        %2354 = vmatprep.subr.mxu0 0.0
        %2355 = vmatpush2.msra.mxu0 0.0
        %2356 = vmatprep.subr.mxu0 0.0
        %2357 = vmatpush2.msra.mxu0 0.0
        %2358 = vmatprep.subr.mxu0 0.0
        %2359 = vmatpush2.msra.mxu0 0.0
        %2360 = vmatprep.subr.mxu0 0.0
        %2361 = vmatpush2.msra.mxu0 0.0
        %2362 = vmatprep.subr.mxu0 0.0
        %2363 = vmatpush2.msra.mxu0 0.0
        %2364 = vmatprep.subr.mxu0 0.0
        %2365 = vmatpush2.msra.mxu0 0.0
        %2366 = vmatprep.subr.mxu0 0.0
        %2367 = vmatpush2.msra.mxu0 0.0
        %2368 = vmatprep.subr.mxu0 0.0
        %2369 = vmatpush2.msra.mxu0 0.0
        %2370 = vmatprep.subr.mxu0 0.0
        %2371 = vmatpush2.msra.mxu0 0.0
        %2372 = vmatprep.mubr.f32.mxu0 0.0
        %2373 = vmatmul.mubr.f32.gmra.mxu0 %v2299
        %v2374 = vpop.f32.mrf.mxu0
        %v2375 = vadd.f32 %v2306, %v2374
        %v2376 = vpop.f32.mrf.mxu0
        %2377 = vdwg.mxu0
        %v2378 = vadd.f32 %v2375, %v1105
        %2379 = vmatprep.subr.mxu0 0.0
        %2380 = vmatpush1.msra.mxu0 %v1121
        %2381 = vmatprep.subr.mxu0 0.0
        %2382 = vmatpush1.msra.mxu0 %v1120
        %2383 = vmatprep.subr.mxu0 0.0
        %2384 = vmatpush1.msra.mxu0 %v1119
        %2385 = vmatprep.subr.mxu0 0.0
        %2386 = vmatpush1.msra.mxu0 %v1118
        %2387 = vmatprep.subr.mxu0 0.0
        %2388 = vmatpush1.msra.mxu0 %v1117
        %2389 = vmatprep.subr.mxu0 0.0
        %2390 = vmatpush1.msra.mxu0 %v1116
        %2391 = vmatprep.subr.mxu0 0.0
        %2392 = vmatpush1.msra.mxu0 %v1115
        %2393 = vmatprep.subr.mxu0 0.0
        %2394 = vmatpush1.msra.mxu0 %v1114
        %2395 = vmatprep.subr.mxu0 0.0
        %2396 = vmatpush1.msra.mxu0 %v1113
        %2397 = vmatprep.subr.mxu0 0.0
        %2398 = vmatpush1.msra.mxu0 %v1112
        %2399 = vmatprep.subr.mxu0 0.0
        %2400 = vmatpush1.msra.mxu0 %v1111
        %2401 = vmatprep.subr.mxu0 0.0
        %2402 = vmatpush1.msra.mxu0 %v1110
        %2403 = vmatprep.subr.mxu0 0.0
        %2404 = vmatpush1.msra.mxu0 %v1109
        %2405 = vmatprep.subr.mxu0 0.0
        %2406 = vmatpush1.msra.mxu0 %v1108
        %2407 = vmatprep.subr.mxu0 0.0
        %2408 = vmatpush1.msra.mxu0 %v1107
        %2409 = vmatprep.subr.mxu0 0.0
        %2410 = vmatpush1.msra.mxu0 %v1106
        %2411 = vmatprep.subr.mxu0 0.0
        %2412 = vmatpush2.msra.mxu0 0.0
        %2413 = vmatprep.subr.mxu0 0.0
        %2414 = vmatpush2.msra.mxu0 0.0
        %2415 = vmatprep.subr.mxu0 0.0
        %2416 = vmatpush2.msra.mxu0 0.0
        %2417 = vmatprep.subr.mxu0 0.0
        %2418 = vmatpush2.msra.mxu0 0.0
        %2419 = vmatprep.subr.mxu0 0.0
        %2420 = vmatpush2.msra.mxu0 0.0
        %2421 = vmatprep.subr.mxu0 0.0
        %2422 = vmatpush2.msra.mxu0 0.0
        %2423 = vmatprep.subr.mxu0 0.0
        %2424 = vmatpush2.msra.mxu0 0.0
        %2425 = vmatprep.subr.mxu0 0.0
        %2426 = vmatpush2.msra.mxu0 0.0
        %2427 = vmatprep.subr.mxu0 0.0
        %2428 = vmatpush2.msra.mxu0 0.0
        %2429 = vmatprep.subr.mxu0 0.0
        %2430 = vmatpush2.msra.mxu0 0.0
        %2431 = vmatprep.subr.mxu0 0.0
        %2432 = vmatpush2.msra.mxu0 0.0
        %2433 = vmatprep.subr.mxu0 0.0
        %2434 = vmatpush2.msra.mxu0 0.0
        %2435 = vmatprep.subr.mxu0 0.0
        %2436 = vmatpush2.msra.mxu0 0.0
        %2437 = vmatprep.subr.mxu0 0.0
        %2438 = vmatpush2.msra.mxu0 0.0
        %2439 = vmatprep.subr.mxu0 0.0
        %2440 = vmatpush2.msra.mxu0 0.0
        %2441 = vmatprep.subr.mxu0 0.0
        %2442 = vmatpush2.msra.mxu0 0.0
        %2443 = vmatprep.mubr.f32.mxu0 0.0
        %2444 = vmatmul.mubr.f32.gmra.mxu0 %v2378
        %v2445 = vpop.f32.mrf.mxu0
        %v2446 = vadd.f32 0.0, %v2445
        %v2447 = vpop.f32.mrf.mxu0
        %2448 = vdwg.mxu0
        %v2449 = vsub.f32 %v2378, %v2446
        %v2450 = vmul.f32 %v2449, %v2449
        %2451 = vmatprep.subr.mxu0 0.0
        %2452 = vmatpush1.msra.mxu0 %v1137
        %2453 = vmatprep.subr.mxu0 0.0
        %2454 = vmatpush1.msra.mxu0 %v1136
        %2455 = vmatprep.subr.mxu0 0.0
        %2456 = vmatpush1.msra.mxu0 %v1135
        %2457 = vmatprep.subr.mxu0 0.0
        %2458 = vmatpush1.msra.mxu0 %v1134
        %2459 = vmatprep.subr.mxu0 0.0
        %2460 = vmatpush1.msra.mxu0 %v1133
        %2461 = vmatprep.subr.mxu0 0.0
        %2462 = vmatpush1.msra.mxu0 %v1132
        %2463 = vmatprep.subr.mxu0 0.0
        %2464 = vmatpush1.msra.mxu0 %v1131
        %2465 = vmatprep.subr.mxu0 0.0
        %2466 = vmatpush1.msra.mxu0 %v1130
        %2467 = vmatprep.subr.mxu0 0.0
        %2468 = vmatpush1.msra.mxu0 %v1129
        %2469 = vmatprep.subr.mxu0 0.0
        %2470 = vmatpush1.msra.mxu0 %v1128
        %2471 = vmatprep.subr.mxu0 0.0
        %2472 = vmatpush1.msra.mxu0 %v1127
        %2473 = vmatprep.subr.mxu0 0.0
        %2474 = vmatpush1.msra.mxu0 %v1126
        %2475 = vmatprep.subr.mxu0 0.0
        %2476 = vmatpush1.msra.mxu0 %v1125
        %2477 = vmatprep.subr.mxu0 0.0
        %2478 = vmatpush1.msra.mxu0 %v1124
        %2479 = vmatprep.subr.mxu0 0.0
        %2480 = vmatpush1.msra.mxu0 %v1123
        %2481 = vmatprep.subr.mxu0 0.0
        %2482 = vmatpush1.msra.mxu0 %v1122
        %2483 = vmatprep.subr.mxu0 0.0
        %2484 = vmatpush2.msra.mxu0 0.0
        %2485 = vmatprep.subr.mxu0 0.0
        %2486 = vmatpush2.msra.mxu0 0.0
        %2487 = vmatprep.subr.mxu0 0.0
        %2488 = vmatpush2.msra.mxu0 0.0
        %2489 = vmatprep.subr.mxu0 0.0
        %2490 = vmatpush2.msra.mxu0 0.0
        %2491 = vmatprep.subr.mxu0 0.0
        %2492 = vmatpush2.msra.mxu0 0.0
        %2493 = vmatprep.subr.mxu0 0.0
        %2494 = vmatpush2.msra.mxu0 0.0
        %2495 = vmatprep.subr.mxu0 0.0
        %2496 = vmatpush2.msra.mxu0 0.0
        %2497 = vmatprep.subr.mxu0 0.0
        %2498 = vmatpush2.msra.mxu0 0.0
        %2499 = vmatprep.subr.mxu0 0.0
        %2500 = vmatpush2.msra.mxu0 0.0
        %2501 = vmatprep.subr.mxu0 0.0
        %2502 = vmatpush2.msra.mxu0 0.0
        %2503 = vmatprep.subr.mxu0 0.0
        %2504 = vmatpush2.msra.mxu0 0.0
        %2505 = vmatprep.subr.mxu0 0.0
        %2506 = vmatpush2.msra.mxu0 0.0
        %2507 = vmatprep.subr.mxu0 0.0
        %2508 = vmatpush2.msra.mxu0 0.0
        %2509 = vmatprep.subr.mxu0 0.0
        %2510 = vmatpush2.msra.mxu0 0.0
        %2511 = vmatprep.subr.mxu0 0.0
        %2512 = vmatpush2.msra.mxu0 0.0
        %2513 = vmatprep.subr.mxu0 0.0
        %2514 = vmatpush2.msra.mxu0 0.0
        %2515 = vmatprep.mubr.f32.mxu0 0.0
        %2516 = vmatmul.mubr.f32.gmra.mxu0 %v2450
        %v2517 = vpop.f32.mrf.mxu0
        %v2518 = vadd.f32 0.0, %v2517
        %v2519 = vpop.f32.mrf.mxu0
        %2520 = vdwg.mxu0
        %v2521 = vrsqrt.pop %v2518
        %v2522 = vmul.f32 %v2518, %v2521
        %vm2523 = vcmp.eq.f32.partialorder %v2518, inf
        %v2524 = vsel %vm2523, %v2518, %v2522
        %vm2525 = vcmp.eq.f32.partialorder %v2518, 0.0
        %v2526 = vand.u32 %v2518, 2147483648
        %v2527 = vsel %vm2525, %v2526, %v2524
        %v2528 = vadd.f32 %v2527, 1e-06
        %v2529 = vrcp.pop %v2528
        %v2530 = vmul.f32 %v2449, %v2529
        %v2532 = vlaneseq
        %v2533 = vshrl.u32 %v2532, 7
        %v2534 = vsub.s32 0, %v2533
        %v2535 = vrot.slane %v1207, %v2534
        %v2537 = vmul.f32 %v2535, %v2530
        %v2539 = vlaneseq
        %v2540 = vshrl.u32 %v2539, 7
        %v2541 = vsub.s32 0, %v2540
        %v2542 = vrot.slane %v1208, %v2541
        %v2544 = vadd.f32 %v2537, %v2542
        %v2545 = vld [vmem:[%s911] sm:$0xff]
        %v2546 = vld [vmem:[%s911 + $0x8] sm:$0xff]
        %v2547 = vld [vmem:[%s911 + $0x10] sm:$0xff]
        %v2548 = vld [vmem:[%s911 + $0x18] sm:$0xff]
        %v2549 = vld [vmem:[%s911 + $0x20] sm:$0xff]
        %v2550 = vld [vmem:[%s911 + $0x28] sm:$0xff]
        %v2551 = vld [vmem:[%s911 + $0x30] sm:$0xff]
        %v2552 = vld [vmem:[%s911 + $0x38] sm:$0xff]
        %v2553 = vld [vmem:[%s911 + $0x40] sm:$0xff]
        %v2554 = vld [vmem:[%s911 + $0x48] sm:$0xff]
        %v2555 = vld [vmem:[%s911 + $0x50] sm:$0xff]
        %v2556 = vld [vmem:[%s911 + $0x58] sm:$0xff]
        %v2557 = vld [vmem:[%s911 + $0x60] sm:$0xff]
        %v2558 = vld [vmem:[%s911 + $0x68] sm:$0xff]
        %v2559 = vld [vmem:[%s911 + $0x70] sm:$0xff]
        %v2560 = vld [vmem:[%s911 + $0x78] sm:$0xff]
        %v2561 = vld [vmem:[%s911 + $0x80] sm:$0xff]
        %v2562 = vld [vmem:[%s911 + $0x88] sm:$0xff]
        %v2563 = vld [vmem:[%s911 + $0x90] sm:$0xff]
        %v2564 = vld [vmem:[%s911 + $0x98] sm:$0xff]
        %v2565 = vld [vmem:[%s911 + $0xa0] sm:$0xff]
        %v2566 = vld [vmem:[%s911 + $0xa8] sm:$0xff]
        %v2567 = vld [vmem:[%s911 + $0xb0] sm:$0xff]
        %v2568 = vld [vmem:[%s911 + $0xb8] sm:$0xff]
        %v2569 = vld [vmem:[%s911 + $0xc0] sm:$0xff]
        %v2570 = vld [vmem:[%s911 + $0xc8] sm:$0xff]
        %v2571 = vld [vmem:[%s911 + $0xd0] sm:$0xff]
        %v2572 = vld [vmem:[%s911 + $0xd8] sm:$0xff]
        %v2573 = vld [vmem:[%s911 + $0xe0] sm:$0xff]
        %v2574 = vld [vmem:[%s911 + $0xe8] sm:$0xff]
        %v2575 = vld [vmem:[%s911 + $0xf0] sm:$0xff]
        %v2576 = vld [vmem:[%s911 + $0xf8] sm:$0xff]
        %v2577 = vld [vmem:[%s911 + $0x100] sm:$0xff]
        %v2578 = vld [vmem:[%s911 + $0x108] sm:$0xff]
        %v2579 = vld [vmem:[%s911 + $0x110] sm:$0xff]
        %v2580 = vld [vmem:[%s911 + $0x118] sm:$0xff]
        %v2581 = vld [vmem:[%s911 + $0x120] sm:$0xff]
        %v2582 = vld [vmem:[%s911 + $0x128] sm:$0xff]
        %v2583 = vld [vmem:[%s911 + $0x130] sm:$0xff]
        %v2584 = vld [vmem:[%s911 + $0x138] sm:$0xff]
        %v2585 = vld [vmem:[%s911 + $0x140] sm:$0xff]
        %v2586 = vld [vmem:[%s911 + $0x148] sm:$0xff]
        %v2587 = vld [vmem:[%s911 + $0x150] sm:$0xff]
        %v2588 = vld [vmem:[%s911 + $0x158] sm:$0xff]
        %v2589 = vld [vmem:[%s911 + $0x160] sm:$0xff]
        %v2590 = vld [vmem:[%s911 + $0x168] sm:$0xff]
        %v2591 = vld [vmem:[%s911 + $0x170] sm:$0xff]
        %v2592 = vld [vmem:[%s911 + $0x178] sm:$0xff]
        %v2593 = vld [vmem:[%s911 + $0x180] sm:$0xff]
        %v2594 = vld [vmem:[%s911 + $0x188] sm:$0xff]
        %v2595 = vld [vmem:[%s911 + $0x190] sm:$0xff]
        %v2596 = vld [vmem:[%s911 + $0x198] sm:$0xff]
        %v2597 = vld [vmem:[%s911 + $0x1a0] sm:$0xff]
        %v2598 = vld [vmem:[%s911 + $0x1a8] sm:$0xff]
        %v2599 = vld [vmem:[%s911 + $0x1b0] sm:$0xff]
        %v2600 = vld [vmem:[%s911 + $0x1b8] sm:$0xff]
        %v2601 = vld [vmem:[%s911 + $0x1c0] sm:$0xff]
        %v2602 = vld [vmem:[%s911 + $0x1c8] sm:$0xff]
        %v2603 = vld [vmem:[%s911 + $0x1d0] sm:$0xff]
        %v2604 = vld [vmem:[%s911 + $0x1d8] sm:$0xff]
        %v2605 = vld [vmem:[%s911 + $0x1e0] sm:$0xff]
        %v2606 = vld [vmem:[%s911 + $0x1e8] sm:$0xff]
        %v2607 = vld [vmem:[%s911 + $0x1f0] sm:$0xff]
        %v2608 = vld [vmem:[%s911 + $0x1f8] sm:$0xff]
        %v2609 = vld [vmem:[%s1085] sm:$0xf]
        %v2610 = vld [vmem:[%s920] sm:$0xff]
        %v2611 = vld [vmem:[%s920 + $0x8] sm:$0xff]
        %v2612 = vld [vmem:[%s920 + $0x10] sm:$0xff]
        %v2613 = vld [vmem:[%s920 + $0x18] sm:$0xff]
        %v2614 = vld [vmem:[%s920 + $0x20] sm:$0xff]
        %v2615 = vld [vmem:[%s920 + $0x28] sm:$0xff]
        %v2616 = vld [vmem:[%s920 + $0x30] sm:$0xff]
        %v2617 = vld [vmem:[%s920 + $0x38] sm:$0xff]
        %v2618 = vld [vmem:[%s920 + $0x40] sm:$0xff]
        %v2619 = vld [vmem:[%s920 + $0x48] sm:$0xff]
        %v2620 = vld [vmem:[%s920 + $0x50] sm:$0xff]
        %v2621 = vld [vmem:[%s920 + $0x58] sm:$0xff]
        %v2622 = vld [vmem:[%s920 + $0x60] sm:$0xff]
        %v2623 = vld [vmem:[%s920 + $0x68] sm:$0xff]
        %v2624 = vld [vmem:[%s920 + $0x70] sm:$0xff]
        %v2625 = vld [vmem:[%s920 + $0x78] sm:$0xff]
        %v2626 = vld [vmem:[%s920 + $0x80] sm:$0xff]
        %v2627 = vld [vmem:[%s920 + $0x88] sm:$0xff]
        %v2628 = vld [vmem:[%s920 + $0x90] sm:$0xff]
        %v2629 = vld [vmem:[%s920 + $0x98] sm:$0xff]
        %v2630 = vld [vmem:[%s920 + $0xa0] sm:$0xff]
        %v2631 = vld [vmem:[%s920 + $0xa8] sm:$0xff]
        %v2632 = vld [vmem:[%s920 + $0xb0] sm:$0xff]
        %v2633 = vld [vmem:[%s920 + $0xb8] sm:$0xff]
        %v2634 = vld [vmem:[%s920 + $0xc0] sm:$0xff]
        %v2635 = vld [vmem:[%s920 + $0xc8] sm:$0xff]
        %v2636 = vld [vmem:[%s920 + $0xd0] sm:$0xff]
        %v2637 = vld [vmem:[%s920 + $0xd8] sm:$0xff]
        %v2638 = vld [vmem:[%s920 + $0xe0] sm:$0xff]
        %v2639 = vld [vmem:[%s920 + $0xe8] sm:$0xff]
        %v2640 = vld [vmem:[%s920 + $0xf0] sm:$0xff]
        %v2641 = vld [vmem:[%s920 + $0xf8] sm:$0xff]
        %v2642 = vld [vmem:[%s920 + $0x100] sm:$0xff]
        %v2643 = vld [vmem:[%s920 + $0x108] sm:$0xff]
        %v2644 = vld [vmem:[%s920 + $0x110] sm:$0xff]
        %v2645 = vld [vmem:[%s920 + $0x118] sm:$0xff]
        %v2646 = vld [vmem:[%s920 + $0x120] sm:$0xff]
        %v2647 = vld [vmem:[%s920 + $0x128] sm:$0xff]
        %v2648 = vld [vmem:[%s920 + $0x130] sm:$0xff]
        %v2649 = vld [vmem:[%s920 + $0x138] sm:$0xff]
        %v2650 = vld [vmem:[%s920 + $0x140] sm:$0xff]
        %v2651 = vld [vmem:[%s920 + $0x148] sm:$0xff]
        %v2652 = vld [vmem:[%s920 + $0x150] sm:$0xff]
        %v2653 = vld [vmem:[%s920 + $0x158] sm:$0xff]
        %v2654 = vld [vmem:[%s920 + $0x160] sm:$0xff]
        %v2655 = vld [vmem:[%s920 + $0x168] sm:$0xff]
        %v2656 = vld [vmem:[%s920 + $0x170] sm:$0xff]
        %v2657 = vld [vmem:[%s920 + $0x178] sm:$0xff]
        %v2658 = vld [vmem:[%s920 + $0x180] sm:$0xff]
        %v2659 = vld [vmem:[%s920 + $0x188] sm:$0xff]
        %v2660 = vld [vmem:[%s920 + $0x190] sm:$0xff]
        %v2661 = vld [vmem:[%s920 + $0x198] sm:$0xff]
        %v2662 = vld [vmem:[%s920 + $0x1a0] sm:$0xff]
        %v2663 = vld [vmem:[%s920 + $0x1a8] sm:$0xff]
        %v2664 = vld [vmem:[%s920 + $0x1b0] sm:$0xff]
        %v2665 = vld [vmem:[%s920 + $0x1b8] sm:$0xff]
        %v2666 = vld [vmem:[%s920 + $0x1c0] sm:$0xff]
        %v2667 = vld [vmem:[%s920 + $0x1c8] sm:$0xff]
        %v2668 = vld [vmem:[%s920 + $0x1d0] sm:$0xff]
        %v2669 = vld [vmem:[%s920 + $0x1d8] sm:$0xff]
        %v2670 = vld [vmem:[%s920 + $0x1e0] sm:$0xff]
        %v2671 = vld [vmem:[%s920 + $0x1e8] sm:$0xff]
        %v2672 = vld [vmem:[%s920 + $0x1f0] sm:$0xff]
        %v2673 = vld [vmem:[%s920 + $0x1f8] sm:$0xff]
        %v2674 = vld [vmem:[%s1088] sm:$0x1]
        %v2675 = vld [vmem:[%s1091] sm:$0x1]
        %v2676 = vld [vmem:[%s1094] sm:$0x1]
        %v2678 = vlaneseq
        %v2679 = vshrl.u32 %v2678, 7
        %v2680 = vsub.s32 0, %v2679
        %v2681 = vrot.slane %v2609, %v2680
        %v2682 = vlaneseq
        %v2683 = vshrl.u32 %v2682, 7
        %v2684 = vsub.s32 1, %v2683
        %v2685 = vrot.slane %v2609, %v2684
        %v2686 = vlaneseq
        %v2687 = vshrl.u32 %v2686, 7
        %v2688 = vsub.s32 2, %v2687
        %v2689 = vrot.slane %v2609, %v2688
        %v2690 = vlaneseq
        %v2691 = vshrl.u32 %v2690, 7
        %v2692 = vsub.s32 3, %v2691
        %v2693 = vrot.slane %v2609, %v2692
        %2698 = vmatprep.subr.mxu0 %v2606
        %2699 = vmatpush1.msra.mxu0 %v2605
        %2700 = vmatprep.subr.mxu0 %v2602
        %2701 = vmatpush1.msra.mxu0 %v2601
        %2702 = vmatprep.subr.mxu0 %v2598
        %2703 = vmatpush1.msra.mxu0 %v2597
        %2704 = vmatprep.subr.mxu0 %v2594
        %2705 = vmatpush1.msra.mxu0 %v2593
        %2706 = vmatprep.subr.mxu0 %v2590
        %2707 = vmatpush1.msra.mxu0 %v2589
        %2708 = vmatprep.subr.mxu0 %v2586
        %2709 = vmatpush1.msra.mxu0 %v2585
        %2710 = vmatprep.subr.mxu0 %v2582
        %2711 = vmatpush1.msra.mxu0 %v2581
        %2712 = vmatprep.subr.mxu0 %v2578
        %2713 = vmatpush1.msra.mxu0 %v2577
        %2714 = vmatprep.subr.mxu0 %v2574
        %2715 = vmatpush1.msra.mxu0 %v2573
        %2716 = vmatprep.subr.mxu0 %v2570
        %2717 = vmatpush1.msra.mxu0 %v2569
        %2718 = vmatprep.subr.mxu0 %v2566
        %2719 = vmatpush1.msra.mxu0 %v2565
        %2720 = vmatprep.subr.mxu0 %v2562
        %2721 = vmatpush1.msra.mxu0 %v2561
        %2722 = vmatprep.subr.mxu0 %v2558
        %2723 = vmatpush1.msra.mxu0 %v2557
        %2724 = vmatprep.subr.mxu0 %v2554
        %2725 = vmatpush1.msra.mxu0 %v2553
        %2726 = vmatprep.subr.mxu0 %v2550
        %2727 = vmatpush1.msra.mxu0 %v2549
        %2728 = vmatprep.subr.mxu0 %v2546
        %2729 = vmatpush1.msra.mxu0 %v2545
        %2730 = vmatprep.subr.mxu0 0.0
        %2731 = vmatpush2.msra.mxu0 0.0
        %2732 = vmatprep.subr.mxu0 0.0
        %2733 = vmatpush2.msra.mxu0 0.0
        %2734 = vmatprep.subr.mxu0 0.0
        %2735 = vmatpush2.msra.mxu0 0.0
        %2736 = vmatprep.subr.mxu0 0.0
        %2737 = vmatpush2.msra.mxu0 0.0
        %2738 = vmatprep.subr.mxu0 0.0
        %2739 = vmatpush2.msra.mxu0 0.0
        %2740 = vmatprep.subr.mxu0 0.0
        %2741 = vmatpush2.msra.mxu0 0.0
        %2742 = vmatprep.subr.mxu0 0.0
        %2743 = vmatpush2.msra.mxu0 0.0
        %2744 = vmatprep.subr.mxu0 0.0
        %2745 = vmatpush2.msra.mxu0 0.0
        %2746 = vmatprep.subr.mxu0 0.0
        %2747 = vmatpush2.msra.mxu0 0.0
        %2748 = vmatprep.subr.mxu0 0.0
        %2749 = vmatpush2.msra.mxu0 0.0
        %2750 = vmatprep.subr.mxu0 0.0
        %2751 = vmatpush2.msra.mxu0 0.0
        %2752 = vmatprep.subr.mxu0 0.0
        %2753 = vmatpush2.msra.mxu0 0.0
        %2754 = vmatprep.subr.mxu0 0.0
        %2755 = vmatpush2.msra.mxu0 0.0
        %2756 = vmatprep.subr.mxu0 0.0
        %2757 = vmatpush2.msra.mxu0 0.0
        %2758 = vmatprep.subr.mxu0 0.0
        %2759 = vmatpush2.msra.mxu0 0.0
        %2760 = vmatprep.subr.mxu0 0.0
        %2761 = vmatpush2.msra.mxu0 0.0
        %2762 = vmatprep.mubr.f32.mxu0 0.0
        %2763 = vmatmul.mubr.f32.gmra.mxu0 %v2544
        %v2764 = vpop.f32.mrf.mxu0
        %v2765 = vadd.f32 %v2681, %v2764
        %v2766 = vpop.f32.mrf.mxu0
        %v2767 = vadd.f32 %v2685, %v2766
        %2768 = vdwg.mxu0
        %2769 = vmatprep.subr.mxu0 %v2608
        %2770 = vmatpush1.msra.mxu0 %v2607
        %2771 = vmatprep.subr.mxu0 %v2604
        %2772 = vmatpush1.msra.mxu0 %v2603
        %2773 = vmatprep.subr.mxu0 %v2600
        %2774 = vmatpush1.msra.mxu0 %v2599
        %2775 = vmatprep.subr.mxu0 %v2596
        %2776 = vmatpush1.msra.mxu0 %v2595
        %2777 = vmatprep.subr.mxu0 %v2592
        %2778 = vmatpush1.msra.mxu0 %v2591
        %2779 = vmatprep.subr.mxu0 %v2588
        %2780 = vmatpush1.msra.mxu0 %v2587
        %2781 = vmatprep.subr.mxu0 %v2584
        %2782 = vmatpush1.msra.mxu0 %v2583
        %2783 = vmatprep.subr.mxu0 %v2580
        %2784 = vmatpush1.msra.mxu0 %v2579
        %2785 = vmatprep.subr.mxu0 %v2576
        %2786 = vmatpush1.msra.mxu0 %v2575
        %2787 = vmatprep.subr.mxu0 %v2572
        %2788 = vmatpush1.msra.mxu0 %v2571
        %2789 = vmatprep.subr.mxu0 %v2568
        %2790 = vmatpush1.msra.mxu0 %v2567
        %2791 = vmatprep.subr.mxu0 %v2564
        %2792 = vmatpush1.msra.mxu0 %v2563
        %2793 = vmatprep.subr.mxu0 %v2560
        %2794 = vmatpush1.msra.mxu0 %v2559
        %2795 = vmatprep.subr.mxu0 %v2556
        %2796 = vmatpush1.msra.mxu0 %v2555
        %2797 = vmatprep.subr.mxu0 %v2552
        %2798 = vmatpush1.msra.mxu0 %v2551
        %2799 = vmatprep.subr.mxu0 %v2548
        %2800 = vmatpush1.msra.mxu0 %v2547
        %2801 = vmatprep.subr.mxu0 0.0
        %2802 = vmatpush2.msra.mxu0 0.0
        %2803 = vmatprep.subr.mxu0 0.0
        %2804 = vmatpush2.msra.mxu0 0.0
        %2805 = vmatprep.subr.mxu0 0.0
        %2806 = vmatpush2.msra.mxu0 0.0
        %2807 = vmatprep.subr.mxu0 0.0
        %2808 = vmatpush2.msra.mxu0 0.0
        %2809 = vmatprep.subr.mxu0 0.0
        %2810 = vmatpush2.msra.mxu0 0.0
        %2811 = vmatprep.subr.mxu0 0.0
        %2812 = vmatpush2.msra.mxu0 0.0
        %2813 = vmatprep.subr.mxu0 0.0
        %2814 = vmatpush2.msra.mxu0 0.0
        %2815 = vmatprep.subr.mxu0 0.0
        %2816 = vmatpush2.msra.mxu0 0.0
        %2817 = vmatprep.subr.mxu0 0.0
        %2818 = vmatpush2.msra.mxu0 0.0
        %2819 = vmatprep.subr.mxu0 0.0
        %2820 = vmatpush2.msra.mxu0 0.0
        %2821 = vmatprep.subr.mxu0 0.0
        %2822 = vmatpush2.msra.mxu0 0.0
        %2823 = vmatprep.subr.mxu0 0.0
        %2824 = vmatpush2.msra.mxu0 0.0
        %2825 = vmatprep.subr.mxu0 0.0
        %2826 = vmatpush2.msra.mxu0 0.0
        %2827 = vmatprep.subr.mxu0 0.0
        %2828 = vmatpush2.msra.mxu0 0.0
        %2829 = vmatprep.subr.mxu0 0.0
        %2830 = vmatpush2.msra.mxu0 0.0
        %2831 = vmatprep.subr.mxu0 0.0
        %2832 = vmatpush2.msra.mxu0 0.0
        %2833 = vmatprep.mubr.f32.mxu0 0.0
        %2834 = vmatmul.mubr.f32.gmra.mxu0 %v2544
        %v2835 = vpop.f32.mrf.mxu0
        %v2836 = vadd.f32 %v2689, %v2835
        %v2837 = vpop.f32.mrf.mxu0
        %v2838 = vadd.f32 %v2693, %v2837
        %2839 = vdwg.mxu0
        %v2840 = vmax.f32 %v2765, 0.0
        %v2841 = vmax.f32 %v2767, 0.0
        %v2842 = vmax.f32 %v2836, 0.0
        %v2843 = vmax.f32 %v2838, 0.0
        %v2845 = vlaneseq
        %v2846 = vshrl.u32 %v2845, 7
        %v2847 = vsub.s32 0, %v2846
        %v2848 = vrot.slane %v2674, %v2847
        %2850 = vmatprep.subr.mxu0 0.0
        %2851 = vmatpush1.msra.mxu0 %v2625
        %2852 = vmatprep.subr.mxu0 0.0
        %2853 = vmatpush1.msra.mxu0 %v2624
        %2854 = vmatprep.subr.mxu0 0.0
        %2855 = vmatpush1.msra.mxu0 %v2623
        %2856 = vmatprep.subr.mxu0 0.0
        %2857 = vmatpush1.msra.mxu0 %v2622
        %2858 = vmatprep.subr.mxu0 0.0
        %2859 = vmatpush1.msra.mxu0 %v2621
        %2860 = vmatprep.subr.mxu0 0.0
        %2861 = vmatpush1.msra.mxu0 %v2620
        %2862 = vmatprep.subr.mxu0 0.0
        %2863 = vmatpush1.msra.mxu0 %v2619
        %2864 = vmatprep.subr.mxu0 0.0
        %2865 = vmatpush1.msra.mxu0 %v2618
        %2866 = vmatprep.subr.mxu0 0.0
        %2867 = vmatpush1.msra.mxu0 %v2617
        %2868 = vmatprep.subr.mxu0 0.0
        %2869 = vmatpush1.msra.mxu0 %v2616
        %2870 = vmatprep.subr.mxu0 0.0
        %2871 = vmatpush1.msra.mxu0 %v2615
        %2872 = vmatprep.subr.mxu0 0.0
        %2873 = vmatpush1.msra.mxu0 %v2614
        %2874 = vmatprep.subr.mxu0 0.0
        %2875 = vmatpush1.msra.mxu0 %v2613
        %2876 = vmatprep.subr.mxu0 0.0
        %2877 = vmatpush1.msra.mxu0 %v2612
        %2878 = vmatprep.subr.mxu0 0.0
        %2879 = vmatpush1.msra.mxu0 %v2611
        %2880 = vmatprep.subr.mxu0 0.0
        %2881 = vmatpush1.msra.mxu0 %v2610
        %2882 = vmatprep.subr.mxu0 0.0
        %2883 = vmatpush2.msra.mxu0 %v2641
        %2884 = vmatprep.subr.mxu0 0.0
        %2885 = vmatpush2.msra.mxu0 %v2640
        %2886 = vmatprep.subr.mxu0 0.0
        %2887 = vmatpush2.msra.mxu0 %v2639
        %2888 = vmatprep.subr.mxu0 0.0
        %2889 = vmatpush2.msra.mxu0 %v2638
        %2890 = vmatprep.subr.mxu0 0.0
        %2891 = vmatpush2.msra.mxu0 %v2637
        %2892 = vmatprep.subr.mxu0 0.0
        %2893 = vmatpush2.msra.mxu0 %v2636
        %2894 = vmatprep.subr.mxu0 0.0
        %2895 = vmatpush2.msra.mxu0 %v2635
        %2896 = vmatprep.subr.mxu0 0.0
        %2897 = vmatpush2.msra.mxu0 %v2634
        %2898 = vmatprep.subr.mxu0 0.0
        %2899 = vmatpush2.msra.mxu0 %v2633
        %2900 = vmatprep.subr.mxu0 0.0
        %2901 = vmatpush2.msra.mxu0 %v2632
        %2902 = vmatprep.subr.mxu0 0.0
        %2903 = vmatpush2.msra.mxu0 %v2631
        %2904 = vmatprep.subr.mxu0 0.0
        %2905 = vmatpush2.msra.mxu0 %v2630
        %2906 = vmatprep.subr.mxu0 0.0
        %2907 = vmatpush2.msra.mxu0 %v2629
        %2908 = vmatprep.subr.mxu0 0.0
        %2909 = vmatpush2.msra.mxu0 %v2628
        %2910 = vmatprep.subr.mxu0 0.0
        %2911 = vmatpush2.msra.mxu0 %v2627
        %2912 = vmatprep.subr.mxu0 0.0
        %2913 = vmatpush2.msra.mxu0 %v2626
        %2914 = vmatprep.mubr.f32.mxu0 %v2841
        %2915 = vmatmul.mubr.f32.gmra.mxu0 %v2840
        %v2916 = vpop.f32.mrf.mxu0
        %v2917 = vadd.f32 %v2848, %v2916
        %v2918 = vpop.f32.mrf.mxu0
        %2919 = vdwg.mxu0
        %2920 = vmatprep.subr.mxu0 0.0
        %2921 = vmatpush1.msra.mxu0 %v2657
        %2922 = vmatprep.subr.mxu0 0.0
        %2923 = vmatpush1.msra.mxu0 %v2656
        %2924 = vmatprep.subr.mxu0 0.0
        %2925 = vmatpush1.msra.mxu0 %v2655
        %2926 = vmatprep.subr.mxu0 0.0
        %2927 = vmatpush1.msra.mxu0 %v2654
        %2928 = vmatprep.subr.mxu0 0.0
        %2929 = vmatpush1.msra.mxu0 %v2653
        %2930 = vmatprep.subr.mxu0 0.0
        %2931 = vmatpush1.msra.mxu0 %v2652
        %2932 = vmatprep.subr.mxu0 0.0
        %2933 = vmatpush1.msra.mxu0 %v2651
        %2934 = vmatprep.subr.mxu0 0.0
        %2935 = vmatpush1.msra.mxu0 %v2650
        %2936 = vmatprep.subr.mxu0 0.0
        %2937 = vmatpush1.msra.mxu0 %v2649
        %2938 = vmatprep.subr.mxu0 0.0
        %2939 = vmatpush1.msra.mxu0 %v2648
        %2940 = vmatprep.subr.mxu0 0.0
        %2941 = vmatpush1.msra.mxu0 %v2647
        %2942 = vmatprep.subr.mxu0 0.0
        %2943 = vmatpush1.msra.mxu0 %v2646
        %2944 = vmatprep.subr.mxu0 0.0
        %2945 = vmatpush1.msra.mxu0 %v2645
        %2946 = vmatprep.subr.mxu0 0.0
        %2947 = vmatpush1.msra.mxu0 %v2644
        %2948 = vmatprep.subr.mxu0 0.0
        %2949 = vmatpush1.msra.mxu0 %v2643
        %2950 = vmatprep.subr.mxu0 0.0
        %2951 = vmatpush1.msra.mxu0 %v2642
        %2952 = vmatprep.subr.mxu0 0.0
        %2953 = vmatpush2.msra.mxu0 %v2673
        %2954 = vmatprep.subr.mxu0 0.0
        %2955 = vmatpush2.msra.mxu0 %v2672
        %2956 = vmatprep.subr.mxu0 0.0
        %2957 = vmatpush2.msra.mxu0 %v2671
        %2958 = vmatprep.subr.mxu0 0.0
        %2959 = vmatpush2.msra.mxu0 %v2670
        %2960 = vmatprep.subr.mxu0 0.0
        %2961 = vmatpush2.msra.mxu0 %v2669
        %2962 = vmatprep.subr.mxu0 0.0
        %2963 = vmatpush2.msra.mxu0 %v2668
        %2964 = vmatprep.subr.mxu0 0.0
        %2965 = vmatpush2.msra.mxu0 %v2667
        %2966 = vmatprep.subr.mxu0 0.0
        %2967 = vmatpush2.msra.mxu0 %v2666
        %2968 = vmatprep.subr.mxu0 0.0
        %2969 = vmatpush2.msra.mxu0 %v2665
        %2970 = vmatprep.subr.mxu0 0.0
        %2971 = vmatpush2.msra.mxu0 %v2664
        %2972 = vmatprep.subr.mxu0 0.0
        %2973 = vmatpush2.msra.mxu0 %v2663
        %2974 = vmatprep.subr.mxu0 0.0
        %2975 = vmatpush2.msra.mxu0 %v2662
        %2976 = vmatprep.subr.mxu0 0.0
        %2977 = vmatpush2.msra.mxu0 %v2661
        %2978 = vmatprep.subr.mxu0 0.0
        %2979 = vmatpush2.msra.mxu0 %v2660
        %2980 = vmatprep.subr.mxu0 0.0
        %2981 = vmatpush2.msra.mxu0 %v2659
        %2982 = vmatprep.subr.mxu0 0.0
        %2983 = vmatpush2.msra.mxu0 %v2658
        %2984 = vmatprep.mubr.f32.mxu0 %v2843
        %2985 = vmatmul.mubr.f32.gmra.mxu0 %v2842
        %v2986 = vpop.f32.mrf.mxu0
        %v2987 = vadd.f32 %v2917, %v2986
        %v2988 = vpop.f32.mrf.mxu0
        %2989 = vdwg.mxu0
        %v2990 = vadd.f32 %v2987, %v2544
        %2991 = vmatprep.subr.mxu0 0.0
        %2992 = vmatpush1.msra.mxu0 %v1121
        %2993 = vmatprep.subr.mxu0 0.0
        %2994 = vmatpush1.msra.mxu0 %v1120
        %2995 = vmatprep.subr.mxu0 0.0
        %2996 = vmatpush1.msra.mxu0 %v1119
        %2997 = vmatprep.subr.mxu0 0.0
        %2998 = vmatpush1.msra.mxu0 %v1118
        %2999 = vmatprep.subr.mxu0 0.0
        %3000 = vmatpush1.msra.mxu0 %v1117
        %3001 = vmatprep.subr.mxu0 0.0
        %3002 = vmatpush1.msra.mxu0 %v1116
        %3003 = vmatprep.subr.mxu0 0.0
        %3004 = vmatpush1.msra.mxu0 %v1115
        %3005 = vmatprep.subr.mxu0 0.0
        %3006 = vmatpush1.msra.mxu0 %v1114
        %3007 = vmatprep.subr.mxu0 0.0
        %3008 = vmatpush1.msra.mxu0 %v1113
        %3009 = vmatprep.subr.mxu0 0.0
        %3010 = vmatpush1.msra.mxu0 %v1112
        %3011 = vmatprep.subr.mxu0 0.0
        %3012 = vmatpush1.msra.mxu0 %v1111
        %3013 = vmatprep.subr.mxu0 0.0
        %3014 = vmatpush1.msra.mxu0 %v1110
        %3015 = vmatprep.subr.mxu0 0.0
        %3016 = vmatpush1.msra.mxu0 %v1109
        %3017 = vmatprep.subr.mxu0 0.0
        %3018 = vmatpush1.msra.mxu0 %v1108
        %3019 = vmatprep.subr.mxu0 0.0
        %3020 = vmatpush1.msra.mxu0 %v1107
        %3021 = vmatprep.subr.mxu0 0.0
        %3022 = vmatpush1.msra.mxu0 %v1106
        %3023 = vmatprep.subr.mxu0 0.0
        %3024 = vmatpush2.msra.mxu0 0.0
        %3025 = vmatprep.subr.mxu0 0.0
        %3026 = vmatpush2.msra.mxu0 0.0
        %3027 = vmatprep.subr.mxu0 0.0
        %3028 = vmatpush2.msra.mxu0 0.0
        %3029 = vmatprep.subr.mxu0 0.0
        %3030 = vmatpush2.msra.mxu0 0.0
        %3031 = vmatprep.subr.mxu0 0.0
        %3032 = vmatpush2.msra.mxu0 0.0
        %3033 = vmatprep.subr.mxu0 0.0
        %3034 = vmatpush2.msra.mxu0 0.0
        %3035 = vmatprep.subr.mxu0 0.0
        %3036 = vmatpush2.msra.mxu0 0.0
        %3037 = vmatprep.subr.mxu0 0.0
        %3038 = vmatpush2.msra.mxu0 0.0
        %3039 = vmatprep.subr.mxu0 0.0
        %3040 = vmatpush2.msra.mxu0 0.0
        %3041 = vmatprep.subr.mxu0 0.0
        %3042 = vmatpush2.msra.mxu0 0.0
        %3043 = vmatprep.subr.mxu0 0.0
        %3044 = vmatpush2.msra.mxu0 0.0
        %3045 = vmatprep.subr.mxu0 0.0
        %3046 = vmatpush2.msra.mxu0 0.0
        %3047 = vmatprep.subr.mxu0 0.0
        %3048 = vmatpush2.msra.mxu0 0.0
        %3049 = vmatprep.subr.mxu0 0.0
        %3050 = vmatpush2.msra.mxu0 0.0
        %3051 = vmatprep.subr.mxu0 0.0
        %3052 = vmatpush2.msra.mxu0 0.0
        %3053 = vmatprep.subr.mxu0 0.0
        %3054 = vmatpush2.msra.mxu0 0.0
        %3055 = vmatprep.mubr.f32.mxu0 0.0
        %3056 = vmatmul.mubr.f32.gmra.mxu0 %v2990
        %v3057 = vpop.f32.mrf.mxu0
        %v3058 = vadd.f32 0.0, %v3057
        %v3059 = vpop.f32.mrf.mxu0
        %3060 = vdwg.mxu0
        %v3061 = vsub.f32 %v2990, %v3058
        %v3062 = vmul.f32 %v3061, %v3061
        %3063 = vmatprep.subr.mxu0 0.0
        %3064 = vmatpush1.msra.mxu0 %v1137
        %3065 = vmatprep.subr.mxu0 0.0
        %3066 = vmatpush1.msra.mxu0 %v1136
        %3067 = vmatprep.subr.mxu0 0.0
        %3068 = vmatpush1.msra.mxu0 %v1135
        %3069 = vmatprep.subr.mxu0 0.0
        %3070 = vmatpush1.msra.mxu0 %v1134
        %3071 = vmatprep.subr.mxu0 0.0
        %3072 = vmatpush1.msra.mxu0 %v1133
        %3073 = vmatprep.subr.mxu0 0.0
        %3074 = vmatpush1.msra.mxu0 %v1132
        %3075 = vmatprep.subr.mxu0 0.0
        %3076 = vmatpush1.msra.mxu0 %v1131
        %3077 = vmatprep.subr.mxu0 0.0
        %3078 = vmatpush1.msra.mxu0 %v1130
        %3079 = vmatprep.subr.mxu0 0.0
        %3080 = vmatpush1.msra.mxu0 %v1129
        %3081 = vmatprep.subr.mxu0 0.0
        %3082 = vmatpush1.msra.mxu0 %v1128
        %3083 = vmatprep.subr.mxu0 0.0
        %3084 = vmatpush1.msra.mxu0 %v1127
        %3085 = vmatprep.subr.mxu0 0.0
        %3086 = vmatpush1.msra.mxu0 %v1126
        %3087 = vmatprep.subr.mxu0 0.0
        %3088 = vmatpush1.msra.mxu0 %v1125
        %3089 = vmatprep.subr.mxu0 0.0
        %3090 = vmatpush1.msra.mxu0 %v1124
        %3091 = vmatprep.subr.mxu0 0.0
        %3092 = vmatpush1.msra.mxu0 %v1123
        %3093 = vmatprep.subr.mxu0 0.0
        %3094 = vmatpush1.msra.mxu0 %v1122
        %3095 = vmatprep.subr.mxu0 0.0
        %3096 = vmatpush2.msra.mxu0 0.0
        %3097 = vmatprep.subr.mxu0 0.0
        %3098 = vmatpush2.msra.mxu0 0.0
        %3099 = vmatprep.subr.mxu0 0.0
        %3100 = vmatpush2.msra.mxu0 0.0
        %3101 = vmatprep.subr.mxu0 0.0
        %3102 = vmatpush2.msra.mxu0 0.0
        %3103 = vmatprep.subr.mxu0 0.0
        %3104 = vmatpush2.msra.mxu0 0.0
        %3105 = vmatprep.subr.mxu0 0.0
        %3106 = vmatpush2.msra.mxu0 0.0
        %3107 = vmatprep.subr.mxu0 0.0
        %3108 = vmatpush2.msra.mxu0 0.0
        %3109 = vmatprep.subr.mxu0 0.0
        %3110 = vmatpush2.msra.mxu0 0.0
        %3111 = vmatprep.subr.mxu0 0.0
        %3112 = vmatpush2.msra.mxu0 0.0
        %3113 = vmatprep.subr.mxu0 0.0
        %3114 = vmatpush2.msra.mxu0 0.0
        %3115 = vmatprep.subr.mxu0 0.0
        %3116 = vmatpush2.msra.mxu0 0.0
        %3117 = vmatprep.subr.mxu0 0.0
        %3118 = vmatpush2.msra.mxu0 0.0
        %3119 = vmatprep.subr.mxu0 0.0
        %3120 = vmatpush2.msra.mxu0 0.0
        %3121 = vmatprep.subr.mxu0 0.0
        %3122 = vmatpush2.msra.mxu0 0.0
        %3123 = vmatprep.subr.mxu0 0.0
        %3124 = vmatpush2.msra.mxu0 0.0
        %3125 = vmatprep.subr.mxu0 0.0
        %3126 = vmatpush2.msra.mxu0 0.0
        %3127 = vmatprep.mubr.f32.mxu0 0.0
        %3128 = vmatmul.mubr.f32.gmra.mxu0 %v3062
        %v3129 = vpop.f32.mrf.mxu0
        %v3130 = vadd.f32 0.0, %v3129
        %v3131 = vpop.f32.mrf.mxu0
        %3132 = vdwg.mxu0
        %v3133 = vrsqrt.pop %v3130
        %v3134 = vmul.f32 %v3130, %v3133
        %vm3135 = vcmp.eq.f32.partialorder %v3130, inf
        %v3136 = vsel %vm3135, %v3130, %v3134
        %vm3137 = vcmp.eq.f32.partialorder %v3130, 0.0
        %v3138 = vand.u32 %v3130, 2147483648
        %v3139 = vsel %vm3137, %v3138, %v3136
        %v3140 = vadd.f32 %v3139, 1e-06
        %v3141 = vrcp.pop %v3140
        %v3142 = vmul.f32 %v3061, %v3141
        %v3144 = vlaneseq
        %v3145 = vshrl.u32 %v3144, 7
        %v3146 = vsub.s32 0, %v3145
        %v3147 = vrot.slane %v2675, %v3146
        %v3149 = vmul.f32 %v3147, %v3142
        %v3151 = vlaneseq
        %v3152 = vshrl.u32 %v3151, 7
        %v3153 = vsub.s32 0, %v3152
        %v3154 = vrot.slane %v2676, %v3153
        %v3156 = vadd.f32 %v3149, %v3154
        %3157 = vst [vmem:[#allocation2] sm:$0xff] %v3156
        %p3158 = scmp.eq.s32.totalorder %s49, 1
        // Predicated region
        $region137: #{mca_ed_forward.2} parent=115 // pred_check
          %p3159 = pneg %p3158
        $region138: #{mca_ed_forward.2} parent=115 // pred_check_branch
          %3161 = sbr.rel (%p3159) target = $region140
        $region139: #{mca_ed_forward.2} parent=115 // pred_region
          %3162 = vst [vmem:[%s1098] sm:$0xff] %v3156
        $region140: #{mca_ed_forward.2} parent=115 // pred_fallthru
          _
        %p3163 = scmp.lt.s32.totalorder %s48, 1
        %s3164 = scalar_select %p3163, %s48, 1
        %s3165 = smul.addr %s3164, 8
        %s3166 = scalar_lea.vmem %s24, %s3165
        // Predicated region
        $region141: #{mca_ed_forward.2} parent=115 // pred_check
          %p3167 = pneg %p668
        $region142: #{mca_ed_forward.2} parent=115 // pred_check_branch
          %3169 = sbr.rel (%p3167) target = $region144
        $region143: #{mca_ed_forward.2} parent=115 // pred_region
          _
        $region144: #{mca_ed_forward.2} parent=115 // pred_fallthru
          _
      $region116: #{mca_ed_forward.2} parent=5 // pred_fallthru
        _
      %p3170 = scmp.le.s32.totalorder 2, %s39
      // Predicated region
      $region145: #{mca_ed_forward.2} parent=5 // pred_check
        %p3171 = pneg %p3170
      $region146: #{mca_ed_forward.2} parent=5 // pred_check_branch
        %3173 = sbr.rel (%p3171) target = $region148
      $region147: #{mca_ed_forward.2} parent=5 // pred_region
        %s3174 = ssub.s32 %s39, 2
        // Predicated region
        $region149: #{mca_ed_forward.2} parent=147 // pred_check
          %p3175 = pneg %p674
        $region150: #{mca_ed_forward.2} parent=147 // pred_check_branch
          %3177 = sbr.rel (%p3175) target = $region152
        $region151: #{mca_ed_forward.2} parent=147 // pred_region
          %p3178 = scmp.lt.s32.totalorder %s50, 1
          %s3179 = scalar_select %p3178, %s50, 1
          %s3180 = smul.addr %s3179, 8
          %s3181 = scalar_lea.vmem %s24, %s3180
        $region152: #{mca_ed_forward.2} parent=147 // pred_fallthru
          _
      $region148: #{mca_ed_forward.2} parent=5 // pred_fallthru
        _
    $region6: #{mca_ed_forward.2} parent=1 // loop_footer
      %s43 = sadd.s32 1, %s39
    $region7: #{mca_ed_forward.2} parent=1 // loop_footer_branch
      %38 = sbr.rel target = $region3
    $region8: #{mca_ed_forward.2} parent=1 // loop_exit
      _
    %3182 = vsyncpa [#allocation4], 1
    %s3183 = scalar_lea.sflag [#allocation4], 1
    %3184 = vsyncpa %s3183, 1
    %3185 = vsyncpa [#allocation6], 1
    %s3186 = scalar_lea.sflag [#allocation6], 1
    %3187 = vsyncpa %s3186, 1
    %3188 = vsyncpa [#allocation9], 1
    %s3189 = scalar_lea.sflag [#allocation9], 1
    %3190 = vsyncpa %s3189, 1

// kernel: mca_ed_forward.3
$region0: #{mca_ed_forward.3}
  #allocation0 [shape = 'u32[]', space=smem, size = 0x4, offset = 0x4, fixed_abs, tag = 'smem constant byte address 0x4 - core index']
  #allocation1 [shape = 'u32[144,128]{1,0:T(1,128)}', space=vmem, size = 0x12000, scoped, tag = 'internal scratch']
  #allocation2 [shape = 'f32[6,128]{1,0:T(8,128)}', space=vmem, size = 0x1000, scoped, tag = 'scratch operand']
  %s0 = inlined_call_operand.smem [shape: u32[37], index: -1, kind: input, shape index: {}]
  %s1 = sld [smem:[%s0]]
  %s2 = scalar_lea.smem %s0, 1
  %s3 = sld [smem:[%s2]]
  %s4 = scalar_lea.smem %s0, 2
  %s5 = sld [smem:[%s4]]
  %s6 = scalar_lea.smem %s0, 3
  %s7 = sld [smem:[%s6]]
  %s8 = scalar_lea.smem %s0, 4
  %s9 = sld [smem:[%s8]]
  %s10 = scalar_lea.smem %s0, 5
  %s11 = sld [smem:[%s10]]
  %s12 = scalar_lea.smem %s0, 6
  %s13 = sld [smem:[%s12]]
  %s14 = scalar_lea.smem %s0, 7
  %s15 = sld [smem:[%s14]]
  %s16 = scalar_lea.smem %s0, 8
  %s17 = sld [smem:[%s16]]
  %s18 = scalar_lea.smem %s0, 9
  %s19 = sld [smem:[%s18]]
  %s20 = scalar_lea.smem %s0, 10
  %s21 = sld [smem:[%s20]]
  %s22 = scalar_lea.smem %s0, 11
  %s23 = sld [smem:[%s22]]
  %s24 = scalar_lea.smem %s0, 12
  %s25 = sld [smem:[%s24]]
  %s26 = scalar_lea.smem %s0, 13
  %s27 = sld [smem:[%s26]]
  %s28 = scalar_lea.smem %s0, 14
  %s29 = sld [smem:[%s28]]
  %s30 = scalar_lea.smem %s0, 15
  %s31 = sld [smem:[%s30]]
  %s32 = scalar_lea.smem %s0, 16
  %s33 = sld [smem:[%s32]]
  %s34 = scalar_lea.smem %s0, 17
  %s35 = sld [smem:[%s34]]
  %s36 = scalar_lea.smem %s0, 18
  %s37 = sld [smem:[%s36]]
  %s38 = scalar_lea.smem %s0, 19
  %s39 = sld [smem:[%s38]]
  %s40 = scalar_lea.smem %s0, 20
  %s41 = sld [smem:[%s40]]
  %s42 = scalar_lea.smem %s0, 21
  %s43 = sld [smem:[%s42]]
  %s44 = scalar_lea.smem %s0, 22
  %s45 = sld [smem:[%s44]]
  %s46 = scalar_lea.smem %s0, 23
  %s47 = sld [smem:[%s46]]
  %s48 = scalar_lea.smem %s0, 24
  %s49 = sld [smem:[%s48]]
  %s50 = scalar_lea.smem %s0, 25
  %s51 = sld [smem:[%s50]]
  %s52 = scalar_lea.smem %s0, 26
  %s53 = sld [smem:[%s52]]
  %s54 = scalar_lea.smem %s0, 27
  %s55 = sld [smem:[%s54]]
  %s56 = scalar_lea.smem %s0, 28
  %s57 = sld [smem:[%s56]]
  %s58 = scalar_lea.smem %s0, 29
  %s59 = sld [smem:[%s58]]
  %s60 = scalar_lea.smem %s0, 30
  %s61 = sld [smem:[%s60]]
  %s62 = scalar_lea.smem %s0, 31
  %s63 = sld [smem:[%s62]]
  %s64 = scalar_lea.smem %s0, 32
  %s65 = sld [smem:[%s64]]
  %s66 = scalar_lea.smem %s0, 33
  %s67 = sld [smem:[%s66]]
  %s68 = scalar_lea.smem %s0, 34
  %s69 = sld [smem:[%s68]]
  %s70 = scalar_lea.smem %s0, 35
  %s71 = sld [smem:[%s70]]
  %s72 = scalar_lea.smem %s0, 36
  %s73 = sld [smem:[%s72]]
  %s74 = sld [smem:[#allocation0]]
  $region241: #{mca_ed_forward.3} parent=0
    _
  %s76 = ssub.s32 1, %s74
  %s77 = scalar_select 0, %s76, %s74
  $region1: #{mca_ed_forward.3} parent=0
    #allocation3 [shape = 'u8[1024]{0}', space=vmem, size = 0x400, scoped, tag = 'input window, operand 11']
    #allocation4 [shape = 's32[2]{0}', space=sflag, size = 0x8, scoped, tag = 'scoped memory for mca_ed_forward.3']
    #allocation5 [shape = 'u8[1024]{0}', space=vmem, size = 0x400, scoped, tag = 'input window, operand 15']
    #allocation6 [shape = 's32[2]{0}', space=sflag, size = 0x8, scoped, tag = 'scoped memory for mca_ed_forward.3']
    #allocation7 [shape = 'u8[1024]{0}', space=vmem, size = 0x400, scoped, tag = 'input window, operand 17']
    #allocation8 [shape = 'u8[1024]{0}', space=vmem, size = 0x400, scoped, tag = 'input window, operand 18']
    #allocation9 [shape = 's32[2]{0}', space=sflag, size = 0x8, scoped, tag = 'scoped memory for mca_ed_forward.3']
    #allocation10 [shape = 'u8[1024]{0}', space=vmem, size = 0x400, scoped, tag = 'input window, operand 19']
    #allocation11 [shape = 'u8[1024]{0}', space=vmem, size = 0x400, scoped, tag = 'input window, operand 21']
    #allocation12 [shape = 's32[2]{0}', space=sflag, size = 0x8, scoped, tag = 'scoped memory for mca_ed_forward.3']
    #allocation13 [shape = 'u8[1024]{0}', space=vmem, size = 0x400, scoped, tag = 'input window, operand 23']
    #allocation14 [shape = 'u8[1024]{0}', space=vmem, size = 0x400, scoped, tag = 'input window, operand 25']
    #allocation15 [shape = 's32[2]{0}', space=sflag, size = 0x8, scoped, tag = 'scoped memory for mca_ed_forward.3']
    #allocation16 [shape = 'u8[1024]{0}', space=vmem, size = 0x400, scoped, tag = 'input window, operand 27']
    #allocation17 [shape = 'u8[1024]{0}', space=vmem, size = 0x400, scoped, tag = 'input window, operand 28']
    #allocation18 [shape = 's32[2]{0}', space=sflag, size = 0x8, scoped, tag = 'scoped memory for mca_ed_forward.3']
    #allocation19 [shape = 'u8[1024]{0}', space=vmem, size = 0x400, scoped, tag = 'input window, operand 29']
    #allocation20 [shape = 'u8[1024]{0}', space=vmem, size = 0x400, scoped, tag = 'input window, operand 33']
    #allocation21 [shape = 's32[2]{0}', space=sflag, size = 0x8, scoped, tag = 'scoped memory for mca_ed_forward.3']
    #allocation22 [shape = 'u8[1024]{0}', space=vmem, size = 0x400, scoped, tag = 'input window, operand 34']
    #allocation23 [shape = 'u8[1024]{0}', space=vmem, size = 0x400, scoped, tag = 'input window, operand 35']
    #allocation24 [shape = 's32[2]{0}', space=sflag, size = 0x8, scoped, tag = 'scoped memory for mca_ed_forward.3']
    %78 = vsyncpa [#allocation4], 0
    %s79 = scalar_lea.sflag [#allocation4], 1
    %80 = vsyncpa %s79, 0
    %81 = vsyncpa [#allocation6], 0
    %s82 = scalar_lea.sflag [#allocation6], 1
    %83 = vsyncpa %s82, 0
    %84 = vsyncpa [#allocation9], 0
    %s85 = scalar_lea.sflag [#allocation9], 1
    %86 = vsyncpa %s85, 0
    %87 = vsyncpa [#allocation12], 0
    %s88 = scalar_lea.sflag [#allocation12], 1
    %89 = vsyncpa %s88, 0
    %90 = vsyncpa [#allocation15], 0
    %s91 = scalar_lea.sflag [#allocation15], 1
    %92 = vsyncpa %s91, 0
    %93 = vsyncpa [#allocation18], 0
    %s94 = scalar_lea.sflag [#allocation18], 1
    %95 = vsyncpa %s94, 0
    %96 = vsyncpa [#allocation21], 0
    %s97 = scalar_lea.sflag [#allocation21], 1
    %98 = vsyncpa %s97, 0
    %99 = vsyncpa [#allocation24], 0
    %s100 = scalar_lea.sflag [#allocation24], 1
    %101 = vsyncpa %s100, 0
    loop: start=0, step=1, limit=6
    $region2: #{mca_ed_forward.3} parent=1 // loop_pre_header
      _
    $region3: #{mca_ed_forward.3} parent=1 // loop_header
      %s103 = sphi 0, %s107
      %p104 = scmp.ge.s32.totalorder %s103, 6
      %s110 = sphi 0, %s122
      %s111 = sphi 0, %s118
      %s112 = sphi 0, %s110
      %s113 = sphi 0, %s111
      %s114 = sphi 0, %s112
      %s115 = sphi 0, %s113
      %s125 = sphi 0, %s127
      %s128 = sphi 0, %s125
      %s129 = sphi 0, %s128
      %s145 = sphi 0, %s129
      %s151 = sphi 0, %s153
      %s154 = sphi 0, %s151
      %s155 = sphi 0, %s154
      %s171 = sphi 0, %s155
      %s177 = sphi 0, %s179
      %s180 = sphi 0, %s177
      %s181 = sphi 0, %s180
      %s197 = sphi 0, %s181
      %s203 = sphi 0, %s205
      %s206 = sphi 0, %s203
      %s207 = sphi 0, %s206
      %s223 = sphi 0, %s207
      %s227 = sphi 0, %s227
      %s229 = sphi 0, %s227
      %s230 = sphi 0, %s229
      %s244 = sphi 0, %s230
      %s248 = sphi 0, %s248
      %s250 = sphi 0, %s248
      %s251 = sphi 0, %s250
      %s265 = sphi 0, %s251
      %s269 = sphi 0, %s269
      %s271 = sphi 0, %s269
      %s272 = sphi 0, %s271
      %s286 = sphi 0, %s272
      %s290 = sphi 0, %s290
      %s292 = sphi 0, %s290
      %s293 = sphi 0, %s292
      %s307 = sphi 0, %s293
      %s311 = sphi 0, %s311
      %s313 = sphi 0, %s311
      %s314 = sphi 0, %s313
      %s328 = sphi 0, %s314
      %s332 = sphi 0, %s332
      %s334 = sphi 0, %s332
      %s335 = sphi 0, %s334
      %s349 = sphi 0, %s335
      %s355 = sphi 0, %s357
      %s358 = sphi 0, %s355
      %s359 = sphi 0, %s358
      %s375 = sphi 0, %s359
      %s381 = sphi 0, %s383
      %s384 = sphi 0, %s381
      %s385 = sphi 0, %s384
      %s401 = sphi 0, %s385
      %s407 = sphi 0, %s409
      %s410 = sphi 0, %s407
      %s411 = sphi 0, %s410
      %s427 = sphi 0, %s411
      %s433 = sphi 0, %s435
      %s436 = sphi 0, %s433
      %s437 = sphi 0, %s436
      %s453 = sphi 0, %s437
      %s459 = sphi 0, %s461
      %s462 = sphi 0, %s459
      %s463 = sphi 0, %s462
      %s479 = sphi 0, %s463
      %s485 = sphi 0, %s487
      %s488 = sphi 0, %s485
      %s489 = sphi 0, %s488
      %s505 = sphi 0, %s489
      %s511 = sphi 0, %s513
      %s514 = sphi 0, %s511
      %s515 = sphi 0, %s514
      %s531 = sphi 0, %s515
      %s537 = sphi 0, %s539
      %s540 = sphi 0, %s537
      %s541 = sphi 0, %s540
      %s557 = sphi 0, %s541
      %s563 = sphi 0, %s565
      %s566 = sphi 0, %s563
      %s567 = sphi 0, %s566
      %s583 = sphi 0, %s567
      %s589 = sphi 0, %s591
      %s592 = sphi 0, %s589
      %s593 = sphi 0, %s592
      %s609 = sphi 0, %s593
      %s615 = sphi 0, %s617
      %s618 = sphi 0, %s615
      %s619 = sphi 0, %s618
      %s635 = sphi 0, %s619
      %s641 = sphi 0, %s643
      %s644 = sphi 0, %s641
      %s645 = sphi 0, %s644
      %s661 = sphi 0, %s645
      %s667 = sphi 0, %s669
      %s670 = sphi 0, %s667
      %s671 = sphi 0, %s670
      %s687 = sphi 0, %s671
      %s693 = sphi 0, %s695
      %s696 = sphi 0, %s693
      %s697 = sphi 0, %s696
      %s713 = sphi 0, %s697
      %s719 = sphi 0, %s721
      %s722 = sphi 0, %s719
      %s723 = sphi 0, %s722
      %s739 = sphi 0, %s723
      %s745 = sphi 0, %s747
      %s748 = sphi 0, %s745
      %s749 = sphi 0, %s748
      %s765 = sphi 0, %s749
      %s771 = sphi 0, %s773
      %s774 = sphi 0, %s771
      %s775 = sphi 0, %s774
      %s791 = sphi 0, %s775
      %s797 = sphi 0, %s799
      %s800 = sphi 0, %s797
      %s801 = sphi 0, %s800
      %s817 = sphi 0, %s801
      %s823 = sphi 0, %s825
      %s826 = sphi 0, %s823
      %s827 = sphi 0, %s826
      %s843 = sphi 0, %s827
      %s849 = sphi 0, %s851
      %s852 = sphi 0, %s849
      %s853 = sphi 0, %s852
      %s869 = sphi 0, %s853
      %s875 = sphi 0, %s877
      %s878 = sphi 0, %s875
      %s879 = sphi 0, %s878
      %s895 = sphi 0, %s879
      %s901 = sphi 0, %s903
      %s904 = sphi 0, %s901
      %s905 = sphi 0, %s904
      %s921 = sphi 0, %s905
      %s927 = sphi 0, %s929
      %s930 = sphi 0, %s927
      %s931 = sphi 0, %s930
      %s947 = sphi 0, %s931
      %s953 = sphi 0, %s955
      %s956 = sphi 0, %s953
      %s957 = sphi 0, %s956
      %s973 = sphi 0, %s957
      %s979 = sphi 0, %s981
      %s982 = sphi 0, %s979
      %s983 = sphi 0, %s982
      %s999 = sphi 0, %s983
      %s1005 = sphi 0, %s1007
      %s1008 = sphi 0, %s1005
      %s1009 = sphi 0, %s1008
      %s1025 = sphi 0, %s1009
      %s1031 = sphi 0, %s1033
      %s1034 = sphi 0, %s1031
      %s1035 = sphi 0, %s1034
      %s1051 = sphi 0, %s1035
    $region4: #{mca_ed_forward.3} parent=1 // loop_header_branch
      %106 = sbr.rel (%p104) target = $region8
    $region5: #{mca_ed_forward.3} parent=1 // loop_body
      %s108 = ssub.s32 %s103, 1
      %s109 = ssub.s32 %s103, 2
      %s116 = sadd.s32 1, %s111
      %p117 = scmp.ge.s32.totalorder %s116, 2
      %s118 = scalar_select %p117, 0, %s116
      %s119 = sadd.s32 1, %s110
      %s120 = scalar_select %p117, %s119, %s110
      %p121 = scmp.ge.s32.totalorder %s120, 2
      %s122 = scalar_select %p121, 0, %s120
      %s123 = ssub.s32 %s110, %s122
      %p124 = scmp.eq.s32.totalorder %s123, 0
      %s126 = sadd.s32 %s125, 1
      %s127 = scalar_select %p124, %s125, %s126
      %p130 = pneg %p124
      %p131 = scmp.eq.s32.totalorder %s103, 3
      %p132 = por %p130, %p131
      %p133 = scmp.ne.s32.totalorder %s125, %s128
      %p134 = scmp.eq.s32.totalorder %s103, 0
      %p135 = por %p133, %p134
      %p136 = scmp.ne.s32.totalorder %s125, %s128
      %p137 = scmp.eq.s32.totalorder %s108, 3
      %p138 = por %p136, %p137
      %p139 = scmp.ne.s32.totalorder %s128, %s129
      %p140 = scmp.eq.s32.totalorder %s108, 0
      %p141 = por %p139, %p140
      %p142 = scmp.ne.s32.totalorder %s128, %s129
      %p143 = scmp.eq.s32.totalorder %s109, 3
      %p144 = por %p142, %p143
      %p146 = scmp.ne.s32.totalorder %s129, %s145
      %p147 = scmp.eq.s32.totalorder %s109, 0
      %p148 = por %p146, %p147
      %s149 = ssub.s32 %s110, %s122
      %p150 = scmp.eq.s32.totalorder %s149, 0
      %s152 = sadd.s32 %s151, 1
      %s153 = scalar_select %p150, %s151, %s152
      %p156 = pneg %p150
      %p157 = scmp.eq.s32.totalorder %s103, 3
      %p158 = por %p156, %p157
      %p159 = scmp.ne.s32.totalorder %s151, %s154
      %p160 = scmp.eq.s32.totalorder %s103, 0
      %p161 = por %p159, %p160
      %p162 = scmp.ne.s32.totalorder %s151, %s154
      %p163 = scmp.eq.s32.totalorder %s108, 3
      %p164 = por %p162, %p163
      %p165 = scmp.ne.s32.totalorder %s154, %s155
      %p166 = scmp.eq.s32.totalorder %s108, 0
      %p167 = por %p165, %p166
      %p168 = scmp.ne.s32.totalorder %s154, %s155
      %p169 = scmp.eq.s32.totalorder %s109, 3
      %p170 = por %p168, %p169
      %p172 = scmp.ne.s32.totalorder %s155, %s171
      %p173 = scmp.eq.s32.totalorder %s109, 0
      %p174 = por %p172, %p173
      %s175 = ssub.s32 %s110, %s122
      %p176 = scmp.eq.s32.totalorder %s175, 0
      %s178 = sadd.s32 %s177, 1
      %s179 = scalar_select %p176, %s177, %s178
      %p182 = pneg %p176
      %p183 = scmp.eq.s32.totalorder %s103, 3
      %p184 = por %p182, %p183
      %p185 = scmp.ne.s32.totalorder %s177, %s180
      %p186 = scmp.eq.s32.totalorder %s103, 0
      %p187 = por %p185, %p186
      %p188 = scmp.ne.s32.totalorder %s177, %s180
      %p189 = scmp.eq.s32.totalorder %s108, 3
      %p190 = por %p188, %p189
      %p191 = scmp.ne.s32.totalorder %s180, %s181
      %p192 = scmp.eq.s32.totalorder %s108, 0
      %p193 = por %p191, %p192
      %p194 = scmp.ne.s32.totalorder %s180, %s181
      %p195 = scmp.eq.s32.totalorder %s109, 3
      %p196 = por %p194, %p195
      %p198 = scmp.ne.s32.totalorder %s181, %s197
      %p199 = scmp.eq.s32.totalorder %s109, 0
      %p200 = por %p198, %p199
      %s201 = ssub.s32 %s110, %s122
      %p202 = scmp.eq.s32.totalorder %s201, 0
      %s204 = sadd.s32 %s203, 1
      %s205 = scalar_select %p202, %s203, %s204
      %p208 = pneg %p202
      %p209 = scmp.eq.s32.totalorder %s103, 3
      %p210 = por %p208, %p209
      %p211 = scmp.ne.s32.totalorder %s203, %s206
      %p212 = scmp.eq.s32.totalorder %s103, 0
      %p213 = por %p211, %p212
      %p214 = scmp.ne.s32.totalorder %s203, %s206
      %p215 = scmp.eq.s32.totalorder %s108, 3
      %p216 = por %p214, %p215
      %p217 = scmp.ne.s32.totalorder %s206, %s207
      %p218 = scmp.eq.s32.totalorder %s108, 0
      %p219 = por %p217, %p218
      %p220 = scmp.ne.s32.totalorder %s206, %s207
      %p221 = scmp.eq.s32.totalorder %s109, 3
      %p222 = por %p220, %p221
      %p224 = scmp.ne.s32.totalorder %s207, %s223
      %p225 = scmp.eq.s32.totalorder %s109, 0
      %p226 = por %p224, %p225
      %s228 = sadd.s32 %s227, 1
      %p231 = scmp.eq.s32.totalorder %s103, 3
      %p232 = scmp.ne.s32.totalorder %s227, %s229
      %p233 = scmp.eq.s32.totalorder %s103, 0
      %p234 = por %p232, %p233
      %p235 = scmp.ne.s32.totalorder %s227, %s229
      %p236 = scmp.eq.s32.totalorder %s108, 3
      %p237 = por %p235, %p236
      %p238 = scmp.ne.s32.totalorder %s229, %s230
      %p239 = scmp.eq.s32.totalorder %s108, 0
      %p240 = por %p238, %p239
      %p241 = scmp.ne.s32.totalorder %s229, %s230
      %p242 = scmp.eq.s32.totalorder %s109, 3
      %p243 = por %p241, %p242
      %p245 = scmp.ne.s32.totalorder %s230, %s244
      %p246 = scmp.eq.s32.totalorder %s109, 0
      %p247 = por %p245, %p246
      %s249 = sadd.s32 %s248, 1
      %p252 = scmp.eq.s32.totalorder %s103, 3
      %p253 = scmp.ne.s32.totalorder %s248, %s250
      %p254 = scmp.eq.s32.totalorder %s103, 0
      %p255 = por %p253, %p254
      %p256 = scmp.ne.s32.totalorder %s248, %s250
      %p257 = scmp.eq.s32.totalorder %s108, 3
      %p258 = por %p256, %p257
      %p259 = scmp.ne.s32.totalorder %s250, %s251
      %p260 = scmp.eq.s32.totalorder %s108, 0
      %p261 = por %p259, %p260
      %p262 = scmp.ne.s32.totalorder %s250, %s251
      %p263 = scmp.eq.s32.totalorder %s109, 3
      %p264 = por %p262, %p263
      %p266 = scmp.ne.s32.totalorder %s251, %s265
      %p267 = scmp.eq.s32.totalorder %s109, 0
      %p268 = por %p266, %p267
      %s270 = sadd.s32 %s269, 1
      %p273 = scmp.eq.s32.totalorder %s103, 3
      %p274 = scmp.ne.s32.totalorder %s269, %s271
      %p275 = scmp.eq.s32.totalorder %s103, 0
      %p276 = por %p274, %p275
      %p277 = scmp.ne.s32.totalorder %s269, %s271
      %p278 = scmp.eq.s32.totalorder %s108, 3
      %p279 = por %p277, %p278
      %p280 = scmp.ne.s32.totalorder %s271, %s272
      %p281 = scmp.eq.s32.totalorder %s108, 0
      %p282 = por %p280, %p281
      %p283 = scmp.ne.s32.totalorder %s271, %s272
      %p284 = scmp.eq.s32.totalorder %s109, 3
      %p285 = por %p283, %p284
      %p287 = scmp.ne.s32.totalorder %s272, %s286
      %p288 = scmp.eq.s32.totalorder %s109, 0
      %p289 = por %p287, %p288
      %s291 = sadd.s32 %s290, 1
      %p294 = scmp.eq.s32.totalorder %s103, 3
      %p295 = scmp.ne.s32.totalorder %s290, %s292
      %p296 = scmp.eq.s32.totalorder %s103, 0
      %p297 = por %p295, %p296
      %p298 = scmp.ne.s32.totalorder %s290, %s292
      %p299 = scmp.eq.s32.totalorder %s108, 3
      %p300 = por %p298, %p299
      %p301 = scmp.ne.s32.totalorder %s292, %s293
      %p302 = scmp.eq.s32.totalorder %s108, 0
      %p303 = por %p301, %p302
      %p304 = scmp.ne.s32.totalorder %s292, %s293
      %p305 = scmp.eq.s32.totalorder %s109, 3
      %p306 = por %p304, %p305
      %p308 = scmp.ne.s32.totalorder %s293, %s307
      %p309 = scmp.eq.s32.totalorder %s109, 0
      %p310 = por %p308, %p309
      %s312 = sadd.s32 %s311, 1
      %p315 = scmp.eq.s32.totalorder %s103, 3
      %p316 = scmp.ne.s32.totalorder %s311, %s313
      %p317 = scmp.eq.s32.totalorder %s103, 0
      %p318 = por %p316, %p317
      %p319 = scmp.ne.s32.totalorder %s311, %s313
      %p320 = scmp.eq.s32.totalorder %s108, 3
      %p321 = por %p319, %p320
      %p322 = scmp.ne.s32.totalorder %s313, %s314
      %p323 = scmp.eq.s32.totalorder %s108, 0
      %p324 = por %p322, %p323
      %p325 = scmp.ne.s32.totalorder %s313, %s314
      %p326 = scmp.eq.s32.totalorder %s109, 3
      %p327 = por %p325, %p326
      %p329 = scmp.ne.s32.totalorder %s314, %s328
      %p330 = scmp.eq.s32.totalorder %s109, 0
      %p331 = por %p329, %p330
      %s333 = sadd.s32 %s332, 1
      %p336 = scmp.eq.s32.totalorder %s103, 3
      %p337 = scmp.ne.s32.totalorder %s332, %s334
      %p338 = scmp.eq.s32.totalorder %s103, 0
      %p339 = por %p337, %p338
      %p340 = scmp.ne.s32.totalorder %s332, %s334
      %p341 = scmp.eq.s32.totalorder %s108, 3
      %p342 = por %p340, %p341
      %p343 = scmp.ne.s32.totalorder %s334, %s335
      %p344 = scmp.eq.s32.totalorder %s108, 0
      %p345 = por %p343, %p344
      %p346 = scmp.ne.s32.totalorder %s334, %s335
      %p347 = scmp.eq.s32.totalorder %s109, 3
      %p348 = por %p346, %p347
      %p350 = scmp.ne.s32.totalorder %s335, %s349
      %p351 = scmp.eq.s32.totalorder %s109, 0
      %p352 = por %p350, %p351
      %s353 = ssub.s32 %s111, %s118
      %p354 = scmp.eq.s32.totalorder %s353, 0
      %s356 = sadd.s32 %s355, 1
      %s357 = scalar_select %p354, %s355, %s356
      %p360 = pneg %p354
      %p361 = scmp.eq.s32.totalorder %s103, 3
      %p362 = por %p360, %p361
      %p363 = scmp.ne.s32.totalorder %s355, %s358
      %p364 = scmp.eq.s32.totalorder %s103, 0
      %p365 = por %p363, %p364
      %p366 = scmp.ne.s32.totalorder %s355, %s358
      %p367 = scmp.eq.s32.totalorder %s108, 3
      %p368 = por %p366, %p367
      %p369 = scmp.ne.s32.totalorder %s358, %s359
      %p370 = scmp.eq.s32.totalorder %s108, 0
      %p371 = por %p369, %p370
      %p372 = scmp.ne.s32.totalorder %s358, %s359
      %p373 = scmp.eq.s32.totalorder %s109, 3
      %p374 = por %p372, %p373
      %p376 = scmp.ne.s32.totalorder %s359, %s375
      %p377 = scmp.eq.s32.totalorder %s109, 0
      %p378 = por %p376, %p377
      %s379 = ssub.s32 %s111, %s118
      %p380 = scmp.eq.s32.totalorder %s379, 0
      %s382 = sadd.s32 %s381, 1
      %s383 = scalar_select %p380, %s381, %s382
      %p386 = pneg %p380
      %p387 = scmp.eq.s32.totalorder %s103, 3
      %p388 = por %p386, %p387
      %p389 = scmp.ne.s32.totalorder %s381, %s384
      %p390 = scmp.eq.s32.totalorder %s103, 0
      %p391 = por %p389, %p390
      %p392 = scmp.ne.s32.totalorder %s381, %s384
      %p393 = scmp.eq.s32.totalorder %s108, 3
      %p394 = por %p392, %p393
      %p395 = scmp.ne.s32.totalorder %s384, %s385
      %p396 = scmp.eq.s32.totalorder %s108, 0
      %p397 = por %p395, %p396
      %p398 = scmp.ne.s32.totalorder %s384, %s385
      %p399 = scmp.eq.s32.totalorder %s109, 3
      %p400 = por %p398, %p399
      %p402 = scmp.ne.s32.totalorder %s385, %s401
      %p403 = scmp.eq.s32.totalorder %s109, 0
      %p404 = por %p402, %p403
      %s405 = ssub.s32 %s111, %s118
      %p406 = scmp.eq.s32.totalorder %s405, 0
      %s408 = sadd.s32 %s407, 1
      %s409 = scalar_select %p406, %s407, %s408
      %p412 = pneg %p406
      %p413 = scmp.eq.s32.totalorder %s103, 3
      %p414 = por %p412, %p413
      %p415 = scmp.ne.s32.totalorder %s407, %s410
      %p416 = scmp.eq.s32.totalorder %s103, 0
      %p417 = por %p415, %p416
      %p418 = scmp.ne.s32.totalorder %s407, %s410
      %p419 = scmp.eq.s32.totalorder %s108, 3
      %p420 = por %p418, %p419
      %p421 = scmp.ne.s32.totalorder %s410, %s411
      %p422 = scmp.eq.s32.totalorder %s108, 0
      %p423 = por %p421, %p422
      %p424 = scmp.ne.s32.totalorder %s410, %s411
      %p425 = scmp.eq.s32.totalorder %s109, 3
      %p426 = por %p424, %p425
      %p428 = scmp.ne.s32.totalorder %s411, %s427
      %p429 = scmp.eq.s32.totalorder %s109, 0
      %p430 = por %p428, %p429
      %s431 = ssub.s32 %s111, %s118
      %p432 = scmp.eq.s32.totalorder %s431, 0
      %s434 = sadd.s32 %s433, 1
      %s435 = scalar_select %p432, %s433, %s434
      %p438 = pneg %p432
      %p439 = scmp.eq.s32.totalorder %s103, 3
      %p440 = por %p438, %p439
      %p441 = scmp.ne.s32.totalorder %s433, %s436
      %p442 = scmp.eq.s32.totalorder %s103, 0
      %p443 = por %p441, %p442
      %p444 = scmp.ne.s32.totalorder %s433, %s436
      %p445 = scmp.eq.s32.totalorder %s108, 3
      %p446 = por %p444, %p445
      %p447 = scmp.ne.s32.totalorder %s436, %s437
      %p448 = scmp.eq.s32.totalorder %s108, 0
      %p449 = por %p447, %p448
      %p450 = scmp.ne.s32.totalorder %s436, %s437
      %p451 = scmp.eq.s32.totalorder %s109, 3
      %p452 = por %p450, %p451
      %p454 = scmp.ne.s32.totalorder %s437, %s453
      %p455 = scmp.eq.s32.totalorder %s109, 0
      %p456 = por %p454, %p455
      %s457 = ssub.s32 %s111, %s118
      %p458 = scmp.eq.s32.totalorder %s457, 0
      %s460 = sadd.s32 %s459, 1
      %s461 = scalar_select %p458, %s459, %s460
      %p464 = pneg %p458
      %p465 = scmp.eq.s32.totalorder %s103, 3
      %p466 = por %p464, %p465
      %p467 = scmp.ne.s32.totalorder %s459, %s462
      %p468 = scmp.eq.s32.totalorder %s103, 0
      %p469 = por %p467, %p468
      %p470 = scmp.ne.s32.totalorder %s459, %s462
      %p471 = scmp.eq.s32.totalorder %s108, 3
      %p472 = por %p470, %p471
      %p473 = scmp.ne.s32.totalorder %s462, %s463
      %p474 = scmp.eq.s32.totalorder %s108, 0
      %p475 = por %p473, %p474
      %p476 = scmp.ne.s32.totalorder %s462, %s463
      %p477 = scmp.eq.s32.totalorder %s109, 3
      %p478 = por %p476, %p477
      %p480 = scmp.ne.s32.totalorder %s463, %s479
      %p481 = scmp.eq.s32.totalorder %s109, 0
      %p482 = por %p480, %p481
      %s483 = ssub.s32 %s111, %s118
      %p484 = scmp.eq.s32.totalorder %s483, 0
      %s486 = sadd.s32 %s485, 1
      %s487 = scalar_select %p484, %s485, %s486
      %p490 = pneg %p484
      %p491 = scmp.eq.s32.totalorder %s103, 3
      %p492 = por %p490, %p491
      %p493 = scmp.ne.s32.totalorder %s485, %s488
      %p494 = scmp.eq.s32.totalorder %s103, 0
      %p495 = por %p493, %p494
      %p496 = scmp.ne.s32.totalorder %s485, %s488
      %p497 = scmp.eq.s32.totalorder %s108, 3
      %p498 = por %p496, %p497
      %p499 = scmp.ne.s32.totalorder %s488, %s489
      %p500 = scmp.eq.s32.totalorder %s108, 0
      %p501 = por %p499, %p500
      %p502 = scmp.ne.s32.totalorder %s488, %s489
      %p503 = scmp.eq.s32.totalorder %s109, 3
      %p504 = por %p502, %p503
      %p506 = scmp.ne.s32.totalorder %s489, %s505
      %p507 = scmp.eq.s32.totalorder %s109, 0
      %p508 = por %p506, %p507
      %s509 = ssub.s32 %s111, %s118
      %p510 = scmp.eq.s32.totalorder %s509, 0
      %s512 = sadd.s32 %s511, 1
      %s513 = scalar_select %p510, %s511, %s512
      %p516 = pneg %p510
      %p517 = scmp.eq.s32.totalorder %s103, 3
      %p518 = por %p516, %p517
      %p519 = scmp.ne.s32.totalorder %s511, %s514
      %p520 = scmp.eq.s32.totalorder %s103, 0
      %p521 = por %p519, %p520
      %p522 = scmp.ne.s32.totalorder %s511, %s514
      %p523 = scmp.eq.s32.totalorder %s108, 3
      %p524 = por %p522, %p523
      %p525 = scmp.ne.s32.totalorder %s514, %s515
      %p526 = scmp.eq.s32.totalorder %s108, 0
      %p527 = por %p525, %p526
      %p528 = scmp.ne.s32.totalorder %s514, %s515
      %p529 = scmp.eq.s32.totalorder %s109, 3
      %p530 = por %p528, %p529
      %p532 = scmp.ne.s32.totalorder %s515, %s531
      %p533 = scmp.eq.s32.totalorder %s109, 0
      %p534 = por %p532, %p533
      %s535 = ssub.s32 %s111, %s118
      %p536 = scmp.eq.s32.totalorder %s535, 0
      %s538 = sadd.s32 %s537, 1
      %s539 = scalar_select %p536, %s537, %s538
      %p542 = pneg %p536
      %p543 = scmp.eq.s32.totalorder %s103, 3
      %p544 = por %p542, %p543
      %p545 = scmp.ne.s32.totalorder %s537, %s540
      %p546 = scmp.eq.s32.totalorder %s103, 0
      %p547 = por %p545, %p546
      %p548 = scmp.ne.s32.totalorder %s537, %s540
      %p549 = scmp.eq.s32.totalorder %s108, 3
      %p550 = por %p548, %p549
      %p551 = scmp.ne.s32.totalorder %s540, %s541
      %p552 = scmp.eq.s32.totalorder %s108, 0
      %p553 = por %p551, %p552
      %p554 = scmp.ne.s32.totalorder %s540, %s541
      %p555 = scmp.eq.s32.totalorder %s109, 3
      %p556 = por %p554, %p555
      %p558 = scmp.ne.s32.totalorder %s541, %s557
      %p559 = scmp.eq.s32.totalorder %s109, 0
      %p560 = por %p558, %p559
      %s561 = ssub.s32 %s111, %s118
      %p562 = scmp.eq.s32.totalorder %s561, 0
      %s564 = sadd.s32 %s563, 1
      %s565 = scalar_select %p562, %s563, %s564
      %p568 = pneg %p562
      %p569 = scmp.eq.s32.totalorder %s103, 3
      %p570 = por %p568, %p569
      %p571 = scmp.ne.s32.totalorder %s563, %s566
      %p572 = scmp.eq.s32.totalorder %s103, 0
      %p573 = por %p571, %p572
      %p574 = scmp.ne.s32.totalorder %s563, %s566
      %p575 = scmp.eq.s32.totalorder %s108, 3
      %p576 = por %p574, %p575
      %p577 = scmp.ne.s32.totalorder %s566, %s567
      %p578 = scmp.eq.s32.totalorder %s108, 0
      %p579 = por %p577, %p578
      %p580 = scmp.ne.s32.totalorder %s566, %s567
      %p581 = scmp.eq.s32.totalorder %s109, 3
      %p582 = por %p580, %p581
      %p584 = scmp.ne.s32.totalorder %s567, %s583
      %p585 = scmp.eq.s32.totalorder %s109, 0
      %p586 = por %p584, %p585
      %s587 = ssub.s32 %s111, %s118
      %p588 = scmp.eq.s32.totalorder %s587, 0
      %s590 = sadd.s32 %s589, 1
      %s591 = scalar_select %p588, %s589, %s590
      %p594 = pneg %p588
      %p595 = scmp.eq.s32.totalorder %s103, 3
      %p596 = por %p594, %p595
      %p597 = scmp.ne.s32.totalorder %s589, %s592
      %p598 = scmp.eq.s32.totalorder %s103, 0
      %p599 = por %p597, %p598
      %p600 = scmp.ne.s32.totalorder %s589, %s592
      %p601 = scmp.eq.s32.totalorder %s108, 3
      %p602 = por %p600, %p601
      %p603 = scmp.ne.s32.totalorder %s592, %s593
      %p604 = scmp.eq.s32.totalorder %s108, 0
      %p605 = por %p603, %p604
      %p606 = scmp.ne.s32.totalorder %s592, %s593
      %p607 = scmp.eq.s32.totalorder %s109, 3
      %p608 = por %p606, %p607
      %p610 = scmp.ne.s32.totalorder %s593, %s609
      %p611 = scmp.eq.s32.totalorder %s109, 0
      %p612 = por %p610, %p611
      %s613 = ssub.s32 %s111, %s118
      %p614 = scmp.eq.s32.totalorder %s613, 0
      %s616 = sadd.s32 %s615, 1
      %s617 = scalar_select %p614, %s615, %s616
      %p620 = pneg %p614
      %p621 = scmp.eq.s32.totalorder %s103, 3
      %p622 = por %p620, %p621
      %p623 = scmp.ne.s32.totalorder %s615, %s618
      %p624 = scmp.eq.s32.totalorder %s103, 0
      %p625 = por %p623, %p624
      %p626 = scmp.ne.s32.totalorder %s615, %s618
      %p627 = scmp.eq.s32.totalorder %s108, 3
      %p628 = por %p626, %p627
      %p629 = scmp.ne.s32.totalorder %s618, %s619
      %p630 = scmp.eq.s32.totalorder %s108, 0
      %p631 = por %p629, %p630
      %p632 = scmp.ne.s32.totalorder %s618, %s619
      %p633 = scmp.eq.s32.totalorder %s109, 3
      %p634 = por %p632, %p633
      %p636 = scmp.ne.s32.totalorder %s619, %s635
      %p637 = scmp.eq.s32.totalorder %s109, 0
      %p638 = por %p636, %p637
      %s639 = ssub.s32 %s111, %s118
      %p640 = scmp.eq.s32.totalorder %s639, 0
      %s642 = sadd.s32 %s641, 1
      %s643 = scalar_select %p640, %s641, %s642
      %p646 = pneg %p640
      %p647 = scmp.eq.s32.totalorder %s103, 3
      %p648 = por %p646, %p647
      %p649 = scmp.ne.s32.totalorder %s641, %s644
      %p650 = scmp.eq.s32.totalorder %s103, 0
      %p651 = por %p649, %p650
      %p652 = scmp.ne.s32.totalorder %s641, %s644
      %p653 = scmp.eq.s32.totalorder %s108, 3
      %p654 = por %p652, %p653
      %p655 = scmp.ne.s32.totalorder %s644, %s645
      %p656 = scmp.eq.s32.totalorder %s108, 0
      %p657 = por %p655, %p656
      %p658 = scmp.ne.s32.totalorder %s644, %s645
      %p659 = scmp.eq.s32.totalorder %s109, 3
      %p660 = por %p658, %p659
      %p662 = scmp.ne.s32.totalorder %s645, %s661
      %p663 = scmp.eq.s32.totalorder %s109, 0
      %p664 = por %p662, %p663
      %s665 = ssub.s32 %s111, %s118
      %p666 = scmp.eq.s32.totalorder %s665, 0
      %s668 = sadd.s32 %s667, 1
      %s669 = scalar_select %p666, %s667, %s668
      %p672 = pneg %p666
      %p673 = scmp.eq.s32.totalorder %s103, 3
      %p674 = por %p672, %p673
      %p675 = scmp.ne.s32.totalorder %s667, %s670
      %p676 = scmp.eq.s32.totalorder %s103, 0
      %p677 = por %p675, %p676
      %p678 = scmp.ne.s32.totalorder %s667, %s670
      %p679 = scmp.eq.s32.totalorder %s108, 3
      %p680 = por %p678, %p679
      %p681 = scmp.ne.s32.totalorder %s670, %s671
      %p682 = scmp.eq.s32.totalorder %s108, 0
      %p683 = por %p681, %p682
      %p684 = scmp.ne.s32.totalorder %s670, %s671
      %p685 = scmp.eq.s32.totalorder %s109, 3
      %p686 = por %p684, %p685
      %p688 = scmp.ne.s32.totalorder %s671, %s687
      %p689 = scmp.eq.s32.totalorder %s109, 0
      %p690 = por %p688, %p689
      %s691 = ssub.s32 %s111, %s118
      %p692 = scmp.eq.s32.totalorder %s691, 0
      %s694 = sadd.s32 %s693, 1
      %s695 = scalar_select %p692, %s693, %s694
      %p698 = pneg %p692
      %p699 = scmp.eq.s32.totalorder %s103, 3
      %p700 = por %p698, %p699
      %p701 = scmp.ne.s32.totalorder %s693, %s696
      %p702 = scmp.eq.s32.totalorder %s103, 0
      %p703 = por %p701, %p702
      %p704 = scmp.ne.s32.totalorder %s693, %s696
      %p705 = scmp.eq.s32.totalorder %s108, 3
      %p706 = por %p704, %p705
      %p707 = scmp.ne.s32.totalorder %s696, %s697
      %p708 = scmp.eq.s32.totalorder %s108, 0
      %p709 = por %p707, %p708
      %p710 = scmp.ne.s32.totalorder %s696, %s697
      %p711 = scmp.eq.s32.totalorder %s109, 3
      %p712 = por %p710, %p711
      %p714 = scmp.ne.s32.totalorder %s697, %s713
      %p715 = scmp.eq.s32.totalorder %s109, 0
      %p716 = por %p714, %p715
      %s717 = ssub.s32 %s111, %s118
      %p718 = scmp.eq.s32.totalorder %s717, 0
      %s720 = sadd.s32 %s719, 1
      %s721 = scalar_select %p718, %s719, %s720
      %p724 = pneg %p718
      %p725 = scmp.eq.s32.totalorder %s103, 3
      %p726 = por %p724, %p725
      %p727 = scmp.ne.s32.totalorder %s719, %s722
      %p728 = scmp.eq.s32.totalorder %s103, 0
      %p729 = por %p727, %p728
      %p730 = scmp.ne.s32.totalorder %s719, %s722
      %p731 = scmp.eq.s32.totalorder %s108, 3
      %p732 = por %p730, %p731
      %p733 = scmp.ne.s32.totalorder %s722, %s723
      %p734 = scmp.eq.s32.totalorder %s108, 0
      %p735 = por %p733, %p734
      %p736 = scmp.ne.s32.totalorder %s722, %s723
      %p737 = scmp.eq.s32.totalorder %s109, 3
      %p738 = por %p736, %p737
      %p740 = scmp.ne.s32.totalorder %s723, %s739
      %p741 = scmp.eq.s32.totalorder %s109, 0
      %p742 = por %p740, %p741
      %s743 = ssub.s32 %s111, %s118
      %p744 = scmp.eq.s32.totalorder %s743, 0
      %s746 = sadd.s32 %s745, 1
      %s747 = scalar_select %p744, %s745, %s746
      %p750 = pneg %p744
      %p751 = scmp.eq.s32.totalorder %s103, 3
      %p752 = por %p750, %p751
      %p753 = scmp.ne.s32.totalorder %s745, %s748
      %p754 = scmp.eq.s32.totalorder %s103, 0
      %p755 = por %p753, %p754
      %p756 = scmp.ne.s32.totalorder %s745, %s748
      %p757 = scmp.eq.s32.totalorder %s108, 3
      %p758 = por %p756, %p757
      %p759 = scmp.ne.s32.totalorder %s748, %s749
      %p760 = scmp.eq.s32.totalorder %s108, 0
      %p761 = por %p759, %p760
      %p762 = scmp.ne.s32.totalorder %s748, %s749
      %p763 = scmp.eq.s32.totalorder %s109, 3
      %p764 = por %p762, %p763
      %p766 = scmp.ne.s32.totalorder %s749, %s765
      %p767 = scmp.eq.s32.totalorder %s109, 0
      %p768 = por %p766, %p767
      %s769 = ssub.s32 %s111, %s118
      %p770 = scmp.eq.s32.totalorder %s769, 0
      %s772 = sadd.s32 %s771, 1
      %s773 = scalar_select %p770, %s771, %s772
      %p776 = pneg %p770
      %p777 = scmp.eq.s32.totalorder %s103, 3
      %p778 = por %p776, %p777
      %p779 = scmp.ne.s32.totalorder %s771, %s774
      %p780 = scmp.eq.s32.totalorder %s103, 0
      %p781 = por %p779, %p780
      %p782 = scmp.ne.s32.totalorder %s771, %s774
      %p783 = scmp.eq.s32.totalorder %s108, 3
      %p784 = por %p782, %p783
      %p785 = scmp.ne.s32.totalorder %s774, %s775
      %p786 = scmp.eq.s32.totalorder %s108, 0
      %p787 = por %p785, %p786
      %p788 = scmp.ne.s32.totalorder %s774, %s775
      %p789 = scmp.eq.s32.totalorder %s109, 3
      %p790 = por %p788, %p789
      %p792 = scmp.ne.s32.totalorder %s775, %s791
      %p793 = scmp.eq.s32.totalorder %s109, 0
      %p794 = por %p792, %p793
      %s795 = ssub.s32 %s111, %s118
      %p796 = scmp.eq.s32.totalorder %s795, 0
      %s798 = sadd.s32 %s797, 1
      %s799 = scalar_select %p796, %s797, %s798
      %p802 = pneg %p796
      %p803 = scmp.eq.s32.totalorder %s103, 3
      %p804 = por %p802, %p803
      %p805 = scmp.ne.s32.totalorder %s797, %s800
      %p806 = scmp.eq.s32.totalorder %s103, 0
      %p807 = por %p805, %p806
      %p808 = scmp.ne.s32.totalorder %s797, %s800
      %p809 = scmp.eq.s32.totalorder %s108, 3
      %p810 = por %p808, %p809
      %p811 = scmp.ne.s32.totalorder %s800, %s801
      %p812 = scmp.eq.s32.totalorder %s108, 0
      %p813 = por %p811, %p812
      %p814 = scmp.ne.s32.totalorder %s800, %s801
      %p815 = scmp.eq.s32.totalorder %s109, 3
      %p816 = por %p814, %p815
      %p818 = scmp.ne.s32.totalorder %s801, %s817
      %p819 = scmp.eq.s32.totalorder %s109, 0
      %p820 = por %p818, %p819
      %s821 = ssub.s32 %s111, %s118
      %p822 = scmp.eq.s32.totalorder %s821, 0
      %s824 = sadd.s32 %s823, 1
      %s825 = scalar_select %p822, %s823, %s824
      %p828 = pneg %p822
      %p829 = scmp.eq.s32.totalorder %s103, 3
      %p830 = por %p828, %p829
      %p831 = scmp.ne.s32.totalorder %s823, %s826
      %p832 = scmp.eq.s32.totalorder %s103, 0
      %p833 = por %p831, %p832
      %p834 = scmp.ne.s32.totalorder %s823, %s826
      %p835 = scmp.eq.s32.totalorder %s108, 3
      %p836 = por %p834, %p835
      %p837 = scmp.ne.s32.totalorder %s826, %s827
      %p838 = scmp.eq.s32.totalorder %s108, 0
      %p839 = por %p837, %p838
      %p840 = scmp.ne.s32.totalorder %s826, %s827
      %p841 = scmp.eq.s32.totalorder %s109, 3
      %p842 = por %p840, %p841
      %p844 = scmp.ne.s32.totalorder %s827, %s843
      %p845 = scmp.eq.s32.totalorder %s109, 0
      %p846 = por %p844, %p845
      %s847 = ssub.s32 %s111, %s118
      %p848 = scmp.eq.s32.totalorder %s847, 0
      %s850 = sadd.s32 %s849, 1
      %s851 = scalar_select %p848, %s849, %s850
      %p854 = pneg %p848
      %p855 = scmp.eq.s32.totalorder %s103, 3
      %p856 = por %p854, %p855
      %p857 = scmp.ne.s32.totalorder %s849, %s852
      %p858 = scmp.eq.s32.totalorder %s103, 0
      %p859 = por %p857, %p858
      %p860 = scmp.ne.s32.totalorder %s849, %s852
      %p861 = scmp.eq.s32.totalorder %s108, 3
      %p862 = por %p860, %p861
      %p863 = scmp.ne.s32.totalorder %s852, %s853
      %p864 = scmp.eq.s32.totalorder %s108, 0
      %p865 = por %p863, %p864
      %p866 = scmp.ne.s32.totalorder %s852, %s853
      %p867 = scmp.eq.s32.totalorder %s109, 3
      %p868 = por %p866, %p867
      %p870 = scmp.ne.s32.totalorder %s853, %s869
      %p871 = scmp.eq.s32.totalorder %s109, 0
      %p872 = por %p870, %p871
      %s873 = ssub.s32 %s111, %s118
      %p874 = scmp.eq.s32.totalorder %s873, 0
      %s876 = sadd.s32 %s875, 1
      %s877 = scalar_select %p874, %s875, %s876
      %p880 = pneg %p874
      %p881 = scmp.eq.s32.totalorder %s103, 3
      %p882 = por %p880, %p881
      %p883 = scmp.ne.s32.totalorder %s875, %s878
      %p884 = scmp.eq.s32.totalorder %s103, 0
      %p885 = por %p883, %p884
      %p886 = scmp.ne.s32.totalorder %s875, %s878
      %p887 = scmp.eq.s32.totalorder %s108, 3
      %p888 = por %p886, %p887
      %p889 = scmp.ne.s32.totalorder %s878, %s879
      %p890 = scmp.eq.s32.totalorder %s108, 0
      %p891 = por %p889, %p890
      %p892 = scmp.ne.s32.totalorder %s878, %s879
      %p893 = scmp.eq.s32.totalorder %s109, 3
      %p894 = por %p892, %p893
      %p896 = scmp.ne.s32.totalorder %s879, %s895
      %p897 = scmp.eq.s32.totalorder %s109, 0
      %p898 = por %p896, %p897
      %s899 = ssub.s32 %s111, %s118
      %p900 = scmp.eq.s32.totalorder %s899, 0
      %s902 = sadd.s32 %s901, 1
      %s903 = scalar_select %p900, %s901, %s902
      %p906 = pneg %p900
      %p907 = scmp.eq.s32.totalorder %s103, 3
      %p908 = por %p906, %p907
      %p909 = scmp.ne.s32.totalorder %s901, %s904
      %p910 = scmp.eq.s32.totalorder %s103, 0
      %p911 = por %p909, %p910
      %p912 = scmp.ne.s32.totalorder %s901, %s904
      %p913 = scmp.eq.s32.totalorder %s108, 3
      %p914 = por %p912, %p913
      %p915 = scmp.ne.s32.totalorder %s904, %s905
      %p916 = scmp.eq.s32.totalorder %s108, 0
      %p917 = por %p915, %p916
      %p918 = scmp.ne.s32.totalorder %s904, %s905
      %p919 = scmp.eq.s32.totalorder %s109, 3
      %p920 = por %p918, %p919
      %p922 = scmp.ne.s32.totalorder %s905, %s921
      %p923 = scmp.eq.s32.totalorder %s109, 0
      %p924 = por %p922, %p923
      %s925 = ssub.s32 %s111, %s118
      %p926 = scmp.eq.s32.totalorder %s925, 0
      %s928 = sadd.s32 %s927, 1
      %s929 = scalar_select %p926, %s927, %s928
      %p932 = pneg %p926
      %p933 = scmp.eq.s32.totalorder %s103, 3
      %p934 = por %p932, %p933
      %p935 = scmp.ne.s32.totalorder %s927, %s930
      %p936 = scmp.eq.s32.totalorder %s103, 0
      %p937 = por %p935, %p936
      %p938 = scmp.ne.s32.totalorder %s927, %s930
      %p939 = scmp.eq.s32.totalorder %s108, 3
      %p940 = por %p938, %p939
      %p941 = scmp.ne.s32.totalorder %s930, %s931
      %p942 = scmp.eq.s32.totalorder %s108, 0
      %p943 = por %p941, %p942
      %p944 = scmp.ne.s32.totalorder %s930, %s931
      %p945 = scmp.eq.s32.totalorder %s109, 3
      %p946 = por %p944, %p945
      %p948 = scmp.ne.s32.totalorder %s931, %s947
      %p949 = scmp.eq.s32.totalorder %s109, 0
      %p950 = por %p948, %p949
      %s951 = ssub.s32 %s111, %s118
      %p952 = scmp.eq.s32.totalorder %s951, 0
      %s954 = sadd.s32 %s953, 1
      %s955 = scalar_select %p952, %s953, %s954
      %p958 = pneg %p952
      %p959 = scmp.eq.s32.totalorder %s103, 3
      %p960 = por %p958, %p959
      %p961 = scmp.ne.s32.totalorder %s953, %s956
      %p962 = scmp.eq.s32.totalorder %s103, 0
      %p963 = por %p961, %p962
      %p964 = scmp.ne.s32.totalorder %s953, %s956
      %p965 = scmp.eq.s32.totalorder %s108, 3
      %p966 = por %p964, %p965
      %p967 = scmp.ne.s32.totalorder %s956, %s957
      %p968 = scmp.eq.s32.totalorder %s108, 0
      %p969 = por %p967, %p968
      %p970 = scmp.ne.s32.totalorder %s956, %s957
      %p971 = scmp.eq.s32.totalorder %s109, 3
      %p972 = por %p970, %p971
      %p974 = scmp.ne.s32.totalorder %s957, %s973
      %p975 = scmp.eq.s32.totalorder %s109, 0
      %p976 = por %p974, %p975
      %s977 = ssub.s32 %s111, %s118
      %p978 = scmp.eq.s32.totalorder %s977, 0
      %s980 = sadd.s32 %s979, 1
      %s981 = scalar_select %p978, %s979, %s980
      %p984 = pneg %p978
      %p985 = scmp.eq.s32.totalorder %s103, 3
      %p986 = por %p984, %p985
      %p987 = scmp.ne.s32.totalorder %s979, %s982
      %p988 = scmp.eq.s32.totalorder %s103, 0
      %p989 = por %p987, %p988
      %p990 = scmp.ne.s32.totalorder %s979, %s982
      %p991 = scmp.eq.s32.totalorder %s108, 3
      %p992 = por %p990, %p991
      %p993 = scmp.ne.s32.totalorder %s982, %s983
      %p994 = scmp.eq.s32.totalorder %s108, 0
      %p995 = por %p993, %p994
      %p996 = scmp.ne.s32.totalorder %s982, %s983
      %p997 = scmp.eq.s32.totalorder %s109, 3
      %p998 = por %p996, %p997
      %p1000 = scmp.ne.s32.totalorder %s983, %s999
      %p1001 = scmp.eq.s32.totalorder %s109, 0
      %p1002 = por %p1000, %p1001
      %s1003 = ssub.s32 %s111, %s118
      %p1004 = scmp.eq.s32.totalorder %s1003, 0
      %s1006 = sadd.s32 %s1005, 1
      %s1007 = scalar_select %p1004, %s1005, %s1006
      %p1010 = pneg %p1004
      %p1011 = scmp.eq.s32.totalorder %s103, 3
      %p1012 = por %p1010, %p1011
      %p1013 = scmp.ne.s32.totalorder %s1005, %s1008
      %p1014 = scmp.eq.s32.totalorder %s103, 0
      %p1015 = por %p1013, %p1014
      %p1016 = scmp.ne.s32.totalorder %s1005, %s1008
      %p1017 = scmp.eq.s32.totalorder %s108, 3
      %p1018 = por %p1016, %p1017
      %p1019 = scmp.ne.s32.totalorder %s1008, %s1009
      %p1020 = scmp.eq.s32.totalorder %s108, 0
      %p1021 = por %p1019, %p1020
      %p1022 = scmp.ne.s32.totalorder %s1008, %s1009
      %p1023 = scmp.eq.s32.totalorder %s109, 3
      %p1024 = por %p1022, %p1023
      %p1026 = scmp.ne.s32.totalorder %s1009, %s1025
      %p1027 = scmp.eq.s32.totalorder %s109, 0
      %p1028 = por %p1026, %p1027
      %s1029 = ssub.s32 %s110, %s122
      %p1030 = scmp.eq.s32.totalorder %s1029, 0
      %s1032 = sadd.s32 %s1031, 1
      %s1033 = scalar_select %p1030, %s1031, %s1032
      %p1036 = pneg %p1030
      %p1037 = scmp.eq.s32.totalorder %s103, 3
      %p1038 = por %p1036, %p1037
      %p1039 = scmp.ne.s32.totalorder %s1031, %s1034
      %p1040 = scmp.eq.s32.totalorder %s103, 0
      %p1041 = por %p1039, %p1040
      %p1042 = scmp.ne.s32.totalorder %s1031, %s1034
      %p1043 = scmp.eq.s32.totalorder %s108, 3
      %p1044 = por %p1042, %p1043
      %p1045 = scmp.ne.s32.totalorder %s1034, %s1035
      %p1046 = scmp.eq.s32.totalorder %s108, 0
      %p1047 = por %p1045, %p1046
      %p1048 = scmp.ne.s32.totalorder %s1034, %s1035
      %p1049 = scmp.eq.s32.totalorder %s109, 3
      %p1050 = por %p1048, %p1049
      %p1052 = scmp.ne.s32.totalorder %s1035, %s1051
      %p1053 = scmp.eq.s32.totalorder %s109, 0
      %p1054 = por %p1052, %p1053
      %p1055 = scmp.le.s32.totalorder 1, %s103
      %p1056 = scmp.lt.s32.totalorder %s103, 5
      %p1057 = pnand %p1055, %p1056
      %p1058 = pneg %p1057
      // Predicated region
      $region9: #{mca_ed_forward.3} parent=5 // pred_check
        _
      $region10: #{mca_ed_forward.3} parent=5 // pred_check_branch
        %1060 = sbr.rel (%p1057) target = $region12
      $region11: #{mca_ed_forward.3} parent=5 // pred_region
        %s1061 = ssub.s32 %s103, 1
        // Predicated region
        $region13: #{mca_ed_forward.3} parent=11 // pred_check
          %p1062 = pneg %p240
        $region14: #{mca_ed_forward.3} parent=11 // pred_check_branch
          %1064 = sbr.rel (%p1062) target = $region16
        $region15: #{mca_ed_forward.3} parent=11 // pred_region
          _
        $region16: #{mca_ed_forward.3} parent=11 // pred_fallthru
          _
        // Predicated region
        $region17: #{mca_ed_forward.3} parent=11 // pred_check
          %p1065 = pneg %p261
        $region18: #{mca_ed_forward.3} parent=11 // pred_check_branch
          %1067 = sbr.rel (%p1065) target = $region20
        $region19: #{mca_ed_forward.3} parent=11 // pred_region
          _
        $region20: #{mca_ed_forward.3} parent=11 // pred_fallthru
          _
        // Predicated region
        $region21: #{mca_ed_forward.3} parent=11 // pred_check
          %p1068 = pneg %p282
        $region22: #{mca_ed_forward.3} parent=11 // pred_check_branch
          %1070 = sbr.rel (%p1068) target = $region24
        $region23: #{mca_ed_forward.3} parent=11 // pred_region
          _
        $region24: #{mca_ed_forward.3} parent=11 // pred_fallthru
          _
        // Predicated region
        $region25: #{mca_ed_forward.3} parent=11 // pred_check
          %p1071 = pneg %p303
        $region26: #{mca_ed_forward.3} parent=11 // pred_check_branch
          %1073 = sbr.rel (%p1071) target = $region28
        $region27: #{mca_ed_forward.3} parent=11 // pred_region
          _
        $region28: #{mca_ed_forward.3} parent=11 // pred_fallthru
          _
        // Predicated region
        $region29: #{mca_ed_forward.3} parent=11 // pred_check
          %p1074 = pneg %p324
        $region30: #{mca_ed_forward.3} parent=11 // pred_check_branch
          %1076 = sbr.rel (%p1074) target = $region32
        $region31: #{mca_ed_forward.3} parent=11 // pred_region
          _
        $region32: #{mca_ed_forward.3} parent=11 // pred_fallthru
          _
        // Predicated region
        $region33: #{mca_ed_forward.3} parent=11 // pred_check
          %p1077 = pneg %p345
        $region34: #{mca_ed_forward.3} parent=11 // pred_check_branch
          %1079 = sbr.rel (%p1077) target = $region36
        $region35: #{mca_ed_forward.3} parent=11 // pred_region
          _
        $region36: #{mca_ed_forward.3} parent=11 // pred_fallthru
          _
      $region12: #{mca_ed_forward.3} parent=5 // pred_fallthru
        _
      %p1080 = scmp.lt.s32.totalorder %s103, 4
      // Predicated region
      $region37: #{mca_ed_forward.3} parent=5 // pred_check
        %p1081 = pneg %p1080
      $region38: #{mca_ed_forward.3} parent=5 // pred_check_branch
        %1083 = sbr.rel (%p1081) target = $region40
      $region39: #{mca_ed_forward.3} parent=5 // pred_region
        // Predicated region
        $region41: #{mca_ed_forward.3} parent=39 // pred_check
          %p1084 = pneg %p135
        $region42: #{mca_ed_forward.3} parent=39 // pred_check_branch
          %1086 = sbr.rel (%p1084) target = $region44
        $region43: #{mca_ed_forward.3} parent=39 // pred_region
          %p1087 = scmp.lt.s32.totalorder %s110, 1
          %s1088 = scalar_select %p1087, %s110, 1
          %s1089 = smul.addr %s1088, 8
          %s1090 = scalar_lea.vmem %s1, %s1089
        $region44: #{mca_ed_forward.3} parent=39 // pred_fallthru
          _
        // Predicated region
        $region45: #{mca_ed_forward.3} parent=39 // pred_check
          %p1091 = pneg %p161
        $region46: #{mca_ed_forward.3} parent=39 // pred_check_branch
          %1093 = sbr.rel (%p1091) target = $region48
        $region47: #{mca_ed_forward.3} parent=39 // pred_region
          %p1094 = scmp.lt.s32.totalorder %s110, 1
          %s1095 = scalar_select %p1094, %s110, 1
          %s1096 = smul.addr %s1095, 8
          %s1097 = scalar_lea.vmem %s3, %s1096
        $region48: #{mca_ed_forward.3} parent=39 // pred_fallthru
          _
        // Predicated region
        $region49: #{mca_ed_forward.3} parent=39 // pred_check
          %p1098 = pneg %p187
        $region50: #{mca_ed_forward.3} parent=39 // pred_check_branch
          %1100 = sbr.rel (%p1098) target = $region52
        $region51: #{mca_ed_forward.3} parent=39 // pred_region
          %p1101 = scmp.lt.s32.totalorder %s110, 1
          %s1102 = scalar_select %p1101, %s110, 1
          %s1103 = scalar_lea.vmem %s5, %s1102
        $region52: #{mca_ed_forward.3} parent=39 // pred_fallthru
          _
        // Predicated region
        $region53: #{mca_ed_forward.3} parent=39 // pred_check
          %p1104 = pneg %p213
        $region54: #{mca_ed_forward.3} parent=39 // pred_check_branch
          %1106 = sbr.rel (%p1104) target = $region56
        $region55: #{mca_ed_forward.3} parent=39 // pred_region
          %p1107 = scmp.lt.s32.totalorder %s110, 1
          %s1108 = scalar_select %p1107, %s110, 1
          %s1109 = scalar_lea.vmem %s7, %s1108
        $region56: #{mca_ed_forward.3} parent=39 // pred_fallthru
          _
        // Predicated region
        $region57: #{mca_ed_forward.3} parent=39 // pred_check
          %p1110 = pneg %p365
        $region58: #{mca_ed_forward.3} parent=39 // pred_check_branch
          %1112 = sbr.rel (%p1110) target = $region60
        $region59: #{mca_ed_forward.3} parent=39 // pred_region
          %p1113 = scmp.lt.s32.totalorder %s111, 1
          %s1114 = scalar_select %p1113, %s111, 1
          %s1115 = smul.addr %s1114, 16
          %s1116 = smul.addr %s1115, 8
          %s1117 = scalar_lea.vmem %s21, %s1116
        $region60: #{mca_ed_forward.3} parent=39 // pred_fallthru
          _
        // Predicated region
        $region61: #{mca_ed_forward.3} parent=39 // pred_check
          %p1118 = pneg %p391
        $region62: #{mca_ed_forward.3} parent=39 // pred_check_branch
          %1120 = sbr.rel (%p1118) target = $region64
        $region63: #{mca_ed_forward.3} parent=39 // pred_region
          %s1121 = sand.u32 %s381, 1
          %s1122 = scalar_lea.sflag [#allocation4], %s1121
          %s1123 = sand.u32 %s381, 1
          %s1124 = scalar_lea.vmem [#allocation3], %s1123
          %s1126 = ssub.s32 16, 16
          %1127 = vsyncadd %s1122, %s1126
          %s1128 = smul.addr %s111, 16
          %s1129 = scalar_lea.hbm %s23, %s1128
          %s1131 = sshll.u32 %s1124, 4
          %s1132 = int_to_ptr.vmem [resolvable:$true] %s1131
          %1134 = dma.hbm_to_vmem [thread:$0]  %s1129, 16, %s1132, %s1122
        $region64: #{mca_ed_forward.3} parent=39 // pred_fallthru
          _
        // Predicated region
        $region65: #{mca_ed_forward.3} parent=39 // pred_check
          %p1135 = pneg %p417
        $region66: #{mca_ed_forward.3} parent=39 // pred_check_branch
          %1137 = sbr.rel (%p1135) target = $region68
        $region67: #{mca_ed_forward.3} parent=39 // pred_region
          %p1138 = scmp.lt.s32.totalorder %s111, 1
          %s1139 = scalar_select %p1138, %s111, 1
          %s1140 = smul.addr %s1139, 16
          %s1141 = smul.addr %s1140, 8
          %s1142 = scalar_lea.vmem %s25, %s1141
        $region68: #{mca_ed_forward.3} parent=39 // pred_fallthru
          _
        // Predicated region
        $region69: #{mca_ed_forward.3} parent=39 // pred_check
          %p1143 = pneg %p443
        $region70: #{mca_ed_forward.3} parent=39 // pred_check_branch
          %1145 = sbr.rel (%p1143) target = $region72
        $region71: #{mca_ed_forward.3} parent=39 // pred_region
          %p1146 = scmp.lt.s32.totalorder %s111, 1
          %s1147 = scalar_select %p1146, %s111, 1
          %s1148 = scalar_lea.vmem %s27, %s1147
        $region72: #{mca_ed_forward.3} parent=39 // pred_fallthru
          _
        // Predicated region
        $region73: #{mca_ed_forward.3} parent=39 // pred_check
          %p1149 = pneg %p469
        $region74: #{mca_ed_forward.3} parent=39 // pred_check_branch
          %1151 = sbr.rel (%p1149) target = $region76
        $region75: #{mca_ed_forward.3} parent=39 // pred_region
          %p1152 = scmp.lt.s32.totalorder %s111, 1
          %s1153 = scalar_select %p1152, %s111, 1
          %s1154 = smul.addr %s1153, 16
          %s1155 = smul.addr %s1154, 8
          %s1156 = scalar_lea.vmem %s29, %s1155
        $region76: #{mca_ed_forward.3} parent=39 // pred_fallthru
          _
        // Predicated region
        $region77: #{mca_ed_forward.3} parent=39 // pred_check
          %p1157 = pneg %p495
        $region78: #{mca_ed_forward.3} parent=39 // pred_check_branch
          %1159 = sbr.rel (%p1157) target = $region80
        $region79: #{mca_ed_forward.3} parent=39 // pred_region
          %s1160 = sand.u32 %s103, 1
          %s1161 = scalar_lea.sflag [#allocation6], %s1160
          %s1162 = sand.u32 %s485, 1
          %s1163 = scalar_lea.vmem [#allocation5], %s1162
          %s1165 = ssub.s32 16, 16
          %1166 = vsyncadd %s1161, %s1165
          %s1167 = smul.addr %s111, 16
          %s1168 = scalar_lea.hbm %s31, %s1167
          %s1170 = sshll.u32 %s1163, 4
          %s1171 = int_to_ptr.vmem [resolvable:$true] %s1170
          %1173 = dma.hbm_to_vmem [thread:$0]  %s1168, 16, %s1171, %s1161
        $region80: #{mca_ed_forward.3} parent=39 // pred_fallthru
          _
        // Predicated region
        $region81: #{mca_ed_forward.3} parent=39 // pred_check
          %p1174 = pneg %p521
        $region82: #{mca_ed_forward.3} parent=39 // pred_check_branch
          %1176 = sbr.rel (%p1174) target = $region84
        $region83: #{mca_ed_forward.3} parent=39 // pred_region
          %p1177 = scmp.lt.s32.totalorder %s111, 1
          %s1178 = scalar_select %p1177, %s111, 1
          %s1179 = smul.addr %s1178, 16
          %s1180 = smul.addr %s1179, 8
          %s1181 = scalar_lea.vmem %s33, %s1180
        $region84: #{mca_ed_forward.3} parent=39 // pred_fallthru
          _
        // Predicated region
        $region85: #{mca_ed_forward.3} parent=39 // pred_check
          %p1182 = pneg %p547
        $region86: #{mca_ed_forward.3} parent=39 // pred_check_branch
          %1184 = sbr.rel (%p1182) target = $region88
        $region87: #{mca_ed_forward.3} parent=39 // pred_region
          %s1185 = sand.u32 %s103, 1
          %s1186 = scalar_lea.sflag [#allocation6], %s1185
          %s1187 = sand.u32 %s537, 1
          %s1188 = scalar_lea.vmem [#allocation7], %s1187
          %s1190 = ssub.s32 16, 16
          %1191 = vsyncadd %s1186, %s1190
          %s1192 = smul.addr %s111, 16
          %s1193 = scalar_lea.hbm %s35, %s1192
          %s1195 = sshll.u32 %s1188, 4
          %s1196 = int_to_ptr.vmem [resolvable:$true] %s1195
          %1198 = dma.hbm_to_vmem [thread:$0]  %s1193, 16, %s1196, %s1186
        $region88: #{mca_ed_forward.3} parent=39 // pred_fallthru
          _
        // Predicated region
        $region89: #{mca_ed_forward.3} parent=39 // pred_check
          %p1199 = pneg %p573
        $region90: #{mca_ed_forward.3} parent=39 // pred_check_branch
          %1201 = sbr.rel (%p1199) target = $region92
        $region91: #{mca_ed_forward.3} parent=39 // pred_region
          %s1202 = sand.u32 %s103, 1
          %s1203 = scalar_lea.sflag [#allocation9], %s1202
          %s1204 = sand.u32 %s563, 1
          %s1205 = scalar_lea.vmem [#allocation8], %s1204
          %s1207 = ssub.s32 16, 16
          %1208 = vsyncadd %s1203, %s1207
          %s1209 = smul.addr %s111, 16
          %s1210 = scalar_lea.hbm %s37, %s1209
          %s1212 = sshll.u32 %s1205, 4
          %s1213 = int_to_ptr.vmem [resolvable:$true] %s1212
          %1215 = dma.hbm_to_vmem [thread:$0]  %s1210, 16, %s1213, %s1203
        $region92: #{mca_ed_forward.3} parent=39 // pred_fallthru
          _
        // Predicated region
        $region93: #{mca_ed_forward.3} parent=39 // pred_check
          %p1216 = pneg %p599
        $region94: #{mca_ed_forward.3} parent=39 // pred_check_branch
          %1218 = sbr.rel (%p1216) target = $region96
        $region95: #{mca_ed_forward.3} parent=39 // pred_region
          %s1219 = sand.u32 %s103, 1
          %s1220 = scalar_lea.sflag [#allocation9], %s1219
          %s1221 = sand.u32 %s589, 1
          %s1222 = scalar_lea.vmem [#allocation10], %s1221
          %s1224 = ssub.s32 16, 16
          %1225 = vsyncadd %s1220, %s1224
          %s1226 = smul.addr %s111, 16
          %s1227 = scalar_lea.hbm %s39, %s1226
          %s1229 = sshll.u32 %s1222, 4
          %s1230 = int_to_ptr.vmem [resolvable:$true] %s1229
          %1232 = dma.hbm_to_vmem [thread:$0]  %s1227, 16, %s1230, %s1220
        $region96: #{mca_ed_forward.3} parent=39 // pred_fallthru
          _
        // Predicated region
        $region97: #{mca_ed_forward.3} parent=39 // pred_check
          %p1233 = pneg %p625
        $region98: #{mca_ed_forward.3} parent=39 // pred_check_branch
          %1235 = sbr.rel (%p1233) target = $region100
        $region99: #{mca_ed_forward.3} parent=39 // pred_region
          %p1236 = scmp.lt.s32.totalorder %s111, 1
          %s1237 = scalar_select %p1236, %s111, 1
          %s1238 = smul.addr %s1237, 16
          %s1239 = smul.addr %s1238, 8
          %s1240 = scalar_lea.vmem %s41, %s1239
        $region100: #{mca_ed_forward.3} parent=39 // pred_fallthru
          _
        // Predicated region
        $region101: #{mca_ed_forward.3} parent=39 // pred_check
          %p1241 = pneg %p651
        $region102: #{mca_ed_forward.3} parent=39 // pred_check_branch
          %1243 = sbr.rel (%p1241) target = $region104
        $region103: #{mca_ed_forward.3} parent=39 // pred_region
          %s1244 = sand.u32 %s103, 1
          %s1245 = scalar_lea.sflag [#allocation12], %s1244
          %s1246 = sand.u32 %s641, 1
          %s1247 = scalar_lea.vmem [#allocation11], %s1246
          %s1249 = ssub.s32 16, 16
          %1250 = vsyncadd %s1245, %s1249
          %s1251 = smul.addr %s111, 16
          %s1252 = scalar_lea.hbm %s43, %s1251
          %s1254 = sshll.u32 %s1247, 4
          %s1255 = int_to_ptr.vmem [resolvable:$true] %s1254
          %1257 = dma.hbm_to_vmem [thread:$0]  %s1252, 16, %s1255, %s1245
        $region104: #{mca_ed_forward.3} parent=39 // pred_fallthru
          _
        // Predicated region
        $region105: #{mca_ed_forward.3} parent=39 // pred_check
          %p1258 = pneg %p677
        $region106: #{mca_ed_forward.3} parent=39 // pred_check_branch
          %1260 = sbr.rel (%p1258) target = $region108
        $region107: #{mca_ed_forward.3} parent=39 // pred_region
          %p1261 = scmp.lt.s32.totalorder %s111, 1
          %s1262 = scalar_select %p1261, %s111, 1
          %s1263 = smul.addr %s1262, 16
          %s1264 = smul.addr %s1263, 8
          %s1265 = scalar_lea.vmem %s45, %s1264
        $region108: #{mca_ed_forward.3} parent=39 // pred_fallthru
          _
        // Predicated region
        $region109: #{mca_ed_forward.3} parent=39 // pred_check
          %p1266 = pneg %p703
        $region110: #{mca_ed_forward.3} parent=39 // pred_check_branch
          %1268 = sbr.rel (%p1266) target = $region112
        $region111: #{mca_ed_forward.3} parent=39 // pred_region
          %s1269 = sand.u32 %s103, 1
          %s1270 = scalar_lea.sflag [#allocation12], %s1269
          %s1271 = sand.u32 %s693, 1
          %s1272 = scalar_lea.vmem [#allocation13], %s1271
          %s1274 = ssub.s32 16, 16
          %1275 = vsyncadd %s1270, %s1274
          %s1276 = smul.addr %s111, 16
          %s1277 = scalar_lea.hbm %s47, %s1276
          %s1279 = sshll.u32 %s1272, 4
          %s1280 = int_to_ptr.vmem [resolvable:$true] %s1279
          %1282 = dma.hbm_to_vmem [thread:$0]  %s1277, 16, %s1280, %s1270
        $region112: #{mca_ed_forward.3} parent=39 // pred_fallthru
          _
        // Predicated region
        $region113: #{mca_ed_forward.3} parent=39 // pred_check
          %p1283 = pneg %p729
        $region114: #{mca_ed_forward.3} parent=39 // pred_check_branch
          %1285 = sbr.rel (%p1283) target = $region116
        $region115: #{mca_ed_forward.3} parent=39 // pred_region
          %p1286 = scmp.lt.s32.totalorder %s111, 1
          %s1287 = scalar_select %p1286, %s111, 1
          %s1288 = smul.addr %s1287, 16
          %s1289 = smul.addr %s1288, 8
          %s1290 = scalar_lea.vmem %s49, %s1289
        $region116: #{mca_ed_forward.3} parent=39 // pred_fallthru
          _
        // Predicated region
        $region117: #{mca_ed_forward.3} parent=39 // pred_check
          %p1291 = pneg %p755
        $region118: #{mca_ed_forward.3} parent=39 // pred_check_branch
          %1293 = sbr.rel (%p1291) target = $region120
        $region119: #{mca_ed_forward.3} parent=39 // pred_region
          %s1294 = sand.u32 %s103, 1
          %s1295 = scalar_lea.sflag [#allocation15], %s1294
          %s1296 = sand.u32 %s745, 1
          %s1297 = scalar_lea.vmem [#allocation14], %s1296
          %s1299 = ssub.s32 16, 16
          %1300 = vsyncadd %s1295, %s1299
          %s1301 = smul.addr %s111, 16
          %s1302 = scalar_lea.hbm %s51, %s1301
          %s1304 = sshll.u32 %s1297, 4
          %s1305 = int_to_ptr.vmem [resolvable:$true] %s1304
          %1307 = dma.hbm_to_vmem [thread:$0]  %s1302, 16, %s1305, %s1295
        $region120: #{mca_ed_forward.3} parent=39 // pred_fallthru
          _
        // Predicated region
        $region121: #{mca_ed_forward.3} parent=39 // pred_check
          %p1308 = pneg %p781
        $region122: #{mca_ed_forward.3} parent=39 // pred_check_branch
          %1310 = sbr.rel (%p1308) target = $region124
        $region123: #{mca_ed_forward.3} parent=39 // pred_region
          %p1311 = scmp.lt.s32.totalorder %s111, 1
          %s1312 = scalar_select %p1311, %s111, 1
          %s1313 = smul.addr %s1312, 16
          %s1314 = smul.addr %s1313, 8
          %s1315 = scalar_lea.vmem %s53, %s1314
        $region124: #{mca_ed_forward.3} parent=39 // pred_fallthru
          _
        // Predicated region
        $region125: #{mca_ed_forward.3} parent=39 // pred_check
          %p1316 = pneg %p807
        $region126: #{mca_ed_forward.3} parent=39 // pred_check_branch
          %1318 = sbr.rel (%p1316) target = $region128
        $region127: #{mca_ed_forward.3} parent=39 // pred_region
          %s1319 = sand.u32 %s103, 1
          %s1320 = scalar_lea.sflag [#allocation15], %s1319
          %s1321 = sand.u32 %s797, 1
          %s1322 = scalar_lea.vmem [#allocation16], %s1321
          %s1324 = ssub.s32 16, 16
          %1325 = vsyncadd %s1320, %s1324
          %s1326 = smul.addr %s111, 16
          %s1327 = scalar_lea.hbm %s55, %s1326
          %s1329 = sshll.u32 %s1322, 4
          %s1330 = int_to_ptr.vmem [resolvable:$true] %s1329
          %1332 = dma.hbm_to_vmem [thread:$0]  %s1327, 16, %s1330, %s1320
        $region128: #{mca_ed_forward.3} parent=39 // pred_fallthru
          _
        // Predicated region
        $region129: #{mca_ed_forward.3} parent=39 // pred_check
          %p1333 = pneg %p833
        $region130: #{mca_ed_forward.3} parent=39 // pred_check_branch
          %1335 = sbr.rel (%p1333) target = $region132
        $region131: #{mca_ed_forward.3} parent=39 // pred_region
          %s1336 = sand.u32 %s103, 1
          %s1337 = scalar_lea.sflag [#allocation18], %s1336
          %s1338 = sand.u32 %s823, 1
          %s1339 = scalar_lea.vmem [#allocation17], %s1338
          %s1341 = ssub.s32 16, 16
          %1342 = vsyncadd %s1337, %s1341
          %s1343 = smul.addr %s111, 16
          %s1344 = scalar_lea.hbm %s57, %s1343
          %s1346 = sshll.u32 %s1339, 4
          %s1347 = int_to_ptr.vmem [resolvable:$true] %s1346
          %1349 = dma.hbm_to_vmem [thread:$0]  %s1344, 16, %s1347, %s1337
        $region132: #{mca_ed_forward.3} parent=39 // pred_fallthru
          _
        // Predicated region
        $region133: #{mca_ed_forward.3} parent=39 // pred_check
          %p1350 = pneg %p859
        $region134: #{mca_ed_forward.3} parent=39 // pred_check_branch
          %1352 = sbr.rel (%p1350) target = $region136
        $region135: #{mca_ed_forward.3} parent=39 // pred_region
          %s1353 = sand.u32 %s103, 1
          %s1354 = scalar_lea.sflag [#allocation18], %s1353
          %s1355 = sand.u32 %s849, 1
          %s1356 = scalar_lea.vmem [#allocation19], %s1355
          %s1358 = ssub.s32 16, 16
          %1359 = vsyncadd %s1354, %s1358
          %s1360 = smul.addr %s111, 16
          %s1361 = scalar_lea.hbm %s59, %s1360
          %s1363 = sshll.u32 %s1356, 4
          %s1364 = int_to_ptr.vmem [resolvable:$true] %s1363
          %1366 = dma.hbm_to_vmem [thread:$0]  %s1361, 16, %s1364, %s1354
        $region136: #{mca_ed_forward.3} parent=39 // pred_fallthru
          _
        // Predicated region
        $region137: #{mca_ed_forward.3} parent=39 // pred_check
          %p1367 = pneg %p885
        $region138: #{mca_ed_forward.3} parent=39 // pred_check_branch
          %1369 = sbr.rel (%p1367) target = $region140
        $region139: #{mca_ed_forward.3} parent=39 // pred_region
          %p1370 = scmp.lt.s32.totalorder %s111, 1
          %s1371 = scalar_select %p1370, %s111, 1
          %s1372 = smul.addr %s1371, 64
          %s1373 = smul.addr %s1372, 8
          %s1374 = scalar_lea.vmem %s61, %s1373
        $region140: #{mca_ed_forward.3} parent=39 // pred_fallthru
          _
        // Predicated region
        $region141: #{mca_ed_forward.3} parent=39 // pred_check
          %p1375 = pneg %p911
        $region142: #{mca_ed_forward.3} parent=39 // pred_check_branch
          %1377 = sbr.rel (%p1375) target = $region144
        $region143: #{mca_ed_forward.3} parent=39 // pred_region
          %p1378 = scmp.lt.s32.totalorder %s111, 1
          %s1379 = scalar_select %p1378, %s111, 1
          %s1380 = smul.addr %s1379, 4
          %s1381 = scalar_lea.vmem %s63, %s1380
        $region144: #{mca_ed_forward.3} parent=39 // pred_fallthru
          _
        // Predicated region
        $region145: #{mca_ed_forward.3} parent=39 // pred_check
          %p1382 = pneg %p937
        $region146: #{mca_ed_forward.3} parent=39 // pred_check_branch
          %1384 = sbr.rel (%p1382) target = $region148
        $region147: #{mca_ed_forward.3} parent=39 // pred_region
          %p1385 = scmp.lt.s32.totalorder %s111, 1
          %s1386 = scalar_select %p1385, %s111, 1
          %s1387 = smul.addr %s1386, 64
          %s1388 = smul.addr %s1387, 8
          %s1389 = scalar_lea.vmem %s65, %s1388
        $region148: #{mca_ed_forward.3} parent=39 // pred_fallthru
          _
        // Predicated region
        $region149: #{mca_ed_forward.3} parent=39 // pred_check
          %p1390 = pneg %p963
        $region150: #{mca_ed_forward.3} parent=39 // pred_check_branch
          %1392 = sbr.rel (%p1390) target = $region152
        $region151: #{mca_ed_forward.3} parent=39 // pred_region
          %s1393 = sand.u32 %s103, 1
          %s1394 = scalar_lea.sflag [#allocation21], %s1393
          %s1395 = sand.u32 %s953, 1
          %s1396 = scalar_lea.vmem [#allocation20], %s1395
          %s1398 = ssub.s32 16, 16
          %1399 = vsyncadd %s1394, %s1398
          %s1400 = smul.addr %s111, 16
          %s1401 = scalar_lea.hbm %s67, %s1400
          %s1403 = sshll.u32 %s1396, 4
          %s1404 = int_to_ptr.vmem [resolvable:$true] %s1403
          %1406 = dma.hbm_to_vmem [thread:$0]  %s1401, 16, %s1404, %s1394
        $region152: #{mca_ed_forward.3} parent=39 // pred_fallthru
          _
        // Predicated region
        $region153: #{mca_ed_forward.3} parent=39 // pred_check
          %p1407 = pneg %p989
        $region154: #{mca_ed_forward.3} parent=39 // pred_check_branch
          %1409 = sbr.rel (%p1407) target = $region156
        $region155: #{mca_ed_forward.3} parent=39 // pred_region
          %s1410 = sand.u32 %s103, 1
          %s1411 = scalar_lea.sflag [#allocation21], %s1410
          %s1412 = sand.u32 %s979, 1
          %s1413 = scalar_lea.vmem [#allocation22], %s1412
          %s1415 = ssub.s32 16, 16
          %1416 = vsyncadd %s1411, %s1415
          %s1417 = smul.addr %s111, 16
          %s1418 = scalar_lea.hbm %s69, %s1417
          %s1420 = sshll.u32 %s1413, 4
          %s1421 = int_to_ptr.vmem [resolvable:$true] %s1420
          %1423 = dma.hbm_to_vmem [thread:$0]  %s1418, 16, %s1421, %s1411
        $region156: #{mca_ed_forward.3} parent=39 // pred_fallthru
          _
        // Predicated region
        $region157: #{mca_ed_forward.3} parent=39 // pred_check
          %p1424 = pneg %p1015
        $region158: #{mca_ed_forward.3} parent=39 // pred_check_branch
          %1426 = sbr.rel (%p1424) target = $region160
        $region159: #{mca_ed_forward.3} parent=39 // pred_region
          %s1427 = sand.u32 %s1005, 1
          %s1428 = scalar_lea.sflag [#allocation24], %s1427
          %s1429 = sand.u32 %s1005, 1
          %s1430 = scalar_lea.vmem [#allocation23], %s1429
          %s1432 = ssub.s32 16, 16
          %1433 = vsyncadd %s1428, %s1432
          %s1434 = smul.addr %s111, 16
          %s1435 = scalar_lea.hbm %s71, %s1434
          %s1437 = sshll.u32 %s1430, 4
          %s1438 = int_to_ptr.vmem [resolvable:$true] %s1437
          %1440 = dma.hbm_to_vmem [thread:$0]  %s1435, 16, %s1438, %s1428
        $region160: #{mca_ed_forward.3} parent=39 // pred_fallthru
          _
      $region40: #{mca_ed_forward.3} parent=5 // pred_fallthru
        _
      %p1441 = scmp.le.s32.totalorder 1, %s103
      %p1442 = scmp.lt.s32.totalorder %s103, 5
      %p1443 = pnand %p1441, %p1442
      %p1444 = pneg %p1443
      // Predicated region
      $region161: #{mca_ed_forward.3} parent=5 // pred_check
        _
      $region162: #{mca_ed_forward.3} parent=5 // pred_check_branch
        %1446 = sbr.rel (%p1443) target = $region164
      $region163: #{mca_ed_forward.3} parent=5 // pred_region
        %s1447 = ssub.s32 %s103, 1
        %s1448 = sand.u32 %s384, 1
        %s1449 = scalar_lea.sflag [#allocation4], %s1448
        %s1450 = sand.u32 %s384, 1
        %s1451 = scalar_lea.vmem [#allocation3], %s1450
        // Predicated region
        $region165: #{mca_ed_forward.3} parent=163 // pred_check
          %p1452 = pneg %p397
        $region166: #{mca_ed_forward.3} parent=163 // pred_check_branch
          %1454 = sbr.rel (%p1452) target = $region168
        $region167: #{mca_ed_forward.3} parent=163 // pred_region
          %1455 = dma.done %s1449, 16
        $region168: #{mca_ed_forward.3} parent=163 // pred_fallthru
          _
        %s1456 = sand.u32 %s108, 1
        %s1457 = scalar_lea.sflag [#allocation6], %s1456
        %s1458 = sand.u32 %s488, 1
        %s1459 = scalar_lea.vmem [#allocation5], %s1458
        // Predicated region
        $region169: #{mca_ed_forward.3} parent=163 // pred_check
          %p1460 = pneg %p501
        $region170: #{mca_ed_forward.3} parent=163 // pred_check_branch
          %1462 = sbr.rel (%p1460) target = $region172
        $region171: #{mca_ed_forward.3} parent=163 // pred_region
          %1463 = dma.done %s1457, 16
        $region172: #{mca_ed_forward.3} parent=163 // pred_fallthru
          _
        %s1464 = sand.u32 %s108, 1
        %s1465 = scalar_lea.sflag [#allocation6], %s1464
        %s1466 = sand.u32 %s540, 1
        %s1467 = scalar_lea.vmem [#allocation7], %s1466
        // Predicated region
        $region173: #{mca_ed_forward.3} parent=163 // pred_check
          %p1468 = pneg %p553
        $region174: #{mca_ed_forward.3} parent=163 // pred_check_branch
          %1470 = sbr.rel (%p1468) target = $region176
        $region175: #{mca_ed_forward.3} parent=163 // pred_region
          %1471 = dma.done %s1465, 16
        $region176: #{mca_ed_forward.3} parent=163 // pred_fallthru
          _
        %s1472 = sand.u32 %s108, 1
        %s1473 = scalar_lea.sflag [#allocation9], %s1472
        %s1474 = sand.u32 %s566, 1
        %s1475 = scalar_lea.vmem [#allocation8], %s1474
        // Predicated region
        $region177: #{mca_ed_forward.3} parent=163 // pred_check
          %p1476 = pneg %p579
        $region178: #{mca_ed_forward.3} parent=163 // pred_check_branch
          %1478 = sbr.rel (%p1476) target = $region180
        $region179: #{mca_ed_forward.3} parent=163 // pred_region
          %1479 = dma.done %s1473, 16
        $region180: #{mca_ed_forward.3} parent=163 // pred_fallthru
          _
        %s1480 = sand.u32 %s108, 1
        %s1481 = scalar_lea.sflag [#allocation9], %s1480
        %s1482 = sand.u32 %s592, 1
        %s1483 = scalar_lea.vmem [#allocation10], %s1482
        // Predicated region
        $region181: #{mca_ed_forward.3} parent=163 // pred_check
          %p1484 = pneg %p605
        $region182: #{mca_ed_forward.3} parent=163 // pred_check_branch
          %1486 = sbr.rel (%p1484) target = $region184
        $region183: #{mca_ed_forward.3} parent=163 // pred_region
          %1487 = dma.done %s1481, 16
        $region184: #{mca_ed_forward.3} parent=163 // pred_fallthru
          _
        %s1488 = sand.u32 %s108, 1
        %s1489 = scalar_lea.sflag [#allocation12], %s1488
        %s1490 = sand.u32 %s644, 1
        %s1491 = scalar_lea.vmem [#allocation11], %s1490
        // Predicated region
        $region185: #{mca_ed_forward.3} parent=163 // pred_check
          %p1492 = pneg %p657
        $region186: #{mca_ed_forward.3} parent=163 // pred_check_branch
          %1494 = sbr.rel (%p1492) target = $region188
        $region187: #{mca_ed_forward.3} parent=163 // pred_region
          %1495 = dma.done %s1489, 16
        $region188: #{mca_ed_forward.3} parent=163 // pred_fallthru
          _
        %s1496 = sand.u32 %s108, 1
        %s1497 = scalar_lea.sflag [#allocation12], %s1496
        %s1498 = sand.u32 %s696, 1
        %s1499 = scalar_lea.vmem [#allocation13], %s1498
        // Predicated region
        $region189: #{mca_ed_forward.3} parent=163 // pred_check
          %p1500 = pneg %p709
        $region190: #{mca_ed_forward.3} parent=163 // pred_check_branch
          %1502 = sbr.rel (%p1500) target = $region192
        $region191: #{mca_ed_forward.3} parent=163 // pred_region
          %1503 = dma.done %s1497, 16
        $region192: #{mca_ed_forward.3} parent=163 // pred_fallthru
          _
        %s1504 = sand.u32 %s108, 1
        %s1505 = scalar_lea.sflag [#allocation15], %s1504
        %s1506 = sand.u32 %s748, 1
        %s1507 = scalar_lea.vmem [#allocation14], %s1506
        // Predicated region
        $region193: #{mca_ed_forward.3} parent=163 // pred_check
          %p1508 = pneg %p761
        $region194: #{mca_ed_forward.3} parent=163 // pred_check_branch
          %1510 = sbr.rel (%p1508) target = $region196
        $region195: #{mca_ed_forward.3} parent=163 // pred_region
          %1511 = dma.done %s1505, 16
        $region196: #{mca_ed_forward.3} parent=163 // pred_fallthru
          _
        %s1512 = sand.u32 %s108, 1
        %s1513 = scalar_lea.sflag [#allocation15], %s1512
        %s1514 = sand.u32 %s800, 1
        %s1515 = scalar_lea.vmem [#allocation16], %s1514
        // Predicated region
        $region197: #{mca_ed_forward.3} parent=163 // pred_check
          %p1516 = pneg %p813
        $region198: #{mca_ed_forward.3} parent=163 // pred_check_branch
          %1518 = sbr.rel (%p1516) target = $region200
        $region199: #{mca_ed_forward.3} parent=163 // pred_region
          %1519 = dma.done %s1513, 16
        $region200: #{mca_ed_forward.3} parent=163 // pred_fallthru
          _
        %s1520 = sand.u32 %s108, 1
        %s1521 = scalar_lea.sflag [#allocation18], %s1520
        %s1522 = sand.u32 %s826, 1
        %s1523 = scalar_lea.vmem [#allocation17], %s1522
        // Predicated region
        $region201: #{mca_ed_forward.3} parent=163 // pred_check
          %p1524 = pneg %p839
        $region202: #{mca_ed_forward.3} parent=163 // pred_check_branch
          %1526 = sbr.rel (%p1524) target = $region204
        $region203: #{mca_ed_forward.3} parent=163 // pred_region
          %1527 = dma.done %s1521, 16
        $region204: #{mca_ed_forward.3} parent=163 // pred_fallthru
          _
        %s1528 = sand.u32 %s108, 1
        %s1529 = scalar_lea.sflag [#allocation18], %s1528
        %s1530 = sand.u32 %s852, 1
        %s1531 = scalar_lea.vmem [#allocation19], %s1530
        // Predicated region
        $region205: #{mca_ed_forward.3} parent=163 // pred_check
          %p1532 = pneg %p865
        $region206: #{mca_ed_forward.3} parent=163 // pred_check_branch
          %1534 = sbr.rel (%p1532) target = $region208
        $region207: #{mca_ed_forward.3} parent=163 // pred_region
          %1535 = dma.done %s1529, 16
        $region208: #{mca_ed_forward.3} parent=163 // pred_fallthru
          _
        %s1536 = sand.u32 %s108, 1
        %s1537 = scalar_lea.sflag [#allocation21], %s1536
        %s1538 = sand.u32 %s956, 1
        %s1539 = scalar_lea.vmem [#allocation20], %s1538
        // Predicated region
        $region209: #{mca_ed_forward.3} parent=163 // pred_check
          %p1540 = pneg %p969
        $region210: #{mca_ed_forward.3} parent=163 // pred_check_branch
          %1542 = sbr.rel (%p1540) target = $region212
        $region211: #{mca_ed_forward.3} parent=163 // pred_region
          %1543 = dma.done %s1537, 16
        $region212: #{mca_ed_forward.3} parent=163 // pred_fallthru
          _
        %s1544 = sand.u32 %s108, 1
        %s1545 = scalar_lea.sflag [#allocation21], %s1544
        %s1546 = sand.u32 %s982, 1
        %s1547 = scalar_lea.vmem [#allocation22], %s1546
        // Predicated region
        $region213: #{mca_ed_forward.3} parent=163 // pred_check
          %p1548 = pneg %p995
        $region214: #{mca_ed_forward.3} parent=163 // pred_check_branch
          %1550 = sbr.rel (%p1548) target = $region216
        $region215: #{mca_ed_forward.3} parent=163 // pred_region
          %1551 = dma.done %s1545, 16
        $region216: #{mca_ed_forward.3} parent=163 // pred_fallthru
          _
        %s1552 = sand.u32 %s1008, 1
        %s1553 = scalar_lea.sflag [#allocation24], %s1552
        %s1554 = sand.u32 %s1008, 1
        %s1555 = scalar_lea.vmem [#allocation23], %s1554
        // Predicated region
        $region217: #{mca_ed_forward.3} parent=163 // pred_check
          %p1556 = pneg %p1021
        $region218: #{mca_ed_forward.3} parent=163 // pred_check_branch
          %1558 = sbr.rel (%p1556) target = $region220
        $region219: #{mca_ed_forward.3} parent=163 // pred_region
          %1559 = dma.done %s1553, 16
        $region220: #{mca_ed_forward.3} parent=163 // pred_fallthru
          _
        %p1560 = scmp.lt.s32.totalorder %s112, 1
        %s1561 = scalar_select %p1560, %s112, 1
        %s1562 = smul.addr %s1561, 8
        %s1563 = scalar_lea.vmem %s1, %s1562
        %p1564 = pneg %p141
        %p1565 = pneg %p138
        %p1566 = scmp.lt.s32.totalorder %s112, 1
        %s1567 = scalar_select %p1566, %s112, 1
        %s1568 = smul.addr %s1567, 8
        %s1569 = scalar_lea.vmem %s3, %s1568
        %p1570 = pneg %p167
        %p1571 = pneg %p164
        %p1572 = scmp.lt.s32.totalorder %s112, 1
        %s1573 = scalar_select %p1572, %s112, 1
        %s1574 = scalar_lea.vmem %s5, %s1573
        %p1575 = pneg %p193
        %p1576 = pneg %p190
        %p1577 = scmp.lt.s32.totalorder %s112, 1
        %s1578 = scalar_select %p1577, %s112, 1
        %s1579 = scalar_lea.vmem %s7, %s1578
        %p1580 = pneg %p219
        %p1581 = pneg %p216
        %p1582 = pneg %p240
        %p1583 = pneg %p237
        %p1584 = pneg %p261
        %p1585 = pneg %p258
        %p1586 = pneg %p282
        %p1587 = pneg %p279
        %p1588 = pneg %p303
        %p1589 = pneg %p300
        %p1590 = pneg %p324
        %p1591 = pneg %p321
        %p1592 = pneg %p345
        %p1593 = pneg %p342
        %p1594 = scmp.lt.s32.totalorder %s113, 1
        %s1595 = scalar_select %p1594, %s113, 1
        %s1596 = smul.addr %s1595, 16
        %s1597 = smul.addr %s1596, 8
        %s1598 = scalar_lea.vmem %s21, %s1597
        %p1599 = pneg %p371
        %p1600 = pneg %p368
        %s1601 = sand.u32 %s384, 1
        %s1602 = scalar_lea.sflag [#allocation4], %s1601
        %s1603 = sand.u32 %s384, 1
        %s1604 = scalar_lea.vmem [#allocation3], %s1603
        %p1605 = pneg %p397
        %p1606 = pneg %p394
        %p1607 = scmp.lt.s32.totalorder %s113, 1
        %s1608 = scalar_select %p1607, %s113, 1
        %s1609 = smul.addr %s1608, 16
        %s1610 = smul.addr %s1609, 8
        %s1611 = scalar_lea.vmem %s25, %s1610
        %p1612 = pneg %p423
        %p1613 = pneg %p420
        %p1614 = scmp.lt.s32.totalorder %s113, 1
        %s1615 = scalar_select %p1614, %s113, 1
        %s1616 = scalar_lea.vmem %s27, %s1615
        %p1617 = pneg %p449
        %p1618 = pneg %p446
        %p1619 = scmp.lt.s32.totalorder %s113, 1
        %s1620 = scalar_select %p1619, %s113, 1
        %s1621 = smul.addr %s1620, 16
        %s1622 = smul.addr %s1621, 8
        %s1623 = scalar_lea.vmem %s29, %s1622
        %p1624 = pneg %p475
        %p1625 = pneg %p472
        %s1626 = sand.u32 %s108, 1
        %s1627 = scalar_lea.sflag [#allocation6], %s1626
        %s1628 = sand.u32 %s488, 1
        %s1629 = scalar_lea.vmem [#allocation5], %s1628
        %p1630 = pneg %p501
        %p1631 = pneg %p498
        %p1632 = scmp.lt.s32.totalorder %s113, 1
        %s1633 = scalar_select %p1632, %s113, 1
        %s1634 = smul.addr %s1633, 16
        %s1635 = smul.addr %s1634, 8
        %s1636 = scalar_lea.vmem %s33, %s1635
        %p1637 = pneg %p527
        %p1638 = pneg %p524
        %s1639 = sand.u32 %s108, 1
        %s1640 = scalar_lea.sflag [#allocation6], %s1639
        %s1641 = sand.u32 %s540, 1
        %s1642 = scalar_lea.vmem [#allocation7], %s1641
        %p1643 = pneg %p553
        %p1644 = pneg %p550
        %s1645 = sand.u32 %s108, 1
        %s1646 = scalar_lea.sflag [#allocation9], %s1645
        %s1647 = sand.u32 %s566, 1
        %s1648 = scalar_lea.vmem [#allocation8], %s1647
        %p1649 = pneg %p579
        %p1650 = pneg %p576
        %s1651 = sand.u32 %s108, 1
        %s1652 = scalar_lea.sflag [#allocation9], %s1651
        %s1653 = sand.u32 %s592, 1
        %s1654 = scalar_lea.vmem [#allocation10], %s1653
        %p1655 = pneg %p605
        %p1656 = pneg %p602
        %p1657 = scmp.lt.s32.totalorder %s113, 1
        %s1658 = scalar_select %p1657, %s113, 1
        %s1659 = smul.addr %s1658, 16
        %s1660 = smul.addr %s1659, 8
        %s1661 = scalar_lea.vmem %s41, %s1660
        %p1662 = pneg %p631
        %p1663 = pneg %p628
        %s1664 = sand.u32 %s108, 1
        %s1665 = scalar_lea.sflag [#allocation12], %s1664
        %s1666 = sand.u32 %s644, 1
        %s1667 = scalar_lea.vmem [#allocation11], %s1666
        %p1668 = pneg %p657
        %p1669 = pneg %p654
        %p1670 = scmp.lt.s32.totalorder %s113, 1
        %s1671 = scalar_select %p1670, %s113, 1
        %s1672 = smul.addr %s1671, 16
        %s1673 = smul.addr %s1672, 8
        %s1674 = scalar_lea.vmem %s45, %s1673
        %p1675 = pneg %p683
        %p1676 = pneg %p680
        %s1677 = sand.u32 %s108, 1
        %s1678 = scalar_lea.sflag [#allocation12], %s1677
        %s1679 = sand.u32 %s696, 1
        %s1680 = scalar_lea.vmem [#allocation13], %s1679
        %p1681 = pneg %p709
        %p1682 = pneg %p706
        %p1683 = scmp.lt.s32.totalorder %s113, 1
        %s1684 = scalar_select %p1683, %s113, 1
        %s1685 = smul.addr %s1684, 16
        %s1686 = smul.addr %s1685, 8
        %s1687 = scalar_lea.vmem %s49, %s1686
        %p1688 = pneg %p735
        %p1689 = pneg %p732
        %s1690 = sand.u32 %s108, 1
        %s1691 = scalar_lea.sflag [#allocation15], %s1690
        %s1692 = sand.u32 %s748, 1
        %s1693 = scalar_lea.vmem [#allocation14], %s1692
        %p1694 = pneg %p761
        %p1695 = pneg %p758
        %p1696 = scmp.lt.s32.totalorder %s113, 1
        %s1697 = scalar_select %p1696, %s113, 1
        %s1698 = smul.addr %s1697, 16
        %s1699 = smul.addr %s1698, 8
        %s1700 = scalar_lea.vmem %s53, %s1699
        %p1701 = pneg %p787
        %p1702 = pneg %p784
        %s1703 = sand.u32 %s108, 1
        %s1704 = scalar_lea.sflag [#allocation15], %s1703
        %s1705 = sand.u32 %s800, 1
        %s1706 = scalar_lea.vmem [#allocation16], %s1705
        %p1707 = pneg %p813
        %p1708 = pneg %p810
        %s1709 = sand.u32 %s108, 1
        %s1710 = scalar_lea.sflag [#allocation18], %s1709
        %s1711 = sand.u32 %s826, 1
        %s1712 = scalar_lea.vmem [#allocation17], %s1711
        %p1713 = pneg %p839
        %p1714 = pneg %p836
        %s1715 = sand.u32 %s108, 1
        %s1716 = scalar_lea.sflag [#allocation18], %s1715
        %s1717 = sand.u32 %s852, 1
        %s1718 = scalar_lea.vmem [#allocation19], %s1717
        %p1719 = pneg %p865
        %p1720 = pneg %p862
        %p1721 = scmp.lt.s32.totalorder %s113, 1
        %s1722 = scalar_select %p1721, %s113, 1
        %s1723 = smul.addr %s1722, 64
        %s1724 = smul.addr %s1723, 8
        %s1725 = scalar_lea.vmem %s61, %s1724
        %p1726 = pneg %p891
        %p1727 = pneg %p888
        %p1728 = scmp.lt.s32.totalorder %s113, 1
        %s1729 = scalar_select %p1728, %s113, 1
        %s1730 = smul.addr %s1729, 4
        %s1731 = scalar_lea.vmem %s63, %s1730
        %p1732 = pneg %p917
        %p1733 = pneg %p914
        %p1734 = scmp.lt.s32.totalorder %s113, 1
        %s1735 = scalar_select %p1734, %s113, 1
        %s1736 = smul.addr %s1735, 64
        %s1737 = smul.addr %s1736, 8
        %s1738 = scalar_lea.vmem %s65, %s1737
        %p1739 = pneg %p943
        %p1740 = pneg %p940
        %s1741 = sand.u32 %s108, 1
        %s1742 = scalar_lea.sflag [#allocation21], %s1741
        %s1743 = sand.u32 %s956, 1
        %s1744 = scalar_lea.vmem [#allocation20], %s1743
        %p1745 = pneg %p969
        %p1746 = pneg %p966
        %s1747 = sand.u32 %s108, 1
        %s1748 = scalar_lea.sflag [#allocation21], %s1747
        %s1749 = sand.u32 %s982, 1
        %s1750 = scalar_lea.vmem [#allocation22], %s1749
        %p1751 = pneg %p995
        %p1752 = pneg %p992
        %s1753 = sand.u32 %s1008, 1
        %s1754 = scalar_lea.sflag [#allocation24], %s1753
        %s1755 = sand.u32 %s1008, 1
        %s1756 = scalar_lea.vmem [#allocation23], %s1755
        %p1757 = pneg %p1021
        %p1758 = pneg %p1018
        %p1759 = pneg %p1047
        %p1760 = pneg %p1044
        %p1761 = scmp.lt.s32.totalorder %s112, 1
        %s1762 = scalar_select %p1761, %s112, 1
        %s1763 = smul.addr %s1762, 8
        %s1764 = scalar_lea.vmem %s73, %s1763
        %p1765 = scmp.lt.s32.totalorder %s112, 1
        %s1766 = scalar_select %p1765, %s112, 1
        %s1767 = smul.addr %s1766, 8
        %s1768 = scalar_lea.vmem %s1, %s1767
        %p1769 = scmp.lt.s32.totalorder %s112, 1
        %s1770 = scalar_select %p1769, %s112, 1
        %s1771 = smul.addr %s1770, 8
        %s1772 = scalar_lea.vmem %s3, %s1771
        %p1773 = scmp.lt.s32.totalorder %s112, 1
        %s1774 = scalar_select %p1773, %s112, 1
        %s1775 = scalar_lea.vmem %s5, %s1774
        %p1776 = scmp.lt.s32.totalorder %s112, 1
        %s1777 = scalar_select %p1776, %s112, 1
        %s1778 = scalar_lea.vmem %s7, %s1777
        %p1779 = scmp.lt.s32.totalorder %s113, 1
        %s1780 = scalar_select %p1779, %s113, 1
        %s1781 = smul.addr %s1780, 16
        %s1782 = smul.addr %s1781, 8
        %s1783 = scalar_lea.vmem %s21, %s1782
        %p1784 = scmp.lt.s32.totalorder %s113, 1
        %s1785 = scalar_select %p1784, %s113, 1
        %s1786 = smul.addr %s1785, 16
        %s1787 = smul.addr %s1786, 8
        %s1788 = scalar_lea.vmem %s25, %s1787
        %p1789 = scmp.lt.s32.totalorder %s113, 1
        %s1790 = scalar_select %p1789, %s113, 1
        %s1791 = scalar_lea.vmem %s27, %s1790
        %p1792 = scmp.lt.s32.totalorder %s113, 1
        %s1793 = scalar_select %p1792, %s113, 1
        %s1794 = smul.addr %s1793, 16
        %s1795 = smul.addr %s1794, 8
        %s1796 = scalar_lea.vmem %s29, %s1795
        %p1797 = scmp.lt.s32.totalorder %s113, 1
        %s1798 = scalar_select %p1797, %s113, 1
        %s1799 = smul.addr %s1798, 16
        %s1800 = smul.addr %s1799, 8
        %s1801 = scalar_lea.vmem %s33, %s1800
        %p1802 = scmp.lt.s32.totalorder %s113, 1
        %s1803 = scalar_select %p1802, %s113, 1
        %s1804 = smul.addr %s1803, 16
        %s1805 = smul.addr %s1804, 8
        %s1806 = scalar_lea.vmem %s41, %s1805
        %p1807 = scmp.lt.s32.totalorder %s113, 1
        %s1808 = scalar_select %p1807, %s113, 1
        %s1809 = smul.addr %s1808, 16
        %s1810 = smul.addr %s1809, 8
        %s1811 = scalar_lea.vmem %s45, %s1810
        %p1812 = scmp.lt.s32.totalorder %s113, 1
        %s1813 = scalar_select %p1812, %s113, 1
        %s1814 = smul.addr %s1813, 16
        %s1815 = smul.addr %s1814, 8
        %s1816 = scalar_lea.vmem %s49, %s1815
        %p1817 = scmp.lt.s32.totalorder %s113, 1
        %s1818 = scalar_select %p1817, %s113, 1
        %s1819 = smul.addr %s1818, 16
        %s1820 = smul.addr %s1819, 8
        %s1821 = scalar_lea.vmem %s53, %s1820
        %p1822 = scmp.lt.s32.totalorder %s113, 1
        %s1823 = scalar_select %p1822, %s113, 1
        %s1824 = smul.addr %s1823, 64
        %s1825 = smul.addr %s1824, 8
        %s1826 = scalar_lea.vmem %s61, %s1825
        %p1827 = scmp.lt.s32.totalorder %s113, 1
        %s1828 = scalar_select %p1827, %s113, 1
        %s1829 = smul.addr %s1828, 4
        %s1830 = scalar_lea.vmem %s63, %s1829
        %p1831 = scmp.lt.s32.totalorder %s113, 1
        %s1832 = scalar_select %p1831, %s113, 1
        %s1833 = smul.addr %s1832, 64
        %s1834 = smul.addr %s1833, 8
        %s1835 = scalar_lea.vmem %s65, %s1834
        %p1836 = scmp.lt.s32.totalorder %s112, 1
        %s1837 = scalar_select %p1836, %s112, 1
        %s1838 = smul.addr %s1837, 8
        %s1839 = scalar_lea.vmem %s73, %s1838
        %p1840 = scmp.eq.s32.totalorder %s113, 0
        // Predicated region
        $region221: #{mca_ed_forward.3} parent=163 // pred_check
          %p1841 = pneg %p1840
        $region222: #{mca_ed_forward.3} parent=163 // pred_check_branch
          %1843 = sbr.rel (%p1841) target = $region224
        $region223: #{mca_ed_forward.3} parent=163 // pred_region
          %v1844 = vld [vmem:[%s1768] sm:$0x3f]
          %1845 = vst [vmem:[#allocation2] sm:$0x3f] %v1844
        $region224: #{mca_ed_forward.3} parent=163 // pred_fallthru
          _
        %v1846 = vld [vmem:[#allocation2] sm:$0x3f]
        %v1847 = vld [vmem:[%s17] sm:$0xff]
        %v1848 = vld [vmem:[%s17 + $0x8] sm:$0xff]
        %v1849 = vld [vmem:[%s17 + $0x10] sm:$0xff]
        %v1850 = vld [vmem:[%s17 + $0x18] sm:$0xff]
        %v1851 = vld [vmem:[%s17 + $0x20] sm:$0xff]
        %v1852 = vld [vmem:[%s17 + $0x28] sm:$0xff]
        %v1853 = vld [vmem:[%s17 + $0x30] sm:$0xff]
        %v1854 = vld [vmem:[%s17 + $0x38] sm:$0xff]
        %v1855 = vld [vmem:[%s17 + $0x40] sm:$0xff]
        %v1856 = vld [vmem:[%s17 + $0x48] sm:$0xff]
        %v1857 = vld [vmem:[%s17 + $0x50] sm:$0xff]
        %v1858 = vld [vmem:[%s17 + $0x58] sm:$0xff]
        %v1859 = vld [vmem:[%s17 + $0x60] sm:$0xff]
        %v1860 = vld [vmem:[%s17 + $0x68] sm:$0xff]
        %v1861 = vld [vmem:[%s17 + $0x70] sm:$0xff]
        %v1862 = vld [vmem:[%s17 + $0x78] sm:$0xff]
        %v1863 = vld [vmem:[%s19] sm:$0xff]
        %v1864 = vld [vmem:[%s19 + $0x8] sm:$0xff]
        %v1865 = vld [vmem:[%s19 + $0x10] sm:$0xff]
        %v1866 = vld [vmem:[%s19 + $0x18] sm:$0xff]
        %v1867 = vld [vmem:[%s19 + $0x20] sm:$0xff]
        %v1868 = vld [vmem:[%s19 + $0x28] sm:$0xff]
        %v1869 = vld [vmem:[%s19 + $0x30] sm:$0xff]
        %v1870 = vld [vmem:[%s19 + $0x38] sm:$0xff]
        %v1871 = vld [vmem:[%s19 + $0x40] sm:$0xff]
        %v1872 = vld [vmem:[%s19 + $0x48] sm:$0xff]
        %v1873 = vld [vmem:[%s19 + $0x50] sm:$0xff]
        %v1874 = vld [vmem:[%s19 + $0x58] sm:$0xff]
        %v1875 = vld [vmem:[%s19 + $0x60] sm:$0xff]
        %v1876 = vld [vmem:[%s19 + $0x68] sm:$0xff]
        %v1877 = vld [vmem:[%s19 + $0x70] sm:$0xff]
        %v1878 = vld [vmem:[%s19 + $0x78] sm:$0xff]
        %v1879 = vld [vmem:[%s9] sm:$0xff]
        %v1880 = vld [vmem:[%s9 + $0x8] sm:$0xff]
        %v1881 = vld [vmem:[%s9 + $0x10] sm:$0xff]
        %v1882 = vld [vmem:[%s9 + $0x18] sm:$0xff]
        %v1883 = vld [vmem:[%s9 + $0x20] sm:$0xff]
        %v1884 = vld [vmem:[%s9 + $0x28] sm:$0xff]
        %v1885 = vld [vmem:[%s9 + $0x30] sm:$0xff]
        %v1886 = vld [vmem:[%s9 + $0x38] sm:$0xff]
        %v1887 = vld [vmem:[%s9 + $0x40] sm:$0xff]
        %v1888 = vld [vmem:[%s9 + $0x48] sm:$0xff]
        %v1889 = vld [vmem:[%s9 + $0x50] sm:$0xff]
        %v1890 = vld [vmem:[%s9 + $0x58] sm:$0xff]
        %v1891 = vld [vmem:[%s11] sm:$0xff]
        %v1892 = vld [vmem:[%s11 + $0x8] sm:$0xff]
        %v1893 = vld [vmem:[%s11 + $0x10] sm:$0xff]
        %v1894 = vld [vmem:[%s11 + $0x18] sm:$0xff]
        %v1895 = vld [vmem:[%s11 + $0x20] sm:$0xff]
        %v1896 = vld [vmem:[%s11 + $0x28] sm:$0xff]
        %v1897 = vld [vmem:[%s11 + $0x30] sm:$0xff]
        %v1898 = vld [vmem:[%s11 + $0x38] sm:$0xff]
        %v1899 = vld [vmem:[%s11 + $0x40] sm:$0xff]
        %v1900 = vld [vmem:[%s11 + $0x48] sm:$0xff]
        %v1901 = vld [vmem:[%s11 + $0x50] sm:$0xff]
        %v1902 = vld [vmem:[%s11 + $0x58] sm:$0xff]
        %v1903 = vld [vmem:[%s13] sm:$0xff]
        %v1904 = vld [vmem:[%s13 + $0x8] sm:$0xff]
        %v1905 = vld [vmem:[%s13 + $0x10] sm:$0xff]
        %v1906 = vld [vmem:[%s13 + $0x18] sm:$0xff]
        %v1907 = vld [vmem:[%s13 + $0x20] sm:$0xff]
        %v1908 = vld [vmem:[%s13 + $0x28] sm:$0xff]
        %v1909 = vld [vmem:[%s13 + $0x30] sm:$0xff]
        %v1910 = vld [vmem:[%s13 + $0x38] sm:$0xff]
        %v1911 = vld [vmem:[%s13 + $0x40] sm:$0xff]
        %v1912 = vld [vmem:[%s13 + $0x48] sm:$0xff]
        %v1913 = vld [vmem:[%s13 + $0x50] sm:$0xff]
        %v1914 = vld [vmem:[%s13 + $0x58] sm:$0xff]
        %v1915 = vld [vmem:[%s15] sm:$0x3f]
        %v1916 = vld [vmem:[%s1775] sm:$0x1]
        %v1917 = vld [vmem:[%s1783] sm:$0xff]
        %v1918 = vld [vmem:[%s1783 + $0x8] sm:$0xff]
        %v1919 = vld [vmem:[%s1783 + $0x10] sm:$0xff]
        %v1920 = vld [vmem:[%s1783 + $0x18] sm:$0xff]
        %v1921 = vld [vmem:[%s1783 + $0x20] sm:$0xff]
        %v1922 = vld [vmem:[%s1783 + $0x28] sm:$0xff]
        %v1923 = vld [vmem:[%s1783 + $0x30] sm:$0xff]
        %v1924 = vld [vmem:[%s1783 + $0x38] sm:$0xff]
        %v1925 = vld [vmem:[%s1783 + $0x40] sm:$0xff]
        %v1926 = vld [vmem:[%s1783 + $0x48] sm:$0xff]
        %v1927 = vld [vmem:[%s1783 + $0x50] sm:$0xff]
        %v1928 = vld [vmem:[%s1783 + $0x58] sm:$0xff]
        %v1929 = vld [vmem:[%s1783 + $0x60] sm:$0xff]
        %v1930 = vld [vmem:[%s1783 + $0x68] sm:$0xff]
        %v1931 = vld [vmem:[%s1783 + $0x70] sm:$0xff]
        %v1932 = vld [vmem:[%s1783 + $0x78] sm:$0xff]
        %v1933 = vld [vmem:[%s1451] sm:$0x1]
        %v1934 = vld [vmem:[%s1788] sm:$0xff]
        %v1935 = vld [vmem:[%s1788 + $0x8] sm:$0xff]
        %v1936 = vld [vmem:[%s1788 + $0x10] sm:$0xff]
        %v1937 = vld [vmem:[%s1788 + $0x18] sm:$0xff]
        %v1938 = vld [vmem:[%s1788 + $0x20] sm:$0xff]
        %v1939 = vld [vmem:[%s1788 + $0x28] sm:$0xff]
        %v1940 = vld [vmem:[%s1788 + $0x30] sm:$0xff]
        %v1941 = vld [vmem:[%s1788 + $0x38] sm:$0xff]
        %v1942 = vld [vmem:[%s1788 + $0x40] sm:$0xff]
        %v1943 = vld [vmem:[%s1788 + $0x48] sm:$0xff]
        %v1944 = vld [vmem:[%s1788 + $0x50] sm:$0xff]
        %v1945 = vld [vmem:[%s1788 + $0x58] sm:$0xff]
        %v1946 = vld [vmem:[%s1788 + $0x60] sm:$0xff]
        %v1947 = vld [vmem:[%s1788 + $0x68] sm:$0xff]
        %v1948 = vld [vmem:[%s1788 + $0x70] sm:$0xff]
        %v1949 = vld [vmem:[%s1788 + $0x78] sm:$0xff]
        %v1950 = vld [vmem:[%s1791] sm:$0x1]
        %v1951 = vld [vmem:[%s1796] sm:$0xff]
        %v1952 = vld [vmem:[%s1796 + $0x8] sm:$0xff]
        %v1953 = vld [vmem:[%s1796 + $0x10] sm:$0xff]
        %v1954 = vld [vmem:[%s1796 + $0x18] sm:$0xff]
        %v1955 = vld [vmem:[%s1796 + $0x20] sm:$0xff]
        %v1956 = vld [vmem:[%s1796 + $0x28] sm:$0xff]
        %v1957 = vld [vmem:[%s1796 + $0x30] sm:$0xff]
        %v1958 = vld [vmem:[%s1796 + $0x38] sm:$0xff]
        %v1959 = vld [vmem:[%s1796 + $0x40] sm:$0xff]
        %v1960 = vld [vmem:[%s1796 + $0x48] sm:$0xff]
        %v1961 = vld [vmem:[%s1796 + $0x50] sm:$0xff]
        %v1962 = vld [vmem:[%s1796 + $0x58] sm:$0xff]
        %v1963 = vld [vmem:[%s1796 + $0x60] sm:$0xff]
        %v1964 = vld [vmem:[%s1796 + $0x68] sm:$0xff]
        %v1965 = vld [vmem:[%s1796 + $0x70] sm:$0xff]
        %v1966 = vld [vmem:[%s1796 + $0x78] sm:$0xff]
        %v1967 = vld [vmem:[%s1459] sm:$0x1]
        %v1968 = vld [vmem:[%s1801] sm:$0xff]
        %v1969 = vld [vmem:[%s1801 + $0x8] sm:$0xff]
        %v1970 = vld [vmem:[%s1801 + $0x10] sm:$0xff]
        %v1971 = vld [vmem:[%s1801 + $0x18] sm:$0xff]
        %v1972 = vld [vmem:[%s1801 + $0x20] sm:$0xff]
        %v1973 = vld [vmem:[%s1801 + $0x28] sm:$0xff]
        %v1974 = vld [vmem:[%s1801 + $0x30] sm:$0xff]
        %v1975 = vld [vmem:[%s1801 + $0x38] sm:$0xff]
        %v1976 = vld [vmem:[%s1801 + $0x40] sm:$0xff]
        %v1977 = vld [vmem:[%s1801 + $0x48] sm:$0xff]
        %v1978 = vld [vmem:[%s1801 + $0x50] sm:$0xff]
        %v1979 = vld [vmem:[%s1801 + $0x58] sm:$0xff]
        %v1980 = vld [vmem:[%s1801 + $0x60] sm:$0xff]
        %v1981 = vld [vmem:[%s1801 + $0x68] sm:$0xff]
        %v1982 = vld [vmem:[%s1801 + $0x70] sm:$0xff]
        %v1983 = vld [vmem:[%s1801 + $0x78] sm:$0xff]
        %v1984 = vld [vmem:[%s1467] sm:$0x1]
        %v1985 = vld [vmem:[%s1475] sm:$0x1]
        %v1986 = vld [vmem:[%s1483] sm:$0x1]
        %v1988 = vlaneseq
        %v1989 = vshrl.u32 %v1988, 7
        %v1990 = vsub.s32 0, %v1989
        %v1991 = vrot.slane %v1933, %v1990
        %1993 = vmatprep.subr.mxu0 0.0
        %1994 = vmatpush1.msra.mxu0 %v1932
        %1995 = vmatprep.subr.mxu0 0.0
        %1996 = vmatpush1.msra.mxu0 %v1931
        %1997 = vmatprep.subr.mxu0 0.0
        %1998 = vmatpush1.msra.mxu0 %v1930
        %1999 = vmatprep.subr.mxu0 0.0
        %2000 = vmatpush1.msra.mxu0 %v1929
        %2001 = vmatprep.subr.mxu0 0.0
        %2002 = vmatpush1.msra.mxu0 %v1928
        %2003 = vmatprep.subr.mxu0 0.0
        %2004 = vmatpush1.msra.mxu0 %v1927
        %2005 = vmatprep.subr.mxu0 0.0
        %2006 = vmatpush1.msra.mxu0 %v1926
        %2007 = vmatprep.subr.mxu0 0.0
        %2008 = vmatpush1.msra.mxu0 %v1925
        %2009 = vmatprep.subr.mxu0 0.0
        %2010 = vmatpush1.msra.mxu0 %v1924
        %2011 = vmatprep.subr.mxu0 0.0
        %2012 = vmatpush1.msra.mxu0 %v1923
        %2013 = vmatprep.subr.mxu0 0.0
        %2014 = vmatpush1.msra.mxu0 %v1922
        %2015 = vmatprep.subr.mxu0 0.0
        %2016 = vmatpush1.msra.mxu0 %v1921
        %2017 = vmatprep.subr.mxu0 0.0
        %2018 = vmatpush1.msra.mxu0 %v1920
        %2019 = vmatprep.subr.mxu0 0.0
        %2020 = vmatpush1.msra.mxu0 %v1919
        %2021 = vmatprep.subr.mxu0 0.0
        %2022 = vmatpush1.msra.mxu0 %v1918
        %2023 = vmatprep.subr.mxu0 0.0
        %2024 = vmatpush1.msra.mxu0 %v1917
        %2025 = vmatprep.subr.mxu0 0.0
        %2026 = vmatpush2.msra.mxu0 0.0
        %2027 = vmatprep.subr.mxu0 0.0
        %2028 = vmatpush2.msra.mxu0 0.0
        %2029 = vmatprep.subr.mxu0 0.0
        %2030 = vmatpush2.msra.mxu0 0.0
        %2031 = vmatprep.subr.mxu0 0.0
        %2032 = vmatpush2.msra.mxu0 0.0
        %2033 = vmatprep.subr.mxu0 0.0
        %2034 = vmatpush2.msra.mxu0 0.0
        %2035 = vmatprep.subr.mxu0 0.0
        %2036 = vmatpush2.msra.mxu0 0.0
        %2037 = vmatprep.subr.mxu0 0.0
        %2038 = vmatpush2.msra.mxu0 0.0
        %2039 = vmatprep.subr.mxu0 0.0
        %2040 = vmatpush2.msra.mxu0 0.0
        %2041 = vmatprep.subr.mxu0 0.0
        %2042 = vmatpush2.msra.mxu0 0.0
        %2043 = vmatprep.subr.mxu0 0.0
        %2044 = vmatpush2.msra.mxu0 0.0
        %2045 = vmatprep.subr.mxu0 0.0
        %2046 = vmatpush2.msra.mxu0 0.0
        %2047 = vmatprep.subr.mxu0 0.0
        %2048 = vmatpush2.msra.mxu0 0.0
        %2049 = vmatprep.subr.mxu0 0.0
        %2050 = vmatpush2.msra.mxu0 0.0
        %2051 = vmatprep.subr.mxu0 0.0
        %2052 = vmatpush2.msra.mxu0 0.0
        %2053 = vmatprep.subr.mxu0 0.0
        %2054 = vmatpush2.msra.mxu0 0.0
        %2055 = vmatprep.subr.mxu0 0.0
        %2056 = vmatpush2.msra.mxu0 0.0
        %2057 = vmatprep.mubr.f32.mxu0 0.0
        %2058 = vmatmul.mubr.f32.gmra.mxu0 %v1846
        %v2059 = vpop.f32.mrf.mxu0
        %v2060 = vadd.f32 %v1991, %v2059
        %v2061 = vpop.f32.mrf.mxu0
        %2062 = vdwg.mxu0
        %v2064 = vlaneseq
        %v2065 = vshrl.u32 %v2064, 7
        %v2066 = vsub.s32 0, %v2065
        %v2067 = vrot.slane %v1950, %v2066
        %2069 = vmatprep.subr.mxu0 0.0
        %2070 = vmatpush1.msra.mxu0 %v1949
        %2071 = vmatprep.subr.mxu0 0.0
        %2072 = vmatpush1.msra.mxu0 %v1948
        %2073 = vmatprep.subr.mxu0 0.0
        %2074 = vmatpush1.msra.mxu0 %v1947
        %2075 = vmatprep.subr.mxu0 0.0
        %2076 = vmatpush1.msra.mxu0 %v1946
        %2077 = vmatprep.subr.mxu0 0.0
        %2078 = vmatpush1.msra.mxu0 %v1945
        %2079 = vmatprep.subr.mxu0 0.0
        %2080 = vmatpush1.msra.mxu0 %v1944
        %2081 = vmatprep.subr.mxu0 0.0
        %2082 = vmatpush1.msra.mxu0 %v1943
        %2083 = vmatprep.subr.mxu0 0.0
        %2084 = vmatpush1.msra.mxu0 %v1942
        %2085 = vmatprep.subr.mxu0 0.0
        %2086 = vmatpush1.msra.mxu0 %v1941
        %2087 = vmatprep.subr.mxu0 0.0
        %2088 = vmatpush1.msra.mxu0 %v1940
        %2089 = vmatprep.subr.mxu0 0.0
        %2090 = vmatpush1.msra.mxu0 %v1939
        %2091 = vmatprep.subr.mxu0 0.0
        %2092 = vmatpush1.msra.mxu0 %v1938
        %2093 = vmatprep.subr.mxu0 0.0
        %2094 = vmatpush1.msra.mxu0 %v1937
        %2095 = vmatprep.subr.mxu0 0.0
        %2096 = vmatpush1.msra.mxu0 %v1936
        %2097 = vmatprep.subr.mxu0 0.0
        %2098 = vmatpush1.msra.mxu0 %v1935
        %2099 = vmatprep.subr.mxu0 0.0
        %2100 = vmatpush1.msra.mxu0 %v1934
        %2101 = vmatprep.subr.mxu0 0.0
        %2102 = vmatpush2.msra.mxu0 0.0
        %2103 = vmatprep.subr.mxu0 0.0
        %2104 = vmatpush2.msra.mxu0 0.0
        %2105 = vmatprep.subr.mxu0 0.0
        %2106 = vmatpush2.msra.mxu0 0.0
        %2107 = vmatprep.subr.mxu0 0.0
        %2108 = vmatpush2.msra.mxu0 0.0
        %2109 = vmatprep.subr.mxu0 0.0
        %2110 = vmatpush2.msra.mxu0 0.0
        %2111 = vmatprep.subr.mxu0 0.0
        %2112 = vmatpush2.msra.mxu0 0.0
        %2113 = vmatprep.subr.mxu0 0.0
        %2114 = vmatpush2.msra.mxu0 0.0
        %2115 = vmatprep.subr.mxu0 0.0
        %2116 = vmatpush2.msra.mxu0 0.0
        %2117 = vmatprep.subr.mxu0 0.0
        %2118 = vmatpush2.msra.mxu0 0.0
        %2119 = vmatprep.subr.mxu0 0.0
        %2120 = vmatpush2.msra.mxu0 0.0
        %2121 = vmatprep.subr.mxu0 0.0
        %2122 = vmatpush2.msra.mxu0 0.0
        %2123 = vmatprep.subr.mxu0 0.0
        %2124 = vmatpush2.msra.mxu0 0.0
        %2125 = vmatprep.subr.mxu0 0.0
        %2126 = vmatpush2.msra.mxu0 0.0
        %2127 = vmatprep.subr.mxu0 0.0
        %2128 = vmatpush2.msra.mxu0 0.0
        %2129 = vmatprep.subr.mxu0 0.0
        %2130 = vmatpush2.msra.mxu0 0.0
        %2131 = vmatprep.subr.mxu0 0.0
        %2132 = vmatpush2.msra.mxu0 0.0
        %2133 = vmatprep.mubr.f32.mxu0 0.0
        %2134 = vmatmul.mubr.f32.gmra.mxu0 %v1846
        %v2135 = vpop.f32.mrf.mxu0
        %v2136 = vadd.f32 %v2067, %v2135
        %v2137 = vpop.f32.mrf.mxu0
        %2138 = vdwg.mxu0
        %v2140 = vlaneseq
        %v2141 = vshrl.u32 %v2140, 7
        %v2142 = vsub.s32 0, %v2141
        %v2143 = vrot.slane %v1967, %v2142
        %2145 = vmatprep.subr.mxu0 0.0
        %2146 = vmatpush1.msra.mxu0 %v1966
        %2147 = vmatprep.subr.mxu0 0.0
        %2148 = vmatpush1.msra.mxu0 %v1965
        %2149 = vmatprep.subr.mxu0 0.0
        %2150 = vmatpush1.msra.mxu0 %v1964
        %2151 = vmatprep.subr.mxu0 0.0
        %2152 = vmatpush1.msra.mxu0 %v1963
        %2153 = vmatprep.subr.mxu0 0.0
        %2154 = vmatpush1.msra.mxu0 %v1962
        %2155 = vmatprep.subr.mxu0 0.0
        %2156 = vmatpush1.msra.mxu0 %v1961
        %2157 = vmatprep.subr.mxu0 0.0
        %2158 = vmatpush1.msra.mxu0 %v1960
        %2159 = vmatprep.subr.mxu0 0.0
        %2160 = vmatpush1.msra.mxu0 %v1959
        %2161 = vmatprep.subr.mxu0 0.0
        %2162 = vmatpush1.msra.mxu0 %v1958
        %2163 = vmatprep.subr.mxu0 0.0
        %2164 = vmatpush1.msra.mxu0 %v1957
        %2165 = vmatprep.subr.mxu0 0.0
        %2166 = vmatpush1.msra.mxu0 %v1956
        %2167 = vmatprep.subr.mxu0 0.0
        %2168 = vmatpush1.msra.mxu0 %v1955
        %2169 = vmatprep.subr.mxu0 0.0
        %2170 = vmatpush1.msra.mxu0 %v1954
        %2171 = vmatprep.subr.mxu0 0.0
        %2172 = vmatpush1.msra.mxu0 %v1953
        %2173 = vmatprep.subr.mxu0 0.0
        %2174 = vmatpush1.msra.mxu0 %v1952
        %2175 = vmatprep.subr.mxu0 0.0
        %2176 = vmatpush1.msra.mxu0 %v1951
        %2177 = vmatprep.subr.mxu0 0.0
        %2178 = vmatpush2.msra.mxu0 0.0
        %2179 = vmatprep.subr.mxu0 0.0
        %2180 = vmatpush2.msra.mxu0 0.0
        %2181 = vmatprep.subr.mxu0 0.0
        %2182 = vmatpush2.msra.mxu0 0.0
        %2183 = vmatprep.subr.mxu0 0.0
        %2184 = vmatpush2.msra.mxu0 0.0
        %2185 = vmatprep.subr.mxu0 0.0
        %2186 = vmatpush2.msra.mxu0 0.0
        %2187 = vmatprep.subr.mxu0 0.0
        %2188 = vmatpush2.msra.mxu0 0.0
        %2189 = vmatprep.subr.mxu0 0.0
        %2190 = vmatpush2.msra.mxu0 0.0
        %2191 = vmatprep.subr.mxu0 0.0
        %2192 = vmatpush2.msra.mxu0 0.0
        %2193 = vmatprep.subr.mxu0 0.0
        %2194 = vmatpush2.msra.mxu0 0.0
        %2195 = vmatprep.subr.mxu0 0.0
        %2196 = vmatpush2.msra.mxu0 0.0
        %2197 = vmatprep.subr.mxu0 0.0
        %2198 = vmatpush2.msra.mxu0 0.0
        %2199 = vmatprep.subr.mxu0 0.0
        %2200 = vmatpush2.msra.mxu0 0.0
        %2201 = vmatprep.subr.mxu0 0.0
        %2202 = vmatpush2.msra.mxu0 0.0
        %2203 = vmatprep.subr.mxu0 0.0
        %2204 = vmatpush2.msra.mxu0 0.0
        %2205 = vmatprep.subr.mxu0 0.0
        %2206 = vmatpush2.msra.mxu0 0.0
        %2207 = vmatprep.subr.mxu0 0.0
        %2208 = vmatpush2.msra.mxu0 0.0
        %2209 = vmatprep.mubr.f32.mxu0 0.0
        %2210 = vmatmul.mubr.f32.gmra.mxu0 %v1846
        %v2211 = vpop.f32.mrf.mxu0
        %v2212 = vadd.f32 %v2143, %v2211
        %v2213 = vpop.f32.mrf.mxu0
        %2214 = vdwg.mxu0
        %vm2215 = vcmask 48128
        %v2217 = vsel %vm2215, %v1879, 0
        %v2220 = vsel %vm2215, %v1880, 0
        %v2223 = vsel %vm2215, %v1881, 0
        %v2226 = vsel %vm2215, %v1882, 0
        %v2229 = vsel %vm2215, %v1883, 0
        %v2232 = vsel %vm2215, %v1884, 0
        %v2235 = vsel %vm2215, %v1885, 0
        %v2238 = vsel %vm2215, %v1886, 0
        %v2241 = vsel %vm2215, %v1887, 0
        %v2244 = vsel %vm2215, %v1888, 0
        %v2247 = vsel %vm2215, %v1889, 0
        %v2250 = vsel %vm2215, %v1890, 0
        %vm2252 = vcmask 1045504
        %v2254 = vsel %vm2252, %v2060, 0
        %2256 = vmatprep.subr.mxu0 0.0
        %2257 = vmatpush1.msra.mxu0 0.0
        %2258 = vmatprep.subr.mxu0 0.0
        %2259 = vmatpush1.msra.mxu0 0.0
        %2260 = vmatprep.subr.mxu0 0.0
        %2261 = vmatpush1.msra.mxu0 0.0
        %2262 = vmatprep.subr.mxu0 0.0
        %2263 = vmatpush1.msra.mxu0 0.0
        %2264 = vmatprep.subr.mxu0 0.0
        %2265 = vmatpush1.msra.mxu0 0.0
        %2266 = vmatprep.subr.mxu0 0.0
        %2267 = vmatpush1.msra.mxu0 0.0
        %2268 = vmatprep.subr.mxu0 0.0
        %2269 = vmatpush1.msra.mxu0 0.0
        %2270 = vmatprep.subr.mxu0 0.0
        %2271 = vmatpush1.msra.mxu0 0.0
        %2272 = vmatprep.subr.mxu0 0.0
        %2273 = vmatpush1.msra.mxu0 0.0
        %2274 = vmatprep.subr.mxu0 0.0
        %2275 = vmatpush1.msra.mxu0 0.0
        %2276 = vmatprep.subr.mxu0 0.0
        %2277 = vmatpush1.msra.mxu0 0.0
        %2278 = vmatprep.subr.mxu0 0.0
        %2279 = vmatpush1.msra.mxu0 0.0
        %2280 = vmatprep.subr.mxu0 0.0
        %2281 = vmatpush1.msra.mxu0 0.0
        %2282 = vmatprep.subr.mxu0 0.0
        %2283 = vmatpush1.msra.mxu0 0.0
        %2284 = vmatprep.subr.mxu0 0.0
        %2285 = vmatpush1.msra.mxu0 0.0
        %2286 = vmatprep.subr.mxu0 0.0
        %2287 = vmatpush1.msra.mxu0 %v2254
        %2288 = vmatprep.subr.mxu0 0.0
        %2289 = vmatpush2.msra.mxu0 0.0
        %2290 = vmatprep.subr.mxu0 0.0
        %2291 = vmatpush2.msra.mxu0 0.0
        %2292 = vmatprep.subr.mxu0 0.0
        %2293 = vmatpush2.msra.mxu0 0.0
        %2294 = vmatprep.subr.mxu0 0.0
        %2295 = vmatpush2.msra.mxu0 0.0
        %2296 = vmatprep.subr.mxu0 0.0
        %2297 = vmatpush2.msra.mxu0 0.0
        %2298 = vmatprep.subr.mxu0 0.0
        %2299 = vmatpush2.msra.mxu0 0.0
        %2300 = vmatprep.subr.mxu0 0.0
        %2301 = vmatpush2.msra.mxu0 0.0
        %2302 = vmatprep.subr.mxu0 0.0
        %2303 = vmatpush2.msra.mxu0 0.0
        %2304 = vmatprep.subr.mxu0 0.0
        %2305 = vmatpush2.msra.mxu0 0.0
        %2306 = vmatprep.subr.mxu0 0.0
        %2307 = vmatpush2.msra.mxu0 0.0
        %2308 = vmatprep.subr.mxu0 0.0
        %2309 = vmatpush2.msra.mxu0 0.0
        %2310 = vmatprep.subr.mxu0 0.0
        %2311 = vmatpush2.msra.mxu0 0.0
        %2312 = vmatprep.subr.mxu0 0.0
        %2313 = vmatpush2.msra.mxu0 0.0
        %2314 = vmatprep.subr.mxu0 0.0
        %2315 = vmatpush2.msra.mxu0 0.0
        %2316 = vmatprep.subr.mxu0 0.0
        %2317 = vmatpush2.msra.mxu0 0.0
        %2318 = vmatprep.subr.mxu0 0.0
        %2319 = vmatpush2.msra.mxu0 0.0
        %2320 = vmatprep.mubr.f32.mxu0 0.0
        %2321 = vmatmul.mubr.f32.gmra.mxu0 %v2217
        %v2322 = vpop.f32.mrf.mxu0
        %v2323 = vadd.f32 0.0, %v2322
        %v2324 = vpop.f32.mrf.mxu0
        %2325 = vmatprep.mubr.f32.mxu0 0.0
        %2326 = vmatmul.mubr.f32.gmra.mxu0 %v2220
        %v2327 = vpop.f32.mrf.mxu0
        %v2328 = vadd.f32 0.0, %v2327
        %v2329 = vpop.f32.mrf.mxu0
        %2330 = vmatprep.mubr.f32.mxu0 0.0
        %2331 = vmatmul.mubr.f32.gmra.mxu0 %v2223
        %v2332 = vpop.f32.mrf.mxu0
        %v2333 = vadd.f32 0.0, %v2332
        %v2334 = vpop.f32.mrf.mxu0
        %2335 = vmatprep.mubr.f32.mxu0 0.0
        %2336 = vmatmul.mubr.f32.gmra.mxu0 %v2226
        %v2337 = vpop.f32.mrf.mxu0
        %v2338 = vadd.f32 0.0, %v2337
        %v2339 = vpop.f32.mrf.mxu0
        %2340 = vmatprep.mubr.f32.mxu0 0.0
        %2341 = vmatmul.mubr.f32.gmra.mxu0 %v2229
        %v2342 = vpop.f32.mrf.mxu0
        %v2343 = vadd.f32 0.0, %v2342
        %v2344 = vpop.f32.mrf.mxu0
        %2345 = vmatprep.mubr.f32.mxu0 0.0
        %2346 = vmatmul.mubr.f32.gmra.mxu0 %v2232
        %v2347 = vpop.f32.mrf.mxu0
        %v2348 = vadd.f32 0.0, %v2347
        %v2349 = vpop.f32.mrf.mxu0
        %2350 = vmatprep.mubr.f32.mxu0 0.0
        %2351 = vmatmul.mubr.f32.gmra.mxu0 %v2235
        %v2352 = vpop.f32.mrf.mxu0
        %v2353 = vadd.f32 0.0, %v2352
        %v2354 = vpop.f32.mrf.mxu0
        %2355 = vmatprep.mubr.f32.mxu0 0.0
        %2356 = vmatmul.mubr.f32.gmra.mxu0 %v2238
        %v2357 = vpop.f32.mrf.mxu0
        %v2358 = vadd.f32 0.0, %v2357
        %v2359 = vpop.f32.mrf.mxu0
        %2360 = vmatprep.mubr.f32.mxu0 0.0
        %2361 = vmatmul.mubr.f32.gmra.mxu0 %v2241
        %v2362 = vpop.f32.mrf.mxu0
        %v2363 = vadd.f32 0.0, %v2362
        %v2364 = vpop.f32.mrf.mxu0
        %2365 = vmatprep.mubr.f32.mxu0 0.0
        %2366 = vmatmul.mubr.f32.gmra.mxu0 %v2244
        %v2367 = vpop.f32.mrf.mxu0
        %v2368 = vadd.f32 0.0, %v2367
        %v2369 = vpop.f32.mrf.mxu0
        %2370 = vmatprep.mubr.f32.mxu0 0.0
        %2371 = vmatmul.mubr.f32.gmra.mxu0 %v2247
        %v2372 = vpop.f32.mrf.mxu0
        %v2373 = vadd.f32 0.0, %v2372
        %v2374 = vpop.f32.mrf.mxu0
        %2375 = vmatprep.mubr.f32.mxu0 0.0
        %2376 = vmatmul.mubr.f32.gmra.mxu0 %v2250
        %v2377 = vpop.f32.mrf.mxu0
        %v2378 = vadd.f32 0.0, %v2377
        %v2379 = vpop.f32.mrf.mxu0
        %2380 = vdwg.mxu0
        %v2381 = vmul.f32 %v2323, %v1891
        %v2382 = vmul.f32 %v2328, %v1892
        %v2383 = vmul.f32 %v2333, %v1893
        %v2384 = vmul.f32 %v2338, %v1894
        %v2385 = vmul.f32 %v2343, %v1895
        %v2386 = vmul.f32 %v2348, %v1896
        %v2387 = vmul.f32 %v2353, %v1897
        %v2388 = vmul.f32 %v2358, %v1898
        %v2389 = vmul.f32 %v2363, %v1899
        %v2390 = vmul.f32 %v2368, %v1900
        %v2391 = vmul.f32 %v2373, %v1901
        %v2392 = vmul.f32 %v2378, %v1902
        %v2394 = vlaneseq
        %v2395 = vshrl.u32 %v2394, 7
        %v2396 = vsub.s32 0, %v2395
        %v2397 = vrot.slane %v1916, %v2396
        %2399 = vmatprep.subr.mxu0 0.0
        %2400 = vmatpush1.xpose.msra.mxu0 0.0
        %2401 = vmatprep.subr.mxu0 0.0
        %2402 = vmatpush1.xpose.msra.mxu0 0.0
        %2403 = vmatprep.subr.mxu0 0.0
        %2404 = vmatpush1.xpose.msra.mxu0 0.0
        %2405 = vmatprep.subr.mxu0 0.0
        %2406 = vmatpush1.xpose.msra.mxu0 0.0
        %2407 = vmatprep.subr.mxu0 0.0
        %2408 = vmatpush1.xpose.msra.mxu0 0.0
        %2409 = vmatprep.subr.mxu0 0.0
        %2410 = vmatpush1.xpose.msra.mxu0 0.0
        %2411 = vmatprep.subr.mxu0 0.0
        %2412 = vmatpush1.xpose.msra.mxu0 0.0
        %2413 = vmatprep.subr.mxu0 0.0
        %2414 = vmatpush1.xpose.msra.mxu0 0.0
        %2415 = vmatprep.subr.mxu0 0.0
        %2416 = vmatpush1.xpose.msra.mxu0 0.0
        %2417 = vmatprep.subr.mxu0 0.0
        %2418 = vmatpush1.xpose.msra.mxu0 0.0
        %2419 = vmatprep.subr.mxu0 0.0
        %2420 = vmatpush1.xpose.msra.mxu0 0.0
        %2421 = vmatprep.subr.mxu0 0.0
        %2422 = vmatpush1.xpose.msra.mxu0 0.0
        %2423 = vmatprep.subr.mxu0 0.0
        %2424 = vmatpush1.xpose.msra.mxu0 0.0
        %2425 = vmatprep.subr.mxu0 0.0
        %2426 = vmatpush1.xpose.msra.mxu0 0.0
        %2427 = vmatprep.subr.mxu0 0.0
        %2428 = vmatpush1.xpose.msra.mxu0 0.0
        %2429 = vmatprep.subr.mxu0 0.0
        %2430 = vmatpush1.xpose.msra.mxu0 %v2136
        %2431 = vmatprep.subr.mxu0 0.0
        %2432 = vmatpush2.xpose.msra.mxu0 0.0
        %2433 = vmatprep.subr.mxu0 0.0
        %2434 = vmatpush2.xpose.msra.mxu0 0.0
        %2435 = vmatprep.subr.mxu0 0.0
        %2436 = vmatpush2.xpose.msra.mxu0 0.0
        %2437 = vmatprep.subr.mxu0 0.0
        %2438 = vmatpush2.xpose.msra.mxu0 0.0
        %2439 = vmatprep.subr.mxu0 0.0
        %2440 = vmatpush2.xpose.msra.mxu0 0.0
        %2441 = vmatprep.subr.mxu0 0.0
        %2442 = vmatpush2.xpose.msra.mxu0 0.0
        %2443 = vmatprep.subr.mxu0 0.0
        %2444 = vmatpush2.xpose.msra.mxu0 0.0
        %2445 = vmatprep.subr.mxu0 0.0
        %2446 = vmatpush2.xpose.msra.mxu0 0.0
        %2447 = vmatprep.subr.mxu0 0.0
        %2448 = vmatpush2.xpose.msra.mxu0 0.0
        %2449 = vmatprep.subr.mxu0 0.0
        %2450 = vmatpush2.xpose.msra.mxu0 0.0
        %2451 = vmatprep.subr.mxu0 0.0
        %2452 = vmatpush2.xpose.msra.mxu0 0.0
        %2453 = vmatprep.subr.mxu0 0.0
        %2454 = vmatpush2.xpose.msra.mxu0 0.0
        %2455 = vmatprep.subr.mxu0 0.0
        %2456 = vmatpush2.xpose.msra.mxu0 0.0
        %2457 = vmatprep.subr.mxu0 0.0
        %2458 = vmatpush2.xpose.msra.mxu0 0.0
        %2459 = vmatprep.subr.mxu0 0.0
        %2460 = vmatpush2.xpose.msra.mxu0 0.0
        %2461 = vmatprep.subr.mxu0 0.0
        %2462 = vmatpush2.xpose.msra.mxu0 0.0
        %2463 = vmatprep.mubr.f32.mxu0 0.0
        %2464 = vmatmul.mubr.f32.gmra.mxu0 %v2381
        %v2465 = vpop.f32.mrf.mxu0
        %v2466 = vadd.f32 %v2397, %v2465
        %v2467 = vpop.f32.mrf.mxu0
        %2468 = vmatprep.mubr.f32.mxu0 0.0
        %2469 = vmatmul.mubr.f32.gmra.mxu0 %v2382
        %v2470 = vpop.f32.mrf.mxu0
        %v2471 = vadd.f32 %v2397, %v2470
        %v2472 = vpop.f32.mrf.mxu0
        %2473 = vmatprep.mubr.f32.mxu0 0.0
        %2474 = vmatmul.mubr.f32.gmra.mxu0 %v2383
        %v2475 = vpop.f32.mrf.mxu0
        %v2476 = vadd.f32 %v2397, %v2475
        %v2477 = vpop.f32.mrf.mxu0
        %2478 = vmatprep.mubr.f32.mxu0 0.0
        %2479 = vmatmul.mubr.f32.gmra.mxu0 %v2384
        %v2480 = vpop.f32.mrf.mxu0
        %v2481 = vadd.f32 %v2397, %v2480
        %v2482 = vpop.f32.mrf.mxu0
        %2483 = vmatprep.mubr.f32.mxu0 0.0
        %2484 = vmatmul.mubr.f32.gmra.mxu0 %v2385
        %v2485 = vpop.f32.mrf.mxu0
        %v2486 = vadd.f32 %v2397, %v2485
        %v2487 = vpop.f32.mrf.mxu0
        %2488 = vmatprep.mubr.f32.mxu0 0.0
        %2489 = vmatmul.mubr.f32.gmra.mxu0 %v2386
        %v2490 = vpop.f32.mrf.mxu0
        %v2491 = vadd.f32 %v2397, %v2490
        %v2492 = vpop.f32.mrf.mxu0
        %2493 = vmatprep.mubr.f32.mxu0 0.0
        %2494 = vmatmul.mubr.f32.gmra.mxu0 %v2387
        %v2495 = vpop.f32.mrf.mxu0
        %v2496 = vadd.f32 %v2397, %v2495
        %v2497 = vpop.f32.mrf.mxu0
        %2498 = vmatprep.mubr.f32.mxu0 0.0
        %2499 = vmatmul.mubr.f32.gmra.mxu0 %v2388
        %v2500 = vpop.f32.mrf.mxu0
        %v2501 = vadd.f32 %v2397, %v2500
        %v2502 = vpop.f32.mrf.mxu0
        %2503 = vmatprep.mubr.f32.mxu0 0.0
        %2504 = vmatmul.mubr.f32.gmra.mxu0 %v2389
        %v2505 = vpop.f32.mrf.mxu0
        %v2506 = vadd.f32 %v2397, %v2505
        %v2507 = vpop.f32.mrf.mxu0
        %2508 = vmatprep.mubr.f32.mxu0 0.0
        %2509 = vmatmul.mubr.f32.gmra.mxu0 %v2390
        %v2510 = vpop.f32.mrf.mxu0
        %v2511 = vadd.f32 %v2397, %v2510
        %v2512 = vpop.f32.mrf.mxu0
        %2513 = vmatprep.mubr.f32.mxu0 0.0
        %2514 = vmatmul.mubr.f32.gmra.mxu0 %v2391
        %v2515 = vpop.f32.mrf.mxu0
        %v2516 = vadd.f32 %v2397, %v2515
        %v2517 = vpop.f32.mrf.mxu0
        %2518 = vmatprep.mubr.f32.mxu0 0.0
        %2519 = vmatmul.mubr.f32.gmra.mxu0 %v2392
        %v2520 = vpop.f32.mrf.mxu0
        %v2521 = vadd.f32 %v2397, %v2520
        %v2522 = vpop.f32.mrf.mxu0
        %2523 = vdwg.mxu0
        %v2524 = vsel %vm2215, %v2466, -inf
        %2525 = vmax.xlane.f32.xlu0 %v2524
        %v2526 = vpop.xlane.xlu0 %2525
        %v2527 = vsel %vm2215, %v2471, -inf
        %2528 = vmax.xlane.f32.xlu0 %v2527
        %v2529 = vpop.xlane.xlu0 %2528
        %v2530 = vsel %vm2215, %v2476, -inf
        %2531 = vmax.xlane.f32.xlu0 %v2530
        %v2532 = vpop.xlane.xlu0 %2531
        %v2533 = vsel %vm2215, %v2481, -inf
        %2534 = vmax.xlane.f32.xlu0 %v2533
        %v2535 = vpop.xlane.xlu0 %2534
        %v2536 = vsel %vm2215, %v2486, -inf
        %2537 = vmax.xlane.f32.xlu0 %v2536
        %v2538 = vpop.xlane.xlu0 %2537
        %v2539 = vsel %vm2215, %v2491, -inf
        %2540 = vmax.xlane.f32.xlu0 %v2539
        %v2541 = vpop.xlane.xlu0 %2540
        %v2542 = vsel %vm2215, %v2496, -inf
        %2543 = vmax.xlane.f32.xlu0 %v2542
        %v2544 = vpop.xlane.xlu0 %2543
        %v2545 = vsel %vm2215, %v2501, -inf
        %2546 = vmax.xlane.f32.xlu0 %v2545
        %v2547 = vpop.xlane.xlu0 %2546
        %v2548 = vsel %vm2215, %v2506, -inf
        %2549 = vmax.xlane.f32.xlu0 %v2548
        %v2550 = vpop.xlane.xlu0 %2549
        %v2551 = vsel %vm2215, %v2511, -inf
        %2552 = vmax.xlane.f32.xlu0 %v2551
        %v2553 = vpop.xlane.xlu0 %2552
        %v2554 = vsel %vm2215, %v2516, -inf
        %2555 = vmax.xlane.f32.xlu0 %v2554
        %v2556 = vpop.xlane.xlu0 %2555
        %v2557 = vsel %vm2215, %v2521, -inf
        %2558 = vmax.xlane.f32.xlu0 %v2557
        %v2559 = vpop.xlane.xlu0 %2558
        %v2560 = vsub.f32 %v2466, %v2526
        %v2561 = vsub.f32 %v2471, %v2529
        %v2562 = vsub.f32 %v2476, %v2532
        %v2563 = vsub.f32 %v2481, %v2535
        %v2564 = vsub.f32 %v2486, %v2538
        %v2565 = vsub.f32 %v2491, %v2541
        %v2566 = vsub.f32 %v2496, %v2544
        %v2567 = vsub.f32 %v2501, %v2547
        %v2568 = vsub.f32 %v2506, %v2550
        %v2569 = vsub.f32 %v2511, %v2553
        %v2570 = vsub.f32 %v2516, %v2556
        %v2571 = vsub.f32 %v2521, %v2559
        %v2572 = vmul.f32 %v2560, 1.442695
        %v2573 = vpow.pop %v2572
        %v2574 = vmul.f32 %v2561, 1.442695
        %v2575 = vpow.pop %v2574
        %v2576 = vmul.f32 %v2562, 1.442695
        %v2577 = vpow.pop %v2576
        %v2578 = vmul.f32 %v2563, 1.442695
        %v2579 = vpow.pop %v2578
        %v2580 = vmul.f32 %v2564, 1.442695
        %v2581 = vpow.pop %v2580
        %v2582 = vmul.f32 %v2565, 1.442695
        %v2583 = vpow.pop %v2582
        %v2584 = vmul.f32 %v2566, 1.442695
        %v2585 = vpow.pop %v2584
        %v2586 = vmul.f32 %v2567, 1.442695
        %v2587 = vpow.pop %v2586
        %v2588 = vmul.f32 %v2568, 1.442695
        %v2589 = vpow.pop %v2588
        %v2590 = vmul.f32 %v2569, 1.442695
        %v2591 = vpow.pop %v2590
        %v2592 = vmul.f32 %v2570, 1.442695
        %v2593 = vpow.pop %v2592
        %v2594 = vmul.f32 %v2571, 1.442695
        %v2595 = vpow.pop %v2594
        %v2596 = vsel %vm2215, %v2573, 0.0
        %2597 = vadd.xlane.f32.xlu0 %v2596
        %v2598 = vpop.xlane.xlu0 %2597
        %v2599 = vsel %vm2215, %v2575, 0.0
        %2600 = vadd.xlane.f32.xlu0 %v2599
        %v2601 = vpop.xlane.xlu0 %2600
        %v2602 = vsel %vm2215, %v2577, 0.0
        %2603 = vadd.xlane.f32.xlu0 %v2602
        %v2604 = vpop.xlane.xlu0 %2603
        %v2605 = vsel %vm2215, %v2579, 0.0
        %2606 = vadd.xlane.f32.xlu0 %v2605
        %v2607 = vpop.xlane.xlu0 %2606
        %v2608 = vsel %vm2215, %v2581, 0.0
        %2609 = vadd.xlane.f32.xlu0 %v2608
        %v2610 = vpop.xlane.xlu0 %2609
        %v2611 = vsel %vm2215, %v2583, 0.0
        %2612 = vadd.xlane.f32.xlu0 %v2611
        %v2613 = vpop.xlane.xlu0 %2612
        %v2614 = vsel %vm2215, %v2585, 0.0
        %2615 = vadd.xlane.f32.xlu0 %v2614
        %v2616 = vpop.xlane.xlu0 %2615
        %v2617 = vsel %vm2215, %v2587, 0.0
        %2618 = vadd.xlane.f32.xlu0 %v2617
        %v2619 = vpop.xlane.xlu0 %2618
        %v2620 = vsel %vm2215, %v2589, 0.0
        %2621 = vadd.xlane.f32.xlu0 %v2620
        %v2622 = vpop.xlane.xlu0 %2621
        %v2623 = vsel %vm2215, %v2591, 0.0
        %2624 = vadd.xlane.f32.xlu0 %v2623
        %v2625 = vpop.xlane.xlu0 %2624
        %v2626 = vsel %vm2215, %v2593, 0.0
        %2627 = vadd.xlane.f32.xlu0 %v2626
        %v2628 = vpop.xlane.xlu0 %2627
        %v2629 = vsel %vm2215, %v2595, 0.0
        %2630 = vadd.xlane.f32.xlu0 %v2629
        %v2631 = vpop.xlane.xlu0 %2630
        %v2632 = vrcp.pop %v2598
        %v2633 = vmul.f32 %v2573, %v2632
        %v2634 = vrcp.pop %v2601
        %v2635 = vmul.f32 %v2575, %v2634
        %v2636 = vrcp.pop %v2604
        %v2637 = vmul.f32 %v2577, %v2636
        %v2638 = vrcp.pop %v2607
        %v2639 = vmul.f32 %v2579, %v2638
        %v2640 = vrcp.pop %v2610
        %v2641 = vmul.f32 %v2581, %v2640
        %v2642 = vrcp.pop %v2613
        %v2643 = vmul.f32 %v2583, %v2642
        %v2644 = vrcp.pop %v2616
        %v2645 = vmul.f32 %v2585, %v2644
        %v2646 = vrcp.pop %v2619
        %v2647 = vmul.f32 %v2587, %v2646
        %v2648 = vrcp.pop %v2622
        %v2649 = vmul.f32 %v2589, %v2648
        %v2650 = vrcp.pop %v2625
        %v2651 = vmul.f32 %v2591, %v2650
        %v2652 = vrcp.pop %v2628
        %v2653 = vmul.f32 %v2593, %v2652
        %v2654 = vrcp.pop %v2631
        %v2655 = vmul.f32 %v2595, %v2654
        %v2657 = vsel %vm2215, %v2633, 0
        %v2660 = vsel %vm2215, %v2635, 0
        %v2663 = vsel %vm2215, %v2637, 0
        %v2666 = vsel %vm2215, %v2639, 0
        %v2669 = vsel %vm2215, %v2641, 0
        %v2672 = vsel %vm2215, %v2643, 0
        %v2675 = vsel %vm2215, %v2645, 0
        %v2678 = vsel %vm2215, %v2647, 0
        %v2681 = vsel %vm2215, %v2649, 0
        %v2684 = vsel %vm2215, %v2651, 0
        %v2687 = vsel %vm2215, %v2653, 0
        %v2690 = vsel %vm2215, %v2655, 0
        %v2693 = vsel %vm2252, %v2212, 0
        %2695 = vmatprep.subr.mxu0 0.0
        %2696 = vmatpush1.msra.mxu0 0.0
        %2697 = vmatprep.subr.mxu0 0.0
        %2698 = vmatpush1.msra.mxu0 0.0
        %2699 = vmatprep.subr.mxu0 0.0
        %2700 = vmatpush1.msra.mxu0 0.0
        %2701 = vmatprep.subr.mxu0 0.0
        %2702 = vmatpush1.msra.mxu0 0.0
        %2703 = vmatprep.subr.mxu0 0.0
        %2704 = vmatpush1.msra.mxu0 0.0
        %2705 = vmatprep.subr.mxu0 0.0
        %2706 = vmatpush1.msra.mxu0 0.0
        %2707 = vmatprep.subr.mxu0 0.0
        %2708 = vmatpush1.msra.mxu0 0.0
        %2709 = vmatprep.subr.mxu0 0.0
        %2710 = vmatpush1.msra.mxu0 0.0
        %2711 = vmatprep.subr.mxu0 0.0
        %2712 = vmatpush1.msra.mxu0 0.0
        %2713 = vmatprep.subr.mxu0 0.0
        %2714 = vmatpush1.msra.mxu0 0.0
        %2715 = vmatprep.subr.mxu0 0.0
        %2716 = vmatpush1.msra.mxu0 0.0
        %2717 = vmatprep.subr.mxu0 0.0
        %2718 = vmatpush1.msra.mxu0 0.0
        %2719 = vmatprep.subr.mxu0 0.0
        %2720 = vmatpush1.msra.mxu0 0.0
        %2721 = vmatprep.subr.mxu0 0.0
        %2722 = vmatpush1.msra.mxu0 0.0
        %2723 = vmatprep.subr.mxu0 0.0
        %2724 = vmatpush1.msra.mxu0 0.0
        %2725 = vmatprep.subr.mxu0 0.0
        %2726 = vmatpush1.msra.mxu0 %v2693
        %2727 = vmatprep.subr.mxu0 0.0
        %2728 = vmatpush2.msra.mxu0 0.0
        %2729 = vmatprep.subr.mxu0 0.0
        %2730 = vmatpush2.msra.mxu0 0.0
        %2731 = vmatprep.subr.mxu0 0.0
        %2732 = vmatpush2.msra.mxu0 0.0
        %2733 = vmatprep.subr.mxu0 0.0
        %2734 = vmatpush2.msra.mxu0 0.0
        %2735 = vmatprep.subr.mxu0 0.0
        %2736 = vmatpush2.msra.mxu0 0.0
        %2737 = vmatprep.subr.mxu0 0.0
        %2738 = vmatpush2.msra.mxu0 0.0
        %2739 = vmatprep.subr.mxu0 0.0
        %2740 = vmatpush2.msra.mxu0 0.0
        %2741 = vmatprep.subr.mxu0 0.0
        %2742 = vmatpush2.msra.mxu0 0.0
        %2743 = vmatprep.subr.mxu0 0.0
        %2744 = vmatpush2.msra.mxu0 0.0
        %2745 = vmatprep.subr.mxu0 0.0
        %2746 = vmatpush2.msra.mxu0 0.0
        %2747 = vmatprep.subr.mxu0 0.0
        %2748 = vmatpush2.msra.mxu0 0.0
        %2749 = vmatprep.subr.mxu0 0.0
        %2750 = vmatpush2.msra.mxu0 0.0
        %2751 = vmatprep.subr.mxu0 0.0
        %2752 = vmatpush2.msra.mxu0 0.0
        %2753 = vmatprep.subr.mxu0 0.0
        %2754 = vmatpush2.msra.mxu0 0.0
        %2755 = vmatprep.subr.mxu0 0.0
        %2756 = vmatpush2.msra.mxu0 0.0
        %2757 = vmatprep.subr.mxu0 0.0
        %2758 = vmatpush2.msra.mxu0 0.0
        %2759 = vmatprep.mubr.f32.mxu0 0.0
        %2760 = vmatmul.mubr.f32.gmra.mxu0 %v2657
        %v2761 = vpop.f32.mrf.mxu0
        %v2762 = vadd.f32 0.0, %v2761
        %v2763 = vpop.f32.mrf.mxu0
        %2764 = vmatprep.mubr.f32.mxu0 0.0
        %2765 = vmatmul.mubr.f32.gmra.mxu0 %v2660
        %v2766 = vpop.f32.mrf.mxu0
        %v2767 = vadd.f32 0.0, %v2766
        %v2768 = vpop.f32.mrf.mxu0
        %2769 = vmatprep.mubr.f32.mxu0 0.0
        %2770 = vmatmul.mubr.f32.gmra.mxu0 %v2663
        %v2771 = vpop.f32.mrf.mxu0
        %v2772 = vadd.f32 0.0, %v2771
        %v2773 = vpop.f32.mrf.mxu0
        %2774 = vmatprep.mubr.f32.mxu0 0.0
        %2775 = vmatmul.mubr.f32.gmra.mxu0 %v2666
        %v2776 = vpop.f32.mrf.mxu0
        %v2777 = vadd.f32 0.0, %v2776
        %v2778 = vpop.f32.mrf.mxu0
        %2779 = vmatprep.mubr.f32.mxu0 0.0
        %2780 = vmatmul.mubr.f32.gmra.mxu0 %v2669
        %v2781 = vpop.f32.mrf.mxu0
        %v2782 = vadd.f32 0.0, %v2781
        %v2783 = vpop.f32.mrf.mxu0
        %2784 = vmatprep.mubr.f32.mxu0 0.0
        %2785 = vmatmul.mubr.f32.gmra.mxu0 %v2672
        %v2786 = vpop.f32.mrf.mxu0
        %v2787 = vadd.f32 0.0, %v2786
        %v2788 = vpop.f32.mrf.mxu0
        %2789 = vmatprep.mubr.f32.mxu0 0.0
        %2790 = vmatmul.mubr.f32.gmra.mxu0 %v2675
        %v2791 = vpop.f32.mrf.mxu0
        %v2792 = vadd.f32 0.0, %v2791
        %v2793 = vpop.f32.mrf.mxu0
        %2794 = vmatprep.mubr.f32.mxu0 0.0
        %2795 = vmatmul.mubr.f32.gmra.mxu0 %v2678
        %v2796 = vpop.f32.mrf.mxu0
        %v2797 = vadd.f32 0.0, %v2796
        %v2798 = vpop.f32.mrf.mxu0
        %2799 = vmatprep.mubr.f32.mxu0 0.0
        %2800 = vmatmul.mubr.f32.gmra.mxu0 %v2681
        %v2801 = vpop.f32.mrf.mxu0
        %v2802 = vadd.f32 0.0, %v2801
        %v2803 = vpop.f32.mrf.mxu0
        %2804 = vmatprep.mubr.f32.mxu0 0.0
        %2805 = vmatmul.mubr.f32.gmra.mxu0 %v2684
        %v2806 = vpop.f32.mrf.mxu0
        %v2807 = vadd.f32 0.0, %v2806
        %v2808 = vpop.f32.mrf.mxu0
        %2809 = vmatprep.mubr.f32.mxu0 0.0
        %2810 = vmatmul.mubr.f32.gmra.mxu0 %v2687
        %v2811 = vpop.f32.mrf.mxu0
        %v2812 = vadd.f32 0.0, %v2811
        %v2813 = vpop.f32.mrf.mxu0
        %2814 = vmatprep.mubr.f32.mxu0 0.0
        %2815 = vmatmul.mubr.f32.gmra.mxu0 %v2690
        %v2816 = vpop.f32.mrf.mxu0
        %v2817 = vadd.f32 0.0, %v2816
        %v2818 = vpop.f32.mrf.mxu0
        %2819 = vdwg.mxu0
        %v2820 = vmul.f32 %v2762, %v1903
        %v2821 = vmul.f32 %v2767, %v1904
        %v2822 = vmul.f32 %v2772, %v1905
        %v2823 = vmul.f32 %v2777, %v1906
        %v2824 = vmul.f32 %v2782, %v1907
        %v2825 = vmul.f32 %v2787, %v1908
        %v2826 = vmul.f32 %v2792, %v1909
        %v2827 = vmul.f32 %v2797, %v1910
        %v2828 = vmul.f32 %v2802, %v1911
        %v2829 = vmul.f32 %v2807, %v1912
        %v2830 = vmul.f32 %v2812, %v1913
        %v2831 = vmul.f32 %v2817, %v1914
        %vm2832 = vcmask 785408
        %v2834 = vsel %vm2832, %v1915, 0
        %2836 = vmatprep.subr.mxu0 0.0
        %2837 = vmatpush1.msra.mxu0 0.0
        %2838 = vmatprep.subr.mxu0 0.0
        %2839 = vmatpush1.msra.mxu0 0.0
        %2840 = vmatprep.subr.mxu0 0.0
        %2841 = vmatpush1.msra.mxu0 0.0
        %2842 = vmatprep.subr.mxu0 0.0
        %2843 = vmatpush1.msra.mxu0 0.0
        %2844 = vmatprep.subr.mxu0 0.0
        %2845 = vmatpush1.msra.mxu0 %v2831
        %2846 = vmatprep.subr.mxu0 0.0
        %2847 = vmatpush1.msra.mxu0 %v2830
        %2848 = vmatprep.subr.mxu0 0.0
        %2849 = vmatpush1.msra.mxu0 %v2829
        %2850 = vmatprep.subr.mxu0 0.0
        %2851 = vmatpush1.msra.mxu0 %v2828
        %2852 = vmatprep.subr.mxu0 0.0
        %2853 = vmatpush1.msra.mxu0 %v2827
        %2854 = vmatprep.subr.mxu0 0.0
        %2855 = vmatpush1.msra.mxu0 %v2826
        %2856 = vmatprep.subr.mxu0 0.0
        %2857 = vmatpush1.msra.mxu0 %v2825
        %2858 = vmatprep.subr.mxu0 0.0
        %2859 = vmatpush1.msra.mxu0 %v2824
        %2860 = vmatprep.subr.mxu0 0.0
        %2861 = vmatpush1.msra.mxu0 %v2823
        %2862 = vmatprep.subr.mxu0 0.0
        %2863 = vmatpush1.msra.mxu0 %v2822
        %2864 = vmatprep.subr.mxu0 0.0
        %2865 = vmatpush1.msra.mxu0 %v2821
        %2866 = vmatprep.subr.mxu0 0.0
        %2867 = vmatpush1.msra.mxu0 %v2820
        %2868 = vmatprep.subr.mxu0 0.0
        %2869 = vmatpush2.msra.mxu0 0.0
        %2870 = vmatprep.subr.mxu0 0.0
        %2871 = vmatpush2.msra.mxu0 0.0
        %2872 = vmatprep.subr.mxu0 0.0
        %2873 = vmatpush2.msra.mxu0 0.0
        %2874 = vmatprep.subr.mxu0 0.0
        %2875 = vmatpush2.msra.mxu0 0.0
        %2876 = vmatprep.subr.mxu0 0.0
        %2877 = vmatpush2.msra.mxu0 0.0
        %2878 = vmatprep.subr.mxu0 0.0
        %2879 = vmatpush2.msra.mxu0 0.0
        %2880 = vmatprep.subr.mxu0 0.0
        %2881 = vmatpush2.msra.mxu0 0.0
        %2882 = vmatprep.subr.mxu0 0.0
        %2883 = vmatpush2.msra.mxu0 0.0
        %2884 = vmatprep.subr.mxu0 0.0
        %2885 = vmatpush2.msra.mxu0 0.0
        %2886 = vmatprep.subr.mxu0 0.0
        %2887 = vmatpush2.msra.mxu0 0.0
        %2888 = vmatprep.subr.mxu0 0.0
        %2889 = vmatpush2.msra.mxu0 0.0
        %2890 = vmatprep.subr.mxu0 0.0
        %2891 = vmatpush2.msra.mxu0 0.0
        %2892 = vmatprep.subr.mxu0 0.0
        %2893 = vmatpush2.msra.mxu0 0.0
        %2894 = vmatprep.subr.mxu0 0.0
        %2895 = vmatpush2.msra.mxu0 0.0
        %2896 = vmatprep.subr.mxu0 0.0
        %2897 = vmatpush2.msra.mxu0 0.0
        %2898 = vmatprep.subr.mxu0 0.0
        %2899 = vmatpush2.msra.mxu0 0.0
        %2900 = vmatprep.mubr.f32.mxu0 0.0
        %2901 = vmatmul.mubr.f32.gmra.mxu0 %v2834
        %v2902 = vpop.f32.mrf.mxu0
        %v2903 = vadd.f32 0.0, %v2902
        %v2904 = vpop.f32.mrf.mxu0
        %2905 = vdwg.mxu0
        %v2907 = vlaneseq
        %v2908 = vshrl.u32 %v2907, 7
        %v2909 = vsub.s32 0, %v2908
        %v2910 = vrot.slane %v1984, %v2909
        %2912 = vmatprep.subr.mxu0 0.0
        %2913 = vmatpush1.msra.mxu0 %v1983
        %2914 = vmatprep.subr.mxu0 0.0
        %2915 = vmatpush1.msra.mxu0 %v1982
        %2916 = vmatprep.subr.mxu0 0.0
        %2917 = vmatpush1.msra.mxu0 %v1981
        %2918 = vmatprep.subr.mxu0 0.0
        %2919 = vmatpush1.msra.mxu0 %v1980
        %2920 = vmatprep.subr.mxu0 0.0
        %2921 = vmatpush1.msra.mxu0 %v1979
        %2922 = vmatprep.subr.mxu0 0.0
        %2923 = vmatpush1.msra.mxu0 %v1978
        %2924 = vmatprep.subr.mxu0 0.0
        %2925 = vmatpush1.msra.mxu0 %v1977
        %2926 = vmatprep.subr.mxu0 0.0
        %2927 = vmatpush1.msra.mxu0 %v1976
        %2928 = vmatprep.subr.mxu0 0.0
        %2929 = vmatpush1.msra.mxu0 %v1975
        %2930 = vmatprep.subr.mxu0 0.0
        %2931 = vmatpush1.msra.mxu0 %v1974
        %2932 = vmatprep.subr.mxu0 0.0
        %2933 = vmatpush1.msra.mxu0 %v1973
        %2934 = vmatprep.subr.mxu0 0.0
        %2935 = vmatpush1.msra.mxu0 %v1972
        %2936 = vmatprep.subr.mxu0 0.0
        %2937 = vmatpush1.msra.mxu0 %v1971
        %2938 = vmatprep.subr.mxu0 0.0
        %2939 = vmatpush1.msra.mxu0 %v1970
        %2940 = vmatprep.subr.mxu0 0.0
        %2941 = vmatpush1.msra.mxu0 %v1969
        %2942 = vmatprep.subr.mxu0 0.0
        %2943 = vmatpush1.msra.mxu0 %v1968
        %2944 = vmatprep.subr.mxu0 0.0
        %2945 = vmatpush2.msra.mxu0 0.0
        %2946 = vmatprep.subr.mxu0 0.0
        %2947 = vmatpush2.msra.mxu0 0.0
        %2948 = vmatprep.subr.mxu0 0.0
        %2949 = vmatpush2.msra.mxu0 0.0
        %2950 = vmatprep.subr.mxu0 0.0
        %2951 = vmatpush2.msra.mxu0 0.0
        %2952 = vmatprep.subr.mxu0 0.0
        %2953 = vmatpush2.msra.mxu0 0.0
        %2954 = vmatprep.subr.mxu0 0.0
        %2955 = vmatpush2.msra.mxu0 0.0
        %2956 = vmatprep.subr.mxu0 0.0
        %2957 = vmatpush2.msra.mxu0 0.0
        %2958 = vmatprep.subr.mxu0 0.0
        %2959 = vmatpush2.msra.mxu0 0.0
        %2960 = vmatprep.subr.mxu0 0.0
        %2961 = vmatpush2.msra.mxu0 0.0
        %2962 = vmatprep.subr.mxu0 0.0
        %2963 = vmatpush2.msra.mxu0 0.0
        %2964 = vmatprep.subr.mxu0 0.0
        %2965 = vmatpush2.msra.mxu0 0.0
        %2966 = vmatprep.subr.mxu0 0.0
        %2967 = vmatpush2.msra.mxu0 0.0
        %2968 = vmatprep.subr.mxu0 0.0
        %2969 = vmatpush2.msra.mxu0 0.0
        %2970 = vmatprep.subr.mxu0 0.0
        %2971 = vmatpush2.msra.mxu0 0.0
        %2972 = vmatprep.subr.mxu0 0.0
        %2973 = vmatpush2.msra.mxu0 0.0
        %2974 = vmatprep.subr.mxu0 0.0
        %2975 = vmatpush2.msra.mxu0 0.0
        %2976 = vmatprep.mubr.f32.mxu0 0.0
        %2977 = vmatmul.mubr.f32.gmra.mxu0 %v2903
        %v2978 = vpop.f32.mrf.mxu0
        %v2979 = vadd.f32 %v2910, %v2978
        %v2980 = vpop.f32.mrf.mxu0
        %2981 = vdwg.mxu0
        %v2982 = vadd.f32 %v2979, %v1846
        %2983 = vmatprep.subr.mxu0 0.0
        %2984 = vmatpush1.msra.mxu0 %v1862
        %2985 = vmatprep.subr.mxu0 0.0
        %2986 = vmatpush1.msra.mxu0 %v1861
        %2987 = vmatprep.subr.mxu0 0.0
        %2988 = vmatpush1.msra.mxu0 %v1860
        %2989 = vmatprep.subr.mxu0 0.0
        %2990 = vmatpush1.msra.mxu0 %v1859
        %2991 = vmatprep.subr.mxu0 0.0
        %2992 = vmatpush1.msra.mxu0 %v1858
        %2993 = vmatprep.subr.mxu0 0.0
        %2994 = vmatpush1.msra.mxu0 %v1857
        %2995 = vmatprep.subr.mxu0 0.0
        %2996 = vmatpush1.msra.mxu0 %v1856
        %2997 = vmatprep.subr.mxu0 0.0
        %2998 = vmatpush1.msra.mxu0 %v1855
        %2999 = vmatprep.subr.mxu0 0.0
        %3000 = vmatpush1.msra.mxu0 %v1854
        %3001 = vmatprep.subr.mxu0 0.0
        %3002 = vmatpush1.msra.mxu0 %v1853
        %3003 = vmatprep.subr.mxu0 0.0
        %3004 = vmatpush1.msra.mxu0 %v1852
        %3005 = vmatprep.subr.mxu0 0.0
        %3006 = vmatpush1.msra.mxu0 %v1851
        %3007 = vmatprep.subr.mxu0 0.0
        %3008 = vmatpush1.msra.mxu0 %v1850
        %3009 = vmatprep.subr.mxu0 0.0
        %3010 = vmatpush1.msra.mxu0 %v1849
        %3011 = vmatprep.subr.mxu0 0.0
        %3012 = vmatpush1.msra.mxu0 %v1848
        %3013 = vmatprep.subr.mxu0 0.0
        %3014 = vmatpush1.msra.mxu0 %v1847
        %3015 = vmatprep.subr.mxu0 0.0
        %3016 = vmatpush2.msra.mxu0 0.0
        %3017 = vmatprep.subr.mxu0 0.0
        %3018 = vmatpush2.msra.mxu0 0.0
        %3019 = vmatprep.subr.mxu0 0.0
        %3020 = vmatpush2.msra.mxu0 0.0
        %3021 = vmatprep.subr.mxu0 0.0
        %3022 = vmatpush2.msra.mxu0 0.0
        %3023 = vmatprep.subr.mxu0 0.0
        %3024 = vmatpush2.msra.mxu0 0.0
        %3025 = vmatprep.subr.mxu0 0.0
        %3026 = vmatpush2.msra.mxu0 0.0
        %3027 = vmatprep.subr.mxu0 0.0
        %3028 = vmatpush2.msra.mxu0 0.0
        %3029 = vmatprep.subr.mxu0 0.0
        %3030 = vmatpush2.msra.mxu0 0.0
        %3031 = vmatprep.subr.mxu0 0.0
        %3032 = vmatpush2.msra.mxu0 0.0
        %3033 = vmatprep.subr.mxu0 0.0
        %3034 = vmatpush2.msra.mxu0 0.0
        %3035 = vmatprep.subr.mxu0 0.0
        %3036 = vmatpush2.msra.mxu0 0.0
        %3037 = vmatprep.subr.mxu0 0.0
        %3038 = vmatpush2.msra.mxu0 0.0
        %3039 = vmatprep.subr.mxu0 0.0
        %3040 = vmatpush2.msra.mxu0 0.0
        %3041 = vmatprep.subr.mxu0 0.0
        %3042 = vmatpush2.msra.mxu0 0.0
        %3043 = vmatprep.subr.mxu0 0.0
        %3044 = vmatpush2.msra.mxu0 0.0
        %3045 = vmatprep.subr.mxu0 0.0
        %3046 = vmatpush2.msra.mxu0 0.0
        %3047 = vmatprep.mubr.f32.mxu0 0.0
        %3048 = vmatmul.mubr.f32.gmra.mxu0 %v2982
        %v3049 = vpop.f32.mrf.mxu0
        %v3050 = vadd.f32 0.0, %v3049
        %v3051 = vpop.f32.mrf.mxu0
        %3052 = vdwg.mxu0
        %v3053 = vsub.f32 %v2982, %v3050
        %v3054 = vmul.f32 %v3053, %v3053
        %3055 = vmatprep.subr.mxu0 0.0
        %3056 = vmatpush1.msra.mxu0 %v1878
        %3057 = vmatprep.subr.mxu0 0.0
        %3058 = vmatpush1.msra.mxu0 %v1877
        %3059 = vmatprep.subr.mxu0 0.0
        %3060 = vmatpush1.msra.mxu0 %v1876
        %3061 = vmatprep.subr.mxu0 0.0
        %3062 = vmatpush1.msra.mxu0 %v1875
        %3063 = vmatprep.subr.mxu0 0.0
        %3064 = vmatpush1.msra.mxu0 %v1874
        %3065 = vmatprep.subr.mxu0 0.0
        %3066 = vmatpush1.msra.mxu0 %v1873
        %3067 = vmatprep.subr.mxu0 0.0
        %3068 = vmatpush1.msra.mxu0 %v1872
        %3069 = vmatprep.subr.mxu0 0.0
        %3070 = vmatpush1.msra.mxu0 %v1871
        %3071 = vmatprep.subr.mxu0 0.0
        %3072 = vmatpush1.msra.mxu0 %v1870
        %3073 = vmatprep.subr.mxu0 0.0
        %3074 = vmatpush1.msra.mxu0 %v1869
        %3075 = vmatprep.subr.mxu0 0.0
        %3076 = vmatpush1.msra.mxu0 %v1868
        %3077 = vmatprep.subr.mxu0 0.0
        %3078 = vmatpush1.msra.mxu0 %v1867
        %3079 = vmatprep.subr.mxu0 0.0
        %3080 = vmatpush1.msra.mxu0 %v1866
        %3081 = vmatprep.subr.mxu0 0.0
        %3082 = vmatpush1.msra.mxu0 %v1865
        %3083 = vmatprep.subr.mxu0 0.0
        %3084 = vmatpush1.msra.mxu0 %v1864
        %3085 = vmatprep.subr.mxu0 0.0
        %3086 = vmatpush1.msra.mxu0 %v1863
        %3087 = vmatprep.subr.mxu0 0.0
        %3088 = vmatpush2.msra.mxu0 0.0
        %3089 = vmatprep.subr.mxu0 0.0
        %3090 = vmatpush2.msra.mxu0 0.0
        %3091 = vmatprep.subr.mxu0 0.0
        %3092 = vmatpush2.msra.mxu0 0.0
        %3093 = vmatprep.subr.mxu0 0.0
        %3094 = vmatpush2.msra.mxu0 0.0
        %3095 = vmatprep.subr.mxu0 0.0
        %3096 = vmatpush2.msra.mxu0 0.0
        %3097 = vmatprep.subr.mxu0 0.0
        %3098 = vmatpush2.msra.mxu0 0.0
        %3099 = vmatprep.subr.mxu0 0.0
        %3100 = vmatpush2.msra.mxu0 0.0
        %3101 = vmatprep.subr.mxu0 0.0
        %3102 = vmatpush2.msra.mxu0 0.0
        %3103 = vmatprep.subr.mxu0 0.0
        %3104 = vmatpush2.msra.mxu0 0.0
        %3105 = vmatprep.subr.mxu0 0.0
        %3106 = vmatpush2.msra.mxu0 0.0
        %3107 = vmatprep.subr.mxu0 0.0
        %3108 = vmatpush2.msra.mxu0 0.0
        %3109 = vmatprep.subr.mxu0 0.0
        %3110 = vmatpush2.msra.mxu0 0.0
        %3111 = vmatprep.subr.mxu0 0.0
        %3112 = vmatpush2.msra.mxu0 0.0
        %3113 = vmatprep.subr.mxu0 0.0
        %3114 = vmatpush2.msra.mxu0 0.0
        %3115 = vmatprep.subr.mxu0 0.0
        %3116 = vmatpush2.msra.mxu0 0.0
        %3117 = vmatprep.subr.mxu0 0.0
        %3118 = vmatpush2.msra.mxu0 0.0
        %3119 = vmatprep.mubr.f32.mxu0 0.0
        %3120 = vmatmul.mubr.f32.gmra.mxu0 %v3054
        %v3121 = vpop.f32.mrf.mxu0
        %v3122 = vadd.f32 0.0, %v3121
        %v3123 = vpop.f32.mrf.mxu0
        %3124 = vdwg.mxu0
        %v3125 = vrsqrt.pop %v3122
        %v3126 = vmul.f32 %v3122, %v3125
        %vm3127 = vcmp.eq.f32.partialorder %v3122, inf
        %v3128 = vsel %vm3127, %v3122, %v3126
        %vm3129 = vcmp.eq.f32.partialorder %v3122, 0.0
        %v3130 = vand.u32 %v3122, 2147483648
        %v3131 = vsel %vm3129, %v3130, %v3128
        %v3132 = vadd.f32 %v3131, 1e-06
        %v3133 = vrcp.pop %v3132
        %v3134 = vmul.f32 %v3053, %v3133
        %v3136 = vlaneseq
        %v3137 = vshrl.u32 %v3136, 7
        %v3138 = vsub.s32 0, %v3137
        %v3139 = vrot.slane %v1985, %v3138
        %v3141 = vmul.f32 %v3139, %v3134
        %v3143 = vlaneseq
        %v3144 = vshrl.u32 %v3143, 7
        %v3145 = vsub.s32 0, %v3144
        %v3146 = vrot.slane %v1986, %v3145
        %v3148 = vadd.f32 %v3141, %v3146
        %v3149 = vld [vmem:[%s1772] sm:$0xff]
        %v3150 = vld [vmem:[%s1778] sm:$0x1]
        %v3151 = vld [vmem:[%s1806] sm:$0xff]
        %v3152 = vld [vmem:[%s1806 + $0x8] sm:$0xff]
        %v3153 = vld [vmem:[%s1806 + $0x10] sm:$0xff]
        %v3154 = vld [vmem:[%s1806 + $0x18] sm:$0xff]
        %v3155 = vld [vmem:[%s1806 + $0x20] sm:$0xff]
        %v3156 = vld [vmem:[%s1806 + $0x28] sm:$0xff]
        %v3157 = vld [vmem:[%s1806 + $0x30] sm:$0xff]
        %v3158 = vld [vmem:[%s1806 + $0x38] sm:$0xff]
        %v3159 = vld [vmem:[%s1806 + $0x40] sm:$0xff]
        %v3160 = vld [vmem:[%s1806 + $0x48] sm:$0xff]
        %v3161 = vld [vmem:[%s1806 + $0x50] sm:$0xff]
        %v3162 = vld [vmem:[%s1806 + $0x58] sm:$0xff]
        %v3163 = vld [vmem:[%s1806 + $0x60] sm:$0xff]
        %v3164 = vld [vmem:[%s1806 + $0x68] sm:$0xff]
        %v3165 = vld [vmem:[%s1806 + $0x70] sm:$0xff]
        %v3166 = vld [vmem:[%s1806 + $0x78] sm:$0xff]
        %v3167 = vld [vmem:[%s1491] sm:$0x1]
        %v3168 = vld [vmem:[%s1811] sm:$0xff]
        %v3169 = vld [vmem:[%s1811 + $0x8] sm:$0xff]
        %v3170 = vld [vmem:[%s1811 + $0x10] sm:$0xff]
        %v3171 = vld [vmem:[%s1811 + $0x18] sm:$0xff]
        %v3172 = vld [vmem:[%s1811 + $0x20] sm:$0xff]
        %v3173 = vld [vmem:[%s1811 + $0x28] sm:$0xff]
        %v3174 = vld [vmem:[%s1811 + $0x30] sm:$0xff]
        %v3175 = vld [vmem:[%s1811 + $0x38] sm:$0xff]
        %v3176 = vld [vmem:[%s1811 + $0x40] sm:$0xff]
        %v3177 = vld [vmem:[%s1811 + $0x48] sm:$0xff]
        %v3178 = vld [vmem:[%s1811 + $0x50] sm:$0xff]
        %v3179 = vld [vmem:[%s1811 + $0x58] sm:$0xff]
        %v3180 = vld [vmem:[%s1811 + $0x60] sm:$0xff]
        %v3181 = vld [vmem:[%s1811 + $0x68] sm:$0xff]
        %v3182 = vld [vmem:[%s1811 + $0x70] sm:$0xff]
        %v3183 = vld [vmem:[%s1811 + $0x78] sm:$0xff]
        %v3184 = vld [vmem:[%s1499] sm:$0x1]
        %v3185 = vld [vmem:[%s1816] sm:$0xff]
        %v3186 = vld [vmem:[%s1816 + $0x8] sm:$0xff]
        %v3187 = vld [vmem:[%s1816 + $0x10] sm:$0xff]
        %v3188 = vld [vmem:[%s1816 + $0x18] sm:$0xff]
        %v3189 = vld [vmem:[%s1816 + $0x20] sm:$0xff]
        %v3190 = vld [vmem:[%s1816 + $0x28] sm:$0xff]
        %v3191 = vld [vmem:[%s1816 + $0x30] sm:$0xff]
        %v3192 = vld [vmem:[%s1816 + $0x38] sm:$0xff]
        %v3193 = vld [vmem:[%s1816 + $0x40] sm:$0xff]
        %v3194 = vld [vmem:[%s1816 + $0x48] sm:$0xff]
        %v3195 = vld [vmem:[%s1816 + $0x50] sm:$0xff]
        %v3196 = vld [vmem:[%s1816 + $0x58] sm:$0xff]
        %v3197 = vld [vmem:[%s1816 + $0x60] sm:$0xff]
        %v3198 = vld [vmem:[%s1816 + $0x68] sm:$0xff]
        %v3199 = vld [vmem:[%s1816 + $0x70] sm:$0xff]
        %v3200 = vld [vmem:[%s1816 + $0x78] sm:$0xff]
        %v3201 = vld [vmem:[%s1507] sm:$0x1]
        %v3202 = vld [vmem:[%s1821] sm:$0xff]
        %v3203 = vld [vmem:[%s1821 + $0x8] sm:$0xff]
        %v3204 = vld [vmem:[%s1821 + $0x10] sm:$0xff]
        %v3205 = vld [vmem:[%s1821 + $0x18] sm:$0xff]
        %v3206 = vld [vmem:[%s1821 + $0x20] sm:$0xff]
        %v3207 = vld [vmem:[%s1821 + $0x28] sm:$0xff]
        %v3208 = vld [vmem:[%s1821 + $0x30] sm:$0xff]
        %v3209 = vld [vmem:[%s1821 + $0x38] sm:$0xff]
        %v3210 = vld [vmem:[%s1821 + $0x40] sm:$0xff]
        %v3211 = vld [vmem:[%s1821 + $0x48] sm:$0xff]
        %v3212 = vld [vmem:[%s1821 + $0x50] sm:$0xff]
        %v3213 = vld [vmem:[%s1821 + $0x58] sm:$0xff]
        %v3214 = vld [vmem:[%s1821 + $0x60] sm:$0xff]
        %v3215 = vld [vmem:[%s1821 + $0x68] sm:$0xff]
        %v3216 = vld [vmem:[%s1821 + $0x70] sm:$0xff]
        %v3217 = vld [vmem:[%s1821 + $0x78] sm:$0xff]
        %v3218 = vld [vmem:[%s1515] sm:$0x1]
        %v3219 = vld [vmem:[%s1523] sm:$0x1]
        %v3220 = vld [vmem:[%s1531] sm:$0x1]
        %v3222 = vlaneseq
        %v3223 = vshrl.u32 %v3222, 7
        %v3224 = vsub.s32 0, %v3223
        %v3225 = vrot.slane %v3167, %v3224
        %3227 = vmatprep.subr.mxu0 0.0
        %3228 = vmatpush1.msra.mxu0 %v3166
        %3229 = vmatprep.subr.mxu0 0.0
        %3230 = vmatpush1.msra.mxu0 %v3165
        %3231 = vmatprep.subr.mxu0 0.0
        %3232 = vmatpush1.msra.mxu0 %v3164
        %3233 = vmatprep.subr.mxu0 0.0
        %3234 = vmatpush1.msra.mxu0 %v3163
        %3235 = vmatprep.subr.mxu0 0.0
        %3236 = vmatpush1.msra.mxu0 %v3162
        %3237 = vmatprep.subr.mxu0 0.0
        %3238 = vmatpush1.msra.mxu0 %v3161
        %3239 = vmatprep.subr.mxu0 0.0
        %3240 = vmatpush1.msra.mxu0 %v3160
        %3241 = vmatprep.subr.mxu0 0.0
        %3242 = vmatpush1.msra.mxu0 %v3159
        %3243 = vmatprep.subr.mxu0 0.0
        %3244 = vmatpush1.msra.mxu0 %v3158
        %3245 = vmatprep.subr.mxu0 0.0
        %3246 = vmatpush1.msra.mxu0 %v3157
        %3247 = vmatprep.subr.mxu0 0.0
        %3248 = vmatpush1.msra.mxu0 %v3156
        %3249 = vmatprep.subr.mxu0 0.0
        %3250 = vmatpush1.msra.mxu0 %v3155
        %3251 = vmatprep.subr.mxu0 0.0
        %3252 = vmatpush1.msra.mxu0 %v3154
        %3253 = vmatprep.subr.mxu0 0.0
        %3254 = vmatpush1.msra.mxu0 %v3153
        %3255 = vmatprep.subr.mxu0 0.0
        %3256 = vmatpush1.msra.mxu0 %v3152
        %3257 = vmatprep.subr.mxu0 0.0
        %3258 = vmatpush1.msra.mxu0 %v3151
        %3259 = vmatprep.subr.mxu0 0.0
        %3260 = vmatpush2.msra.mxu0 0.0
        %3261 = vmatprep.subr.mxu0 0.0
        %3262 = vmatpush2.msra.mxu0 0.0
        %3263 = vmatprep.subr.mxu0 0.0
        %3264 = vmatpush2.msra.mxu0 0.0
        %3265 = vmatprep.subr.mxu0 0.0
        %3266 = vmatpush2.msra.mxu0 0.0
        %3267 = vmatprep.subr.mxu0 0.0
        %3268 = vmatpush2.msra.mxu0 0.0
        %3269 = vmatprep.subr.mxu0 0.0
        %3270 = vmatpush2.msra.mxu0 0.0
        %3271 = vmatprep.subr.mxu0 0.0
        %3272 = vmatpush2.msra.mxu0 0.0
        %3273 = vmatprep.subr.mxu0 0.0
        %3274 = vmatpush2.msra.mxu0 0.0
        %3275 = vmatprep.subr.mxu0 0.0
        %3276 = vmatpush2.msra.mxu0 0.0
        %3277 = vmatprep.subr.mxu0 0.0
        %3278 = vmatpush2.msra.mxu0 0.0
        %3279 = vmatprep.subr.mxu0 0.0
        %3280 = vmatpush2.msra.mxu0 0.0
        %3281 = vmatprep.subr.mxu0 0.0
        %3282 = vmatpush2.msra.mxu0 0.0
        %3283 = vmatprep.subr.mxu0 0.0
        %3284 = vmatpush2.msra.mxu0 0.0
        %3285 = vmatprep.subr.mxu0 0.0
        %3286 = vmatpush2.msra.mxu0 0.0
        %3287 = vmatprep.subr.mxu0 0.0
        %3288 = vmatpush2.msra.mxu0 0.0
        %3289 = vmatprep.subr.mxu0 0.0
        %3290 = vmatpush2.msra.mxu0 0.0
        %3291 = vmatprep.mubr.f32.mxu0 0.0
        %3292 = vmatmul.mubr.f32.gmra.mxu0 %v3148
        %v3293 = vpop.f32.mrf.mxu0
        %v3294 = vadd.f32 %v3225, %v3293
        %v3295 = vpop.f32.mrf.mxu0
        %3296 = vdwg.mxu0
        %v3298 = vlaneseq
        %v3299 = vshrl.u32 %v3298, 7
        %v3300 = vsub.s32 0, %v3299
        %v3301 = vrot.slane %v3184, %v3300
        %3303 = vmatprep.subr.mxu0 0.0
        %3304 = vmatpush1.msra.mxu0 %v3183
        %3305 = vmatprep.subr.mxu0 0.0
        %3306 = vmatpush1.msra.mxu0 %v3182
        %3307 = vmatprep.subr.mxu0 0.0
        %3308 = vmatpush1.msra.mxu0 %v3181
        %3309 = vmatprep.subr.mxu0 0.0
        %3310 = vmatpush1.msra.mxu0 %v3180
        %3311 = vmatprep.subr.mxu0 0.0
        %3312 = vmatpush1.msra.mxu0 %v3179
        %3313 = vmatprep.subr.mxu0 0.0
        %3314 = vmatpush1.msra.mxu0 %v3178
        %3315 = vmatprep.subr.mxu0 0.0
        %3316 = vmatpush1.msra.mxu0 %v3177
        %3317 = vmatprep.subr.mxu0 0.0
        %3318 = vmatpush1.msra.mxu0 %v3176
        %3319 = vmatprep.subr.mxu0 0.0
        %3320 = vmatpush1.msra.mxu0 %v3175
        %3321 = vmatprep.subr.mxu0 0.0
        %3322 = vmatpush1.msra.mxu0 %v3174
        %3323 = vmatprep.subr.mxu0 0.0
        %3324 = vmatpush1.msra.mxu0 %v3173
        %3325 = vmatprep.subr.mxu0 0.0
        %3326 = vmatpush1.msra.mxu0 %v3172
        %3327 = vmatprep.subr.mxu0 0.0
        %3328 = vmatpush1.msra.mxu0 %v3171
        %3329 = vmatprep.subr.mxu0 0.0
        %3330 = vmatpush1.msra.mxu0 %v3170
        %3331 = vmatprep.subr.mxu0 0.0
        %3332 = vmatpush1.msra.mxu0 %v3169
        %3333 = vmatprep.subr.mxu0 0.0
        %3334 = vmatpush1.msra.mxu0 %v3168
        %3335 = vmatprep.subr.mxu0 0.0
        %3336 = vmatpush2.msra.mxu0 0.0
        %3337 = vmatprep.subr.mxu0 0.0
        %3338 = vmatpush2.msra.mxu0 0.0
        %3339 = vmatprep.subr.mxu0 0.0
        %3340 = vmatpush2.msra.mxu0 0.0
        %3341 = vmatprep.subr.mxu0 0.0
        %3342 = vmatpush2.msra.mxu0 0.0
        %3343 = vmatprep.subr.mxu0 0.0
        %3344 = vmatpush2.msra.mxu0 0.0
        %3345 = vmatprep.subr.mxu0 0.0
        %3346 = vmatpush2.msra.mxu0 0.0
        %3347 = vmatprep.subr.mxu0 0.0
        %3348 = vmatpush2.msra.mxu0 0.0
        %3349 = vmatprep.subr.mxu0 0.0
        %3350 = vmatpush2.msra.mxu0 0.0
        %3351 = vmatprep.subr.mxu0 0.0
        %3352 = vmatpush2.msra.mxu0 0.0
        %3353 = vmatprep.subr.mxu0 0.0
        %3354 = vmatpush2.msra.mxu0 0.0
        %3355 = vmatprep.subr.mxu0 0.0
        %3356 = vmatpush2.msra.mxu0 0.0
        %3357 = vmatprep.subr.mxu0 0.0
        %3358 = vmatpush2.msra.mxu0 0.0
        %3359 = vmatprep.subr.mxu0 0.0
        %3360 = vmatpush2.msra.mxu0 0.0
        %3361 = vmatprep.subr.mxu0 0.0
        %3362 = vmatpush2.msra.mxu0 0.0
        %3363 = vmatprep.subr.mxu0 0.0
        %3364 = vmatpush2.msra.mxu0 0.0
        %3365 = vmatprep.subr.mxu0 0.0
        %3366 = vmatpush2.msra.mxu0 0.0
        %3367 = vmatprep.mubr.f32.mxu0 0.0
        %3368 = vmatmul.mubr.f32.gmra.mxu0 %v3149
        %v3369 = vpop.f32.mrf.mxu0
        %v3370 = vadd.f32 %v3301, %v3369
        %v3371 = vpop.f32.mrf.mxu0
        %3372 = vdwg.mxu0
        %v3374 = vlaneseq
        %v3375 = vshrl.u32 %v3374, 7
        %v3376 = vsub.s32 0, %v3375
        %v3377 = vrot.slane %v3201, %v3376
        %3379 = vmatprep.subr.mxu0 0.0
        %3380 = vmatpush1.msra.mxu0 %v3200
        %3381 = vmatprep.subr.mxu0 0.0
        %3382 = vmatpush1.msra.mxu0 %v3199
        %3383 = vmatprep.subr.mxu0 0.0
        %3384 = vmatpush1.msra.mxu0 %v3198
        %3385 = vmatprep.subr.mxu0 0.0
        %3386 = vmatpush1.msra.mxu0 %v3197
        %3387 = vmatprep.subr.mxu0 0.0
        %3388 = vmatpush1.msra.mxu0 %v3196
        %3389 = vmatprep.subr.mxu0 0.0
        %3390 = vmatpush1.msra.mxu0 %v3195
        %3391 = vmatprep.subr.mxu0 0.0
        %3392 = vmatpush1.msra.mxu0 %v3194
        %3393 = vmatprep.subr.mxu0 0.0
        %3394 = vmatpush1.msra.mxu0 %v3193
        %3395 = vmatprep.subr.mxu0 0.0
        %3396 = vmatpush1.msra.mxu0 %v3192
        %3397 = vmatprep.subr.mxu0 0.0
        %3398 = vmatpush1.msra.mxu0 %v3191
        %3399 = vmatprep.subr.mxu0 0.0
        %3400 = vmatpush1.msra.mxu0 %v3190
        %3401 = vmatprep.subr.mxu0 0.0
        %3402 = vmatpush1.msra.mxu0 %v3189
        %3403 = vmatprep.subr.mxu0 0.0
        %3404 = vmatpush1.msra.mxu0 %v3188
        %3405 = vmatprep.subr.mxu0 0.0
        %3406 = vmatpush1.msra.mxu0 %v3187
        %3407 = vmatprep.subr.mxu0 0.0
        %3408 = vmatpush1.msra.mxu0 %v3186
        %3409 = vmatprep.subr.mxu0 0.0
        %3410 = vmatpush1.msra.mxu0 %v3185
        %3411 = vmatprep.subr.mxu0 0.0
        %3412 = vmatpush2.msra.mxu0 0.0
        %3413 = vmatprep.subr.mxu0 0.0
        %3414 = vmatpush2.msra.mxu0 0.0
        %3415 = vmatprep.subr.mxu0 0.0
        %3416 = vmatpush2.msra.mxu0 0.0
        %3417 = vmatprep.subr.mxu0 0.0
        %3418 = vmatpush2.msra.mxu0 0.0
        %3419 = vmatprep.subr.mxu0 0.0
        %3420 = vmatpush2.msra.mxu0 0.0
        %3421 = vmatprep.subr.mxu0 0.0
        %3422 = vmatpush2.msra.mxu0 0.0
        %3423 = vmatprep.subr.mxu0 0.0
        %3424 = vmatpush2.msra.mxu0 0.0
        %3425 = vmatprep.subr.mxu0 0.0
        %3426 = vmatpush2.msra.mxu0 0.0
        %3427 = vmatprep.subr.mxu0 0.0
        %3428 = vmatpush2.msra.mxu0 0.0
        %3429 = vmatprep.subr.mxu0 0.0
        %3430 = vmatpush2.msra.mxu0 0.0
        %3431 = vmatprep.subr.mxu0 0.0
        %3432 = vmatpush2.msra.mxu0 0.0
        %3433 = vmatprep.subr.mxu0 0.0
        %3434 = vmatpush2.msra.mxu0 0.0
        %3435 = vmatprep.subr.mxu0 0.0
        %3436 = vmatpush2.msra.mxu0 0.0
        %3437 = vmatprep.subr.mxu0 0.0
        %3438 = vmatpush2.msra.mxu0 0.0
        %3439 = vmatprep.subr.mxu0 0.0
        %3440 = vmatpush2.msra.mxu0 0.0
        %3441 = vmatprep.subr.mxu0 0.0
        %3442 = vmatpush2.msra.mxu0 0.0
        %3443 = vmatprep.mubr.f32.mxu0 0.0
        %3444 = vmatmul.mubr.f32.gmra.mxu0 %v3149
        %v3445 = vpop.f32.mrf.mxu0
        %v3446 = vadd.f32 %v3377, %v3445
        %v3447 = vpop.f32.mrf.mxu0
        %3448 = vdwg.mxu0
        %v3450 = vsel %vm2252, %v3294, 0
        %3452 = vmatprep.subr.mxu0 0.0
        %3453 = vmatpush1.msra.mxu0 0.0
        %3454 = vmatprep.subr.mxu0 0.0
        %3455 = vmatpush1.msra.mxu0 0.0
        %3456 = vmatprep.subr.mxu0 0.0
        %3457 = vmatpush1.msra.mxu0 0.0
        %3458 = vmatprep.subr.mxu0 0.0
        %3459 = vmatpush1.msra.mxu0 0.0
        %3460 = vmatprep.subr.mxu0 0.0
        %3461 = vmatpush1.msra.mxu0 0.0
        %3462 = vmatprep.subr.mxu0 0.0
        %3463 = vmatpush1.msra.mxu0 0.0
        %3464 = vmatprep.subr.mxu0 0.0
        %3465 = vmatpush1.msra.mxu0 0.0
        %3466 = vmatprep.subr.mxu0 0.0
        %3467 = vmatpush1.msra.mxu0 0.0
        %3468 = vmatprep.subr.mxu0 0.0
        %3469 = vmatpush1.msra.mxu0 0.0
        %3470 = vmatprep.subr.mxu0 0.0
        %3471 = vmatpush1.msra.mxu0 0.0
        %3472 = vmatprep.subr.mxu0 0.0
        %3473 = vmatpush1.msra.mxu0 0.0
        %3474 = vmatprep.subr.mxu0 0.0
        %3475 = vmatpush1.msra.mxu0 0.0
        %3476 = vmatprep.subr.mxu0 0.0
        %3477 = vmatpush1.msra.mxu0 0.0
        %3478 = vmatprep.subr.mxu0 0.0
        %3479 = vmatpush1.msra.mxu0 0.0
        %3480 = vmatprep.subr.mxu0 0.0
        %3481 = vmatpush1.msra.mxu0 0.0
        %3482 = vmatprep.subr.mxu0 0.0
        %3483 = vmatpush1.msra.mxu0 %v3450
        %3484 = vmatprep.subr.mxu0 0.0
        %3485 = vmatpush2.msra.mxu0 0.0
        %3486 = vmatprep.subr.mxu0 0.0
        %3487 = vmatpush2.msra.mxu0 0.0
        %3488 = vmatprep.subr.mxu0 0.0
        %3489 = vmatpush2.msra.mxu0 0.0
        %3490 = vmatprep.subr.mxu0 0.0
        %3491 = vmatpush2.msra.mxu0 0.0
        %3492 = vmatprep.subr.mxu0 0.0
        %3493 = vmatpush2.msra.mxu0 0.0
        %3494 = vmatprep.subr.mxu0 0.0
        %3495 = vmatpush2.msra.mxu0 0.0
        %3496 = vmatprep.subr.mxu0 0.0
        %3497 = vmatpush2.msra.mxu0 0.0
        %3498 = vmatprep.subr.mxu0 0.0
        %3499 = vmatpush2.msra.mxu0 0.0
        %3500 = vmatprep.subr.mxu0 0.0
        %3501 = vmatpush2.msra.mxu0 0.0
        %3502 = vmatprep.subr.mxu0 0.0
        %3503 = vmatpush2.msra.mxu0 0.0
        %3504 = vmatprep.subr.mxu0 0.0
        %3505 = vmatpush2.msra.mxu0 0.0
        %3506 = vmatprep.subr.mxu0 0.0
        %3507 = vmatpush2.msra.mxu0 0.0
        %3508 = vmatprep.subr.mxu0 0.0
        %3509 = vmatpush2.msra.mxu0 0.0
        %3510 = vmatprep.subr.mxu0 0.0
        %3511 = vmatpush2.msra.mxu0 0.0
        %3512 = vmatprep.subr.mxu0 0.0
        %3513 = vmatpush2.msra.mxu0 0.0
        %3514 = vmatprep.subr.mxu0 0.0
        %3515 = vmatpush2.msra.mxu0 0.0
        %3516 = vmatprep.mubr.f32.mxu0 0.0
        %3517 = vmatmul.mubr.f32.gmra.mxu0 %v2217
        %v3518 = vpop.f32.mrf.mxu0
        %v3519 = vadd.f32 0.0, %v3518
        %v3520 = vpop.f32.mrf.mxu0
        %3521 = vmatprep.mubr.f32.mxu0 0.0
        %3522 = vmatmul.mubr.f32.gmra.mxu0 %v2220
        %v3523 = vpop.f32.mrf.mxu0
        %v3524 = vadd.f32 0.0, %v3523
        %v3525 = vpop.f32.mrf.mxu0
        %3526 = vmatprep.mubr.f32.mxu0 0.0
        %3527 = vmatmul.mubr.f32.gmra.mxu0 %v2223
        %v3528 = vpop.f32.mrf.mxu0
        %v3529 = vadd.f32 0.0, %v3528
        %v3530 = vpop.f32.mrf.mxu0
        %3531 = vmatprep.mubr.f32.mxu0 0.0
        %3532 = vmatmul.mubr.f32.gmra.mxu0 %v2226
        %v3533 = vpop.f32.mrf.mxu0
        %v3534 = vadd.f32 0.0, %v3533
        %v3535 = vpop.f32.mrf.mxu0
        %3536 = vmatprep.mubr.f32.mxu0 0.0
        %3537 = vmatmul.mubr.f32.gmra.mxu0 %v2229
        %v3538 = vpop.f32.mrf.mxu0
        %v3539 = vadd.f32 0.0, %v3538
        %v3540 = vpop.f32.mrf.mxu0
        %3541 = vmatprep.mubr.f32.mxu0 0.0
        %3542 = vmatmul.mubr.f32.gmra.mxu0 %v2232
        %v3543 = vpop.f32.mrf.mxu0
        %v3544 = vadd.f32 0.0, %v3543
        %v3545 = vpop.f32.mrf.mxu0
        %3546 = vmatprep.mubr.f32.mxu0 0.0
        %3547 = vmatmul.mubr.f32.gmra.mxu0 %v2235
        %v3548 = vpop.f32.mrf.mxu0
        %v3549 = vadd.f32 0.0, %v3548
        %v3550 = vpop.f32.mrf.mxu0
        %3551 = vmatprep.mubr.f32.mxu0 0.0
        %3552 = vmatmul.mubr.f32.gmra.mxu0 %v2238
        %v3553 = vpop.f32.mrf.mxu0
        %v3554 = vadd.f32 0.0, %v3553
        %v3555 = vpop.f32.mrf.mxu0
        %3556 = vmatprep.mubr.f32.mxu0 0.0
        %3557 = vmatmul.mubr.f32.gmra.mxu0 %v2241
        %v3558 = vpop.f32.mrf.mxu0
        %v3559 = vadd.f32 0.0, %v3558
        %v3560 = vpop.f32.mrf.mxu0
        %3561 = vmatprep.mubr.f32.mxu0 0.0
        %3562 = vmatmul.mubr.f32.gmra.mxu0 %v2244
        %v3563 = vpop.f32.mrf.mxu0
        %v3564 = vadd.f32 0.0, %v3563
        %v3565 = vpop.f32.mrf.mxu0
        %3566 = vmatprep.mubr.f32.mxu0 0.0
        %3567 = vmatmul.mubr.f32.gmra.mxu0 %v2247
        %v3568 = vpop.f32.mrf.mxu0
        %v3569 = vadd.f32 0.0, %v3568
        %v3570 = vpop.f32.mrf.mxu0
        %3571 = vmatprep.mubr.f32.mxu0 0.0
        %3572 = vmatmul.mubr.f32.gmra.mxu0 %v2250
        %v3573 = vpop.f32.mrf.mxu0
        %v3574 = vadd.f32 0.0, %v3573
        %v3575 = vpop.f32.mrf.mxu0
        %3576 = vdwg.mxu0
        %v3577 = vmul.f32 %v3519, %v1891
        %v3578 = vmul.f32 %v3524, %v1892
        %v3579 = vmul.f32 %v3529, %v1893
        %v3580 = vmul.f32 %v3534, %v1894
        %v3581 = vmul.f32 %v3539, %v1895
        %v3582 = vmul.f32 %v3544, %v1896
        %v3583 = vmul.f32 %v3549, %v1897
        %v3584 = vmul.f32 %v3554, %v1898
        %v3585 = vmul.f32 %v3559, %v1899
        %v3586 = vmul.f32 %v3564, %v1900
        %v3587 = vmul.f32 %v3569, %v1901
        %v3588 = vmul.f32 %v3574, %v1902
        %v3590 = vlaneseq
        %v3591 = vshrl.u32 %v3590, 7
        %v3592 = vsub.s32 0, %v3591
        %v3593 = vrot.slane %v3150, %v3592
        %3595 = vmatprep.subr.mxu0 0.0
        %3596 = vmatpush1.xpose.msra.mxu0 0.0
        %3597 = vmatprep.subr.mxu0 0.0
        %3598 = vmatpush1.xpose.msra.mxu0 0.0
        %3599 = vmatprep.subr.mxu0 0.0
        %3600 = vmatpush1.xpose.msra.mxu0 0.0
        %3601 = vmatprep.subr.mxu0 0.0
        %3602 = vmatpush1.xpose.msra.mxu0 0.0
        %3603 = vmatprep.subr.mxu0 0.0
        %3604 = vmatpush1.xpose.msra.mxu0 0.0
        %3605 = vmatprep.subr.mxu0 0.0
        %3606 = vmatpush1.xpose.msra.mxu0 0.0
        %3607 = vmatprep.subr.mxu0 0.0
        %3608 = vmatpush1.xpose.msra.mxu0 0.0
        %3609 = vmatprep.subr.mxu0 0.0
        %3610 = vmatpush1.xpose.msra.mxu0 0.0
        %3611 = vmatprep.subr.mxu0 0.0
        %3612 = vmatpush1.xpose.msra.mxu0 0.0
        %3613 = vmatprep.subr.mxu0 0.0
        %3614 = vmatpush1.xpose.msra.mxu0 0.0
        %3615 = vmatprep.subr.mxu0 0.0
        %3616 = vmatpush1.xpose.msra.mxu0 0.0
        %3617 = vmatprep.subr.mxu0 0.0
        %3618 = vmatpush1.xpose.msra.mxu0 0.0
        %3619 = vmatprep.subr.mxu0 0.0
        %3620 = vmatpush1.xpose.msra.mxu0 0.0
        %3621 = vmatprep.subr.mxu0 0.0
        %3622 = vmatpush1.xpose.msra.mxu0 0.0
        %3623 = vmatprep.subr.mxu0 0.0
        %3624 = vmatpush1.xpose.msra.mxu0 0.0
        %3625 = vmatprep.subr.mxu0 0.0
        %3626 = vmatpush1.xpose.msra.mxu0 %v3370
        %3627 = vmatprep.subr.mxu0 0.0
        %3628 = vmatpush2.xpose.msra.mxu0 0.0
        %3629 = vmatprep.subr.mxu0 0.0
        %3630 = vmatpush2.xpose.msra.mxu0 0.0
        %3631 = vmatprep.subr.mxu0 0.0
        %3632 = vmatpush2.xpose.msra.mxu0 0.0
        %3633 = vmatprep.subr.mxu0 0.0
        %3634 = vmatpush2.xpose.msra.mxu0 0.0
        %3635 = vmatprep.subr.mxu0 0.0
        %3636 = vmatpush2.xpose.msra.mxu0 0.0
        %3637 = vmatprep.subr.mxu0 0.0
        %3638 = vmatpush2.xpose.msra.mxu0 0.0
        %3639 = vmatprep.subr.mxu0 0.0
        %3640 = vmatpush2.xpose.msra.mxu0 0.0
        %3641 = vmatprep.subr.mxu0 0.0
        %3642 = vmatpush2.xpose.msra.mxu0 0.0
        %3643 = vmatprep.subr.mxu0 0.0
        %3644 = vmatpush2.xpose.msra.mxu0 0.0
        %3645 = vmatprep.subr.mxu0 0.0
        %3646 = vmatpush2.xpose.msra.mxu0 0.0
        %3647 = vmatprep.subr.mxu0 0.0
        %3648 = vmatpush2.xpose.msra.mxu0 0.0
        %3649 = vmatprep.subr.mxu0 0.0
        %3650 = vmatpush2.xpose.msra.mxu0 0.0
        %3651 = vmatprep.subr.mxu0 0.0
        %3652 = vmatpush2.xpose.msra.mxu0 0.0
        %3653 = vmatprep.subr.mxu0 0.0
        %3654 = vmatpush2.xpose.msra.mxu0 0.0
        %3655 = vmatprep.subr.mxu0 0.0
        %3656 = vmatpush2.xpose.msra.mxu0 0.0
        %3657 = vmatprep.subr.mxu0 0.0
        %3658 = vmatpush2.xpose.msra.mxu0 0.0
        %3659 = vmatprep.mubr.f32.mxu0 0.0
        %3660 = vmatmul.mubr.f32.gmra.mxu0 %v3577
        %v3661 = vpop.f32.mrf.mxu0
        %v3662 = vadd.f32 %v3593, %v3661
        %v3663 = vpop.f32.mrf.mxu0
        %3664 = vmatprep.mubr.f32.mxu0 0.0
        %3665 = vmatmul.mubr.f32.gmra.mxu0 %v3578
        %v3666 = vpop.f32.mrf.mxu0
        %v3667 = vadd.f32 %v3593, %v3666
        %v3668 = vpop.f32.mrf.mxu0
        %3669 = vmatprep.mubr.f32.mxu0 0.0
        %3670 = vmatmul.mubr.f32.gmra.mxu0 %v3579
        %v3671 = vpop.f32.mrf.mxu0
        %v3672 = vadd.f32 %v3593, %v3671
        %v3673 = vpop.f32.mrf.mxu0
        %3674 = vmatprep.mubr.f32.mxu0 0.0
        %3675 = vmatmul.mubr.f32.gmra.mxu0 %v3580
        %v3676 = vpop.f32.mrf.mxu0
        %v3677 = vadd.f32 %v3593, %v3676
        %v3678 = vpop.f32.mrf.mxu0
        %3679 = vmatprep.mubr.f32.mxu0 0.0
        %3680 = vmatmul.mubr.f32.gmra.mxu0 %v3581
        %v3681 = vpop.f32.mrf.mxu0
        %v3682 = vadd.f32 %v3593, %v3681
        %v3683 = vpop.f32.mrf.mxu0
        %3684 = vmatprep.mubr.f32.mxu0 0.0
        %3685 = vmatmul.mubr.f32.gmra.mxu0 %v3582
        %v3686 = vpop.f32.mrf.mxu0
        %v3687 = vadd.f32 %v3593, %v3686
        %v3688 = vpop.f32.mrf.mxu0
        %3689 = vmatprep.mubr.f32.mxu0 0.0
        %3690 = vmatmul.mubr.f32.gmra.mxu0 %v3583
        %v3691 = vpop.f32.mrf.mxu0
        %v3692 = vadd.f32 %v3593, %v3691
        %v3693 = vpop.f32.mrf.mxu0
        %3694 = vmatprep.mubr.f32.mxu0 0.0
        %3695 = vmatmul.mubr.f32.gmra.mxu0 %v3584
        %v3696 = vpop.f32.mrf.mxu0
        %v3697 = vadd.f32 %v3593, %v3696
        %v3698 = vpop.f32.mrf.mxu0
        %3699 = vmatprep.mubr.f32.mxu0 0.0
        %3700 = vmatmul.mubr.f32.gmra.mxu0 %v3585
        %v3701 = vpop.f32.mrf.mxu0
        %v3702 = vadd.f32 %v3593, %v3701
        %v3703 = vpop.f32.mrf.mxu0
        %3704 = vmatprep.mubr.f32.mxu0 0.0
        %3705 = vmatmul.mubr.f32.gmra.mxu0 %v3586
        %v3706 = vpop.f32.mrf.mxu0
        %v3707 = vadd.f32 %v3593, %v3706
        %v3708 = vpop.f32.mrf.mxu0
        %3709 = vmatprep.mubr.f32.mxu0 0.0
        %3710 = vmatmul.mubr.f32.gmra.mxu0 %v3587
        %v3711 = vpop.f32.mrf.mxu0
        %v3712 = vadd.f32 %v3593, %v3711
        %v3713 = vpop.f32.mrf.mxu0
        %3714 = vmatprep.mubr.f32.mxu0 0.0
        %3715 = vmatmul.mubr.f32.gmra.mxu0 %v3588
        %v3716 = vpop.f32.mrf.mxu0
        %v3717 = vadd.f32 %v3593, %v3716
        %v3718 = vpop.f32.mrf.mxu0
        %3719 = vdwg.mxu0
        %vm3720 = vcmask 64512
        %v3721 = vsel %vm3720, %v3662, -inf
        %3722 = vmax.xlane.f32.xlu0 %v3721
        %v3723 = vpop.xlane.xlu0 %3722
        %v3724 = vsel %vm3720, %v3667, -inf
        %3725 = vmax.xlane.f32.xlu0 %v3724
        %v3726 = vpop.xlane.xlu0 %3725
        %v3727 = vsel %vm3720, %v3672, -inf
        %3728 = vmax.xlane.f32.xlu0 %v3727
        %v3729 = vpop.xlane.xlu0 %3728
        %v3730 = vsel %vm3720, %v3677, -inf
        %3731 = vmax.xlane.f32.xlu0 %v3730
        %v3732 = vpop.xlane.xlu0 %3731
        %v3733 = vsel %vm3720, %v3682, -inf
        %3734 = vmax.xlane.f32.xlu0 %v3733
        %v3735 = vpop.xlane.xlu0 %3734
        %v3736 = vsel %vm3720, %v3687, -inf
        %3737 = vmax.xlane.f32.xlu0 %v3736
        %v3738 = vpop.xlane.xlu0 %3737
        %v3739 = vsel %vm3720, %v3692, -inf
        %3740 = vmax.xlane.f32.xlu0 %v3739
        %v3741 = vpop.xlane.xlu0 %3740
        %v3742 = vsel %vm3720, %v3697, -inf
        %3743 = vmax.xlane.f32.xlu0 %v3742
        %v3744 = vpop.xlane.xlu0 %3743
        %v3745 = vsel %vm3720, %v3702, -inf
        %3746 = vmax.xlane.f32.xlu0 %v3745
        %v3747 = vpop.xlane.xlu0 %3746
        %v3748 = vsel %vm3720, %v3707, -inf
        %3749 = vmax.xlane.f32.xlu0 %v3748
        %v3750 = vpop.xlane.xlu0 %3749
        %v3751 = vsel %vm3720, %v3712, -inf
        %3752 = vmax.xlane.f32.xlu0 %v3751
        %v3753 = vpop.xlane.xlu0 %3752
        %v3754 = vsel %vm3720, %v3717, -inf
        %3755 = vmax.xlane.f32.xlu0 %v3754
        %v3756 = vpop.xlane.xlu0 %3755
        %v3757 = vsub.f32 %v3662, %v3723
        %v3758 = vsub.f32 %v3667, %v3726
        %v3759 = vsub.f32 %v3672, %v3729
        %v3760 = vsub.f32 %v3677, %v3732
        %v3761 = vsub.f32 %v3682, %v3735
        %v3762 = vsub.f32 %v3687, %v3738
        %v3763 = vsub.f32 %v3692, %v3741
        %v3764 = vsub.f32 %v3697, %v3744
        %v3765 = vsub.f32 %v3702, %v3747
        %v3766 = vsub.f32 %v3707, %v3750
        %v3767 = vsub.f32 %v3712, %v3753
        %v3768 = vsub.f32 %v3717, %v3756
        %v3769 = vmul.f32 %v3757, 1.442695
        %v3770 = vpow.pop %v3769
        %v3771 = vmul.f32 %v3758, 1.442695
        %v3772 = vpow.pop %v3771
        %v3773 = vmul.f32 %v3759, 1.442695
        %v3774 = vpow.pop %v3773
        %v3775 = vmul.f32 %v3760, 1.442695
        %v3776 = vpow.pop %v3775
        %v3777 = vmul.f32 %v3761, 1.442695
        %v3778 = vpow.pop %v3777
        %v3779 = vmul.f32 %v3762, 1.442695
        %v3780 = vpow.pop %v3779
        %v3781 = vmul.f32 %v3763, 1.442695
        %v3782 = vpow.pop %v3781
        %v3783 = vmul.f32 %v3764, 1.442695
        %v3784 = vpow.pop %v3783
        %v3785 = vmul.f32 %v3765, 1.442695
        %v3786 = vpow.pop %v3785
        %v3787 = vmul.f32 %v3766, 1.442695
        %v3788 = vpow.pop %v3787
        %v3789 = vmul.f32 %v3767, 1.442695
        %v3790 = vpow.pop %v3789
        %v3791 = vmul.f32 %v3768, 1.442695
        %v3792 = vpow.pop %v3791
        %v3793 = vsel %vm3720, %v3770, 0.0
        %3794 = vadd.xlane.f32.xlu0 %v3793
        %v3795 = vpop.xlane.xlu0 %3794
        %v3796 = vsel %vm3720, %v3772, 0.0
        %3797 = vadd.xlane.f32.xlu0 %v3796
        %v3798 = vpop.xlane.xlu0 %3797
        %v3799 = vsel %vm3720, %v3774, 0.0
        %3800 = vadd.xlane.f32.xlu0 %v3799
        %v3801 = vpop.xlane.xlu0 %3800
        %v3802 = vsel %vm3720, %v3776, 0.0
        %3803 = vadd.xlane.f32.xlu0 %v3802
        %v3804 = vpop.xlane.xlu0 %3803
        %v3805 = vsel %vm3720, %v3778, 0.0
        %3806 = vadd.xlane.f32.xlu0 %v3805
        %v3807 = vpop.xlane.xlu0 %3806
        %v3808 = vsel %vm3720, %v3780, 0.0
        %3809 = vadd.xlane.f32.xlu0 %v3808
        %v3810 = vpop.xlane.xlu0 %3809
        %v3811 = vsel %vm3720, %v3782, 0.0
        %3812 = vadd.xlane.f32.xlu0 %v3811
        %v3813 = vpop.xlane.xlu0 %3812
        %v3814 = vsel %vm3720, %v3784, 0.0
        %3815 = vadd.xlane.f32.xlu0 %v3814
        %v3816 = vpop.xlane.xlu0 %3815
        %v3817 = vsel %vm3720, %v3786, 0.0
        %3818 = vadd.xlane.f32.xlu0 %v3817
        %v3819 = vpop.xlane.xlu0 %3818
        %v3820 = vsel %vm3720, %v3788, 0.0
        %3821 = vadd.xlane.f32.xlu0 %v3820
        %v3822 = vpop.xlane.xlu0 %3821
        %v3823 = vsel %vm3720, %v3790, 0.0
        %3824 = vadd.xlane.f32.xlu0 %v3823
        %v3825 = vpop.xlane.xlu0 %3824
        %v3826 = vsel %vm3720, %v3792, 0.0
        %3827 = vadd.xlane.f32.xlu0 %v3826
        %v3828 = vpop.xlane.xlu0 %3827
        %v3829 = vrcp.pop %v3795
        %v3830 = vmul.f32 %v3770, %v3829
        %v3831 = vrcp.pop %v3798
        %v3832 = vmul.f32 %v3772, %v3831
        %v3833 = vrcp.pop %v3801
        %v3834 = vmul.f32 %v3774, %v3833
        %v3835 = vrcp.pop %v3804
        %v3836 = vmul.f32 %v3776, %v3835
        %v3837 = vrcp.pop %v3807
        %v3838 = vmul.f32 %v3778, %v3837
        %v3839 = vrcp.pop %v3810
        %v3840 = vmul.f32 %v3780, %v3839
        %v3841 = vrcp.pop %v3813
        %v3842 = vmul.f32 %v3782, %v3841
        %v3843 = vrcp.pop %v3816
        %v3844 = vmul.f32 %v3784, %v3843
        %v3845 = vrcp.pop %v3819
        %v3846 = vmul.f32 %v3786, %v3845
        %v3847 = vrcp.pop %v3822
        %v3848 = vmul.f32 %v3788, %v3847
        %v3849 = vrcp.pop %v3825
        %v3850 = vmul.f32 %v3790, %v3849
        %v3851 = vrcp.pop %v3828
        %v3852 = vmul.f32 %v3792, %v3851
        %v3854 = vsel %vm3720, %v3830, 0
        %v3857 = vsel %vm3720, %v3832, 0
        %v3860 = vsel %vm3720, %v3834, 0
        %v3863 = vsel %vm3720, %v3836, 0
        %v3866 = vsel %vm3720, %v3838, 0
        %v3869 = vsel %vm3720, %v3840, 0
        %v3872 = vsel %vm3720, %v3842, 0
        %v3875 = vsel %vm3720, %v3844, 0
        %v3878 = vsel %vm3720, %v3846, 0
        %v3881 = vsel %vm3720, %v3848, 0
        %v3884 = vsel %vm3720, %v3850, 0
        %v3887 = vsel %vm3720, %v3852, 0
        %3889 = vmatprep.subr.mxu0 0.0
        %3890 = vmatpush1.msra.mxu0 0.0
        %3891 = vmatprep.subr.mxu0 0.0
        %3892 = vmatpush1.msra.mxu0 0.0
        %3893 = vmatprep.subr.mxu0 0.0
        %3894 = vmatpush1.msra.mxu0 0.0
        %3895 = vmatprep.subr.mxu0 0.0
        %3896 = vmatpush1.msra.mxu0 0.0
        %3897 = vmatprep.subr.mxu0 0.0
        %3898 = vmatpush1.msra.mxu0 0.0
        %3899 = vmatprep.subr.mxu0 0.0
        %3900 = vmatpush1.msra.mxu0 0.0
        %3901 = vmatprep.subr.mxu0 0.0
        %3902 = vmatpush1.msra.mxu0 0.0
        %3903 = vmatprep.subr.mxu0 0.0
        %3904 = vmatpush1.msra.mxu0 0.0
        %3905 = vmatprep.subr.mxu0 0.0
        %3906 = vmatpush1.msra.mxu0 0.0
        %3907 = vmatprep.subr.mxu0 0.0
        %3908 = vmatpush1.msra.mxu0 0.0
        %3909 = vmatprep.subr.mxu0 0.0
        %3910 = vmatpush1.msra.mxu0 0.0
        %3911 = vmatprep.subr.mxu0 0.0
        %3912 = vmatpush1.msra.mxu0 0.0
        %3913 = vmatprep.subr.mxu0 0.0
        %3914 = vmatpush1.msra.mxu0 0.0
        %3915 = vmatprep.subr.mxu0 0.0
        %3916 = vmatpush1.msra.mxu0 0.0
        %3917 = vmatprep.subr.mxu0 0.0
        %3918 = vmatpush1.msra.mxu0 0.0
        %3919 = vmatprep.subr.mxu0 0.0
        %3920 = vmatpush1.msra.mxu0 %v3446
        %3921 = vmatprep.subr.mxu0 0.0
        %3922 = vmatpush2.msra.mxu0 0.0
        %3923 = vmatprep.subr.mxu0 0.0
        %3924 = vmatpush2.msra.mxu0 0.0
        %3925 = vmatprep.subr.mxu0 0.0
        %3926 = vmatpush2.msra.mxu0 0.0
        %3927 = vmatprep.subr.mxu0 0.0
        %3928 = vmatpush2.msra.mxu0 0.0
        %3929 = vmatprep.subr.mxu0 0.0
        %3930 = vmatpush2.msra.mxu0 0.0
        %3931 = vmatprep.subr.mxu0 0.0
        %3932 = vmatpush2.msra.mxu0 0.0
        %3933 = vmatprep.subr.mxu0 0.0
        %3934 = vmatpush2.msra.mxu0 0.0
        %3935 = vmatprep.subr.mxu0 0.0
        %3936 = vmatpush2.msra.mxu0 0.0
        %3937 = vmatprep.subr.mxu0 0.0
        %3938 = vmatpush2.msra.mxu0 0.0
        %3939 = vmatprep.subr.mxu0 0.0
        %3940 = vmatpush2.msra.mxu0 0.0
        %3941 = vmatprep.subr.mxu0 0.0
        %3942 = vmatpush2.msra.mxu0 0.0
        %3943 = vmatprep.subr.mxu0 0.0
        %3944 = vmatpush2.msra.mxu0 0.0
        %3945 = vmatprep.subr.mxu0 0.0
        %3946 = vmatpush2.msra.mxu0 0.0
        %3947 = vmatprep.subr.mxu0 0.0
        %3948 = vmatpush2.msra.mxu0 0.0
        %3949 = vmatprep.subr.mxu0 0.0
        %3950 = vmatpush2.msra.mxu0 0.0
        %3951 = vmatprep.subr.mxu0 0.0
        %3952 = vmatpush2.msra.mxu0 0.0
        %3953 = vmatprep.mubr.f32.mxu0 0.0
        %3954 = vmatmul.mubr.f32.gmra.mxu0 %v3854
        %v3955 = vpop.f32.mrf.mxu0
        %v3956 = vadd.f32 0.0, %v3955
        %v3957 = vpop.f32.mrf.mxu0
        %3958 = vmatprep.mubr.f32.mxu0 0.0
        %3959 = vmatmul.mubr.f32.gmra.mxu0 %v3857
        %v3960 = vpop.f32.mrf.mxu0
        %v3961 = vadd.f32 0.0, %v3960
        %v3962 = vpop.f32.mrf.mxu0
        %3963 = vmatprep.mubr.f32.mxu0 0.0
        %3964 = vmatmul.mubr.f32.gmra.mxu0 %v3860
        %v3965 = vpop.f32.mrf.mxu0
        %v3966 = vadd.f32 0.0, %v3965
        %v3967 = vpop.f32.mrf.mxu0
        %3968 = vmatprep.mubr.f32.mxu0 0.0
        %3969 = vmatmul.mubr.f32.gmra.mxu0 %v3863
        %v3970 = vpop.f32.mrf.mxu0
        %v3971 = vadd.f32 0.0, %v3970
        %v3972 = vpop.f32.mrf.mxu0
        %3973 = vmatprep.mubr.f32.mxu0 0.0
        %3974 = vmatmul.mubr.f32.gmra.mxu0 %v3866
        %v3975 = vpop.f32.mrf.mxu0
        %v3976 = vadd.f32 0.0, %v3975
        %v3977 = vpop.f32.mrf.mxu0
        %3978 = vmatprep.mubr.f32.mxu0 0.0
        %3979 = vmatmul.mubr.f32.gmra.mxu0 %v3869
        %v3980 = vpop.f32.mrf.mxu0
        %v3981 = vadd.f32 0.0, %v3980
        %v3982 = vpop.f32.mrf.mxu0
        %3983 = vmatprep.mubr.f32.mxu0 0.0
        %3984 = vmatmul.mubr.f32.gmra.mxu0 %v3872
        %v3985 = vpop.f32.mrf.mxu0
        %v3986 = vadd.f32 0.0, %v3985
        %v3987 = vpop.f32.mrf.mxu0
        %3988 = vmatprep.mubr.f32.mxu0 0.0
        %3989 = vmatmul.mubr.f32.gmra.mxu0 %v3875
        %v3990 = vpop.f32.mrf.mxu0
        %v3991 = vadd.f32 0.0, %v3990
        %v3992 = vpop.f32.mrf.mxu0
        %3993 = vmatprep.mubr.f32.mxu0 0.0
        %3994 = vmatmul.mubr.f32.gmra.mxu0 %v3878
        %v3995 = vpop.f32.mrf.mxu0
        %v3996 = vadd.f32 0.0, %v3995
        %v3997 = vpop.f32.mrf.mxu0
        %3998 = vmatprep.mubr.f32.mxu0 0.0
        %3999 = vmatmul.mubr.f32.gmra.mxu0 %v3881
        %v4000 = vpop.f32.mrf.mxu0
        %v4001 = vadd.f32 0.0, %v4000
        %v4002 = vpop.f32.mrf.mxu0
        %4003 = vmatprep.mubr.f32.mxu0 0.0
        %4004 = vmatmul.mubr.f32.gmra.mxu0 %v3884
        %v4005 = vpop.f32.mrf.mxu0
        %v4006 = vadd.f32 0.0, %v4005
        %v4007 = vpop.f32.mrf.mxu0
        %4008 = vmatprep.mubr.f32.mxu0 0.0
        %4009 = vmatmul.mubr.f32.gmra.mxu0 %v3887
        %v4010 = vpop.f32.mrf.mxu0
        %v4011 = vadd.f32 0.0, %v4010
        %v4012 = vpop.f32.mrf.mxu0
        %4013 = vdwg.mxu0
        %v4014 = vmul.f32 %v3956, %v1903
        %v4015 = vmul.f32 %v3961, %v1904
        %v4016 = vmul.f32 %v3966, %v1905
        %v4017 = vmul.f32 %v3971, %v1906
        %v4018 = vmul.f32 %v3976, %v1907
        %v4019 = vmul.f32 %v3981, %v1908
        %v4020 = vmul.f32 %v3986, %v1909
        %v4021 = vmul.f32 %v3991, %v1910
        %v4022 = vmul.f32 %v3996, %v1911
        %v4023 = vmul.f32 %v4001, %v1912
        %v4024 = vmul.f32 %v4006, %v1913
        %v4025 = vmul.f32 %v4011, %v1914
        %4026 = vmatprep.subr.mxu0 0.0
        %4027 = vmatpush1.msra.mxu0 0.0
        %4028 = vmatprep.subr.mxu0 0.0
        %4029 = vmatpush1.msra.mxu0 0.0
        %4030 = vmatprep.subr.mxu0 0.0
        %4031 = vmatpush1.msra.mxu0 0.0
        %4032 = vmatprep.subr.mxu0 0.0
        %4033 = vmatpush1.msra.mxu0 0.0
        %4034 = vmatprep.subr.mxu0 0.0
        %4035 = vmatpush1.msra.mxu0 %v4025
        %4036 = vmatprep.subr.mxu0 0.0
        %4037 = vmatpush1.msra.mxu0 %v4024
        %4038 = vmatprep.subr.mxu0 0.0
        %4039 = vmatpush1.msra.mxu0 %v4023
        %4040 = vmatprep.subr.mxu0 0.0
        %4041 = vmatpush1.msra.mxu0 %v4022
        %4042 = vmatprep.subr.mxu0 0.0
        %4043 = vmatpush1.msra.mxu0 %v4021
        %4044 = vmatprep.subr.mxu0 0.0
        %4045 = vmatpush1.msra.mxu0 %v4020
        %4046 = vmatprep.subr.mxu0 0.0
        %4047 = vmatpush1.msra.mxu0 %v4019
        %4048 = vmatprep.subr.mxu0 0.0
        %4049 = vmatpush1.msra.mxu0 %v4018
        %4050 = vmatprep.subr.mxu0 0.0
        %4051 = vmatpush1.msra.mxu0 %v4017
        %4052 = vmatprep.subr.mxu0 0.0
        %4053 = vmatpush1.msra.mxu0 %v4016
        %4054 = vmatprep.subr.mxu0 0.0
        %4055 = vmatpush1.msra.mxu0 %v4015
        %4056 = vmatprep.subr.mxu0 0.0
        %4057 = vmatpush1.msra.mxu0 %v4014
        %4058 = vmatprep.subr.mxu0 0.0
        %4059 = vmatpush2.msra.mxu0 0.0
        %4060 = vmatprep.subr.mxu0 0.0
        %4061 = vmatpush2.msra.mxu0 0.0
        %4062 = vmatprep.subr.mxu0 0.0
        %4063 = vmatpush2.msra.mxu0 0.0
        %4064 = vmatprep.subr.mxu0 0.0
        %4065 = vmatpush2.msra.mxu0 0.0
        %4066 = vmatprep.subr.mxu0 0.0
        %4067 = vmatpush2.msra.mxu0 0.0
        %4068 = vmatprep.subr.mxu0 0.0
        %4069 = vmatpush2.msra.mxu0 0.0
        %4070 = vmatprep.subr.mxu0 0.0
        %4071 = vmatpush2.msra.mxu0 0.0
        %4072 = vmatprep.subr.mxu0 0.0
        %4073 = vmatpush2.msra.mxu0 0.0
        %4074 = vmatprep.subr.mxu0 0.0
        %4075 = vmatpush2.msra.mxu0 0.0
        %4076 = vmatprep.subr.mxu0 0.0
        %4077 = vmatpush2.msra.mxu0 0.0
        %4078 = vmatprep.subr.mxu0 0.0
        %4079 = vmatpush2.msra.mxu0 0.0
        %4080 = vmatprep.subr.mxu0 0.0
        %4081 = vmatpush2.msra.mxu0 0.0
        %4082 = vmatprep.subr.mxu0 0.0
        %4083 = vmatpush2.msra.mxu0 0.0
        %4084 = vmatprep.subr.mxu0 0.0
        %4085 = vmatpush2.msra.mxu0 0.0
        %4086 = vmatprep.subr.mxu0 0.0
        %4087 = vmatpush2.msra.mxu0 0.0
        %4088 = vmatprep.subr.mxu0 0.0
        %4089 = vmatpush2.msra.mxu0 0.0
        %4090 = vmatprep.mubr.f32.mxu0 0.0
        %4091 = vmatmul.mubr.f32.gmra.mxu0 %v2834
        %v4092 = vpop.f32.mrf.mxu0
        %v4093 = vadd.f32 0.0, %v4092
        %v4094 = vpop.f32.mrf.mxu0
        %4095 = vdwg.mxu0
        %v4097 = vlaneseq
        %v4098 = vshrl.u32 %v4097, 7
        %v4099 = vsub.s32 0, %v4098
        %v4100 = vrot.slane %v3218, %v4099
        %4102 = vmatprep.subr.mxu0 0.0
        %4103 = vmatpush1.msra.mxu0 %v3217
        %4104 = vmatprep.subr.mxu0 0.0
        %4105 = vmatpush1.msra.mxu0 %v3216
        %4106 = vmatprep.subr.mxu0 0.0
        %4107 = vmatpush1.msra.mxu0 %v3215
        %4108 = vmatprep.subr.mxu0 0.0
        %4109 = vmatpush1.msra.mxu0 %v3214
        %4110 = vmatprep.subr.mxu0 0.0
        %4111 = vmatpush1.msra.mxu0 %v3213
        %4112 = vmatprep.subr.mxu0 0.0
        %4113 = vmatpush1.msra.mxu0 %v3212
        %4114 = vmatprep.subr.mxu0 0.0
        %4115 = vmatpush1.msra.mxu0 %v3211
        %4116 = vmatprep.subr.mxu0 0.0
        %4117 = vmatpush1.msra.mxu0 %v3210
        %4118 = vmatprep.subr.mxu0 0.0
        %4119 = vmatpush1.msra.mxu0 %v3209
        %4120 = vmatprep.subr.mxu0 0.0
        %4121 = vmatpush1.msra.mxu0 %v3208
        %4122 = vmatprep.subr.mxu0 0.0
        %4123 = vmatpush1.msra.mxu0 %v3207
        %4124 = vmatprep.subr.mxu0 0.0
        %4125 = vmatpush1.msra.mxu0 %v3206
        %4126 = vmatprep.subr.mxu0 0.0
        %4127 = vmatpush1.msra.mxu0 %v3205
        %4128 = vmatprep.subr.mxu0 0.0
        %4129 = vmatpush1.msra.mxu0 %v3204
        %4130 = vmatprep.subr.mxu0 0.0
        %4131 = vmatpush1.msra.mxu0 %v3203
        %4132 = vmatprep.subr.mxu0 0.0
        %4133 = vmatpush1.msra.mxu0 %v3202
        %4134 = vmatprep.subr.mxu0 0.0
        %4135 = vmatpush2.msra.mxu0 0.0
        %4136 = vmatprep.subr.mxu0 0.0
        %4137 = vmatpush2.msra.mxu0 0.0
        %4138 = vmatprep.subr.mxu0 0.0
        %4139 = vmatpush2.msra.mxu0 0.0
        %4140 = vmatprep.subr.mxu0 0.0
        %4141 = vmatpush2.msra.mxu0 0.0
        %4142 = vmatprep.subr.mxu0 0.0
        %4143 = vmatpush2.msra.mxu0 0.0
        %4144 = vmatprep.subr.mxu0 0.0
        %4145 = vmatpush2.msra.mxu0 0.0
        %4146 = vmatprep.subr.mxu0 0.0
        %4147 = vmatpush2.msra.mxu0 0.0
        %4148 = vmatprep.subr.mxu0 0.0
        %4149 = vmatpush2.msra.mxu0 0.0
        %4150 = vmatprep.subr.mxu0 0.0
        %4151 = vmatpush2.msra.mxu0 0.0
        %4152 = vmatprep.subr.mxu0 0.0
        %4153 = vmatpush2.msra.mxu0 0.0
        %4154 = vmatprep.subr.mxu0 0.0
        %4155 = vmatpush2.msra.mxu0 0.0
        %4156 = vmatprep.subr.mxu0 0.0
        %4157 = vmatpush2.msra.mxu0 0.0
        %4158 = vmatprep.subr.mxu0 0.0
        %4159 = vmatpush2.msra.mxu0 0.0
        %4160 = vmatprep.subr.mxu0 0.0
        %4161 = vmatpush2.msra.mxu0 0.0
        %4162 = vmatprep.subr.mxu0 0.0
        %4163 = vmatpush2.msra.mxu0 0.0
        %4164 = vmatprep.subr.mxu0 0.0
        %4165 = vmatpush2.msra.mxu0 0.0
        %4166 = vmatprep.mubr.f32.mxu0 0.0
        %4167 = vmatmul.mubr.f32.gmra.mxu0 %v4093
        %v4168 = vpop.f32.mrf.mxu0
        %v4169 = vadd.f32 %v4100, %v4168
        %v4170 = vpop.f32.mrf.mxu0
        %4171 = vdwg.mxu0
        %v4172 = vadd.f32 %v4169, %v3148
        %4173 = vmatprep.subr.mxu0 0.0
        %4174 = vmatpush1.msra.mxu0 %v1862
        %4175 = vmatprep.subr.mxu0 0.0
        %4176 = vmatpush1.msra.mxu0 %v1861
        %4177 = vmatprep.subr.mxu0 0.0
        %4178 = vmatpush1.msra.mxu0 %v1860
        %4179 = vmatprep.subr.mxu0 0.0
        %4180 = vmatpush1.msra.mxu0 %v1859
        %4181 = vmatprep.subr.mxu0 0.0
        %4182 = vmatpush1.msra.mxu0 %v1858
        %4183 = vmatprep.subr.mxu0 0.0
        %4184 = vmatpush1.msra.mxu0 %v1857
        %4185 = vmatprep.subr.mxu0 0.0
        %4186 = vmatpush1.msra.mxu0 %v1856
        %4187 = vmatprep.subr.mxu0 0.0
        %4188 = vmatpush1.msra.mxu0 %v1855
        %4189 = vmatprep.subr.mxu0 0.0
        %4190 = vmatpush1.msra.mxu0 %v1854
        %4191 = vmatprep.subr.mxu0 0.0
        %4192 = vmatpush1.msra.mxu0 %v1853
        %4193 = vmatprep.subr.mxu0 0.0
        %4194 = vmatpush1.msra.mxu0 %v1852
        %4195 = vmatprep.subr.mxu0 0.0
        %4196 = vmatpush1.msra.mxu0 %v1851
        %4197 = vmatprep.subr.mxu0 0.0
        %4198 = vmatpush1.msra.mxu0 %v1850
        %4199 = vmatprep.subr.mxu0 0.0
        %4200 = vmatpush1.msra.mxu0 %v1849
        %4201 = vmatprep.subr.mxu0 0.0
        %4202 = vmatpush1.msra.mxu0 %v1848
        %4203 = vmatprep.subr.mxu0 0.0
        %4204 = vmatpush1.msra.mxu0 %v1847
        %4205 = vmatprep.subr.mxu0 0.0
        %4206 = vmatpush2.msra.mxu0 0.0
        %4207 = vmatprep.subr.mxu0 0.0
        %4208 = vmatpush2.msra.mxu0 0.0
        %4209 = vmatprep.subr.mxu0 0.0
        %4210 = vmatpush2.msra.mxu0 0.0
        %4211 = vmatprep.subr.mxu0 0.0
        %4212 = vmatpush2.msra.mxu0 0.0
        %4213 = vmatprep.subr.mxu0 0.0
        %4214 = vmatpush2.msra.mxu0 0.0
        %4215 = vmatprep.subr.mxu0 0.0
        %4216 = vmatpush2.msra.mxu0 0.0
        %4217 = vmatprep.subr.mxu0 0.0
        %4218 = vmatpush2.msra.mxu0 0.0
        %4219 = vmatprep.subr.mxu0 0.0
        %4220 = vmatpush2.msra.mxu0 0.0
        %4221 = vmatprep.subr.mxu0 0.0
        %4222 = vmatpush2.msra.mxu0 0.0
        %4223 = vmatprep.subr.mxu0 0.0
        %4224 = vmatpush2.msra.mxu0 0.0
        %4225 = vmatprep.subr.mxu0 0.0
        %4226 = vmatpush2.msra.mxu0 0.0
        %4227 = vmatprep.subr.mxu0 0.0
        %4228 = vmatpush2.msra.mxu0 0.0
        %4229 = vmatprep.subr.mxu0 0.0
        %4230 = vmatpush2.msra.mxu0 0.0
        %4231 = vmatprep.subr.mxu0 0.0
        %4232 = vmatpush2.msra.mxu0 0.0
        %4233 = vmatprep.subr.mxu0 0.0
        %4234 = vmatpush2.msra.mxu0 0.0
        %4235 = vmatprep.subr.mxu0 0.0
        %4236 = vmatpush2.msra.mxu0 0.0
        %4237 = vmatprep.mubr.f32.mxu0 0.0
        %4238 = vmatmul.mubr.f32.gmra.mxu0 %v4172
        %v4239 = vpop.f32.mrf.mxu0
        %v4240 = vadd.f32 0.0, %v4239
        %v4241 = vpop.f32.mrf.mxu0
        %4242 = vdwg.mxu0
        %v4243 = vsub.f32 %v4172, %v4240
        %v4244 = vmul.f32 %v4243, %v4243
        %4245 = vmatprep.subr.mxu0 0.0
        %4246 = vmatpush1.msra.mxu0 %v1878
        %4247 = vmatprep.subr.mxu0 0.0
        %4248 = vmatpush1.msra.mxu0 %v1877
        %4249 = vmatprep.subr.mxu0 0.0
        %4250 = vmatpush1.msra.mxu0 %v1876
        %4251 = vmatprep.subr.mxu0 0.0
        %4252 = vmatpush1.msra.mxu0 %v1875
        %4253 = vmatprep.subr.mxu0 0.0
        %4254 = vmatpush1.msra.mxu0 %v1874
        %4255 = vmatprep.subr.mxu0 0.0
        %4256 = vmatpush1.msra.mxu0 %v1873
        %4257 = vmatprep.subr.mxu0 0.0
        %4258 = vmatpush1.msra.mxu0 %v1872
        %4259 = vmatprep.subr.mxu0 0.0
        %4260 = vmatpush1.msra.mxu0 %v1871
        %4261 = vmatprep.subr.mxu0 0.0
        %4262 = vmatpush1.msra.mxu0 %v1870
        %4263 = vmatprep.subr.mxu0 0.0
        %4264 = vmatpush1.msra.mxu0 %v1869
        %4265 = vmatprep.subr.mxu0 0.0
        %4266 = vmatpush1.msra.mxu0 %v1868
        %4267 = vmatprep.subr.mxu0 0.0
        %4268 = vmatpush1.msra.mxu0 %v1867
        %4269 = vmatprep.subr.mxu0 0.0
        %4270 = vmatpush1.msra.mxu0 %v1866
        %4271 = vmatprep.subr.mxu0 0.0
        %4272 = vmatpush1.msra.mxu0 %v1865
        %4273 = vmatprep.subr.mxu0 0.0
        %4274 = vmatpush1.msra.mxu0 %v1864
        %4275 = vmatprep.subr.mxu0 0.0
        %4276 = vmatpush1.msra.mxu0 %v1863
        %4277 = vmatprep.subr.mxu0 0.0
        %4278 = vmatpush2.msra.mxu0 0.0
        %4279 = vmatprep.subr.mxu0 0.0
        %4280 = vmatpush2.msra.mxu0 0.0
        %4281 = vmatprep.subr.mxu0 0.0
        %4282 = vmatpush2.msra.mxu0 0.0
        %4283 = vmatprep.subr.mxu0 0.0
        %4284 = vmatpush2.msra.mxu0 0.0
        %4285 = vmatprep.subr.mxu0 0.0
        %4286 = vmatpush2.msra.mxu0 0.0
        %4287 = vmatprep.subr.mxu0 0.0
        %4288 = vmatpush2.msra.mxu0 0.0
        %4289 = vmatprep.subr.mxu0 0.0
        %4290 = vmatpush2.msra.mxu0 0.0
        %4291 = vmatprep.subr.mxu0 0.0
        %4292 = vmatpush2.msra.mxu0 0.0
        %4293 = vmatprep.subr.mxu0 0.0
        %4294 = vmatpush2.msra.mxu0 0.0
        %4295 = vmatprep.subr.mxu0 0.0
        %4296 = vmatpush2.msra.mxu0 0.0
        %4297 = vmatprep.subr.mxu0 0.0
        %4298 = vmatpush2.msra.mxu0 0.0
        %4299 = vmatprep.subr.mxu0 0.0
        %4300 = vmatpush2.msra.mxu0 0.0
        %4301 = vmatprep.subr.mxu0 0.0
        %4302 = vmatpush2.msra.mxu0 0.0
        %4303 = vmatprep.subr.mxu0 0.0
        %4304 = vmatpush2.msra.mxu0 0.0
        %4305 = vmatprep.subr.mxu0 0.0
        %4306 = vmatpush2.msra.mxu0 0.0
        %4307 = vmatprep.subr.mxu0 0.0
        %4308 = vmatpush2.msra.mxu0 0.0
        %4309 = vmatprep.mubr.f32.mxu0 0.0
        %4310 = vmatmul.mubr.f32.gmra.mxu0 %v4244
        %v4311 = vpop.f32.mrf.mxu0
        %v4312 = vadd.f32 0.0, %v4311
        %v4313 = vpop.f32.mrf.mxu0
        %4314 = vdwg.mxu0
        %v4315 = vrsqrt.pop %v4312
        %v4316 = vmul.f32 %v4312, %v4315
        %vm4317 = vcmp.eq.f32.partialorder %v4312, inf
        %v4318 = vsel %vm4317, %v4312, %v4316
        %vm4319 = vcmp.eq.f32.partialorder %v4312, 0.0
        %v4320 = vand.u32 %v4312, 2147483648
        %v4321 = vsel %vm4319, %v4320, %v4318
        %v4322 = vadd.f32 %v4321, 1e-06
        %v4323 = vrcp.pop %v4322
        %v4324 = vmul.f32 %v4243, %v4323
        %v4326 = vlaneseq
        %v4327 = vshrl.u32 %v4326, 7
        %v4328 = vsub.s32 0, %v4327
        %v4329 = vrot.slane %v3219, %v4328
        %v4331 = vmul.f32 %v4329, %v4324
        %v4333 = vlaneseq
        %v4334 = vshrl.u32 %v4333, 7
        %v4335 = vsub.s32 0, %v4334
        %v4336 = vrot.slane %v3220, %v4335
        %v4338 = vadd.f32 %v4331, %v4336
        %v4339 = vld [vmem:[%s1826] sm:$0xff]
        %v4340 = vld [vmem:[%s1826 + $0x8] sm:$0xff]
        %v4341 = vld [vmem:[%s1826 + $0x10] sm:$0xff]
        %v4342 = vld [vmem:[%s1826 + $0x18] sm:$0xff]
        %v4343 = vld [vmem:[%s1826 + $0x20] sm:$0xff]
        %v4344 = vld [vmem:[%s1826 + $0x28] sm:$0xff]
        %v4345 = vld [vmem:[%s1826 + $0x30] sm:$0xff]
        %v4346 = vld [vmem:[%s1826 + $0x38] sm:$0xff]
        %v4347 = vld [vmem:[%s1826 + $0x40] sm:$0xff]
        %v4348 = vld [vmem:[%s1826 + $0x48] sm:$0xff]
        %v4349 = vld [vmem:[%s1826 + $0x50] sm:$0xff]
        %v4350 = vld [vmem:[%s1826 + $0x58] sm:$0xff]
        %v4351 = vld [vmem:[%s1826 + $0x60] sm:$0xff]
        %v4352 = vld [vmem:[%s1826 + $0x68] sm:$0xff]
        %v4353 = vld [vmem:[%s1826 + $0x70] sm:$0xff]
        %v4354 = vld [vmem:[%s1826 + $0x78] sm:$0xff]
        %v4355 = vld [vmem:[%s1826 + $0x80] sm:$0xff]
        %v4356 = vld [vmem:[%s1826 + $0x88] sm:$0xff]
        %v4357 = vld [vmem:[%s1826 + $0x90] sm:$0xff]
        %v4358 = vld [vmem:[%s1826 + $0x98] sm:$0xff]
        %v4359 = vld [vmem:[%s1826 + $0xa0] sm:$0xff]
        %v4360 = vld [vmem:[%s1826 + $0xa8] sm:$0xff]
        %v4361 = vld [vmem:[%s1826 + $0xb0] sm:$0xff]
        %v4362 = vld [vmem:[%s1826 + $0xb8] sm:$0xff]
        %v4363 = vld [vmem:[%s1826 + $0xc0] sm:$0xff]
        %v4364 = vld [vmem:[%s1826 + $0xc8] sm:$0xff]
        %v4365 = vld [vmem:[%s1826 + $0xd0] sm:$0xff]
        %v4366 = vld [vmem:[%s1826 + $0xd8] sm:$0xff]
        %v4367 = vld [vmem:[%s1826 + $0xe0] sm:$0xff]
        %v4368 = vld [vmem:[%s1826 + $0xe8] sm:$0xff]
        %v4369 = vld [vmem:[%s1826 + $0xf0] sm:$0xff]
        %v4370 = vld [vmem:[%s1826 + $0xf8] sm:$0xff]
        %v4371 = vld [vmem:[%s1826 + $0x100] sm:$0xff]
        %v4372 = vld [vmem:[%s1826 + $0x108] sm:$0xff]
        %v4373 = vld [vmem:[%s1826 + $0x110] sm:$0xff]
        %v4374 = vld [vmem:[%s1826 + $0x118] sm:$0xff]
        %v4375 = vld [vmem:[%s1826 + $0x120] sm:$0xff]
        %v4376 = vld [vmem:[%s1826 + $0x128] sm:$0xff]
        %v4377 = vld [vmem:[%s1826 + $0x130] sm:$0xff]
        %v4378 = vld [vmem:[%s1826 + $0x138] sm:$0xff]
        %v4379 = vld [vmem:[%s1826 + $0x140] sm:$0xff]
        %v4380 = vld [vmem:[%s1826 + $0x148] sm:$0xff]
        %v4381 = vld [vmem:[%s1826 + $0x150] sm:$0xff]
        %v4382 = vld [vmem:[%s1826 + $0x158] sm:$0xff]
        %v4383 = vld [vmem:[%s1826 + $0x160] sm:$0xff]
        %v4384 = vld [vmem:[%s1826 + $0x168] sm:$0xff]
        %v4385 = vld [vmem:[%s1826 + $0x170] sm:$0xff]
        %v4386 = vld [vmem:[%s1826 + $0x178] sm:$0xff]
        %v4387 = vld [vmem:[%s1826 + $0x180] sm:$0xff]
        %v4388 = vld [vmem:[%s1826 + $0x188] sm:$0xff]
        %v4389 = vld [vmem:[%s1826 + $0x190] sm:$0xff]
        %v4390 = vld [vmem:[%s1826 + $0x198] sm:$0xff]
        %v4391 = vld [vmem:[%s1826 + $0x1a0] sm:$0xff]
        %v4392 = vld [vmem:[%s1826 + $0x1a8] sm:$0xff]
        %v4393 = vld [vmem:[%s1826 + $0x1b0] sm:$0xff]
        %v4394 = vld [vmem:[%s1826 + $0x1b8] sm:$0xff]
        %v4395 = vld [vmem:[%s1826 + $0x1c0] sm:$0xff]
        %v4396 = vld [vmem:[%s1826 + $0x1c8] sm:$0xff]
        %v4397 = vld [vmem:[%s1826 + $0x1d0] sm:$0xff]
        %v4398 = vld [vmem:[%s1826 + $0x1d8] sm:$0xff]
        %v4399 = vld [vmem:[%s1826 + $0x1e0] sm:$0xff]
        %v4400 = vld [vmem:[%s1826 + $0x1e8] sm:$0xff]
        %v4401 = vld [vmem:[%s1826 + $0x1f0] sm:$0xff]
        %v4402 = vld [vmem:[%s1826 + $0x1f8] sm:$0xff]
        %v4403 = vld [vmem:[%s1830] sm:$0xf]
        %v4404 = vld [vmem:[%s1835] sm:$0xff]
        %v4405 = vld [vmem:[%s1835 + $0x8] sm:$0xff]
        %v4406 = vld [vmem:[%s1835 + $0x10] sm:$0xff]
        %v4407 = vld [vmem:[%s1835 + $0x18] sm:$0xff]
        %v4408 = vld [vmem:[%s1835 + $0x20] sm:$0xff]
        %v4409 = vld [vmem:[%s1835 + $0x28] sm:$0xff]
        %v4410 = vld [vmem:[%s1835 + $0x30] sm:$0xff]
        %v4411 = vld [vmem:[%s1835 + $0x38] sm:$0xff]
        %v4412 = vld [vmem:[%s1835 + $0x40] sm:$0xff]
        %v4413 = vld [vmem:[%s1835 + $0x48] sm:$0xff]
        %v4414 = vld [vmem:[%s1835 + $0x50] sm:$0xff]
        %v4415 = vld [vmem:[%s1835 + $0x58] sm:$0xff]
        %v4416 = vld [vmem:[%s1835 + $0x60] sm:$0xff]
        %v4417 = vld [vmem:[%s1835 + $0x68] sm:$0xff]
        %v4418 = vld [vmem:[%s1835 + $0x70] sm:$0xff]
        %v4419 = vld [vmem:[%s1835 + $0x78] sm:$0xff]
        %v4420 = vld [vmem:[%s1835 + $0x80] sm:$0xff]
        %v4421 = vld [vmem:[%s1835 + $0x88] sm:$0xff]
        %v4422 = vld [vmem:[%s1835 + $0x90] sm:$0xff]
        %v4423 = vld [vmem:[%s1835 + $0x98] sm:$0xff]
        %v4424 = vld [vmem:[%s1835 + $0xa0] sm:$0xff]
        %v4425 = vld [vmem:[%s1835 + $0xa8] sm:$0xff]
        %v4426 = vld [vmem:[%s1835 + $0xb0] sm:$0xff]
        %v4427 = vld [vmem:[%s1835 + $0xb8] sm:$0xff]
        %v4428 = vld [vmem:[%s1835 + $0xc0] sm:$0xff]
        %v4429 = vld [vmem:[%s1835 + $0xc8] sm:$0xff]
        %v4430 = vld [vmem:[%s1835 + $0xd0] sm:$0xff]
        %v4431 = vld [vmem:[%s1835 + $0xd8] sm:$0xff]
        %v4432 = vld [vmem:[%s1835 + $0xe0] sm:$0xff]
        %v4433 = vld [vmem:[%s1835 + $0xe8] sm:$0xff]
        %v4434 = vld [vmem:[%s1835 + $0xf0] sm:$0xff]
        %v4435 = vld [vmem:[%s1835 + $0xf8] sm:$0xff]
        %v4436 = vld [vmem:[%s1835 + $0x100] sm:$0xff]
        %v4437 = vld [vmem:[%s1835 + $0x108] sm:$0xff]
        %v4438 = vld [vmem:[%s1835 + $0x110] sm:$0xff]
        %v4439 = vld [vmem:[%s1835 + $0x118] sm:$0xff]
        %v4440 = vld [vmem:[%s1835 + $0x120] sm:$0xff]
        %v4441 = vld [vmem:[%s1835 + $0x128] sm:$0xff]
        %v4442 = vld [vmem:[%s1835 + $0x130] sm:$0xff]
        %v4443 = vld [vmem:[%s1835 + $0x138] sm:$0xff]
        %v4444 = vld [vmem:[%s1835 + $0x140] sm:$0xff]
        %v4445 = vld [vmem:[%s1835 + $0x148] sm:$0xff]
        %v4446 = vld [vmem:[%s1835 + $0x150] sm:$0xff]
        %v4447 = vld [vmem:[%s1835 + $0x158] sm:$0xff]
        %v4448 = vld [vmem:[%s1835 + $0x160] sm:$0xff]
        %v4449 = vld [vmem:[%s1835 + $0x168] sm:$0xff]
        %v4450 = vld [vmem:[%s1835 + $0x170] sm:$0xff]
        %v4451 = vld [vmem:[%s1835 + $0x178] sm:$0xff]
        %v4452 = vld [vmem:[%s1835 + $0x180] sm:$0xff]
        %v4453 = vld [vmem:[%s1835 + $0x188] sm:$0xff]
        %v4454 = vld [vmem:[%s1835 + $0x190] sm:$0xff]
        %v4455 = vld [vmem:[%s1835 + $0x198] sm:$0xff]
        %v4456 = vld [vmem:[%s1835 + $0x1a0] sm:$0xff]
        %v4457 = vld [vmem:[%s1835 + $0x1a8] sm:$0xff]
        %v4458 = vld [vmem:[%s1835 + $0x1b0] sm:$0xff]
        %v4459 = vld [vmem:[%s1835 + $0x1b8] sm:$0xff]
        %v4460 = vld [vmem:[%s1835 + $0x1c0] sm:$0xff]
        %v4461 = vld [vmem:[%s1835 + $0x1c8] sm:$0xff]
        %v4462 = vld [vmem:[%s1835 + $0x1d0] sm:$0xff]
        %v4463 = vld [vmem:[%s1835 + $0x1d8] sm:$0xff]
        %v4464 = vld [vmem:[%s1835 + $0x1e0] sm:$0xff]
        %v4465 = vld [vmem:[%s1835 + $0x1e8] sm:$0xff]
        %v4466 = vld [vmem:[%s1835 + $0x1f0] sm:$0xff]
        %v4467 = vld [vmem:[%s1835 + $0x1f8] sm:$0xff]
        %v4468 = vld [vmem:[%s1539] sm:$0x1]
        %v4469 = vld [vmem:[%s1547] sm:$0x1]
        %v4470 = vld [vmem:[%s1555] sm:$0x1]
        %v4472 = vlaneseq
        %v4473 = vshrl.u32 %v4472, 7
        %v4474 = vsub.s32 0, %v4473
        %v4475 = vrot.slane %v4403, %v4474
        %v4476 = vlaneseq
        %v4477 = vshrl.u32 %v4476, 7
        %v4478 = vsub.s32 1, %v4477
        %v4479 = vrot.slane %v4403, %v4478
        %v4480 = vlaneseq
        %v4481 = vshrl.u32 %v4480, 7
        %v4482 = vsub.s32 2, %v4481
        %v4483 = vrot.slane %v4403, %v4482
        %v4484 = vlaneseq
        %v4485 = vshrl.u32 %v4484, 7
        %v4486 = vsub.s32 3, %v4485
        %v4487 = vrot.slane %v4403, %v4486
        %4492 = vmatprep.subr.mxu0 %v4400
        %4493 = vmatpush1.msra.mxu0 %v4399
        %4494 = vmatprep.subr.mxu0 %v4396
        %4495 = vmatpush1.msra.mxu0 %v4395
        %4496 = vmatprep.subr.mxu0 %v4392
        %4497 = vmatpush1.msra.mxu0 %v4391
        %4498 = vmatprep.subr.mxu0 %v4388
        %4499 = vmatpush1.msra.mxu0 %v4387
        %4500 = vmatprep.subr.mxu0 %v4384
        %4501 = vmatpush1.msra.mxu0 %v4383
        %4502 = vmatprep.subr.mxu0 %v4380
        %4503 = vmatpush1.msra.mxu0 %v4379
        %4504 = vmatprep.subr.mxu0 %v4376
        %4505 = vmatpush1.msra.mxu0 %v4375
        %4506 = vmatprep.subr.mxu0 %v4372
        %4507 = vmatpush1.msra.mxu0 %v4371
        %4508 = vmatprep.subr.mxu0 %v4368
        %4509 = vmatpush1.msra.mxu0 %v4367
        %4510 = vmatprep.subr.mxu0 %v4364
        %4511 = vmatpush1.msra.mxu0 %v4363
        %4512 = vmatprep.subr.mxu0 %v4360
        %4513 = vmatpush1.msra.mxu0 %v4359
        %4514 = vmatprep.subr.mxu0 %v4356
        %4515 = vmatpush1.msra.mxu0 %v4355
        %4516 = vmatprep.subr.mxu0 %v4352
        %4517 = vmatpush1.msra.mxu0 %v4351
        %4518 = vmatprep.subr.mxu0 %v4348
        %4519 = vmatpush1.msra.mxu0 %v4347
        %4520 = vmatprep.subr.mxu0 %v4344
        %4521 = vmatpush1.msra.mxu0 %v4343
        %4522 = vmatprep.subr.mxu0 %v4340
        %4523 = vmatpush1.msra.mxu0 %v4339
        %4524 = vmatprep.subr.mxu0 0.0
        %4525 = vmatpush2.msra.mxu0 0.0
        %4526 = vmatprep.subr.mxu0 0.0
        %4527 = vmatpush2.msra.mxu0 0.0
        %4528 = vmatprep.subr.mxu0 0.0
        %4529 = vmatpush2.msra.mxu0 0.0
        %4530 = vmatprep.subr.mxu0 0.0
        %4531 = vmatpush2.msra.mxu0 0.0
        %4532 = vmatprep.subr.mxu0 0.0
        %4533 = vmatpush2.msra.mxu0 0.0
        %4534 = vmatprep.subr.mxu0 0.0
        %4535 = vmatpush2.msra.mxu0 0.0
        %4536 = vmatprep.subr.mxu0 0.0
        %4537 = vmatpush2.msra.mxu0 0.0
        %4538 = vmatprep.subr.mxu0 0.0
        %4539 = vmatpush2.msra.mxu0 0.0
        %4540 = vmatprep.subr.mxu0 0.0
        %4541 = vmatpush2.msra.mxu0 0.0
        %4542 = vmatprep.subr.mxu0 0.0
        %4543 = vmatpush2.msra.mxu0 0.0
        %4544 = vmatprep.subr.mxu0 0.0
        %4545 = vmatpush2.msra.mxu0 0.0
        %4546 = vmatprep.subr.mxu0 0.0
        %4547 = vmatpush2.msra.mxu0 0.0
        %4548 = vmatprep.subr.mxu0 0.0
        %4549 = vmatpush2.msra.mxu0 0.0
        %4550 = vmatprep.subr.mxu0 0.0
        %4551 = vmatpush2.msra.mxu0 0.0
        %4552 = vmatprep.subr.mxu0 0.0
        %4553 = vmatpush2.msra.mxu0 0.0
        %4554 = vmatprep.subr.mxu0 0.0
        %4555 = vmatpush2.msra.mxu0 0.0
        %4556 = vmatprep.mubr.f32.mxu0 0.0
        %4557 = vmatmul.mubr.f32.gmra.mxu0 %v4338
        %v4558 = vpop.f32.mrf.mxu0
        %v4559 = vadd.f32 %v4475, %v4558
        %v4560 = vpop.f32.mrf.mxu0
        %v4561 = vadd.f32 %v4479, %v4560
        %4562 = vdwg.mxu0
        %4563 = vmatprep.subr.mxu0 %v4402
        %4564 = vmatpush1.msra.mxu0 %v4401
        %4565 = vmatprep.subr.mxu0 %v4398
        %4566 = vmatpush1.msra.mxu0 %v4397
        %4567 = vmatprep.subr.mxu0 %v4394
        %4568 = vmatpush1.msra.mxu0 %v4393
        %4569 = vmatprep.subr.mxu0 %v4390
        %4570 = vmatpush1.msra.mxu0 %v4389
        %4571 = vmatprep.subr.mxu0 %v4386
        %4572 = vmatpush1.msra.mxu0 %v4385
        %4573 = vmatprep.subr.mxu0 %v4382
        %4574 = vmatpush1.msra.mxu0 %v4381
        %4575 = vmatprep.subr.mxu0 %v4378
        %4576 = vmatpush1.msra.mxu0 %v4377
        %4577 = vmatprep.subr.mxu0 %v4374
        %4578 = vmatpush1.msra.mxu0 %v4373
        %4579 = vmatprep.subr.mxu0 %v4370
        %4580 = vmatpush1.msra.mxu0 %v4369
        %4581 = vmatprep.subr.mxu0 %v4366
        %4582 = vmatpush1.msra.mxu0 %v4365
        %4583 = vmatprep.subr.mxu0 %v4362
        %4584 = vmatpush1.msra.mxu0 %v4361
        %4585 = vmatprep.subr.mxu0 %v4358
        %4586 = vmatpush1.msra.mxu0 %v4357
        %4587 = vmatprep.subr.mxu0 %v4354
        %4588 = vmatpush1.msra.mxu0 %v4353
        %4589 = vmatprep.subr.mxu0 %v4350
        %4590 = vmatpush1.msra.mxu0 %v4349
        %4591 = vmatprep.subr.mxu0 %v4346
        %4592 = vmatpush1.msra.mxu0 %v4345
        %4593 = vmatprep.subr.mxu0 %v4342
        %4594 = vmatpush1.msra.mxu0 %v4341
        %4595 = vmatprep.subr.mxu0 0.0
        %4596 = vmatpush2.msra.mxu0 0.0
        %4597 = vmatprep.subr.mxu0 0.0
        %4598 = vmatpush2.msra.mxu0 0.0
        %4599 = vmatprep.subr.mxu0 0.0
        %4600 = vmatpush2.msra.mxu0 0.0
        %4601 = vmatprep.subr.mxu0 0.0
        %4602 = vmatpush2.msra.mxu0 0.0
        %4603 = vmatprep.subr.mxu0 0.0
        %4604 = vmatpush2.msra.mxu0 0.0
        %4605 = vmatprep.subr.mxu0 0.0
        %4606 = vmatpush2.msra.mxu0 0.0
        %4607 = vmatprep.subr.mxu0 0.0
        %4608 = vmatpush2.msra.mxu0 0.0
        %4609 = vmatprep.subr.mxu0 0.0
        %4610 = vmatpush2.msra.mxu0 0.0
        %4611 = vmatprep.subr.mxu0 0.0
        %4612 = vmatpush2.msra.mxu0 0.0
        %4613 = vmatprep.subr.mxu0 0.0
        %4614 = vmatpush2.msra.mxu0 0.0
        %4615 = vmatprep.subr.mxu0 0.0
        %4616 = vmatpush2.msra.mxu0 0.0
        %4617 = vmatprep.subr.mxu0 0.0
        %4618 = vmatpush2.msra.mxu0 0.0
        %4619 = vmatprep.subr.mxu0 0.0
        %4620 = vmatpush2.msra.mxu0 0.0
        %4621 = vmatprep.subr.mxu0 0.0
        %4622 = vmatpush2.msra.mxu0 0.0
        %4623 = vmatprep.subr.mxu0 0.0
        %4624 = vmatpush2.msra.mxu0 0.0
        %4625 = vmatprep.subr.mxu0 0.0
        %4626 = vmatpush2.msra.mxu0 0.0
        %4627 = vmatprep.mubr.f32.mxu0 0.0
        %4628 = vmatmul.mubr.f32.gmra.mxu0 %v4338
        %v4629 = vpop.f32.mrf.mxu0
        %v4630 = vadd.f32 %v4483, %v4629
        %v4631 = vpop.f32.mrf.mxu0
        %v4632 = vadd.f32 %v4487, %v4631
        %4633 = vdwg.mxu0
        %v4634 = vmax.f32 %v4559, 0.0
        %v4635 = vmax.f32 %v4561, 0.0
        %v4636 = vmax.f32 %v4630, 0.0
        %v4637 = vmax.f32 %v4632, 0.0
        %v4639 = vlaneseq
        %v4640 = vshrl.u32 %v4639, 7
        %v4641 = vsub.s32 0, %v4640
        %v4642 = vrot.slane %v4468, %v4641
        %4644 = vmatprep.subr.mxu0 0.0
        %4645 = vmatpush1.msra.mxu0 %v4419
        %4646 = vmatprep.subr.mxu0 0.0
        %4647 = vmatpush1.msra.mxu0 %v4418
        %4648 = vmatprep.subr.mxu0 0.0
        %4649 = vmatpush1.msra.mxu0 %v4417
        %4650 = vmatprep.subr.mxu0 0.0
        %4651 = vmatpush1.msra.mxu0 %v4416
        %4652 = vmatprep.subr.mxu0 0.0
        %4653 = vmatpush1.msra.mxu0 %v4415
        %4654 = vmatprep.subr.mxu0 0.0
        %4655 = vmatpush1.msra.mxu0 %v4414
        %4656 = vmatprep.subr.mxu0 0.0
        %4657 = vmatpush1.msra.mxu0 %v4413
        %4658 = vmatprep.subr.mxu0 0.0
        %4659 = vmatpush1.msra.mxu0 %v4412
        %4660 = vmatprep.subr.mxu0 0.0
        %4661 = vmatpush1.msra.mxu0 %v4411
        %4662 = vmatprep.subr.mxu0 0.0
        %4663 = vmatpush1.msra.mxu0 %v4410
        %4664 = vmatprep.subr.mxu0 0.0
        %4665 = vmatpush1.msra.mxu0 %v4409
        %4666 = vmatprep.subr.mxu0 0.0
        %4667 = vmatpush1.msra.mxu0 %v4408
        %4668 = vmatprep.subr.mxu0 0.0
        %4669 = vmatpush1.msra.mxu0 %v4407
        %4670 = vmatprep.subr.mxu0 0.0
        %4671 = vmatpush1.msra.mxu0 %v4406
        %4672 = vmatprep.subr.mxu0 0.0
        %4673 = vmatpush1.msra.mxu0 %v4405
        %4674 = vmatprep.subr.mxu0 0.0
        %4675 = vmatpush1.msra.mxu0 %v4404
        %4676 = vmatprep.subr.mxu0 0.0
        %4677 = vmatpush2.msra.mxu0 %v4435
        %4678 = vmatprep.subr.mxu0 0.0
        %4679 = vmatpush2.msra.mxu0 %v4434
        %4680 = vmatprep.subr.mxu0 0.0
        %4681 = vmatpush2.msra.mxu0 %v4433
        %4682 = vmatprep.subr.mxu0 0.0
        %4683 = vmatpush2.msra.mxu0 %v4432
        %4684 = vmatprep.subr.mxu0 0.0
        %4685 = vmatpush2.msra.mxu0 %v4431
        %4686 = vmatprep.subr.mxu0 0.0
        %4687 = vmatpush2.msra.mxu0 %v4430
        %4688 = vmatprep.subr.mxu0 0.0
        %4689 = vmatpush2.msra.mxu0 %v4429
        %4690 = vmatprep.subr.mxu0 0.0
        %4691 = vmatpush2.msra.mxu0 %v4428
        %4692 = vmatprep.subr.mxu0 0.0
        %4693 = vmatpush2.msra.mxu0 %v4427
        %4694 = vmatprep.subr.mxu0 0.0
        %4695 = vmatpush2.msra.mxu0 %v4426
        %4696 = vmatprep.subr.mxu0 0.0
        %4697 = vmatpush2.msra.mxu0 %v4425
        %4698 = vmatprep.subr.mxu0 0.0
        %4699 = vmatpush2.msra.mxu0 %v4424
        %4700 = vmatprep.subr.mxu0 0.0
        %4701 = vmatpush2.msra.mxu0 %v4423
        %4702 = vmatprep.subr.mxu0 0.0
        %4703 = vmatpush2.msra.mxu0 %v4422
        %4704 = vmatprep.subr.mxu0 0.0
        %4705 = vmatpush2.msra.mxu0 %v4421
        %4706 = vmatprep.subr.mxu0 0.0
        %4707 = vmatpush2.msra.mxu0 %v4420
        %4708 = vmatprep.mubr.f32.mxu0 %v4635
        %4709 = vmatmul.mubr.f32.gmra.mxu0 %v4634
        %v4710 = vpop.f32.mrf.mxu0
        %v4711 = vadd.f32 %v4642, %v4710
        %v4712 = vpop.f32.mrf.mxu0
        %4713 = vdwg.mxu0
        %4714 = vmatprep.subr.mxu0 0.0
        %4715 = vmatpush1.msra.mxu0 %v4451
        %4716 = vmatprep.subr.mxu0 0.0
        %4717 = vmatpush1.msra.mxu0 %v4450
        %4718 = vmatprep.subr.mxu0 0.0
        %4719 = vmatpush1.msra.mxu0 %v4449
        %4720 = vmatprep.subr.mxu0 0.0
        %4721 = vmatpush1.msra.mxu0 %v4448
        %4722 = vmatprep.subr.mxu0 0.0
        %4723 = vmatpush1.msra.mxu0 %v4447
        %4724 = vmatprep.subr.mxu0 0.0
        %4725 = vmatpush1.msra.mxu0 %v4446
        %4726 = vmatprep.subr.mxu0 0.0
        %4727 = vmatpush1.msra.mxu0 %v4445
        %4728 = vmatprep.subr.mxu0 0.0
        %4729 = vmatpush1.msra.mxu0 %v4444
        %4730 = vmatprep.subr.mxu0 0.0
        %4731 = vmatpush1.msra.mxu0 %v4443
        %4732 = vmatprep.subr.mxu0 0.0
        %4733 = vmatpush1.msra.mxu0 %v4442
        %4734 = vmatprep.subr.mxu0 0.0
        %4735 = vmatpush1.msra.mxu0 %v4441
        %4736 = vmatprep.subr.mxu0 0.0
        %4737 = vmatpush1.msra.mxu0 %v4440
        %4738 = vmatprep.subr.mxu0 0.0
        %4739 = vmatpush1.msra.mxu0 %v4439
        %4740 = vmatprep.subr.mxu0 0.0
        %4741 = vmatpush1.msra.mxu0 %v4438
        %4742 = vmatprep.subr.mxu0 0.0
        %4743 = vmatpush1.msra.mxu0 %v4437
        %4744 = vmatprep.subr.mxu0 0.0
        %4745 = vmatpush1.msra.mxu0 %v4436
        %4746 = vmatprep.subr.mxu0 0.0
        %4747 = vmatpush2.msra.mxu0 %v4467
        %4748 = vmatprep.subr.mxu0 0.0
        %4749 = vmatpush2.msra.mxu0 %v4466
        %4750 = vmatprep.subr.mxu0 0.0
        %4751 = vmatpush2.msra.mxu0 %v4465
        %4752 = vmatprep.subr.mxu0 0.0
        %4753 = vmatpush2.msra.mxu0 %v4464
        %4754 = vmatprep.subr.mxu0 0.0
        %4755 = vmatpush2.msra.mxu0 %v4463
        %4756 = vmatprep.subr.mxu0 0.0
        %4757 = vmatpush2.msra.mxu0 %v4462
        %4758 = vmatprep.subr.mxu0 0.0
        %4759 = vmatpush2.msra.mxu0 %v4461
        %4760 = vmatprep.subr.mxu0 0.0
        %4761 = vmatpush2.msra.mxu0 %v4460
        %4762 = vmatprep.subr.mxu0 0.0
        %4763 = vmatpush2.msra.mxu0 %v4459
        %4764 = vmatprep.subr.mxu0 0.0
        %4765 = vmatpush2.msra.mxu0 %v4458
        %4766 = vmatprep.subr.mxu0 0.0
        %4767 = vmatpush2.msra.mxu0 %v4457
        %4768 = vmatprep.subr.mxu0 0.0
        %4769 = vmatpush2.msra.mxu0 %v4456
        %4770 = vmatprep.subr.mxu0 0.0
        %4771 = vmatpush2.msra.mxu0 %v4455
        %4772 = vmatprep.subr.mxu0 0.0
        %4773 = vmatpush2.msra.mxu0 %v4454
        %4774 = vmatprep.subr.mxu0 0.0
        %4775 = vmatpush2.msra.mxu0 %v4453
        %4776 = vmatprep.subr.mxu0 0.0
        %4777 = vmatpush2.msra.mxu0 %v4452
        %4778 = vmatprep.mubr.f32.mxu0 %v4637
        %4779 = vmatmul.mubr.f32.gmra.mxu0 %v4636
        %v4780 = vpop.f32.mrf.mxu0
        %v4781 = vadd.f32 %v4711, %v4780
        %v4782 = vpop.f32.mrf.mxu0
        %4783 = vdwg.mxu0
        %v4784 = vadd.f32 %v4781, %v4338
        %4785 = vmatprep.subr.mxu0 0.0
        %4786 = vmatpush1.msra.mxu0 %v1862
        %4787 = vmatprep.subr.mxu0 0.0
        %4788 = vmatpush1.msra.mxu0 %v1861
        %4789 = vmatprep.subr.mxu0 0.0
        %4790 = vmatpush1.msra.mxu0 %v1860
        %4791 = vmatprep.subr.mxu0 0.0
        %4792 = vmatpush1.msra.mxu0 %v1859
        %4793 = vmatprep.subr.mxu0 0.0
        %4794 = vmatpush1.msra.mxu0 %v1858
        %4795 = vmatprep.subr.mxu0 0.0
        %4796 = vmatpush1.msra.mxu0 %v1857
        %4797 = vmatprep.subr.mxu0 0.0
        %4798 = vmatpush1.msra.mxu0 %v1856
        %4799 = vmatprep.subr.mxu0 0.0
        %4800 = vmatpush1.msra.mxu0 %v1855
        %4801 = vmatprep.subr.mxu0 0.0
        %4802 = vmatpush1.msra.mxu0 %v1854
        %4803 = vmatprep.subr.mxu0 0.0
        %4804 = vmatpush1.msra.mxu0 %v1853
        %4805 = vmatprep.subr.mxu0 0.0
        %4806 = vmatpush1.msra.mxu0 %v1852
        %4807 = vmatprep.subr.mxu0 0.0
        %4808 = vmatpush1.msra.mxu0 %v1851
        %4809 = vmatprep.subr.mxu0 0.0
        %4810 = vmatpush1.msra.mxu0 %v1850
        %4811 = vmatprep.subr.mxu0 0.0
        %4812 = vmatpush1.msra.mxu0 %v1849
        %4813 = vmatprep.subr.mxu0 0.0
        %4814 = vmatpush1.msra.mxu0 %v1848
        %4815 = vmatprep.subr.mxu0 0.0
        %4816 = vmatpush1.msra.mxu0 %v1847
        %4817 = vmatprep.subr.mxu0 0.0
        %4818 = vmatpush2.msra.mxu0 0.0
        %4819 = vmatprep.subr.mxu0 0.0
        %4820 = vmatpush2.msra.mxu0 0.0
        %4821 = vmatprep.subr.mxu0 0.0
        %4822 = vmatpush2.msra.mxu0 0.0
        %4823 = vmatprep.subr.mxu0 0.0
        %4824 = vmatpush2.msra.mxu0 0.0
        %4825 = vmatprep.subr.mxu0 0.0
        %4826 = vmatpush2.msra.mxu0 0.0
        %4827 = vmatprep.subr.mxu0 0.0
        %4828 = vmatpush2.msra.mxu0 0.0
        %4829 = vmatprep.subr.mxu0 0.0
        %4830 = vmatpush2.msra.mxu0 0.0
        %4831 = vmatprep.subr.mxu0 0.0
        %4832 = vmatpush2.msra.mxu0 0.0
        %4833 = vmatprep.subr.mxu0 0.0
        %4834 = vmatpush2.msra.mxu0 0.0
        %4835 = vmatprep.subr.mxu0 0.0
        %4836 = vmatpush2.msra.mxu0 0.0
        %4837 = vmatprep.subr.mxu0 0.0
        %4838 = vmatpush2.msra.mxu0 0.0
        %4839 = vmatprep.subr.mxu0 0.0
        %4840 = vmatpush2.msra.mxu0 0.0
        %4841 = vmatprep.subr.mxu0 0.0
        %4842 = vmatpush2.msra.mxu0 0.0
        %4843 = vmatprep.subr.mxu0 0.0
        %4844 = vmatpush2.msra.mxu0 0.0
        %4845 = vmatprep.subr.mxu0 0.0
        %4846 = vmatpush2.msra.mxu0 0.0
        %4847 = vmatprep.subr.mxu0 0.0
        %4848 = vmatpush2.msra.mxu0 0.0
        %4849 = vmatprep.mubr.f32.mxu0 0.0
        %4850 = vmatmul.mubr.f32.gmra.mxu0 %v4784
        %v4851 = vpop.f32.mrf.mxu0
        %v4852 = vadd.f32 0.0, %v4851
        %v4853 = vpop.f32.mrf.mxu0
        %4854 = vdwg.mxu0
        %v4855 = vsub.f32 %v4784, %v4852
        %v4856 = vmul.f32 %v4855, %v4855
        %4857 = vmatprep.subr.mxu0 0.0
        %4858 = vmatpush1.msra.mxu0 %v1878
        %4859 = vmatprep.subr.mxu0 0.0
        %4860 = vmatpush1.msra.mxu0 %v1877
        %4861 = vmatprep.subr.mxu0 0.0
        %4862 = vmatpush1.msra.mxu0 %v1876
        %4863 = vmatprep.subr.mxu0 0.0
        %4864 = vmatpush1.msra.mxu0 %v1875
        %4865 = vmatprep.subr.mxu0 0.0
        %4866 = vmatpush1.msra.mxu0 %v1874
        %4867 = vmatprep.subr.mxu0 0.0
        %4868 = vmatpush1.msra.mxu0 %v1873
        %4869 = vmatprep.subr.mxu0 0.0
        %4870 = vmatpush1.msra.mxu0 %v1872
        %4871 = vmatprep.subr.mxu0 0.0
        %4872 = vmatpush1.msra.mxu0 %v1871
        %4873 = vmatprep.subr.mxu0 0.0
        %4874 = vmatpush1.msra.mxu0 %v1870
        %4875 = vmatprep.subr.mxu0 0.0
        %4876 = vmatpush1.msra.mxu0 %v1869
        %4877 = vmatprep.subr.mxu0 0.0
        %4878 = vmatpush1.msra.mxu0 %v1868
        %4879 = vmatprep.subr.mxu0 0.0
        %4880 = vmatpush1.msra.mxu0 %v1867
        %4881 = vmatprep.subr.mxu0 0.0
        %4882 = vmatpush1.msra.mxu0 %v1866
        %4883 = vmatprep.subr.mxu0 0.0
        %4884 = vmatpush1.msra.mxu0 %v1865
        %4885 = vmatprep.subr.mxu0 0.0
        %4886 = vmatpush1.msra.mxu0 %v1864
        %4887 = vmatprep.subr.mxu0 0.0
        %4888 = vmatpush1.msra.mxu0 %v1863
        %4889 = vmatprep.subr.mxu0 0.0
        %4890 = vmatpush2.msra.mxu0 0.0
        %4891 = vmatprep.subr.mxu0 0.0
        %4892 = vmatpush2.msra.mxu0 0.0
        %4893 = vmatprep.subr.mxu0 0.0
        %4894 = vmatpush2.msra.mxu0 0.0
        %4895 = vmatprep.subr.mxu0 0.0
        %4896 = vmatpush2.msra.mxu0 0.0
        %4897 = vmatprep.subr.mxu0 0.0
        %4898 = vmatpush2.msra.mxu0 0.0
        %4899 = vmatprep.subr.mxu0 0.0
        %4900 = vmatpush2.msra.mxu0 0.0
        %4901 = vmatprep.subr.mxu0 0.0
        %4902 = vmatpush2.msra.mxu0 0.0
        %4903 = vmatprep.subr.mxu0 0.0
        %4904 = vmatpush2.msra.mxu0 0.0
        %4905 = vmatprep.subr.mxu0 0.0
        %4906 = vmatpush2.msra.mxu0 0.0
        %4907 = vmatprep.subr.mxu0 0.0
        %4908 = vmatpush2.msra.mxu0 0.0
        %4909 = vmatprep.subr.mxu0 0.0
        %4910 = vmatpush2.msra.mxu0 0.0
        %4911 = vmatprep.subr.mxu0 0.0
        %4912 = vmatpush2.msra.mxu0 0.0
        %4913 = vmatprep.subr.mxu0 0.0
        %4914 = vmatpush2.msra.mxu0 0.0
        %4915 = vmatprep.subr.mxu0 0.0
        %4916 = vmatpush2.msra.mxu0 0.0
        %4917 = vmatprep.subr.mxu0 0.0
        %4918 = vmatpush2.msra.mxu0 0.0
        %4919 = vmatprep.subr.mxu0 0.0
        %4920 = vmatpush2.msra.mxu0 0.0
        %4921 = vmatprep.mubr.f32.mxu0 0.0
        %4922 = vmatmul.mubr.f32.gmra.mxu0 %v4856
        %v4923 = vpop.f32.mrf.mxu0
        %v4924 = vadd.f32 0.0, %v4923
        %v4925 = vpop.f32.mrf.mxu0
        %4926 = vdwg.mxu0
        %v4927 = vrsqrt.pop %v4924
        %v4928 = vmul.f32 %v4924, %v4927
        %vm4929 = vcmp.eq.f32.partialorder %v4924, inf
        %v4930 = vsel %vm4929, %v4924, %v4928
        %vm4931 = vcmp.eq.f32.partialorder %v4924, 0.0
        %v4932 = vand.u32 %v4924, 2147483648
        %v4933 = vsel %vm4931, %v4932, %v4930
        %v4934 = vadd.f32 %v4933, 1e-06
        %v4935 = vrcp.pop %v4934
        %v4936 = vmul.f32 %v4855, %v4935
        %v4938 = vlaneseq
        %v4939 = vshrl.u32 %v4938, 7
        %v4940 = vsub.s32 0, %v4939
        %v4941 = vrot.slane %v4469, %v4940
        %v4943 = vmul.f32 %v4941, %v4936
        %v4945 = vlaneseq
        %v4946 = vshrl.u32 %v4945, 7
        %v4947 = vsub.s32 0, %v4946
        %v4948 = vrot.slane %v4470, %v4947
        %v4950 = vadd.f32 %v4943, %v4948
        %4951 = vst [vmem:[#allocation2] sm:$0x3f] %v4950
        %p4952 = scmp.eq.s32.totalorder %s113, 1
        // Predicated region
        $region225: #{mca_ed_forward.3} parent=163 // pred_check
          %p4953 = pneg %p4952
        $region226: #{mca_ed_forward.3} parent=163 // pred_check_branch
          %4955 = sbr.rel (%p4953) target = $region228
        $region227: #{mca_ed_forward.3} parent=163 // pred_region
          %4956 = vst [vmem:[%s1839] sm:$0x3f] %v4950
        $region228: #{mca_ed_forward.3} parent=163 // pred_fallthru
          _
        %p4957 = scmp.lt.s32.totalorder %s112, 1
        %s4958 = scalar_select %p4957, %s112, 1
        %s4959 = smul.addr %s4958, 8
        %s4960 = scalar_lea.vmem %s73, %s4959
        // Predicated region
        $region229: #{mca_ed_forward.3} parent=163 // pred_check
          %p4961 = pneg %p1044
        $region230: #{mca_ed_forward.3} parent=163 // pred_check_branch
          %4963 = sbr.rel (%p4961) target = $region232
        $region231: #{mca_ed_forward.3} parent=163 // pred_region
          _
        $region232: #{mca_ed_forward.3} parent=163 // pred_fallthru
          _
      $region164: #{mca_ed_forward.3} parent=5 // pred_fallthru
        _
      %p4964 = scmp.le.s32.totalorder 2, %s103
      // Predicated region
      $region233: #{mca_ed_forward.3} parent=5 // pred_check
        %p4965 = pneg %p4964
      $region234: #{mca_ed_forward.3} parent=5 // pred_check_branch
        %4967 = sbr.rel (%p4965) target = $region236
      $region235: #{mca_ed_forward.3} parent=5 // pred_region
        %s4968 = ssub.s32 %s103, 2
        // Predicated region
        $region237: #{mca_ed_forward.3} parent=235 // pred_check
          %p4969 = pneg %p1050
        $region238: #{mca_ed_forward.3} parent=235 // pred_check_branch
          %4971 = sbr.rel (%p4969) target = $region240
        $region239: #{mca_ed_forward.3} parent=235 // pred_region
          %p4972 = scmp.lt.s32.totalorder %s114, 1
          %s4973 = scalar_select %p4972, %s114, 1
          %s4974 = smul.addr %s4973, 8
          %s4975 = scalar_lea.vmem %s73, %s4974
        $region240: #{mca_ed_forward.3} parent=235 // pred_fallthru
          _
      $region236: #{mca_ed_forward.3} parent=5 // pred_fallthru
        _
    $region6: #{mca_ed_forward.3} parent=1 // loop_footer
      %s107 = sadd.s32 1, %s103
    $region7: #{mca_ed_forward.3} parent=1 // loop_footer_branch
      %102 = sbr.rel target = $region3
    $region8: #{mca_ed_forward.3} parent=1 // loop_exit
      _
    %4976 = vsyncpa [#allocation4], 1
    %s4977 = scalar_lea.sflag [#allocation4], 1
    %4978 = vsyncpa %s4977, 1
    %4979 = vsyncpa [#allocation6], 1
    %s4980 = scalar_lea.sflag [#allocation6], 1
    %4981 = vsyncpa %s4980, 1
    %4982 = vsyncpa [#allocation9], 1
    %s4983 = scalar_lea.sflag [#allocation9], 1
    %4984 = vsyncpa %s4983, 1
    %4985 = vsyncpa [#allocation12], 1
    %s4986 = scalar_lea.sflag [#allocation12], 1
    %4987 = vsyncpa %s4986, 1
    %4988 = vsyncpa [#allocation15], 1
    %s4989 = scalar_lea.sflag [#allocation15], 1
    %4990 = vsyncpa %s4989, 1
    %4991 = vsyncpa [#allocation18], 1
    %s4992 = scalar_lea.sflag [#allocation18], 1
    %4993 = vsyncpa %s4992, 1
    %4994 = vsyncpa [#allocation21], 1
    %s4995 = scalar_lea.sflag [#allocation21], 1
    %4996 = vsyncpa %s4995, 1
    %4997 = vsyncpa [#allocation24], 1
    %s4998 = scalar_lea.sflag [#allocation24], 1
    %4999 = vsyncpa %s4998, 1

</llo_original>
